<compile_context>
chip_gen: v7x
topology: tpu7x:2x2x1
jax: 0.10.0
libtpu: 0.0.40
codegen_flags: <defaults>
</compile_context>

<pallas_src>
import functools
import math

import jax
import jax.numpy as jnp
from jax.experimental import pallas as pl

RMS_EPS = 1e-6          # LlamaConfig.rms_norm_eps default
ROPE_THETA = 10000.0    # LlamaConfig.rope_theta default

# Synthetic model config (small shapes; the reference loads a pretrained
# checkpoint, which we replace with deterministic random init).
VOCAB = 256
HIDDEN = 64
N_HEADS = 4
HEAD_DIM = HIDDEN // N_HEADS
INTER = 128
N_LAYERS = 6
AUDIO_VOCAB = 16386
N_CODEBOOKS = 8


# --------------------------- fused Pallas kernel ----------------------------

def _fused_trunk_kernel(
    hidden_ref,   # (B*S, H)    f32   input hidden states (tok emb + audio sum)
    cosw_ref,     # (B*S, H)    f32   rotary cos, tiled over heads & batch
    sinw_ref,     # (B*S, H)    f32   rotary sin
    mask_ref,     # (B, S, S)   f32   combined causal + padding additive bias
    ln1_ref,      # (L, 1, H)   f32   input_layernorm weights
    wqkvr_ref,    # (L, H, 5H)  bf16  [q*scl | rot(q)*scl | k | rot(k) | v]
    wo_ref,       # (L, H, H)   bf16  output projection
    ln2_ref,      # (L, 1, H)   f32   post_attention_layernorm weights
    wgu_ref,      # (L, H, 2I)  bf16  fused [gate | up] projection
    wd_ref,       # (L, I, H)   bf16  down projection
    normw_ref,    # (1, H)      f32   final RMSNorm weight
    out_ref,      # (B*S, H)    f32
    *, n_layers, n_heads, head_dim, batch, seq, hidden, inter, eps,
):
    bs = batch * seq
    H = hidden

    x = hidden_ref[...].astype(jnp.float32)        # (B*S, H) residual stream
    cosw = cosw_ref[...]                           # (B*S, H)
    sinw = sinw_ref[...]
    mask = mask_ref[...]                           # (B, S, S) additive bias

    def rmsnorm(v, w):                             # v: (M, H), w: (1, H)
        var = jnp.mean(v * v, axis=-1, keepdims=True)
        return v * jax.lax.rsqrt(var + eps) * w

    for l in range(n_layers):
        # ------------------------- self-attention -------------------------
        xn = rmsnorm(x, ln1_ref[l])                                      # (B*S, H)
        qkv = jnp.dot(xn.astype(jnp.bfloat16), wqkvr_ref[l],
                      preferred_element_type=jnp.float32)                # (B*S, 5H)

        # RoPE: rotate_half already folded into the weight's 2nd/4th blocks,
        # so rotation is purely elementwise here (VPU only, no lane shuffles).
        q = qkv[:, 0 * H:1 * H] * cosw + qkv[:, 1 * H:2 * H] * sinw      # scaled
        k = qkv[:, 2 * H:3 * H] * cosw + qkv[:, 3 * H:4 * H] * sinw
        v = qkv[:, 4 * H:5 * H]

        q3 = q.astype(jnp.bfloat16).reshape(batch, seq, H)               # (B,S,H)
        k3 = k.astype(jnp.bfloat16).reshape(batch, seq, H)
        v3 = v.astype(jnp.bfloat16).reshape(batch, seq, H)

        head_outs = []
        for h in range(n_heads):
            c0 = h * head_dim
            s = jnp.einsum('bqd,bkd->bqk',
                           q3[:, :, c0:c0 + head_dim],
                           k3[:, :, c0:c0 + head_dim],
                           preferred_element_type=jnp.float32)           # (B,S,S)
            s = s + mask                     # causal + padding bias, one add
            s = s - jnp.max(s, axis=-1, keepdims=True)
            p = jnp.exp(s)
            p = p * pl.reciprocal(jnp.sum(p, axis=-1, keepdims=True),
                                  approx=True)
            head_outs.append(
                jnp.einsum('bqk,bkd->bqd', p.astype(jnp.bfloat16),
                           v3[:, :, c0:c0 + head_dim],
                           preferred_element_type=jnp.float32))          # (B,S,hd)
        attn = jnp.concatenate(head_outs, axis=-1).reshape(bs, H)        # (B*S, H)

        x = x + jnp.dot(attn.astype(jnp.bfloat16), wo_ref[l],
                        preferred_element_type=jnp.float32)

        # ----------------------------- SwiGLU MLP --------------------------
        xn2 = rmsnorm(x, ln2_ref[l])
        gu = jnp.dot(xn2.astype(jnp.bfloat16), wgu_ref[l],
                     preferred_element_type=jnp.float32)                 # (B*S, 2I)
        g = gu[:, :inter]                    # 128-lane-aligned slice (free)
        u = gu[:, inter:]
        hmid = (g * jax.nn.sigmoid(g)) * u
        x = x + jnp.dot(hmid.astype(jnp.bfloat16), wd_ref[l],
                        preferred_element_type=jnp.float32)

    # final RMSNorm
    # TODO(synk): for real Llama sizes, present a lane-dense (multiple-of-128)
    # output slab and add a "parallel" grid axis over rows (v7x: 2 TensorCores)
    # plus per-layer weight pipelining for v7x's 64 MiB VMEM.
    out_ref[...] = rmsnorm(x, normw_ref[...]).astype(out_ref.dtype)


def fused_trunk(hidden2d, cosw, sinw, mask, params, *, batch, seq):
    bs, h = hidden2d.shape
    kernel = functools.partial(
        _fused_trunk_kernel,
        n_layers=N_LAYERS, n_heads=N_HEADS, head_dim=HEAD_DIM,
        batch=batch, seq=seq, hidden=h, inter=INTER, eps=RMS_EPS,
    )
    # Single invocation, everything VMEM-resident (weights ~0.6 MB bf16).
    return pl.pallas_call(
        kernel,
        out_shape=jax.ShapeDtypeStruct((bs, h), hidden2d.dtype),
    )(hidden2d, cosw, sinw, mask,
      params["ln1"], params["wqkvr"], params["wo"],
      params["ln2"], params["wgu"], params["wd"], params["norm_w"])


# ------------------------- host-side weight prep ----------------------------

def _rotate_half_matrix(n_heads, head_dim):
    """R such that t @ R == rotate_half(t) per head (block-diagonal over heads)."""
    half = head_dim // 2
    eye = jnp.eye(half, dtype=jnp.float32)
    z = jnp.zeros((half, half), jnp.float32)
    # out[j < half]  = -t[half + j]   ;   out[half + j] = t[j]
    r = jnp.block([[z, eye], [-eye, z]])                   # (hd, hd)
    return jnp.kron(jnp.eye(n_heads, dtype=jnp.float32), r)  # (H, H)


def prepare_params(raw):
    """One-time transform of raw weights into kernel-ready fused bf16 weights."""
    H = HIDDEN
    scale = 1.0 / math.sqrt(HEAD_DIM)
    R = _rotate_half_matrix(N_HEADS, HEAD_DIM)             # (H, H)

    wqkv = raw["wqkv"]                                     # (L, H, 3H)
    wq = wqkv[:, :, 0:H] * scale                           # fold attention scale
    wk = wqkv[:, :, H:2 * H]
    wv = wqkv[:, :, 2 * H:3 * H]
    wq_rot = jnp.einsum("lij,jk->lik", wq, R)              # rotate_half folded in
    wk_rot = jnp.einsum("lij,jk->lik", wk, R)
    wqkvr = jnp.concatenate([wq, wq_rot, wk, wk_rot, wv], axis=-1)   # (L, H, 5H)
    wgu = jnp.concatenate([raw["wg"], raw["wu"]], axis=-1)           # (L, H, 2I)

    return dict(
        embed_tokens=raw["embed_tokens"],
        audio_embed=raw["audio_embed"],
        token_weights=raw["token_weights"],
        ln1=raw["ln1"], ln2=raw["ln2"], norm_w=raw["norm_w"],
        wqkvr=wqkvr.astype(jnp.bfloat16),
        wo=raw["wo"].astype(jnp.bfloat16),
        wgu=wgu.astype(jnp.bfloat16),
        wd=raw["wd"].astype(jnp.bfloat16),
    )


# ------------------------------ model (glue) --------------------------------

def llama_sub_model_forward(kparams, input_ids, audio_ids=None,
                            attention_mask=None):
    b, s = input_ids.shape
    h = HIDDEN

    # token embedding gather (glue, stays in JAX)
    hidden = jnp.take(kparams["embed_tokens"], input_ids, axis=0)        # (b, s, h)

    if audio_ids is not None:
        # add_tensor[:, i] = 2048 * i  (i = 0..7)
        offsets = (jnp.arange(N_CODEBOOKS, dtype=audio_ids.dtype) * 2048)[None, :, None]
        aid = audio_ids + offsets                                        # (b, 8, s)
        audio_emb = jnp.take(kparams["audio_embed"], aid, axis=0)        # (b, 8, s, h)
        hidden = hidden + jnp.einsum("bcsh,c->bsh", audio_emb,
                                     kparams["token_weights"])

    # rotary embeddings (position_ids = arange, identical across batch),
    # pre-tiled over heads and batch so the kernel RoPE is pure elementwise.
    pos = jnp.arange(s, dtype=jnp.float32)
    inv_freq = 1.0 / (ROPE_THETA ** (jnp.arange(0, HEAD_DIM, 2, dtype=jnp.float32)
                                     / HEAD_DIM))
    freqs = pos[:, None] * inv_freq[None, :]                             # (s, hd/2)
    emb = jnp.concatenate([freqs, freqs], axis=-1)                       # (s, hd)
    cosw = jnp.tile(jnp.tile(jnp.cos(emb), (1, N_HEADS)), (b, 1))        # (b*s, h)
    sinw = jnp.tile(jnp.tile(jnp.sin(emb), (1, N_HEADS)), (b, 1))

    # combined additive bias: _extend_attention_mask padding term + causal fill
    if attention_mask is not None:
        pad_bias = (1.0 - attention_mask.astype(jnp.float32)) * -10000.0  # (b, s)
    else:
        pad_bias = jnp.zeros((b, s), jnp.float32)
    causal = (jnp.arange(s)[None, :] <= jnp.arange(s)[:, None])          # (s, s)
    mask = jnp.where(causal[None, :, :], pad_bias[:, None, :], -1e30)    # (b, s, s)

    out = fused_trunk(hidden.reshape(b * s, h), cosw, sinw, mask, kparams,
                      batch=b, seq=s)
    return out.reshape(b, s, h)


def init_params(key):
    # TODO(synk): reference loads pretrained Llama weights via from_pretrained;
    # here we deterministically synthesize weights of the same structure
    # (stacked per-layer so the fused kernel can index layer l statically).
    keys = jax.random.split(key, 3 + N_LAYERS)
    embed_tokens = jax.random.normal(keys[0], (VOCAB, HIDDEN), jnp.float32) * 0.02
    limit = math.sqrt(6.0 / (AUDIO_VOCAB + HIDDEN))  # xavier_uniform_
    audio_embed = jax.random.uniform(keys[1], (AUDIO_VOCAB, HIDDEN), jnp.float32,
                                     minval=-limit, maxval=limit)
    token_weights = jnp.ones((N_CODEBOOKS,), jnp.float32)

    wqkv, wo, wg, wu, wd = [], [], [], [], []
    for i in range(N_LAYERS):
        lk = jax.random.split(keys[3 + i], 5)
        wqkv.append(jax.random.normal(lk[0], (HIDDEN, 3 * HIDDEN), jnp.float32) * 0.02)
        wo.append(jax.random.normal(lk[1], (HIDDEN, HIDDEN), jnp.float32) * 0.02)
        wg.append(jax.random.normal(lk[2], (HIDDEN, INTER), jnp.float32) * 0.02)
        wu.append(jax.random.normal(lk[3], (HIDDEN, INTER), jnp.float32) * 0.02)
        wd.append(jax.random.normal(lk[4], (INTER, HIDDEN), jnp.float32) * 0.02)

    return dict(
        embed_tokens=embed_tokens,
        audio_embed=audio_embed,
        token_weights=token_weights,
        ln1=jnp.ones((N_LAYERS, 1, HIDDEN), jnp.float32),
        ln2=jnp.ones((N_LAYERS, 1, HIDDEN), jnp.float32),
        wqkv=jnp.stack(wqkv),
        wo=jnp.stack(wo),
        wg=jnp.stack(wg),
        wu=jnp.stack(wu),
        wd=jnp.stack(wd),
        norm_w=jnp.ones((1, HIDDEN), jnp.float32),
    )


if __name__ == "__main__":
    key = jax.random.PRNGKey(0)
    pk, ik, ak = jax.random.split(key, 3)

    B, S = 2, 8
    params = prepare_params(init_params(pk))    # one-time host-side weight prep
    input_ids = jax.random.randint(ik, (B, S), 0, VOCAB, dtype=jnp.int32)
    audio_ids = jax.random.randint(ak, (B, N_CODEBOOKS, S), 0, 2048, dtype=jnp.int32)
    attention_mask = jnp.ones((B, S), jnp.float32)

    fwd = jax.jit(llama_sub_model_forward)
    out = fwd(params, input_ids, audio_ids, attention_mask)
    jax.block_until_ready(out)

    assert out.shape == (B, S, HIDDEN), out.shape
    assert out.dtype == jnp.float32
    assert bool(jnp.all(jnp.isfinite(out)))
    print("KERNEL_OK")
</pallas_src>

<mosaic_0001>
module attributes {stable_mosaic.version = 11 : i64} {
  func.func @_fused_trunk_kernel(%arg0: memref<16x64xf32, #tpu.memory_space<vmem>>, %arg1: memref<16x64xf32, #tpu.memory_space<vmem>>, %arg2: memref<16x64xf32, #tpu.memory_space<vmem>>, %arg3: memref<2x8x8xf32, #tpu.memory_space<vmem>>, %arg4: memref<6x1x64xf32, #tpu.memory_space<vmem>>, %arg5: memref<6x64x320xbf16, #tpu.memory_space<vmem>>, %arg6: memref<6x64x64xbf16, #tpu.memory_space<vmem>>, %arg7: memref<6x1x64xf32, #tpu.memory_space<vmem>>, %arg8: memref<6x64x256xbf16, #tpu.memory_space<vmem>>, %arg9: memref<6x128x64xbf16, #tpu.memory_space<vmem>>, %arg10: memref<1x64xf32, #tpu.memory_space<vmem>>, %arg11: memref<16x64xf32, #tpu.memory_space<vmem>>) attributes {dimension_semantics = [], scalar_prefetch = 0 : i64, scratch_operands = 0 : i64, tpu.core_type = #tpu.core_type<tc>} {
    %c0 = arith.constant 0 : index
    %c0_0 = arith.constant 0 : index
    %0 = vector.load %arg0[%c0, %c0_0] : memref<16x64xf32, #tpu.memory_space<vmem>>, vector<16x64xf32>
    %c0_1 = arith.constant 0 : index
    %c0_2 = arith.constant 0 : index
    %1 = vector.load %arg1[%c0_1, %c0_2] : memref<16x64xf32, #tpu.memory_space<vmem>>, vector<16x64xf32>
    %c0_3 = arith.constant 0 : index
    %c0_4 = arith.constant 0 : index
    %2 = vector.load %arg2[%c0_3, %c0_4] : memref<16x64xf32, #tpu.memory_space<vmem>>, vector<16x64xf32>
    %c0_5 = arith.constant 0 : index
    %c0_6 = arith.constant 0 : index
    %c0_7 = arith.constant 0 : index
    %3 = vector.load %arg3[%c0_5, %c0_6, %c0_7] : memref<2x8x8xf32, #tpu.memory_space<vmem>>, vector<2x8x8xf32>
    %c0_8 = arith.constant 0 : index
    %c0_9 = arith.constant 0 : index
    %c0_10 = arith.constant 0 : index
    %4 = vector.load %arg4[%c0_8, %c0_9, %c0_10] : memref<6x1x64xf32, #tpu.memory_space<vmem>>, vector<1x1x64xf32>
    %5 = vector.shape_cast %4 : vector<1x1x64xf32> to vector<1x64xf32>
    %6 = arith.mulf %0, %0 : vector<16x64xf32>
    %cst = arith.constant dense<0.000000e+00> : vector<16xf32>
    %7 = vector.multi_reduction <add>, %6, %cst [1] : vector<16x64xf32> to vector<16xf32>
    %8 = vector.shape_cast %7 : vector<16xf32> to vector<16x1xf32>
    %cst_11 = arith.constant 6.400000e+01 : f32
    %9 = vector.broadcast %cst_11 : f32 to vector<16x1xf32>
    %10 = arith.divf %8, %9 : vector<16x1xf32>
    %cst_12 = arith.constant 9.99999997E-7 : f32
    %11 = vector.broadcast %cst_12 : f32 to vector<16x1xf32>
    %12 = arith.addf %10, %11 : vector<16x1xf32>
    %13 = math.rsqrt %12 : vector<16x1xf32>
    %14 = vector.broadcast %13 : vector<16x1xf32> to vector<16x64xf32>
    %15 = arith.mulf %0, %14 : vector<16x64xf32>
    %16 = vector.broadcast %5 : vector<1x64xf32> to vector<16x64xf32>
    %17 = arith.mulf %15, %16 : vector<16x64xf32>
    %18 = arith.truncf %17 : vector<16x64xf32> to vector<16x64xbf16>
    %c0_13 = arith.constant 0 : index
    %c0_14 = arith.constant 0 : index
    %c0_15 = arith.constant 0 : index
    %19 = vector.load %arg5[%c0_13, %c0_14, %c0_15] : memref<6x64x320xbf16, #tpu.memory_space<vmem>>, vector<1x64x320xbf16>
    %20 = vector.shape_cast %19 : vector<1x64x320xbf16> to vector<64x320xbf16>
    %cst_16 = arith.constant dense<0.000000e+00> : vector<16x320xf32>
    %21 = tpu.matmul %18, %20, %cst_16 {dimension_numbers = #tpu.dot_dimension_numbers<[1], [0], [0], [1], [0, 0, 1, 1], [], []>} : vector<16x64xbf16>, vector<64x320xbf16>, vector<16x320xf32> -> vector<16x320xf32>
    %22 = vector.extract_strided_slice %21 {offsets = [0, 0], sizes = [16, 64], strides = [1, 1]} : vector<16x320xf32> to vector<16x64xf32>
    %23 = arith.mulf %22, %1 : vector<16x64xf32>
    %24 = vector.extract_strided_slice %21 {offsets = [0, 64], sizes = [16, 64], strides = [1, 1]} : vector<16x320xf32> to vector<16x64xf32>
    %25 = arith.mulf %24, %2 : vector<16x64xf32>
    %26 = arith.addf %23, %25 : vector<16x64xf32>
    %27 = vector.extract_strided_slice %21 {offsets = [0, 128], sizes = [16, 64], strides = [1, 1]} : vector<16x320xf32> to vector<16x64xf32>
    %28 = arith.mulf %27, %1 : vector<16x64xf32>
    %29 = vector.extract_strided_slice %21 {offsets = [0, 192], sizes = [16, 64], strides = [1, 1]} : vector<16x320xf32> to vector<16x64xf32>
    %30 = arith.mulf %29, %2 : vector<16x64xf32>
    %31 = arith.addf %28, %30 : vector<16x64xf32>
    %32 = vector.extract_strided_slice %21 {offsets = [0, 256], sizes = [16, 64], strides = [1, 1]} : vector<16x320xf32> to vector<16x64xf32>
    %33 = arith.truncf %26 : vector<16x64xf32> to vector<16x64xbf16>
    %34 = vector.shape_cast %33 : vector<16x64xbf16> to vector<2x8x64xbf16>
    %35 = arith.truncf %31 : vector<16x64xf32> to vector<16x64xbf16>
    %36 = vector.shape_cast %35 : vector<16x64xbf16> to vector<2x8x64xbf16>
    %37 = arith.truncf %32 : vector<16x64xf32> to vector<16x64xbf16>
    %38 = vector.shape_cast %37 : vector<16x64xbf16> to vector<2x8x64xbf16>
    %39 = vector.extract_strided_slice %34 {offsets = [0, 0, 0], sizes = [2, 8, 16], strides = [1, 1, 1]} : vector<2x8x64xbf16> to vector<2x8x16xbf16>
    %40 = vector.extract_strided_slice %36 {offsets = [0, 0, 0], sizes = [2, 8, 16], strides = [1, 1, 1]} : vector<2x8x64xbf16> to vector<2x8x16xbf16>
    "tpu.trace_start"() <{level = 10 : i32, message = "bqd,bkd->bqk"}> : () -> ()
    %cst_17 = arith.constant dense<0.000000e+00> : vector<2x8x8xf32>
    %41 = tpu.matmul %39, %40, %cst_17 {dimension_numbers = #tpu.dot_dimension_numbers<[2], [2], [1], [1], [0, 0, 0, 1, 1, 1], [0], [0]>} : vector<2x8x16xbf16>, vector<2x8x16xbf16>, vector<2x8x8xf32> -> vector<2x8x8xf32>
    "tpu.trace_stop"() : () -> ()
    %42 = arith.addf %41, %3 : vector<2x8x8xf32>
    %cst_18 = arith.constant dense<0xFF800000> : vector<2x8xf32>
    %43 = vector.multi_reduction <maximumf>, %42, %cst_18 [2] : vector<2x8x8xf32> to vector<2x8xf32>
    %44 = vector.shape_cast %43 : vector<2x8xf32> to vector<2x8x1xf32>
    %45 = vector.broadcast %44 : vector<2x8x1xf32> to vector<2x8x8xf32>
    %46 = arith.subf %42, %45 : vector<2x8x8xf32>
    %47 = math.exp %46 : vector<2x8x8xf32>
    %cst_19 = arith.constant dense<0.000000e+00> : vector<2x8xf32>
    %48 = vector.multi_reduction <add>, %47, %cst_19 [2] : vector<2x8x8xf32> to vector<2x8xf32>
    %49 = vector.shape_cast %48 : vector<2x8xf32> to vector<2x8x1xf32>
    %50 = tpu.reciprocal %49 {approx = true} : vector<2x8x1xf32> -> vector<2x8x1xf32>
    %51 = vector.broadcast %50 : vector<2x8x1xf32> to vector<2x8x8xf32>
    %52 = arith.mulf %47, %51 : vector<2x8x8xf32>
    %53 = arith.truncf %52 : vector<2x8x8xf32> to vector<2x8x8xbf16>
    %54 = vector.extract_strided_slice %38 {offsets = [0, 0, 0], sizes = [2, 8, 16], strides = [1, 1, 1]} : vector<2x8x64xbf16> to vector<2x8x16xbf16>
    "tpu.trace_start"() <{level = 10 : i32, message = "bqk,bkd->bqd"}> : () -> ()
    %cst_20 = arith.constant dense<0.000000e+00> : vector<2x8x16xf32>
    %55 = tpu.matmul %53, %54, %cst_20 {dimension_numbers = #tpu.dot_dimension_numbers<[2], [1], [1], [2], [0, 0, 0, 1, 1, 2], [0], [0]>} : vector<2x8x8xbf16>, vector<2x8x16xbf16>, vector<2x8x16xf32> -> vector<2x8x16xf32>
    "tpu.trace_stop"() : () -> ()
    %56 = vector.extract_strided_slice %34 {offsets = [0, 0, 16], sizes = [2, 8, 16], strides = [1, 1, 1]} : vector<2x8x64xbf16> to vector<2x8x16xbf16>
    %57 = vector.extract_strided_slice %36 {offsets = [0, 0, 16], sizes = [2, 8, 16], strides = [1, 1, 1]} : vector<2x8x64xbf16> to vector<2x8x16xbf16>
    "tpu.trace_start"() <{level = 10 : i32, message = "bqd,bkd->bqk"}> : () -> ()
    %cst_21 = arith.constant dense<0.000000e+00> : vector<2x8x8xf32>
    %58 = tpu.matmul %56, %57, %cst_21 {dimension_numbers = #tpu.dot_dimension_numbers<[2], [2], [1], [1], [0, 0, 0, 1, 1, 1], [0], [0]>} : vector<2x8x16xbf16>, vector<2x8x16xbf16>, vector<2x8x8xf32> -> vector<2x8x8xf32>
    "tpu.trace_stop"() : () -> ()
    %59 = arith.addf %58, %3 : vector<2x8x8xf32>
    %cst_22 = arith.constant dense<0xFF800000> : vector<2x8xf32>
    %60 = vector.multi_reduction <maximumf>, %59, %cst_22 [2] : vector<2x8x8xf32> to vector<2x8xf32>
    %61 = vector.shape_cast %60 : vector<2x8xf32> to vector<2x8x1xf32>
    %62 = vector.broadcast %61 : vector<2x8x1xf32> to vector<2x8x8xf32>
    %63 = arith.subf %59, %62 : vector<2x8x8xf32>
    %64 = math.exp %63 : vector<2x8x8xf32>
    %cst_23 = arith.constant dense<0.000000e+00> : vector<2x8xf32>
    %65 = vector.multi_reduction <add>, %64, %cst_23 [2] : vector<2x8x8xf32> to vector<2x8xf32>
    %66 = vector.shape_cast %65 : vector<2x8xf32> to vector<2x8x1xf32>
    %67 = tpu.reciprocal %66 {approx = true} : vector<2x8x1xf32> -> vector<2x8x1xf32>
    %68 = vector.broadcast %67 : vector<2x8x1xf32> to vector<2x8x8xf32>
    %69 = arith.mulf %64, %68 : vector<2x8x8xf32>
    %70 = arith.truncf %69 : vector<2x8x8xf32> to vector<2x8x8xbf16>
    %71 = vector.extract_strided_slice %38 {offsets = [0, 0, 16], sizes = [2, 8, 16], strides = [1, 1, 1]} : vector<2x8x64xbf16> to vector<2x8x16xbf16>
    "tpu.trace_start"() <{level = 10 : i32, message = "bqk,bkd->bqd"}> : () -> ()
    %cst_24 = arith.constant dense<0.000000e+00> : vector<2x8x16xf32>
    %72 = tpu.matmul %70, %71, %cst_24 {dimension_numbers = #tpu.dot_dimension_numbers<[2], [1], [1], [2], [0, 0, 0, 1, 1, 2], [0], [0]>} : vector<2x8x8xbf16>, vector<2x8x16xbf16>, vector<2x8x16xf32> -> vector<2x8x16xf32>
    "tpu.trace_stop"() : () -> ()
    %73 = vector.extract_strided_slice %34 {offsets = [0, 0, 32], sizes = [2, 8, 16], strides = [1, 1, 1]} : vector<2x8x64xbf16> to vector<2x8x16xbf16>
    %74 = vector.extract_strided_slice %36 {offsets = [0, 0, 32], sizes = [2, 8, 16], strides = [1, 1, 1]} : vector<2x8x64xbf16> to vector<2x8x16xbf16>
    "tpu.trace_start"() <{level = 10 : i32, message = "bqd,bkd->bqk"}> : () -> ()
    %cst_25 = arith.constant dense<0.000000e+00> : vector<2x8x8xf32>
    %75 = tpu.matmul %73, %74, %cst_25 {dimension_numbers = #tpu.dot_dimension_numbers<[2], [2], [1], [1], [0, 0, 0, 1, 1, 1], [0], [0]>} : vector<2x8x16xbf16>, vector<2x8x16xbf16>, vector<2x8x8xf32> -> vector<2x8x8xf32>
    "tpu.trace_stop"() : () -> ()
    %76 = arith.addf %75, %3 : vector<2x8x8xf32>
    %cst_26 = arith.constant dense<0xFF800000> : vector<2x8xf32>
    %77 = vector.multi_reduction <maximumf>, %76, %cst_26 [2] : vector<2x8x8xf32> to vector<2x8xf32>
    %78 = vector.shape_cast %77 : vector<2x8xf32> to vector<2x8x1xf32>
    %79 = vector.broadcast %78 : vector<2x8x1xf32> to vector<2x8x8xf32>
    %80 = arith.subf %76, %79 : vector<2x8x8xf32>
    %81 = math.exp %80 : vector<2x8x8xf32>
    %cst_27 = arith.constant dense<0.000000e+00> : vector<2x8xf32>
    %82 = vector.multi_reduction <add>, %81, %cst_27 [2] : vector<2x8x8xf32> to vector<2x8xf32>
    %83 = vector.shape_cast %82 : vector<2x8xf32> to vector<2x8x1xf32>
    %84 = tpu.reciprocal %83 {approx = true} : vector<2x8x1xf32> -> vector<2x8x1xf32>
    %85 = vector.broadcast %84 : vector<2x8x1xf32> to vector<2x8x8xf32>
    %86 = arith.mulf %81, %85 : vector<2x8x8xf32>
    %87 = arith.truncf %86 : vector<2x8x8xf32> to vector<2x8x8xbf16>
    %88 = vector.extract_strided_slice %38 {offsets = [0, 0, 32], sizes = [2, 8, 16], strides = [1, 1, 1]} : vector<2x8x64xbf16> to vector<2x8x16xbf16>
    "tpu.trace_start"() <{level = 10 : i32, message = "bqk,bkd->bqd"}> : () -> ()
    %cst_28 = arith.constant dense<0.000000e+00> : vector<2x8x16xf32>
    %89 = tpu.matmul %87, %88, %cst_28 {dimension_numbers = #tpu.dot_dimension_numbers<[2], [1], [1], [2], [0, 0, 0, 1, 1, 2], [0], [0]>} : vector<2x8x8xbf16>, vector<2x8x16xbf16>, vector<2x8x16xf32> -> vector<2x8x16xf32>
    "tpu.trace_stop"() : () -> ()
    %90 = vector.extract_strided_slice %34 {offsets = [0, 0, 48], sizes = [2, 8, 16], strides = [1, 1, 1]} : vector<2x8x64xbf16> to vector<2x8x16xbf16>
    %91 = vector.extract_strided_slice %36 {offsets = [0, 0, 48], sizes = [2, 8, 16], strides = [1, 1, 1]} : vector<2x8x64xbf16> to vector<2x8x16xbf16>
    "tpu.trace_start"() <{level = 10 : i32, message = "bqd,bkd->bqk"}> : () -> ()
    %cst_29 = arith.constant dense<0.000000e+00> : vector<2x8x8xf32>
    %92 = tpu.matmul %90, %91, %cst_29 {dimension_numbers = #tpu.dot_dimension_numbers<[2], [2], [1], [1], [0, 0, 0, 1, 1, 1], [0], [0]>} : vector<2x8x16xbf16>, vector<2x8x16xbf16>, vector<2x8x8xf32> -> vector<2x8x8xf32>
    "tpu.trace_stop"() : () -> ()
    %93 = arith.addf %92, %3 : vector<2x8x8xf32>
    %cst_30 = arith.constant dense<0xFF800000> : vector<2x8xf32>
    %94 = vector.multi_reduction <maximumf>, %93, %cst_30 [2] : vector<2x8x8xf32> to vector<2x8xf32>
    %95 = vector.shape_cast %94 : vector<2x8xf32> to vector<2x8x1xf32>
    %96 = vector.broadcast %95 : vector<2x8x1xf32> to vector<2x8x8xf32>
    %97 = arith.subf %93, %96 : vector<2x8x8xf32>
    %98 = math.exp %97 : vector<2x8x8xf32>
    %cst_31 = arith.constant dense<0.000000e+00> : vector<2x8xf32>
    %99 = vector.multi_reduction <add>, %98, %cst_31 [2] : vector<2x8x8xf32> to vector<2x8xf32>
    %100 = vector.shape_cast %99 : vector<2x8xf32> to vector<2x8x1xf32>
    %101 = tpu.reciprocal %100 {approx = true} : vector<2x8x1xf32> -> vector<2x8x1xf32>
    %102 = vector.broadcast %101 : vector<2x8x1xf32> to vector<2x8x8xf32>
    %103 = arith.mulf %98, %102 : vector<2x8x8xf32>
    %104 = arith.truncf %103 : vector<2x8x8xf32> to vector<2x8x8xbf16>
    %105 = vector.extract_strided_slice %38 {offsets = [0, 0, 48], sizes = [2, 8, 16], strides = [1, 1, 1]} : vector<2x8x64xbf16> to vector<2x8x16xbf16>
    "tpu.trace_start"() <{level = 10 : i32, message = "bqk,bkd->bqd"}> : () -> ()
    %cst_32 = arith.constant dense<0.000000e+00> : vector<2x8x16xf32>
    %106 = tpu.matmul %104, %105, %cst_32 {dimension_numbers = #tpu.dot_dimension_numbers<[2], [1], [1], [2], [0, 0, 0, 1, 1, 2], [0], [0]>} : vector<2x8x8xbf16>, vector<2x8x16xbf16>, vector<2x8x16xf32> -> vector<2x8x16xf32>
    "tpu.trace_stop"() : () -> ()
    %107 = tpu.concatenate %55, %72, %89, %106 in 2 : vector<2x8x16xf32>, vector<2x8x16xf32>, vector<2x8x16xf32>, vector<2x8x16xf32> -> vector<2x8x64xf32>
    %108 = vector.shape_cast %107 : vector<2x8x64xf32> to vector<16x64xf32>
    %109 = arith.truncf %108 : vector<16x64xf32> to vector<16x64xbf16>
    %c0_33 = arith.constant 0 : index
    %c0_34 = arith.constant 0 : index
    %c0_35 = arith.constant 0 : index
    %110 = vector.load %arg6[%c0_33, %c0_34, %c0_35] : memref<6x64x64xbf16, #tpu.memory_space<vmem>>, vector<1x64x64xbf16>
    %111 = vector.shape_cast %110 : vector<1x64x64xbf16> to vector<64x64xbf16>
    %cst_36 = arith.constant dense<0.000000e+00> : vector<16x64xf32>
    %112 = tpu.matmul %109, %111, %cst_36 {dimension_numbers = #tpu.dot_dimension_numbers<[1], [0], [0], [1], [0, 0, 1, 1], [], []>} : vector<16x64xbf16>, vector<64x64xbf16>, vector<16x64xf32> -> vector<16x64xf32>
    %113 = arith.addf %0, %112 : vector<16x64xf32>
    %c0_37 = arith.constant 0 : index
    %c0_38 = arith.constant 0 : index
    %c0_39 = arith.constant 0 : index
    %114 = vector.load %arg7[%c0_37, %c0_38, %c0_39] : memref<6x1x64xf32, #tpu.memory_space<vmem>>, vector<1x1x64xf32>
    %115 = vector.shape_cast %114 : vector<1x1x64xf32> to vector<1x64xf32>
    %116 = arith.mulf %113, %113 : vector<16x64xf32>
    %cst_40 = arith.constant dense<0.000000e+00> : vector<16xf32>
    %117 = vector.multi_reduction <add>, %116, %cst_40 [1] : vector<16x64xf32> to vector<16xf32>
    %118 = vector.shape_cast %117 : vector<16xf32> to vector<16x1xf32>
    %cst_41 = arith.constant 6.400000e+01 : f32
    %119 = vector.broadcast %cst_41 : f32 to vector<16x1xf32>
    %120 = arith.divf %118, %119 : vector<16x1xf32>
    %cst_42 = arith.constant 9.99999997E-7 : f32
    %121 = vector.broadcast %cst_42 : f32 to vector<16x1xf32>
    %122 = arith.addf %120, %121 : vector<16x1xf32>
    %123 = math.rsqrt %122 : vector<16x1xf32>
    %124 = vector.broadcast %123 : vector<16x1xf32> to vector<16x64xf32>
    %125 = arith.mulf %113, %124 : vector<16x64xf32>
    %126 = vector.broadcast %115 : vector<1x64xf32> to vector<16x64xf32>
    %127 = arith.mulf %125, %126 : vector<16x64xf32>
    %128 = arith.truncf %127 : vector<16x64xf32> to vector<16x64xbf16>
    %c0_43 = arith.constant 0 : index
    %c0_44 = arith.constant 0 : index
    %c0_45 = arith.constant 0 : index
    %129 = vector.load %arg8[%c0_43, %c0_44, %c0_45] : memref<6x64x256xbf16, #tpu.memory_space<vmem>>, vector<1x64x256xbf16>
    %130 = vector.shape_cast %129 : vector<1x64x256xbf16> to vector<64x256xbf16>
    %cst_46 = arith.constant dense<0.000000e+00> : vector<16x256xf32>
    %131 = tpu.matmul %128, %130, %cst_46 {dimension_numbers = #tpu.dot_dimension_numbers<[1], [0], [0], [1], [0, 0, 1, 1], [], []>} : vector<16x64xbf16>, vector<64x256xbf16>, vector<16x256xf32> -> vector<16x256xf32>
    %132 = vector.extract_strided_slice %131 {offsets = [0, 0], sizes = [16, 128], strides = [1, 1]} : vector<16x256xf32> to vector<16x128xf32>
    %133 = vector.extract_strided_slice %131 {offsets = [0, 128], sizes = [16, 128], strides = [1, 1]} : vector<16x256xf32> to vector<16x128xf32>
    %134 = arith.negf %132 : vector<16x128xf32>
    %135 = math.exp %134 : vector<16x128xf32>
    %cst_47 = arith.constant 1.000000e+00 : f32
    %136 = vector.broadcast %cst_47 : f32 to vector<16x128xf32>
    %137 = arith.addf %136, %135 : vector<16x128xf32>
    %138 = arith.divf %136, %137 : vector<16x128xf32>
    %139 = arith.mulf %132, %138 : vector<16x128xf32>
    %140 = arith.mulf %139, %133 : vector<16x128xf32>
    %141 = arith.truncf %140 : vector<16x128xf32> to vector<16x128xbf16>
    %c0_48 = arith.constant 0 : index
    %c0_49 = arith.constant 0 : index
    %c0_50 = arith.constant 0 : index
    %142 = vector.load %arg9[%c0_48, %c0_49, %c0_50] : memref<6x128x64xbf16, #tpu.memory_space<vmem>>, vector<1x128x64xbf16>
    %143 = vector.shape_cast %142 : vector<1x128x64xbf16> to vector<128x64xbf16>
    %cst_51 = arith.constant dense<0.000000e+00> : vector<16x64xf32>
    %144 = tpu.matmul %141, %143, %cst_51 {dimension_numbers = #tpu.dot_dimension_numbers<[1], [0], [0], [1], [0, 0, 1, 1], [], []>} : vector<16x128xbf16>, vector<128x64xbf16>, vector<16x64xf32> -> vector<16x64xf32>
    %145 = arith.addf %113, %144 : vector<16x64xf32>
    %c1 = arith.constant 1 : index
    %c0_52 = arith.constant 0 : index
    %c0_53 = arith.constant 0 : index
    %146 = vector.load %arg4[%c1, %c0_52, %c0_53] : memref<6x1x64xf32, #tpu.memory_space<vmem>>, vector<1x1x64xf32>
    %147 = vector.shape_cast %146 : vector<1x1x64xf32> to vector<1x64xf32>
    %148 = arith.mulf %145, %145 : vector<16x64xf32>
    %cst_54 = arith.constant dense<0.000000e+00> : vector<16xf32>
    %149 = vector.multi_reduction <add>, %148, %cst_54 [1] : vector<16x64xf32> to vector<16xf32>
    %150 = vector.shape_cast %149 : vector<16xf32> to vector<16x1xf32>
    %cst_55 = arith.constant 6.400000e+01 : f32
    %151 = vector.broadcast %cst_55 : f32 to vector<16x1xf32>
    %152 = arith.divf %150, %151 : vector<16x1xf32>
    %cst_56 = arith.constant 9.99999997E-7 : f32
    %153 = vector.broadcast %cst_56 : f32 to vector<16x1xf32>
    %154 = arith.addf %152, %153 : vector<16x1xf32>
    %155 = math.rsqrt %154 : vector<16x1xf32>
    %156 = vector.broadcast %155 : vector<16x1xf32> to vector<16x64xf32>
    %157 = arith.mulf %145, %156 : vector<16x64xf32>
    %158 = vector.broadcast %147 : vector<1x64xf32> to vector<16x64xf32>
    %159 = arith.mulf %157, %158 : vector<16x64xf32>
    %160 = arith.truncf %159 : vector<16x64xf32> to vector<16x64xbf16>
    %c1_57 = arith.constant 1 : index
    %c0_58 = arith.constant 0 : index
    %c0_59 = arith.constant 0 : index
    %161 = vector.load %arg5[%c1_57, %c0_58, %c0_59] : memref<6x64x320xbf16, #tpu.memory_space<vmem>>, vector<1x64x320xbf16>
    %162 = vector.shape_cast %161 : vector<1x64x320xbf16> to vector<64x320xbf16>
    %cst_60 = arith.constant dense<0.000000e+00> : vector<16x320xf32>
    %163 = tpu.matmul %160, %162, %cst_60 {dimension_numbers = #tpu.dot_dimension_numbers<[1], [0], [0], [1], [0, 0, 1, 1], [], []>} : vector<16x64xbf16>, vector<64x320xbf16>, vector<16x320xf32> -> vector<16x320xf32>
    %164 = vector.extract_strided_slice %163 {offsets = [0, 0], sizes = [16, 64], strides = [1, 1]} : vector<16x320xf32> to vector<16x64xf32>
    %165 = arith.mulf %164, %1 : vector<16x64xf32>
    %166 = vector.extract_strided_slice %163 {offsets = [0, 64], sizes = [16, 64], strides = [1, 1]} : vector<16x320xf32> to vector<16x64xf32>
    %167 = arith.mulf %166, %2 : vector<16x64xf32>
    %168 = arith.addf %165, %167 : vector<16x64xf32>
    %169 = vector.extract_strided_slice %163 {offsets = [0, 128], sizes = [16, 64], strides = [1, 1]} : vector<16x320xf32> to vector<16x64xf32>
    %170 = arith.mulf %169, %1 : vector<16x64xf32>
    %171 = vector.extract_strided_slice %163 {offsets = [0, 192], sizes = [16, 64], strides = [1, 1]} : vector<16x320xf32> to vector<16x64xf32>
    %172 = arith.mulf %171, %2 : vector<16x64xf32>
    %173 = arith.addf %170, %172 : vector<16x64xf32>
    %174 = vector.extract_strided_slice %163 {offsets = [0, 256], sizes = [16, 64], strides = [1, 1]} : vector<16x320xf32> to vector<16x64xf32>
    %175 = arith.truncf %168 : vector<16x64xf32> to vector<16x64xbf16>
    %176 = vector.shape_cast %175 : vector<16x64xbf16> to vector<2x8x64xbf16>
    %177 = arith.truncf %173 : vector<16x64xf32> to vector<16x64xbf16>
    %178 = vector.shape_cast %177 : vector<16x64xbf16> to vector<2x8x64xbf16>
    %179 = arith.truncf %174 : vector<16x64xf32> to vector<16x64xbf16>
    %180 = vector.shape_cast %179 : vector<16x64xbf16> to vector<2x8x64xbf16>
    %181 = vector.extract_strided_slice %176 {offsets = [0, 0, 0], sizes = [2, 8, 16], strides = [1, 1, 1]} : vector<2x8x64xbf16> to vector<2x8x16xbf16>
    %182 = vector.extract_strided_slice %178 {offsets = [0, 0, 0], sizes = [2, 8, 16], strides = [1, 1, 1]} : vector<2x8x64xbf16> to vector<2x8x16xbf16>
    "tpu.trace_start"() <{level = 10 : i32, message = "bqd,bkd->bqk"}> : () -> ()
    %cst_61 = arith.constant dense<0.000000e+00> : vector<2x8x8xf32>
    %183 = tpu.matmul %181, %182, %cst_61 {dimension_numbers = #tpu.dot_dimension_numbers<[2], [2], [1], [1], [0, 0, 0, 1, 1, 1], [0], [0]>} : vector<2x8x16xbf16>, vector<2x8x16xbf16>, vector<2x8x8xf32> -> vector<2x8x8xf32>
    "tpu.trace_stop"() : () -> ()
    %184 = arith.addf %183, %3 : vector<2x8x8xf32>
    %cst_62 = arith.constant dense<0xFF800000> : vector<2x8xf32>
    %185 = vector.multi_reduction <maximumf>, %184, %cst_62 [2] : vector<2x8x8xf32> to vector<2x8xf32>
    %186 = vector.shape_cast %185 : vector<2x8xf32> to vector<2x8x1xf32>
    %187 = vector.broadcast %186 : vector<2x8x1xf32> to vector<2x8x8xf32>
    %188 = arith.subf %184, %187 : vector<2x8x8xf32>
    %189 = math.exp %188 : vector<2x8x8xf32>
    %cst_63 = arith.constant dense<0.000000e+00> : vector<2x8xf32>
    %190 = vector.multi_reduction <add>, %189, %cst_63 [2] : vector<2x8x8xf32> to vector<2x8xf32>
    %191 = vector.shape_cast %190 : vector<2x8xf32> to vector<2x8x1xf32>
    %192 = tpu.reciprocal %191 {approx = true} : vector<2x8x1xf32> -> vector<2x8x1xf32>
    %193 = vector.broadcast %192 : vector<2x8x1xf32> to vector<2x8x8xf32>
    %194 = arith.mulf %189, %193 : vector<2x8x8xf32>
    %195 = arith.truncf %194 : vector<2x8x8xf32> to vector<2x8x8xbf16>
    %196 = vector.extract_strided_slice %180 {offsets = [0, 0, 0], sizes = [2, 8, 16], strides = [1, 1, 1]} : vector<2x8x64xbf16> to vector<2x8x16xbf16>
    "tpu.trace_start"() <{level = 10 : i32, message = "bqk,bkd->bqd"}> : () -> ()
    %cst_64 = arith.constant dense<0.000000e+00> : vector<2x8x16xf32>
    %197 = tpu.matmul %195, %196, %cst_64 {dimension_numbers = #tpu.dot_dimension_numbers<[2], [1], [1], [2], [0, 0, 0, 1, 1, 2], [0], [0]>} : vector<2x8x8xbf16>, vector<2x8x16xbf16>, vector<2x8x16xf32> -> vector<2x8x16xf32>
    "tpu.trace_stop"() : () -> ()
    %198 = vector.extract_strided_slice %176 {offsets = [0, 0, 16], sizes = [2, 8, 16], strides = [1, 1, 1]} : vector<2x8x64xbf16> to vector<2x8x16xbf16>
    %199 = vector.extract_strided_slice %178 {offsets = [0, 0, 16], sizes = [2, 8, 16], strides = [1, 1, 1]} : vector<2x8x64xbf16> to vector<2x8x16xbf16>
    "tpu.trace_start"() <{level = 10 : i32, message = "bqd,bkd->bqk"}> : () -> ()
    %cst_65 = arith.constant dense<0.000000e+00> : vector<2x8x8xf32>
    %200 = tpu.matmul %198, %199, %cst_65 {dimension_numbers = #tpu.dot_dimension_numbers<[2], [2], [1], [1], [0, 0, 0, 1, 1, 1], [0], [0]>} : vector<2x8x16xbf16>, vector<2x8x16xbf16>, vector<2x8x8xf32> -> vector<2x8x8xf32>
    "tpu.trace_stop"() : () -> ()
    %201 = arith.addf %200, %3 : vector<2x8x8xf32>
    %cst_66 = arith.constant dense<0xFF800000> : vector<2x8xf32>
    %202 = vector.multi_reduction <maximumf>, %201, %cst_66 [2] : vector<2x8x8xf32> to vector<2x8xf32>
    %203 = vector.shape_cast %202 : vector<2x8xf32> to vector<2x8x1xf32>
    %204 = vector.broadcast %203 : vector<2x8x1xf32> to vector<2x8x8xf32>
    %205 = arith.subf %201, %204 : vector<2x8x8xf32>
    %206 = math.exp %205 : vector<2x8x8xf32>
    %cst_67 = arith.constant dense<0.000000e+00> : vector<2x8xf32>
    %207 = vector.multi_reduction <add>, %206, %cst_67 [2] : vector<2x8x8xf32> to vector<2x8xf32>
    %208 = vector.shape_cast %207 : vector<2x8xf32> to vector<2x8x1xf32>
    %209 = tpu.reciprocal %208 {approx = true} : vector<2x8x1xf32> -> vector<2x8x1xf32>
    %210 = vector.broadcast %209 : vector<2x8x1xf32> to vector<2x8x8xf32>
    %211 = arith.mulf %206, %210 : vector<2x8x8xf32>
    %212 = arith.truncf %211 : vector<2x8x8xf32> to vector<2x8x8xbf16>
    %213 = vector.extract_strided_slice %180 {offsets = [0, 0, 16], sizes = [2, 8, 16], strides = [1, 1, 1]} : vector<2x8x64xbf16> to vector<2x8x16xbf16>
    "tpu.trace_start"() <{level = 10 : i32, message = "bqk,bkd->bqd"}> : () -> ()
    %cst_68 = arith.constant dense<0.000000e+00> : vector<2x8x16xf32>
    %214 = tpu.matmul %212, %213, %cst_68 {dimension_numbers = #tpu.dot_dimension_numbers<[2], [1], [1], [2], [0, 0, 0, 1, 1, 2], [0], [0]>} : vector<2x8x8xbf16>, vector<2x8x16xbf16>, vector<2x8x16xf32> -> vector<2x8x16xf32>
    "tpu.trace_stop"() : () -> ()
    %215 = vector.extract_strided_slice %176 {offsets = [0, 0, 32], sizes = [2, 8, 16], strides = [1, 1, 1]} : vector<2x8x64xbf16> to vector<2x8x16xbf16>
    %216 = vector.extract_strided_slice %178 {offsets = [0, 0, 32], sizes = [2, 8, 16], strides = [1, 1, 1]} : vector<2x8x64xbf16> to vector<2x8x16xbf16>
    "tpu.trace_start"() <{level = 10 : i32, message = "bqd,bkd->bqk"}> : () -> ()
    %cst_69 = arith.constant dense<0.000000e+00> : vector<2x8x8xf32>
    %217 = tpu.matmul %215, %216, %cst_69 {dimension_numbers = #tpu.dot_dimension_numbers<[2], [2], [1], [1], [0, 0, 0, 1, 1, 1], [0], [0]>} : vector<2x8x16xbf16>, vector<2x8x16xbf16>, vector<2x8x8xf32> -> vector<2x8x8xf32>
    "tpu.trace_stop"() : () -> ()
    %218 = arith.addf %217, %3 : vector<2x8x8xf32>
    %cst_70 = arith.constant dense<0xFF800000> : vector<2x8xf32>
    %219 = vector.multi_reduction <maximumf>, %218, %cst_70 [2] : vector<2x8x8xf32> to vector<2x8xf32>
    %220 = vector.shape_cast %219 : vector<2x8xf32> to vector<2x8x1xf32>
    %221 = vector.broadcast %220 : vector<2x8x1xf32> to vector<2x8x8xf32>
    %222 = arith.subf %218, %221 : vector<2x8x8xf32>
    %223 = math.exp %222 : vector<2x8x8xf32>
    %cst_71 = arith.constant dense<0.000000e+00> : vector<2x8xf32>
    %224 = vector.multi_reduction <add>, %223, %cst_71 [2] : vector<2x8x8xf32> to vector<2x8xf32>
    %225 = vector.shape_cast %224 : vector<2x8xf32> to vector<2x8x1xf32>
    %226 = tpu.reciprocal %225 {approx = true} : vector<2x8x1xf32> -> vector<2x8x1xf32>
    %227 = vector.broadcast %226 : vector<2x8x1xf32> to vector<2x8x8xf32>
    %228 = arith.mulf %223, %227 : vector<2x8x8xf32>
    %229 = arith.truncf %228 : vector<2x8x8xf32> to vector<2x8x8xbf16>
    %230 = vector.extract_strided_slice %180 {offsets = [0, 0, 32], sizes = [2, 8, 16], strides = [1, 1, 1]} : vector<2x8x64xbf16> to vector<2x8x16xbf16>
    "tpu.trace_start"() <{level = 10 : i32, message = "bqk,bkd->bqd"}> : () -> ()
    %cst_72 = arith.constant dense<0.000000e+00> : vector<2x8x16xf32>
    %231 = tpu.matmul %229, %230, %cst_72 {dimension_numbers = #tpu.dot_dimension_numbers<[2], [1], [1], [2], [0, 0, 0, 1, 1, 2], [0], [0]>} : vector<2x8x8xbf16>, vector<2x8x16xbf16>, vector<2x8x16xf32> -> vector<2x8x16xf32>
    "tpu.trace_stop"() : () -> ()
    %232 = vector.extract_strided_slice %176 {offsets = [0, 0, 48], sizes = [2, 8, 16], strides = [1, 1, 1]} : vector<2x8x64xbf16> to vector<2x8x16xbf16>
    %233 = vector.extract_strided_slice %178 {offsets = [0, 0, 48], sizes = [2, 8, 16], strides = [1, 1, 1]} : vector<2x8x64xbf16> to vector<2x8x16xbf16>
    "tpu.trace_start"() <{level = 10 : i32, message = "bqd,bkd->bqk"}> : () -> ()
    %cst_73 = arith.constant dense<0.000000e+00> : vector<2x8x8xf32>
    %234 = tpu.matmul %232, %233, %cst_73 {dimension_numbers = #tpu.dot_dimension_numbers<[2], [2], [1], [1], [0, 0, 0, 1, 1, 1], [0], [0]>} : vector<2x8x16xbf16>, vector<2x8x16xbf16>, vector<2x8x8xf32> -> vector<2x8x8xf32>
    "tpu.trace_stop"() : () -> ()
    %235 = arith.addf %234, %3 : vector<2x8x8xf32>
    %cst_74 = arith.constant dense<0xFF800000> : vector<2x8xf32>
    %236 = vector.multi_reduction <maximumf>, %235, %cst_74 [2] : vector<2x8x8xf32> to vector<2x8xf32>
    %237 = vector.shape_cast %236 : vector<2x8xf32> to vector<2x8x1xf32>
    %238 = vector.broadcast %237 : vector<2x8x1xf32> to vector<2x8x8xf32>
    %239 = arith.subf %235, %238 : vector<2x8x8xf32>
    %240 = math.exp %239 : vector<2x8x8xf32>
    %cst_75 = arith.constant dense<0.000000e+00> : vector<2x8xf32>
    %241 = vector.multi_reduction <add>, %240, %cst_75 [2] : vector<2x8x8xf32> to vector<2x8xf32>
    %242 = vector.shape_cast %241 : vector<2x8xf32> to vector<2x8x1xf32>
    %243 = tpu.reciprocal %242 {approx = true} : vector<2x8x1xf32> -> vector<2x8x1xf32>
    %244 = vector.broadcast %243 : vector<2x8x1xf32> to vector<2x8x8xf32>
    %245 = arith.mulf %240, %244 : vector<2x8x8xf32>
    %246 = arith.truncf %245 : vector<2x8x8xf32> to vector<2x8x8xbf16>
    %247 = vector.extract_strided_slice %180 {offsets = [0, 0, 48], sizes = [2, 8, 16], strides = [1, 1, 1]} : vector<2x8x64xbf16> to vector<2x8x16xbf16>
    "tpu.trace_start"() <{level = 10 : i32, message = "bqk,bkd->bqd"}> : () -> ()
    %cst_76 = arith.constant dense<0.000000e+00> : vector<2x8x16xf32>
    %248 = tpu.matmul %246, %247, %cst_76 {dimension_numbers = #tpu.dot_dimension_numbers<[2], [1], [1], [2], [0, 0, 0, 1, 1, 2], [0], [0]>} : vector<2x8x8xbf16>, vector<2x8x16xbf16>, vector<2x8x16xf32> -> vector<2x8x16xf32>
    "tpu.trace_stop"() : () -> ()
    %249 = tpu.concatenate %197, %214, %231, %248 in 2 : vector<2x8x16xf32>, vector<2x8x16xf32>, vector<2x8x16xf32>, vector<2x8x16xf32> -> vector<2x8x64xf32>
    %250 = vector.shape_cast %249 : vector<2x8x64xf32> to vector<16x64xf32>
    %251 = arith.truncf %250 : vector<16x64xf32> to vector<16x64xbf16>
    %c1_77 = arith.constant 1 : index
    %c0_78 = arith.constant 0 : index
    %c0_79 = arith.constant 0 : index
    %252 = vector.load %arg6[%c1_77, %c0_78, %c0_79] : memref<6x64x64xbf16, #tpu.memory_space<vmem>>, vector<1x64x64xbf16>
    %253 = vector.shape_cast %252 : vector<1x64x64xbf16> to vector<64x64xbf16>
    %cst_80 = arith.constant dense<0.000000e+00> : vector<16x64xf32>
    %254 = tpu.matmul %251, %253, %cst_80 {dimension_numbers = #tpu.dot_dimension_numbers<[1], [0], [0], [1], [0, 0, 1, 1], [], []>} : vector<16x64xbf16>, vector<64x64xbf16>, vector<16x64xf32> -> vector<16x64xf32>
    %255 = arith.addf %145, %254 : vector<16x64xf32>
    %c1_81 = arith.constant 1 : index
    %c0_82 = arith.constant 0 : index
    %c0_83 = arith.constant 0 : index
    %256 = vector.load %arg7[%c1_81, %c0_82, %c0_83] : memref<6x1x64xf32, #tpu.memory_space<vmem>>, vector<1x1x64xf32>
    %257 = vector.shape_cast %256 : vector<1x1x64xf32> to vector<1x64xf32>
    %258 = arith.mulf %255, %255 : vector<16x64xf32>
    %cst_84 = arith.constant dense<0.000000e+00> : vector<16xf32>
    %259 = vector.multi_reduction <add>, %258, %cst_84 [1] : vector<16x64xf32> to vector<16xf32>
    %260 = vector.shape_cast %259 : vector<16xf32> to vector<16x1xf32>
    %cst_85 = arith.constant 6.400000e+01 : f32
    %261 = vector.broadcast %cst_85 : f32 to vector<16x1xf32>
    %262 = arith.divf %260, %261 : vector<16x1xf32>
    %cst_86 = arith.constant 9.99999997E-7 : f32
    %263 = vector.broadcast %cst_86 : f32 to vector<16x1xf32>
    %264 = arith.addf %262, %263 : vector<16x1xf32>
    %265 = math.rsqrt %264 : vector<16x1xf32>
    %266 = vector.broadcast %265 : vector<16x1xf32> to vector<16x64xf32>
    %267 = arith.mulf %255, %266 : vector<16x64xf32>
    %268 = vector.broadcast %257 : vector<1x64xf32> to vector<16x64xf32>
    %269 = arith.mulf %267, %268 : vector<16x64xf32>
    %270 = arith.truncf %269 : vector<16x64xf32> to vector<16x64xbf16>
    %c1_87 = arith.constant 1 : index
    %c0_88 = arith.constant 0 : index
    %c0_89 = arith.constant 0 : index
    %271 = vector.load %arg8[%c1_87, %c0_88, %c0_89] : memref<6x64x256xbf16, #tpu.memory_space<vmem>>, vector<1x64x256xbf16>
    %272 = vector.shape_cast %271 : vector<1x64x256xbf16> to vector<64x256xbf16>
    %cst_90 = arith.constant dense<0.000000e+00> : vector<16x256xf32>
    %273 = tpu.matmul %270, %272, %cst_90 {dimension_numbers = #tpu.dot_dimension_numbers<[1], [0], [0], [1], [0, 0, 1, 1], [], []>} : vector<16x64xbf16>, vector<64x256xbf16>, vector<16x256xf32> -> vector<16x256xf32>
    %274 = vector.extract_strided_slice %273 {offsets = [0, 0], sizes = [16, 128], strides = [1, 1]} : vector<16x256xf32> to vector<16x128xf32>
    %275 = vector.extract_strided_slice %273 {offsets = [0, 128], sizes = [16, 128], strides = [1, 1]} : vector<16x256xf32> to vector<16x128xf32>
    %276 = arith.negf %274 : vector<16x128xf32>
    %277 = math.exp %276 : vector<16x128xf32>
    %cst_91 = arith.constant 1.000000e+00 : f32
    %278 = vector.broadcast %cst_91 : f32 to vector<16x128xf32>
    %279 = arith.addf %278, %277 : vector<16x128xf32>
    %280 = arith.divf %278, %279 : vector<16x128xf32>
    %281 = arith.mulf %274, %280 : vector<16x128xf32>
    %282 = arith.mulf %281, %275 : vector<16x128xf32>
    %283 = arith.truncf %282 : vector<16x128xf32> to vector<16x128xbf16>
    %c1_92 = arith.constant 1 : index
    %c0_93 = arith.constant 0 : index
    %c0_94 = arith.constant 0 : index
    %284 = vector.load %arg9[%c1_92, %c0_93, %c0_94] : memref<6x128x64xbf16, #tpu.memory_space<vmem>>, vector<1x128x64xbf16>
    %285 = vector.shape_cast %284 : vector<1x128x64xbf16> to vector<128x64xbf16>
    %cst_95 = arith.constant dense<0.000000e+00> : vector<16x64xf32>
    %286 = tpu.matmul %283, %285, %cst_95 {dimension_numbers = #tpu.dot_dimension_numbers<[1], [0], [0], [1], [0, 0, 1, 1], [], []>} : vector<16x128xbf16>, vector<128x64xbf16>, vector<16x64xf32> -> vector<16x64xf32>
    %287 = arith.addf %255, %286 : vector<16x64xf32>
    %c2 = arith.constant 2 : index
    %c0_96 = arith.constant 0 : index
    %c0_97 = arith.constant 0 : index
    %288 = vector.load %arg4[%c2, %c0_96, %c0_97] : memref<6x1x64xf32, #tpu.memory_space<vmem>>, vector<1x1x64xf32>
    %289 = vector.shape_cast %288 : vector<1x1x64xf32> to vector<1x64xf32>
    %290 = arith.mulf %287, %287 : vector<16x64xf32>
    %cst_98 = arith.constant dense<0.000000e+00> : vector<16xf32>
    %291 = vector.multi_reduction <add>, %290, %cst_98 [1] : vector<16x64xf32> to vector<16xf32>
    %292 = vector.shape_cast %291 : vector<16xf32> to vector<16x1xf32>
    %cst_99 = arith.constant 6.400000e+01 : f32
    %293 = vector.broadcast %cst_99 : f32 to vector<16x1xf32>
    %294 = arith.divf %292, %293 : vector<16x1xf32>
    %cst_100 = arith.constant 9.99999997E-7 : f32
    %295 = vector.broadcast %cst_100 : f32 to vector<16x1xf32>
    %296 = arith.addf %294, %295 : vector<16x1xf32>
    %297 = math.rsqrt %296 : vector<16x1xf32>
    %298 = vector.broadcast %297 : vector<16x1xf32> to vector<16x64xf32>
    %299 = arith.mulf %287, %298 : vector<16x64xf32>
    %300 = vector.broadcast %289 : vector<1x64xf32> to vector<16x64xf32>
    %301 = arith.mulf %299, %300 : vector<16x64xf32>
    %302 = arith.truncf %301 : vector<16x64xf32> to vector<16x64xbf16>
    %c2_101 = arith.constant 2 : index
    %c0_102 = arith.constant 0 : index
    %c0_103 = arith.constant 0 : index
    %303 = vector.load %arg5[%c2_101, %c0_102, %c0_103] : memref<6x64x320xbf16, #tpu.memory_space<vmem>>, vector<1x64x320xbf16>
    %304 = vector.shape_cast %303 : vector<1x64x320xbf16> to vector<64x320xbf16>
    %cst_104 = arith.constant dense<0.000000e+00> : vector<16x320xf32>
    %305 = tpu.matmul %302, %304, %cst_104 {dimension_numbers = #tpu.dot_dimension_numbers<[1], [0], [0], [1], [0, 0, 1, 1], [], []>} : vector<16x64xbf16>, vector<64x320xbf16>, vector<16x320xf32> -> vector<16x320xf32>
    %306 = vector.extract_strided_slice %305 {offsets = [0, 0], sizes = [16, 64], strides = [1, 1]} : vector<16x320xf32> to vector<16x64xf32>
    %307 = arith.mulf %306, %1 : vector<16x64xf32>
    %308 = vector.extract_strided_slice %305 {offsets = [0, 64], sizes = [16, 64], strides = [1, 1]} : vector<16x320xf32> to vector<16x64xf32>
    %309 = arith.mulf %308, %2 : vector<16x64xf32>
    %310 = arith.addf %307, %309 : vector<16x64xf32>
    %311 = vector.extract_strided_slice %305 {offsets = [0, 128], sizes = [16, 64], strides = [1, 1]} : vector<16x320xf32> to vector<16x64xf32>
    %312 = arith.mulf %311, %1 : vector<16x64xf32>
    %313 = vector.extract_strided_slice %305 {offsets = [0, 192], sizes = [16, 64], strides = [1, 1]} : vector<16x320xf32> to vector<16x64xf32>
    %314 = arith.mulf %313, %2 : vector<16x64xf32>
    %315 = arith.addf %312, %314 : vector<16x64xf32>
    %316 = vector.extract_strided_slice %305 {offsets = [0, 256], sizes = [16, 64], strides = [1, 1]} : vector<16x320xf32> to vector<16x64xf32>
    %317 = arith.truncf %310 : vector<16x64xf32> to vector<16x64xbf16>
    %318 = vector.shape_cast %317 : vector<16x64xbf16> to vector<2x8x64xbf16>
    %319 = arith.truncf %315 : vector<16x64xf32> to vector<16x64xbf16>
    %320 = vector.shape_cast %319 : vector<16x64xbf16> to vector<2x8x64xbf16>
    %321 = arith.truncf %316 : vector<16x64xf32> to vector<16x64xbf16>
    %322 = vector.shape_cast %321 : vector<16x64xbf16> to vector<2x8x64xbf16>
    %323 = vector.extract_strided_slice %318 {offsets = [0, 0, 0], sizes = [2, 8, 16], strides = [1, 1, 1]} : vector<2x8x64xbf16> to vector<2x8x16xbf16>
    %324 = vector.extract_strided_slice %320 {offsets = [0, 0, 0], sizes = [2, 8, 16], strides = [1, 1, 1]} : vector<2x8x64xbf16> to vector<2x8x16xbf16>
    "tpu.trace_start"() <{level = 10 : i32, message = "bqd,bkd->bqk"}> : () -> ()
    %cst_105 = arith.constant dense<0.000000e+00> : vector<2x8x8xf32>
    %325 = tpu.matmul %323, %324, %cst_105 {dimension_numbers = #tpu.dot_dimension_numbers<[2], [2], [1], [1], [0, 0, 0, 1, 1, 1], [0], [0]>} : vector<2x8x16xbf16>, vector<2x8x16xbf16>, vector<2x8x8xf32> -> vector<2x8x8xf32>
    "tpu.trace_stop"() : () -> ()
    %326 = arith.addf %325, %3 : vector<2x8x8xf32>
    %cst_106 = arith.constant dense<0xFF800000> : vector<2x8xf32>
    %327 = vector.multi_reduction <maximumf>, %326, %cst_106 [2] : vector<2x8x8xf32> to vector<2x8xf32>
    %328 = vector.shape_cast %327 : vector<2x8xf32> to vector<2x8x1xf32>
    %329 = vector.broadcast %328 : vector<2x8x1xf32> to vector<2x8x8xf32>
    %330 = arith.subf %326, %329 : vector<2x8x8xf32>
    %331 = math.exp %330 : vector<2x8x8xf32>
    %cst_107 = arith.constant dense<0.000000e+00> : vector<2x8xf32>
    %332 = vector.multi_reduction <add>, %331, %cst_107 [2] : vector<2x8x8xf32> to vector<2x8xf32>
    %333 = vector.shape_cast %332 : vector<2x8xf32> to vector<2x8x1xf32>
    %334 = tpu.reciprocal %333 {approx = true} : vector<2x8x1xf32> -> vector<2x8x1xf32>
    %335 = vector.broadcast %334 : vector<2x8x1xf32> to vector<2x8x8xf32>
    %336 = arith.mulf %331, %335 : vector<2x8x8xf32>
    %337 = arith.truncf %336 : vector<2x8x8xf32> to vector<2x8x8xbf16>
    %338 = vector.extract_strided_slice %322 {offsets = [0, 0, 0], sizes = [2, 8, 16], strides = [1, 1, 1]} : vector<2x8x64xbf16> to vector<2x8x16xbf16>
    "tpu.trace_start"() <{level = 10 : i32, message = "bqk,bkd->bqd"}> : () -> ()
    %cst_108 = arith.constant dense<0.000000e+00> : vector<2x8x16xf32>
    %339 = tpu.matmul %337, %338, %cst_108 {dimension_numbers = #tpu.dot_dimension_numbers<[2], [1], [1], [2], [0, 0, 0, 1, 1, 2], [0], [0]>} : vector<2x8x8xbf16>, vector<2x8x16xbf16>, vector<2x8x16xf32> -> vector<2x8x16xf32>
    "tpu.trace_stop"() : () -> ()
    %340 = vector.extract_strided_slice %318 {offsets = [0, 0, 16], sizes = [2, 8, 16], strides = [1, 1, 1]} : vector<2x8x64xbf16> to vector<2x8x16xbf16>
    %341 = vector.extract_strided_slice %320 {offsets = [0, 0, 16], sizes = [2, 8, 16], strides = [1, 1, 1]} : vector<2x8x64xbf16> to vector<2x8x16xbf16>
    "tpu.trace_start"() <{level = 10 : i32, message = "bqd,bkd->bqk"}> : () -> ()
    %cst_109 = arith.constant dense<0.000000e+00> : vector<2x8x8xf32>
    %342 = tpu.matmul %340, %341, %cst_109 {dimension_numbers = #tpu.dot_dimension_numbers<[2], [2], [1], [1], [0, 0, 0, 1, 1, 1], [0], [0]>} : vector<2x8x16xbf16>, vector<2x8x16xbf16>, vector<2x8x8xf32> -> vector<2x8x8xf32>
    "tpu.trace_stop"() : () -> ()
    %343 = arith.addf %342, %3 : vector<2x8x8xf32>
    %cst_110 = arith.constant dense<0xFF800000> : vector<2x8xf32>
    %344 = vector.multi_reduction <maximumf>, %343, %cst_110 [2] : vector<2x8x8xf32> to vector<2x8xf32>
    %345 = vector.shape_cast %344 : vector<2x8xf32> to vector<2x8x1xf32>
    %346 = vector.broadcast %345 : vector<2x8x1xf32> to vector<2x8x8xf32>
    %347 = arith.subf %343, %346 : vector<2x8x8xf32>
    %348 = math.exp %347 : vector<2x8x8xf32>
    %cst_111 = arith.constant dense<0.000000e+00> : vector<2x8xf32>
    %349 = vector.multi_reduction <add>, %348, %cst_111 [2] : vector<2x8x8xf32> to vector<2x8xf32>
    %350 = vector.shape_cast %349 : vector<2x8xf32> to vector<2x8x1xf32>
    %351 = tpu.reciprocal %350 {approx = true} : vector<2x8x1xf32> -> vector<2x8x1xf32>
    %352 = vector.broadcast %351 : vector<2x8x1xf32> to vector<2x8x8xf32>
    %353 = arith.mulf %348, %352 : vector<2x8x8xf32>
    %354 = arith.truncf %353 : vector<2x8x8xf32> to vector<2x8x8xbf16>
    %355 = vector.extract_strided_slice %322 {offsets = [0, 0, 16], sizes = [2, 8, 16], strides = [1, 1, 1]} : vector<2x8x64xbf16> to vector<2x8x16xbf16>
    "tpu.trace_start"() <{level = 10 : i32, message = "bqk,bkd->bqd"}> : () -> ()
    %cst_112 = arith.constant dense<0.000000e+00> : vector<2x8x16xf32>
    %356 = tpu.matmul %354, %355, %cst_112 {dimension_numbers = #tpu.dot_dimension_numbers<[2], [1], [1], [2], [0, 0, 0, 1, 1, 2], [0], [0]>} : vector<2x8x8xbf16>, vector<2x8x16xbf16>, vector<2x8x16xf32> -> vector<2x8x16xf32>
    "tpu.trace_stop"() : () -> ()
    %357 = vector.extract_strided_slice %318 {offsets = [0, 0, 32], sizes = [2, 8, 16], strides = [1, 1, 1]} : vector<2x8x64xbf16> to vector<2x8x16xbf16>
    %358 = vector.extract_strided_slice %320 {offsets = [0, 0, 32], sizes = [2, 8, 16], strides = [1, 1, 1]} : vector<2x8x64xbf16> to vector<2x8x16xbf16>
    "tpu.trace_start"() <{level = 10 : i32, message = "bqd,bkd->bqk"}> : () -> ()
    %cst_113 = arith.constant dense<0.000000e+00> : vector<2x8x8xf32>
    %359 = tpu.matmul %357, %358, %cst_113 {dimension_numbers = #tpu.dot_dimension_numbers<[2], [2], [1], [1], [0, 0, 0, 1, 1, 1], [0], [0]>} : vector<2x8x16xbf16>, vector<2x8x16xbf16>, vector<2x8x8xf32> -> vector<2x8x8xf32>
    "tpu.trace_stop"() : () -> ()
    %360 = arith.addf %359, %3 : vector<2x8x8xf32>
    %cst_114 = arith.constant dense<0xFF800000> : vector<2x8xf32>
    %361 = vector.multi_reduction <maximumf>, %360, %cst_114 [2] : vector<2x8x8xf32> to vector<2x8xf32>
    %362 = vector.shape_cast %361 : vector<2x8xf32> to vector<2x8x1xf32>
    %363 = vector.broadcast %362 : vector<2x8x1xf32> to vector<2x8x8xf32>
    %364 = arith.subf %360, %363 : vector<2x8x8xf32>
    %365 = math.exp %364 : vector<2x8x8xf32>
    %cst_115 = arith.constant dense<0.000000e+00> : vector<2x8xf32>
    %366 = vector.multi_reduction <add>, %365, %cst_115 [2] : vector<2x8x8xf32> to vector<2x8xf32>
    %367 = vector.shape_cast %366 : vector<2x8xf32> to vector<2x8x1xf32>
    %368 = tpu.reciprocal %367 {approx = true} : vector<2x8x1xf32> -> vector<2x8x1xf32>
    %369 = vector.broadcast %368 : vector<2x8x1xf32> to vector<2x8x8xf32>
    %370 = arith.mulf %365, %369 : vector<2x8x8xf32>
    %371 = arith.truncf %370 : vector<2x8x8xf32> to vector<2x8x8xbf16>
    %372 = vector.extract_strided_slice %322 {offsets = [0, 0, 32], sizes = [2, 8, 16], strides = [1, 1, 1]} : vector<2x8x64xbf16> to vector<2x8x16xbf16>
    "tpu.trace_start"() <{level = 10 : i32, message = "bqk,bkd->bqd"}> : () -> ()
    %cst_116 = arith.constant dense<0.000000e+00> : vector<2x8x16xf32>
    %373 = tpu.matmul %371, %372, %cst_116 {dimension_numbers = #tpu.dot_dimension_numbers<[2], [1], [1], [2], [0, 0, 0, 1, 1, 2], [0], [0]>} : vector<2x8x8xbf16>, vector<2x8x16xbf16>, vector<2x8x16xf32> -> vector<2x8x16xf32>
    "tpu.trace_stop"() : () -> ()
    %374 = vector.extract_strided_slice %318 {offsets = [0, 0, 48], sizes = [2, 8, 16], strides = [1, 1, 1]} : vector<2x8x64xbf16> to vector<2x8x16xbf16>
    %375 = vector.extract_strided_slice %320 {offsets = [0, 0, 48], sizes = [2, 8, 16], strides = [1, 1, 1]} : vector<2x8x64xbf16> to vector<2x8x16xbf16>
    "tpu.trace_start"() <{level = 10 : i32, message = "bqd,bkd->bqk"}> : () -> ()
    %cst_117 = arith.constant dense<0.000000e+00> : vector<2x8x8xf32>
    %376 = tpu.matmul %374, %375, %cst_117 {dimension_numbers = #tpu.dot_dimension_numbers<[2], [2], [1], [1], [0, 0, 0, 1, 1, 1], [0], [0]>} : vector<2x8x16xbf16>, vector<2x8x16xbf16>, vector<2x8x8xf32> -> vector<2x8x8xf32>
    "tpu.trace_stop"() : () -> ()
    %377 = arith.addf %376, %3 : vector<2x8x8xf32>
    %cst_118 = arith.constant dense<0xFF800000> : vector<2x8xf32>
    %378 = vector.multi_reduction <maximumf>, %377, %cst_118 [2] : vector<2x8x8xf32> to vector<2x8xf32>
    %379 = vector.shape_cast %378 : vector<2x8xf32> to vector<2x8x1xf32>
    %380 = vector.broadcast %379 : vector<2x8x1xf32> to vector<2x8x8xf32>
    %381 = arith.subf %377, %380 : vector<2x8x8xf32>
    %382 = math.exp %381 : vector<2x8x8xf32>
    %cst_119 = arith.constant dense<0.000000e+00> : vector<2x8xf32>
    %383 = vector.multi_reduction <add>, %382, %cst_119 [2] : vector<2x8x8xf32> to vector<2x8xf32>
    %384 = vector.shape_cast %383 : vector<2x8xf32> to vector<2x8x1xf32>
    %385 = tpu.reciprocal %384 {approx = true} : vector<2x8x1xf32> -> vector<2x8x1xf32>
    %386 = vector.broadcast %385 : vector<2x8x1xf32> to vector<2x8x8xf32>
    %387 = arith.mulf %382, %386 : vector<2x8x8xf32>
    %388 = arith.truncf %387 : vector<2x8x8xf32> to vector<2x8x8xbf16>
    %389 = vector.extract_strided_slice %322 {offsets = [0, 0, 48], sizes = [2, 8, 16], strides = [1, 1, 1]} : vector<2x8x64xbf16> to vector<2x8x16xbf16>
    "tpu.trace_start"() <{level = 10 : i32, message = "bqk,bkd->bqd"}> : () -> ()
    %cst_120 = arith.constant dense<0.000000e+00> : vector<2x8x16xf32>
    %390 = tpu.matmul %388, %389, %cst_120 {dimension_numbers = #tpu.dot_dimension_numbers<[2], [1], [1], [2], [0, 0, 0, 1, 1, 2], [0], [0]>} : vector<2x8x8xbf16>, vector<2x8x16xbf16>, vector<2x8x16xf32> -> vector<2x8x16xf32>
    "tpu.trace_stop"() : () -> ()
    %391 = tpu.concatenate %339, %356, %373, %390 in 2 : vector<2x8x16xf32>, vector<2x8x16xf32>, vector<2x8x16xf32>, vector<2x8x16xf32> -> vector<2x8x64xf32>
    %392 = vector.shape_cast %391 : vector<2x8x64xf32> to vector<16x64xf32>
    %393 = arith.truncf %392 : vector<16x64xf32> to vector<16x64xbf16>
    %c2_121 = arith.constant 2 : index
    %c0_122 = arith.constant 0 : index
    %c0_123 = arith.constant 0 : index
    %394 = vector.load %arg6[%c2_121, %c0_122, %c0_123] : memref<6x64x64xbf16, #tpu.memory_space<vmem>>, vector<1x64x64xbf16>
    %395 = vector.shape_cast %394 : vector<1x64x64xbf16> to vector<64x64xbf16>
    %cst_124 = arith.constant dense<0.000000e+00> : vector<16x64xf32>
    %396 = tpu.matmul %393, %395, %cst_124 {dimension_numbers = #tpu.dot_dimension_numbers<[1], [0], [0], [1], [0, 0, 1, 1], [], []>} : vector<16x64xbf16>, vector<64x64xbf16>, vector<16x64xf32> -> vector<16x64xf32>
    %397 = arith.addf %287, %396 : vector<16x64xf32>
    %c2_125 = arith.constant 2 : index
    %c0_126 = arith.constant 0 : index
    %c0_127 = arith.constant 0 : index
    %398 = vector.load %arg7[%c2_125, %c0_126, %c0_127] : memref<6x1x64xf32, #tpu.memory_space<vmem>>, vector<1x1x64xf32>
    %399 = vector.shape_cast %398 : vector<1x1x64xf32> to vector<1x64xf32>
    %400 = arith.mulf %397, %397 : vector<16x64xf32>
    %cst_128 = arith.constant dense<0.000000e+00> : vector<16xf32>
    %401 = vector.multi_reduction <add>, %400, %cst_128 [1] : vector<16x64xf32> to vector<16xf32>
    %402 = vector.shape_cast %401 : vector<16xf32> to vector<16x1xf32>
    %cst_129 = arith.constant 6.400000e+01 : f32
    %403 = vector.broadcast %cst_129 : f32 to vector<16x1xf32>
    %404 = arith.divf %402, %403 : vector<16x1xf32>
    %cst_130 = arith.constant 9.99999997E-7 : f32
    %405 = vector.broadcast %cst_130 : f32 to vector<16x1xf32>
    %406 = arith.addf %404, %405 : vector<16x1xf32>
    %407 = math.rsqrt %406 : vector<16x1xf32>
    %408 = vector.broadcast %407 : vector<16x1xf32> to vector<16x64xf32>
    %409 = arith.mulf %397, %408 : vector<16x64xf32>
    %410 = vector.broadcast %399 : vector<1x64xf32> to vector<16x64xf32>
    %411 = arith.mulf %409, %410 : vector<16x64xf32>
    %412 = arith.truncf %411 : vector<16x64xf32> to vector<16x64xbf16>
    %c2_131 = arith.constant 2 : index
    %c0_132 = arith.constant 0 : index
    %c0_133 = arith.constant 0 : index
    %413 = vector.load %arg8[%c2_131, %c0_132, %c0_133] : memref<6x64x256xbf16, #tpu.memory_space<vmem>>, vector<1x64x256xbf16>
    %414 = vector.shape_cast %413 : vector<1x64x256xbf16> to vector<64x256xbf16>
    %cst_134 = arith.constant dense<0.000000e+00> : vector<16x256xf32>
    %415 = tpu.matmul %412, %414, %cst_134 {dimension_numbers = #tpu.dot_dimension_numbers<[1], [0], [0], [1], [0, 0, 1, 1], [], []>} : vector<16x64xbf16>, vector<64x256xbf16>, vector<16x256xf32> -> vector<16x256xf32>
    %416 = vector.extract_strided_slice %415 {offsets = [0, 0], sizes = [16, 128], strides = [1, 1]} : vector<16x256xf32> to vector<16x128xf32>
    %417 = vector.extract_strided_slice %415 {offsets = [0, 128], sizes = [16, 128], strides = [1, 1]} : vector<16x256xf32> to vector<16x128xf32>
    %418 = arith.negf %416 : vector<16x128xf32>
    %419 = math.exp %418 : vector<16x128xf32>
    %cst_135 = arith.constant 1.000000e+00 : f32
    %420 = vector.broadcast %cst_135 : f32 to vector<16x128xf32>
    %421 = arith.addf %420, %419 : vector<16x128xf32>
    %422 = arith.divf %420, %421 : vector<16x128xf32>
    %423 = arith.mulf %416, %422 : vector<16x128xf32>
    %424 = arith.mulf %423, %417 : vector<16x128xf32>
    %425 = arith.truncf %424 : vector<16x128xf32> to vector<16x128xbf16>
    %c2_136 = arith.constant 2 : index
    %c0_137 = arith.constant 0 : index
    %c0_138 = arith.constant 0 : index
    %426 = vector.load %arg9[%c2_136, %c0_137, %c0_138] : memref<6x128x64xbf16, #tpu.memory_space<vmem>>, vector<1x128x64xbf16>
    %427 = vector.shape_cast %426 : vector<1x128x64xbf16> to vector<128x64xbf16>
    %cst_139 = arith.constant dense<0.000000e+00> : vector<16x64xf32>
    %428 = tpu.matmul %425, %427, %cst_139 {dimension_numbers = #tpu.dot_dimension_numbers<[1], [0], [0], [1], [0, 0, 1, 1], [], []>} : vector<16x128xbf16>, vector<128x64xbf16>, vector<16x64xf32> -> vector<16x64xf32>
    %429 = arith.addf %397, %428 : vector<16x64xf32>
    %c3 = arith.constant 3 : index
    %c0_140 = arith.constant 0 : index
    %c0_141 = arith.constant 0 : index
    %430 = vector.load %arg4[%c3, %c0_140, %c0_141] : memref<6x1x64xf32, #tpu.memory_space<vmem>>, vector<1x1x64xf32>
    %431 = vector.shape_cast %430 : vector<1x1x64xf32> to vector<1x64xf32>
    %432 = arith.mulf %429, %429 : vector<16x64xf32>
    %cst_142 = arith.constant dense<0.000000e+00> : vector<16xf32>
    %433 = vector.multi_reduction <add>, %432, %cst_142 [1] : vector<16x64xf32> to vector<16xf32>
    %434 = vector.shape_cast %433 : vector<16xf32> to vector<16x1xf32>
    %cst_143 = arith.constant 6.400000e+01 : f32
    %435 = vector.broadcast %cst_143 : f32 to vector<16x1xf32>
    %436 = arith.divf %434, %435 : vector<16x1xf32>
    %cst_144 = arith.constant 9.99999997E-7 : f32
    %437 = vector.broadcast %cst_144 : f32 to vector<16x1xf32>
    %438 = arith.addf %436, %437 : vector<16x1xf32>
    %439 = math.rsqrt %438 : vector<16x1xf32>
    %440 = vector.broadcast %439 : vector<16x1xf32> to vector<16x64xf32>
    %441 = arith.mulf %429, %440 : vector<16x64xf32>
    %442 = vector.broadcast %431 : vector<1x64xf32> to vector<16x64xf32>
    %443 = arith.mulf %441, %442 : vector<16x64xf32>
    %444 = arith.truncf %443 : vector<16x64xf32> to vector<16x64xbf16>
    %c3_145 = arith.constant 3 : index
    %c0_146 = arith.constant 0 : index
    %c0_147 = arith.constant 0 : index
    %445 = vector.load %arg5[%c3_145, %c0_146, %c0_147] : memref<6x64x320xbf16, #tpu.memory_space<vmem>>, vector<1x64x320xbf16>
    %446 = vector.shape_cast %445 : vector<1x64x320xbf16> to vector<64x320xbf16>
    %cst_148 = arith.constant dense<0.000000e+00> : vector<16x320xf32>
    %447 = tpu.matmul %444, %446, %cst_148 {dimension_numbers = #tpu.dot_dimension_numbers<[1], [0], [0], [1], [0, 0, 1, 1], [], []>} : vector<16x64xbf16>, vector<64x320xbf16>, vector<16x320xf32> -> vector<16x320xf32>
    %448 = vector.extract_strided_slice %447 {offsets = [0, 0], sizes = [16, 64], strides = [1, 1]} : vector<16x320xf32> to vector<16x64xf32>
    %449 = arith.mulf %448, %1 : vector<16x64xf32>
    %450 = vector.extract_strided_slice %447 {offsets = [0, 64], sizes = [16, 64], strides = [1, 1]} : vector<16x320xf32> to vector<16x64xf32>
    %451 = arith.mulf %450, %2 : vector<16x64xf32>
    %452 = arith.addf %449, %451 : vector<16x64xf32>
    %453 = vector.extract_strided_slice %447 {offsets = [0, 128], sizes = [16, 64], strides = [1, 1]} : vector<16x320xf32> to vector<16x64xf32>
    %454 = arith.mulf %453, %1 : vector<16x64xf32>
    %455 = vector.extract_strided_slice %447 {offsets = [0, 192], sizes = [16, 64], strides = [1, 1]} : vector<16x320xf32> to vector<16x64xf32>
    %456 = arith.mulf %455, %2 : vector<16x64xf32>
    %457 = arith.addf %454, %456 : vector<16x64xf32>
    %458 = vector.extract_strided_slice %447 {offsets = [0, 256], sizes = [16, 64], strides = [1, 1]} : vector<16x320xf32> to vector<16x64xf32>
    %459 = arith.truncf %452 : vector<16x64xf32> to vector<16x64xbf16>
    %460 = vector.shape_cast %459 : vector<16x64xbf16> to vector<2x8x64xbf16>
    %461 = arith.truncf %457 : vector<16x64xf32> to vector<16x64xbf16>
    %462 = vector.shape_cast %461 : vector<16x64xbf16> to vector<2x8x64xbf16>
    %463 = arith.truncf %458 : vector<16x64xf32> to vector<16x64xbf16>
    %464 = vector.shape_cast %463 : vector<16x64xbf16> to vector<2x8x64xbf16>
    %465 = vector.extract_strided_slice %460 {offsets = [0, 0, 0], sizes = [2, 8, 16], strides = [1, 1, 1]} : vector<2x8x64xbf16> to vector<2x8x16xbf16>
    %466 = vector.extract_strided_slice %462 {offsets = [0, 0, 0], sizes = [2, 8, 16], strides = [1, 1, 1]} : vector<2x8x64xbf16> to vector<2x8x16xbf16>
    "tpu.trace_start"() <{level = 10 : i32, message = "bqd,bkd->bqk"}> : () -> ()
    %cst_149 = arith.constant dense<0.000000e+00> : vector<2x8x8xf32>
    %467 = tpu.matmul %465, %466, %cst_149 {dimension_numbers = #tpu.dot_dimension_numbers<[2], [2], [1], [1], [0, 0, 0, 1, 1, 1], [0], [0]>} : vector<2x8x16xbf16>, vector<2x8x16xbf16>, vector<2x8x8xf32> -> vector<2x8x8xf32>
    "tpu.trace_stop"() : () -> ()
    %468 = arith.addf %467, %3 : vector<2x8x8xf32>
    %cst_150 = arith.constant dense<0xFF800000> : vector<2x8xf32>
    %469 = vector.multi_reduction <maximumf>, %468, %cst_150 [2] : vector<2x8x8xf32> to vector<2x8xf32>
    %470 = vector.shape_cast %469 : vector<2x8xf32> to vector<2x8x1xf32>
    %471 = vector.broadcast %470 : vector<2x8x1xf32> to vector<2x8x8xf32>
    %472 = arith.subf %468, %471 : vector<2x8x8xf32>
    %473 = math.exp %472 : vector<2x8x8xf32>
    %cst_151 = arith.constant dense<0.000000e+00> : vector<2x8xf32>
    %474 = vector.multi_reduction <add>, %473, %cst_151 [2] : vector<2x8x8xf32> to vector<2x8xf32>
    %475 = vector.shape_cast %474 : vector<2x8xf32> to vector<2x8x1xf32>
    %476 = tpu.reciprocal %475 {approx = true} : vector<2x8x1xf32> -> vector<2x8x1xf32>
    %477 = vector.broadcast %476 : vector<2x8x1xf32> to vector<2x8x8xf32>
    %478 = arith.mulf %473, %477 : vector<2x8x8xf32>
    %479 = arith.truncf %478 : vector<2x8x8xf32> to vector<2x8x8xbf16>
    %480 = vector.extract_strided_slice %464 {offsets = [0, 0, 0], sizes = [2, 8, 16], strides = [1, 1, 1]} : vector<2x8x64xbf16> to vector<2x8x16xbf16>
    "tpu.trace_start"() <{level = 10 : i32, message = "bqk,bkd->bqd"}> : () -> ()
    %cst_152 = arith.constant dense<0.000000e+00> : vector<2x8x16xf32>
    %481 = tpu.matmul %479, %480, %cst_152 {dimension_numbers = #tpu.dot_dimension_numbers<[2], [1], [1], [2], [0, 0, 0, 1, 1, 2], [0], [0]>} : vector<2x8x8xbf16>, vector<2x8x16xbf16>, vector<2x8x16xf32> -> vector<2x8x16xf32>
    "tpu.trace_stop"() : () -> ()
    %482 = vector.extract_strided_slice %460 {offsets = [0, 0, 16], sizes = [2, 8, 16], strides = [1, 1, 1]} : vector<2x8x64xbf16> to vector<2x8x16xbf16>
    %483 = vector.extract_strided_slice %462 {offsets = [0, 0, 16], sizes = [2, 8, 16], strides = [1, 1, 1]} : vector<2x8x64xbf16> to vector<2x8x16xbf16>
    "tpu.trace_start"() <{level = 10 : i32, message = "bqd,bkd->bqk"}> : () -> ()
    %cst_153 = arith.constant dense<0.000000e+00> : vector<2x8x8xf32>
    %484 = tpu.matmul %482, %483, %cst_153 {dimension_numbers = #tpu.dot_dimension_numbers<[2], [2], [1], [1], [0, 0, 0, 1, 1, 1], [0], [0]>} : vector<2x8x16xbf16>, vector<2x8x16xbf16>, vector<2x8x8xf32> -> vector<2x8x8xf32>
    "tpu.trace_stop"() : () -> ()
    %485 = arith.addf %484, %3 : vector<2x8x8xf32>
    %cst_154 = arith.constant dense<0xFF800000> : vector<2x8xf32>
    %486 = vector.multi_reduction <maximumf>, %485, %cst_154 [2] : vector<2x8x8xf32> to vector<2x8xf32>
    %487 = vector.shape_cast %486 : vector<2x8xf32> to vector<2x8x1xf32>
    %488 = vector.broadcast %487 : vector<2x8x1xf32> to vector<2x8x8xf32>
    %489 = arith.subf %485, %488 : vector<2x8x8xf32>
    %490 = math.exp %489 : vector<2x8x8xf32>
    %cst_155 = arith.constant dense<0.000000e+00> : vector<2x8xf32>
    %491 = vector.multi_reduction <add>, %490, %cst_155 [2] : vector<2x8x8xf32> to vector<2x8xf32>
    %492 = vector.shape_cast %491 : vector<2x8xf32> to vector<2x8x1xf32>
    %493 = tpu.reciprocal %492 {approx = true} : vector<2x8x1xf32> -> vector<2x8x1xf32>
    %494 = vector.broadcast %493 : vector<2x8x1xf32> to vector<2x8x8xf32>
    %495 = arith.mulf %490, %494 : vector<2x8x8xf32>
    %496 = arith.truncf %495 : vector<2x8x8xf32> to vector<2x8x8xbf16>
    %497 = vector.extract_strided_slice %464 {offsets = [0, 0, 16], sizes = [2, 8, 16], strides = [1, 1, 1]} : vector<2x8x64xbf16> to vector<2x8x16xbf16>
    "tpu.trace_start"() <{level = 10 : i32, message = "bqk,bkd->bqd"}> : () -> ()
    %cst_156 = arith.constant dense<0.000000e+00> : vector<2x8x16xf32>
    %498 = tpu.matmul %496, %497, %cst_156 {dimension_numbers = #tpu.dot_dimension_numbers<[2], [1], [1], [2], [0, 0, 0, 1, 1, 2], [0], [0]>} : vector<2x8x8xbf16>, vector<2x8x16xbf16>, vector<2x8x16xf32> -> vector<2x8x16xf32>
    "tpu.trace_stop"() : () -> ()
    %499 = vector.extract_strided_slice %460 {offsets = [0, 0, 32], sizes = [2, 8, 16], strides = [1, 1, 1]} : vector<2x8x64xbf16> to vector<2x8x16xbf16>
    %500 = vector.extract_strided_slice %462 {offsets = [0, 0, 32], sizes = [2, 8, 16], strides = [1, 1, 1]} : vector<2x8x64xbf16> to vector<2x8x16xbf16>
    "tpu.trace_start"() <{level = 10 : i32, message = "bqd,bkd->bqk"}> : () -> ()
    %cst_157 = arith.constant dense<0.000000e+00> : vector<2x8x8xf32>
    %501 = tpu.matmul %499, %500, %cst_157 {dimension_numbers = #tpu.dot_dimension_numbers<[2], [2], [1], [1], [0, 0, 0, 1, 1, 1], [0], [0]>} : vector<2x8x16xbf16>, vector<2x8x16xbf16>, vector<2x8x8xf32> -> vector<2x8x8xf32>
    "tpu.trace_stop"() : () -> ()
    %502 = arith.addf %501, %3 : vector<2x8x8xf32>
    %cst_158 = arith.constant dense<0xFF800000> : vector<2x8xf32>
    %503 = vector.multi_reduction <maximumf>, %502, %cst_158 [2] : vector<2x8x8xf32> to vector<2x8xf32>
    %504 = vector.shape_cast %503 : vector<2x8xf32> to vector<2x8x1xf32>
    %505 = vector.broadcast %504 : vector<2x8x1xf32> to vector<2x8x8xf32>
    %506 = arith.subf %502, %505 : vector<2x8x8xf32>
    %507 = math.exp %506 : vector<2x8x8xf32>
    %cst_159 = arith.constant dense<0.000000e+00> : vector<2x8xf32>
    %508 = vector.multi_reduction <add>, %507, %cst_159 [2] : vector<2x8x8xf32> to vector<2x8xf32>
    %509 = vector.shape_cast %508 : vector<2x8xf32> to vector<2x8x1xf32>
    %510 = tpu.reciprocal %509 {approx = true} : vector<2x8x1xf32> -> vector<2x8x1xf32>
    %511 = vector.broadcast %510 : vector<2x8x1xf32> to vector<2x8x8xf32>
    %512 = arith.mulf %507, %511 : vector<2x8x8xf32>
    %513 = arith.truncf %512 : vector<2x8x8xf32> to vector<2x8x8xbf16>
    %514 = vector.extract_strided_slice %464 {offsets = [0, 0, 32], sizes = [2, 8, 16], strides = [1, 1, 1]} : vector<2x8x64xbf16> to vector<2x8x16xbf16>
    "tpu.trace_start"() <{level = 10 : i32, message = "bqk,bkd->bqd"}> : () -> ()
    %cst_160 = arith.constant dense<0.000000e+00> : vector<2x8x16xf32>
    %515 = tpu.matmul %513, %514, %cst_160 {dimension_numbers = #tpu.dot_dimension_numbers<[2], [1], [1], [2], [0, 0, 0, 1, 1, 2], [0], [0]>} : vector<2x8x8xbf16>, vector<2x8x16xbf16>, vector<2x8x16xf32> -> vector<2x8x16xf32>
    "tpu.trace_stop"() : () -> ()
    %516 = vector.extract_strided_slice %460 {offsets = [0, 0, 48], sizes = [2, 8, 16], strides = [1, 1, 1]} : vector<2x8x64xbf16> to vector<2x8x16xbf16>
    %517 = vector.extract_strided_slice %462 {offsets = [0, 0, 48], sizes = [2, 8, 16], strides = [1, 1, 1]} : vector<2x8x64xbf16> to vector<2x8x16xbf16>
    "tpu.trace_start"() <{level = 10 : i32, message = "bqd,bkd->bqk"}> : () -> ()
    %cst_161 = arith.constant dense<0.000000e+00> : vector<2x8x8xf32>
    %518 = tpu.matmul %516, %517, %cst_161 {dimension_numbers = #tpu.dot_dimension_numbers<[2], [2], [1], [1], [0, 0, 0, 1, 1, 1], [0], [0]>} : vector<2x8x16xbf16>, vector<2x8x16xbf16>, vector<2x8x8xf32> -> vector<2x8x8xf32>
    "tpu.trace_stop"() : () -> ()
    %519 = arith.addf %518, %3 : vector<2x8x8xf32>
    %cst_162 = arith.constant dense<0xFF800000> : vector<2x8xf32>
    %520 = vector.multi_reduction <maximumf>, %519, %cst_162 [2] : vector<2x8x8xf32> to vector<2x8xf32>
    %521 = vector.shape_cast %520 : vector<2x8xf32> to vector<2x8x1xf32>
    %522 = vector.broadcast %521 : vector<2x8x1xf32> to vector<2x8x8xf32>
    %523 = arith.subf %519, %522 : vector<2x8x8xf32>
    %524 = math.exp %523 : vector<2x8x8xf32>
    %cst_163 = arith.constant dense<0.000000e+00> : vector<2x8xf32>
    %525 = vector.multi_reduction <add>, %524, %cst_163 [2] : vector<2x8x8xf32> to vector<2x8xf32>
    %526 = vector.shape_cast %525 : vector<2x8xf32> to vector<2x8x1xf32>
    %527 = tpu.reciprocal %526 {approx = true} : vector<2x8x1xf32> -> vector<2x8x1xf32>
    %528 = vector.broadcast %527 : vector<2x8x1xf32> to vector<2x8x8xf32>
    %529 = arith.mulf %524, %528 : vector<2x8x8xf32>
    %530 = arith.truncf %529 : vector<2x8x8xf32> to vector<2x8x8xbf16>
    %531 = vector.extract_strided_slice %464 {offsets = [0, 0, 48], sizes = [2, 8, 16], strides = [1, 1, 1]} : vector<2x8x64xbf16> to vector<2x8x16xbf16>
    "tpu.trace_start"() <{level = 10 : i32, message = "bqk,bkd->bqd"}> : () -> ()
    %cst_164 = arith.constant dense<0.000000e+00> : vector<2x8x16xf32>
    %532 = tpu.matmul %530, %531, %cst_164 {dimension_numbers = #tpu.dot_dimension_numbers<[2], [1], [1], [2], [0, 0, 0, 1, 1, 2], [0], [0]>} : vector<2x8x8xbf16>, vector<2x8x16xbf16>, vector<2x8x16xf32> -> vector<2x8x16xf32>
    "tpu.trace_stop"() : () -> ()
    %533 = tpu.concatenate %481, %498, %515, %532 in 2 : vector<2x8x16xf32>, vector<2x8x16xf32>, vector<2x8x16xf32>, vector<2x8x16xf32> -> vector<2x8x64xf32>
    %534 = vector.shape_cast %533 : vector<2x8x64xf32> to vector<16x64xf32>
    %535 = arith.truncf %534 : vector<16x64xf32> to vector<16x64xbf16>
    %c3_165 = arith.constant 3 : index
    %c0_166 = arith.constant 0 : index
    %c0_167 = arith.constant 0 : index
    %536 = vector.load %arg6[%c3_165, %c0_166, %c0_167] : memref<6x64x64xbf16, #tpu.memory_space<vmem>>, vector<1x64x64xbf16>
    %537 = vector.shape_cast %536 : vector<1x64x64xbf16> to vector<64x64xbf16>
    %cst_168 = arith.constant dense<0.000000e+00> : vector<16x64xf32>
    %538 = tpu.matmul %535, %537, %cst_168 {dimension_numbers = #tpu.dot_dimension_numbers<[1], [0], [0], [1], [0, 0, 1, 1], [], []>} : vector<16x64xbf16>, vector<64x64xbf16>, vector<16x64xf32> -> vector<16x64xf32>
    %539 = arith.addf %429, %538 : vector<16x64xf32>
    %c3_169 = arith.constant 3 : index
    %c0_170 = arith.constant 0 : index
    %c0_171 = arith.constant 0 : index
    %540 = vector.load %arg7[%c3_169, %c0_170, %c0_171] : memref<6x1x64xf32, #tpu.memory_space<vmem>>, vector<1x1x64xf32>
    %541 = vector.shape_cast %540 : vector<1x1x64xf32> to vector<1x64xf32>
    %542 = arith.mulf %539, %539 : vector<16x64xf32>
    %cst_172 = arith.constant dense<0.000000e+00> : vector<16xf32>
    %543 = vector.multi_reduction <add>, %542, %cst_172 [1] : vector<16x64xf32> to vector<16xf32>
    %544 = vector.shape_cast %543 : vector<16xf32> to vector<16x1xf32>
    %cst_173 = arith.constant 6.400000e+01 : f32
    %545 = vector.broadcast %cst_173 : f32 to vector<16x1xf32>
    %546 = arith.divf %544, %545 : vector<16x1xf32>
    %cst_174 = arith.constant 9.99999997E-7 : f32
    %547 = vector.broadcast %cst_174 : f32 to vector<16x1xf32>
    %548 = arith.addf %546, %547 : vector<16x1xf32>
    %549 = math.rsqrt %548 : vector<16x1xf32>
    %550 = vector.broadcast %549 : vector<16x1xf32> to vector<16x64xf32>
    %551 = arith.mulf %539, %550 : vector<16x64xf32>
    %552 = vector.broadcast %541 : vector<1x64xf32> to vector<16x64xf32>
    %553 = arith.mulf %551, %552 : vector<16x64xf32>
    %554 = arith.truncf %553 : vector<16x64xf32> to vector<16x64xbf16>
    %c3_175 = arith.constant 3 : index
    %c0_176 = arith.constant 0 : index
    %c0_177 = arith.constant 0 : index
    %555 = vector.load %arg8[%c3_175, %c0_176, %c0_177] : memref<6x64x256xbf16, #tpu.memory_space<vmem>>, vector<1x64x256xbf16>
    %556 = vector.shape_cast %555 : vector<1x64x256xbf16> to vector<64x256xbf16>
    %cst_178 = arith.constant dense<0.000000e+00> : vector<16x256xf32>
    %557 = tpu.matmul %554, %556, %cst_178 {dimension_numbers = #tpu.dot_dimension_numbers<[1], [0], [0], [1], [0, 0, 1, 1], [], []>} : vector<16x64xbf16>, vector<64x256xbf16>, vector<16x256xf32> -> vector<16x256xf32>
    %558 = vector.extract_strided_slice %557 {offsets = [0, 0], sizes = [16, 128], strides = [1, 1]} : vector<16x256xf32> to vector<16x128xf32>
    %559 = vector.extract_strided_slice %557 {offsets = [0, 128], sizes = [16, 128], strides = [1, 1]} : vector<16x256xf32> to vector<16x128xf32>
    %560 = arith.negf %558 : vector<16x128xf32>
    %561 = math.exp %560 : vector<16x128xf32>
    %cst_179 = arith.constant 1.000000e+00 : f32
    %562 = vector.broadcast %cst_179 : f32 to vector<16x128xf32>
    %563 = arith.addf %562, %561 : vector<16x128xf32>
    %564 = arith.divf %562, %563 : vector<16x128xf32>
    %565 = arith.mulf %558, %564 : vector<16x128xf32>
    %566 = arith.mulf %565, %559 : vector<16x128xf32>
    %567 = arith.truncf %566 : vector<16x128xf32> to vector<16x128xbf16>
    %c3_180 = arith.constant 3 : index
    %c0_181 = arith.constant 0 : index
    %c0_182 = arith.constant 0 : index
    %568 = vector.load %arg9[%c3_180, %c0_181, %c0_182] : memref<6x128x64xbf16, #tpu.memory_space<vmem>>, vector<1x128x64xbf16>
    %569 = vector.shape_cast %568 : vector<1x128x64xbf16> to vector<128x64xbf16>
    %cst_183 = arith.constant dense<0.000000e+00> : vector<16x64xf32>
    %570 = tpu.matmul %567, %569, %cst_183 {dimension_numbers = #tpu.dot_dimension_numbers<[1], [0], [0], [1], [0, 0, 1, 1], [], []>} : vector<16x128xbf16>, vector<128x64xbf16>, vector<16x64xf32> -> vector<16x64xf32>
    %571 = arith.addf %539, %570 : vector<16x64xf32>
    %c4 = arith.constant 4 : index
    %c0_184 = arith.constant 0 : index
    %c0_185 = arith.constant 0 : index
    %572 = vector.load %arg4[%c4, %c0_184, %c0_185] : memref<6x1x64xf32, #tpu.memory_space<vmem>>, vector<1x1x64xf32>
    %573 = vector.shape_cast %572 : vector<1x1x64xf32> to vector<1x64xf32>
    %574 = arith.mulf %571, %571 : vector<16x64xf32>
    %cst_186 = arith.constant dense<0.000000e+00> : vector<16xf32>
    %575 = vector.multi_reduction <add>, %574, %cst_186 [1] : vector<16x64xf32> to vector<16xf32>
    %576 = vector.shape_cast %575 : vector<16xf32> to vector<16x1xf32>
    %cst_187 = arith.constant 6.400000e+01 : f32
    %577 = vector.broadcast %cst_187 : f32 to vector<16x1xf32>
    %578 = arith.divf %576, %577 : vector<16x1xf32>
    %cst_188 = arith.constant 9.99999997E-7 : f32
    %579 = vector.broadcast %cst_188 : f32 to vector<16x1xf32>
    %580 = arith.addf %578, %579 : vector<16x1xf32>
    %581 = math.rsqrt %580 : vector<16x1xf32>
    %582 = vector.broadcast %581 : vector<16x1xf32> to vector<16x64xf32>
    %583 = arith.mulf %571, %582 : vector<16x64xf32>
    %584 = vector.broadcast %573 : vector<1x64xf32> to vector<16x64xf32>
    %585 = arith.mulf %583, %584 : vector<16x64xf32>
    %586 = arith.truncf %585 : vector<16x64xf32> to vector<16x64xbf16>
    %c4_189 = arith.constant 4 : index
    %c0_190 = arith.constant 0 : index
    %c0_191 = arith.constant 0 : index
    %587 = vector.load %arg5[%c4_189, %c0_190, %c0_191] : memref<6x64x320xbf16, #tpu.memory_space<vmem>>, vector<1x64x320xbf16>
    %588 = vector.shape_cast %587 : vector<1x64x320xbf16> to vector<64x320xbf16>
    %cst_192 = arith.constant dense<0.000000e+00> : vector<16x320xf32>
    %589 = tpu.matmul %586, %588, %cst_192 {dimension_numbers = #tpu.dot_dimension_numbers<[1], [0], [0], [1], [0, 0, 1, 1], [], []>} : vector<16x64xbf16>, vector<64x320xbf16>, vector<16x320xf32> -> vector<16x320xf32>
    %590 = vector.extract_strided_slice %589 {offsets = [0, 0], sizes = [16, 64], strides = [1, 1]} : vector<16x320xf32> to vector<16x64xf32>
    %591 = arith.mulf %590, %1 : vector<16x64xf32>
    %592 = vector.extract_strided_slice %589 {offsets = [0, 64], sizes = [16, 64], strides = [1, 1]} : vector<16x320xf32> to vector<16x64xf32>
    %593 = arith.mulf %592, %2 : vector<16x64xf32>
    %594 = arith.addf %591, %593 : vector<16x64xf32>
    %595 = vector.extract_strided_slice %589 {offsets = [0, 128], sizes = [16, 64], strides = [1, 1]} : vector<16x320xf32> to vector<16x64xf32>
    %596 = arith.mulf %595, %1 : vector<16x64xf32>
    %597 = vector.extract_strided_slice %589 {offsets = [0, 192], sizes = [16, 64], strides = [1, 1]} : vector<16x320xf32> to vector<16x64xf32>
    %598 = arith.mulf %597, %2 : vector<16x64xf32>
    %599 = arith.addf %596, %598 : vector<16x64xf32>
    %600 = vector.extract_strided_slice %589 {offsets = [0, 256], sizes = [16, 64], strides = [1, 1]} : vector<16x320xf32> to vector<16x64xf32>
    %601 = arith.truncf %594 : vector<16x64xf32> to vector<16x64xbf16>
    %602 = vector.shape_cast %601 : vector<16x64xbf16> to vector<2x8x64xbf16>
    %603 = arith.truncf %599 : vector<16x64xf32> to vector<16x64xbf16>
    %604 = vector.shape_cast %603 : vector<16x64xbf16> to vector<2x8x64xbf16>
    %605 = arith.truncf %600 : vector<16x64xf32> to vector<16x64xbf16>
    %606 = vector.shape_cast %605 : vector<16x64xbf16> to vector<2x8x64xbf16>
    %607 = vector.extract_strided_slice %602 {offsets = [0, 0, 0], sizes = [2, 8, 16], strides = [1, 1, 1]} : vector<2x8x64xbf16> to vector<2x8x16xbf16>
    %608 = vector.extract_strided_slice %604 {offsets = [0, 0, 0], sizes = [2, 8, 16], strides = [1, 1, 1]} : vector<2x8x64xbf16> to vector<2x8x16xbf16>
    "tpu.trace_start"() <{level = 10 : i32, message = "bqd,bkd->bqk"}> : () -> ()
    %cst_193 = arith.constant dense<0.000000e+00> : vector<2x8x8xf32>
    %609 = tpu.matmul %607, %608, %cst_193 {dimension_numbers = #tpu.dot_dimension_numbers<[2], [2], [1], [1], [0, 0, 0, 1, 1, 1], [0], [0]>} : vector<2x8x16xbf16>, vector<2x8x16xbf16>, vector<2x8x8xf32> -> vector<2x8x8xf32>
    "tpu.trace_stop"() : () -> ()
    %610 = arith.addf %609, %3 : vector<2x8x8xf32>
    %cst_194 = arith.constant dense<0xFF800000> : vector<2x8xf32>
    %611 = vector.multi_reduction <maximumf>, %610, %cst_194 [2] : vector<2x8x8xf32> to vector<2x8xf32>
    %612 = vector.shape_cast %611 : vector<2x8xf32> to vector<2x8x1xf32>
    %613 = vector.broadcast %612 : vector<2x8x1xf32> to vector<2x8x8xf32>
    %614 = arith.subf %610, %613 : vector<2x8x8xf32>
    %615 = math.exp %614 : vector<2x8x8xf32>
    %cst_195 = arith.constant dense<0.000000e+00> : vector<2x8xf32>
    %616 = vector.multi_reduction <add>, %615, %cst_195 [2] : vector<2x8x8xf32> to vector<2x8xf32>
    %617 = vector.shape_cast %616 : vector<2x8xf32> to vector<2x8x1xf32>
    %618 = tpu.reciprocal %617 {approx = true} : vector<2x8x1xf32> -> vector<2x8x1xf32>
    %619 = vector.broadcast %618 : vector<2x8x1xf32> to vector<2x8x8xf32>
    %620 = arith.mulf %615, %619 : vector<2x8x8xf32>
    %621 = arith.truncf %620 : vector<2x8x8xf32> to vector<2x8x8xbf16>
    %622 = vector.extract_strided_slice %606 {offsets = [0, 0, 0], sizes = [2, 8, 16], strides = [1, 1, 1]} : vector<2x8x64xbf16> to vector<2x8x16xbf16>
    "tpu.trace_start"() <{level = 10 : i32, message = "bqk,bkd->bqd"}> : () -> ()
    %cst_196 = arith.constant dense<0.000000e+00> : vector<2x8x16xf32>
    %623 = tpu.matmul %621, %622, %cst_196 {dimension_numbers = #tpu.dot_dimension_numbers<[2], [1], [1], [2], [0, 0, 0, 1, 1, 2], [0], [0]>} : vector<2x8x8xbf16>, vector<2x8x16xbf16>, vector<2x8x16xf32> -> vector<2x8x16xf32>
    "tpu.trace_stop"() : () -> ()
    %624 = vector.extract_strided_slice %602 {offsets = [0, 0, 16], sizes = [2, 8, 16], strides = [1, 1, 1]} : vector<2x8x64xbf16> to vector<2x8x16xbf16>
    %625 = vector.extract_strided_slice %604 {offsets = [0, 0, 16], sizes = [2, 8, 16], strides = [1, 1, 1]} : vector<2x8x64xbf16> to vector<2x8x16xbf16>
    "tpu.trace_start"() <{level = 10 : i32, message = "bqd,bkd->bqk"}> : () -> ()
    %cst_197 = arith.constant dense<0.000000e+00> : vector<2x8x8xf32>
    %626 = tpu.matmul %624, %625, %cst_197 {dimension_numbers = #tpu.dot_dimension_numbers<[2], [2], [1], [1], [0, 0, 0, 1, 1, 1], [0], [0]>} : vector<2x8x16xbf16>, vector<2x8x16xbf16>, vector<2x8x8xf32> -> vector<2x8x8xf32>
    "tpu.trace_stop"() : () -> ()
    %627 = arith.addf %626, %3 : vector<2x8x8xf32>
    %cst_198 = arith.constant dense<0xFF800000> : vector<2x8xf32>
    %628 = vector.multi_reduction <maximumf>, %627, %cst_198 [2] : vector<2x8x8xf32> to vector<2x8xf32>
    %629 = vector.shape_cast %628 : vector<2x8xf32> to vector<2x8x1xf32>
    %630 = vector.broadcast %629 : vector<2x8x1xf32> to vector<2x8x8xf32>
    %631 = arith.subf %627, %630 : vector<2x8x8xf32>
    %632 = math.exp %631 : vector<2x8x8xf32>
    %cst_199 = arith.constant dense<0.000000e+00> : vector<2x8xf32>
    %633 = vector.multi_reduction <add>, %632, %cst_199 [2] : vector<2x8x8xf32> to vector<2x8xf32>
    %634 = vector.shape_cast %633 : vector<2x8xf32> to vector<2x8x1xf32>
    %635 = tpu.reciprocal %634 {approx = true} : vector<2x8x1xf32> -> vector<2x8x1xf32>
    %636 = vector.broadcast %635 : vector<2x8x1xf32> to vector<2x8x8xf32>
    %637 = arith.mulf %632, %636 : vector<2x8x8xf32>
    %638 = arith.truncf %637 : vector<2x8x8xf32> to vector<2x8x8xbf16>
    %639 = vector.extract_strided_slice %606 {offsets = [0, 0, 16], sizes = [2, 8, 16], strides = [1, 1, 1]} : vector<2x8x64xbf16> to vector<2x8x16xbf16>
    "tpu.trace_start"() <{level = 10 : i32, message = "bqk,bkd->bqd"}> : () -> ()
    %cst_200 = arith.constant dense<0.000000e+00> : vector<2x8x16xf32>
    %640 = tpu.matmul %638, %639, %cst_200 {dimension_numbers = #tpu.dot_dimension_numbers<[2], [1], [1], [2], [0, 0, 0, 1, 1, 2], [0], [0]>} : vector<2x8x8xbf16>, vector<2x8x16xbf16>, vector<2x8x16xf32> -> vector<2x8x16xf32>
    "tpu.trace_stop"() : () -> ()
    %641 = vector.extract_strided_slice %602 {offsets = [0, 0, 32], sizes = [2, 8, 16], strides = [1, 1, 1]} : vector<2x8x64xbf16> to vector<2x8x16xbf16>
    %642 = vector.extract_strided_slice %604 {offsets = [0, 0, 32], sizes = [2, 8, 16], strides = [1, 1, 1]} : vector<2x8x64xbf16> to vector<2x8x16xbf16>
    "tpu.trace_start"() <{level = 10 : i32, message = "bqd,bkd->bqk"}> : () -> ()
    %cst_201 = arith.constant dense<0.000000e+00> : vector<2x8x8xf32>
    %643 = tpu.matmul %641, %642, %cst_201 {dimension_numbers = #tpu.dot_dimension_numbers<[2], [2], [1], [1], [0, 0, 0, 1, 1, 1], [0], [0]>} : vector<2x8x16xbf16>, vector<2x8x16xbf16>, vector<2x8x8xf32> -> vector<2x8x8xf32>
    "tpu.trace_stop"() : () -> ()
    %644 = arith.addf %643, %3 : vector<2x8x8xf32>
    %cst_202 = arith.constant dense<0xFF800000> : vector<2x8xf32>
    %645 = vector.multi_reduction <maximumf>, %644, %cst_202 [2] : vector<2x8x8xf32> to vector<2x8xf32>
    %646 = vector.shape_cast %645 : vector<2x8xf32> to vector<2x8x1xf32>
    %647 = vector.broadcast %646 : vector<2x8x1xf32> to vector<2x8x8xf32>
    %648 = arith.subf %644, %647 : vector<2x8x8xf32>
    %649 = math.exp %648 : vector<2x8x8xf32>
    %cst_203 = arith.constant dense<0.000000e+00> : vector<2x8xf32>
    %650 = vector.multi_reduction <add>, %649, %cst_203 [2] : vector<2x8x8xf32> to vector<2x8xf32>
    %651 = vector.shape_cast %650 : vector<2x8xf32> to vector<2x8x1xf32>
    %652 = tpu.reciprocal %651 {approx = true} : vector<2x8x1xf32> -> vector<2x8x1xf32>
    %653 = vector.broadcast %652 : vector<2x8x1xf32> to vector<2x8x8xf32>
    %654 = arith.mulf %649, %653 : vector<2x8x8xf32>
    %655 = arith.truncf %654 : vector<2x8x8xf32> to vector<2x8x8xbf16>
    %656 = vector.extract_strided_slice %606 {offsets = [0, 0, 32], sizes = [2, 8, 16], strides = [1, 1, 1]} : vector<2x8x64xbf16> to vector<2x8x16xbf16>
    "tpu.trace_start"() <{level = 10 : i32, message = "bqk,bkd->bqd"}> : () -> ()
    %cst_204 = arith.constant dense<0.000000e+00> : vector<2x8x16xf32>
    %657 = tpu.matmul %655, %656, %cst_204 {dimension_numbers = #tpu.dot_dimension_numbers<[2], [1], [1], [2], [0, 0, 0, 1, 1, 2], [0], [0]>} : vector<2x8x8xbf16>, vector<2x8x16xbf16>, vector<2x8x16xf32> -> vector<2x8x16xf32>
    "tpu.trace_stop"() : () -> ()
    %658 = vector.extract_strided_slice %602 {offsets = [0, 0, 48], sizes = [2, 8, 16], strides = [1, 1, 1]} : vector<2x8x64xbf16> to vector<2x8x16xbf16>
    %659 = vector.extract_strided_slice %604 {offsets = [0, 0, 48], sizes = [2, 8, 16], strides = [1, 1, 1]} : vector<2x8x64xbf16> to vector<2x8x16xbf16>
    "tpu.trace_start"() <{level = 10 : i32, message = "bqd,bkd->bqk"}> : () -> ()
    %cst_205 = arith.constant dense<0.000000e+00> : vector<2x8x8xf32>
    %660 = tpu.matmul %658, %659, %cst_205 {dimension_numbers = #tpu.dot_dimension_numbers<[2], [2], [1], [1], [0, 0, 0, 1, 1, 1], [0], [0]>} : vector<2x8x16xbf16>, vector<2x8x16xbf16>, vector<2x8x8xf32> -> vector<2x8x8xf32>
    "tpu.trace_stop"() : () -> ()
    %661 = arith.addf %660, %3 : vector<2x8x8xf32>
    %cst_206 = arith.constant dense<0xFF800000> : vector<2x8xf32>
    %662 = vector.multi_reduction <maximumf>, %661, %cst_206 [2] : vector<2x8x8xf32> to vector<2x8xf32>
    %663 = vector.shape_cast %662 : vector<2x8xf32> to vector<2x8x1xf32>
    %664 = vector.broadcast %663 : vector<2x8x1xf32> to vector<2x8x8xf32>
    %665 = arith.subf %661, %664 : vector<2x8x8xf32>
    %666 = math.exp %665 : vector<2x8x8xf32>
    %cst_207 = arith.constant dense<0.000000e+00> : vector<2x8xf32>
    %667 = vector.multi_reduction <add>, %666, %cst_207 [2] : vector<2x8x8xf32> to vector<2x8xf32>
    %668 = vector.shape_cast %667 : vector<2x8xf32> to vector<2x8x1xf32>
    %669 = tpu.reciprocal %668 {approx = true} : vector<2x8x1xf32> -> vector<2x8x1xf32>
    %670 = vector.broadcast %669 : vector<2x8x1xf32> to vector<2x8x8xf32>
    %671 = arith.mulf %666, %670 : vector<2x8x8xf32>
    %672 = arith.truncf %671 : vector<2x8x8xf32> to vector<2x8x8xbf16>
    %673 = vector.extract_strided_slice %606 {offsets = [0, 0, 48], sizes = [2, 8, 16], strides = [1, 1, 1]} : vector<2x8x64xbf16> to vector<2x8x16xbf16>
    "tpu.trace_start"() <{level = 10 : i32, message = "bqk,bkd->bqd"}> : () -> ()
    %cst_208 = arith.constant dense<0.000000e+00> : vector<2x8x16xf32>
    %674 = tpu.matmul %672, %673, %cst_208 {dimension_numbers = #tpu.dot_dimension_numbers<[2], [1], [1], [2], [0, 0, 0, 1, 1, 2], [0], [0]>} : vector<2x8x8xbf16>, vector<2x8x16xbf16>, vector<2x8x16xf32> -> vector<2x8x16xf32>
    "tpu.trace_stop"() : () -> ()
    %675 = tpu.concatenate %623, %640, %657, %674 in 2 : vector<2x8x16xf32>, vector<2x8x16xf32>, vector<2x8x16xf32>, vector<2x8x16xf32> -> vector<2x8x64xf32>
    %676 = vector.shape_cast %675 : vector<2x8x64xf32> to vector<16x64xf32>
    %677 = arith.truncf %676 : vector<16x64xf32> to vector<16x64xbf16>
    %c4_209 = arith.constant 4 : index
    %c0_210 = arith.constant 0 : index
    %c0_211 = arith.constant 0 : index
    %678 = vector.load %arg6[%c4_209, %c0_210, %c0_211] : memref<6x64x64xbf16, #tpu.memory_space<vmem>>, vector<1x64x64xbf16>
    %679 = vector.shape_cast %678 : vector<1x64x64xbf16> to vector<64x64xbf16>
    %cst_212 = arith.constant dense<0.000000e+00> : vector<16x64xf32>
    %680 = tpu.matmul %677, %679, %cst_212 {dimension_numbers = #tpu.dot_dimension_numbers<[1], [0], [0], [1], [0, 0, 1, 1], [], []>} : vector<16x64xbf16>, vector<64x64xbf16>, vector<16x64xf32> -> vector<16x64xf32>
    %681 = arith.addf %571, %680 : vector<16x64xf32>
    %c4_213 = arith.constant 4 : index
    %c0_214 = arith.constant 0 : index
    %c0_215 = arith.constant 0 : index
    %682 = vector.load %arg7[%c4_213, %c0_214, %c0_215] : memref<6x1x64xf32, #tpu.memory_space<vmem>>, vector<1x1x64xf32>
    %683 = vector.shape_cast %682 : vector<1x1x64xf32> to vector<1x64xf32>
    %684 = arith.mulf %681, %681 : vector<16x64xf32>
    %cst_216 = arith.constant dense<0.000000e+00> : vector<16xf32>
    %685 = vector.multi_reduction <add>, %684, %cst_216 [1] : vector<16x64xf32> to vector<16xf32>
    %686 = vector.shape_cast %685 : vector<16xf32> to vector<16x1xf32>
    %cst_217 = arith.constant 6.400000e+01 : f32
    %687 = vector.broadcast %cst_217 : f32 to vector<16x1xf32>
    %688 = arith.divf %686, %687 : vector<16x1xf32>
    %cst_218 = arith.constant 9.99999997E-7 : f32
    %689 = vector.broadcast %cst_218 : f32 to vector<16x1xf32>
    %690 = arith.addf %688, %689 : vector<16x1xf32>
    %691 = math.rsqrt %690 : vector<16x1xf32>
    %692 = vector.broadcast %691 : vector<16x1xf32> to vector<16x64xf32>
    %693 = arith.mulf %681, %692 : vector<16x64xf32>
    %694 = vector.broadcast %683 : vector<1x64xf32> to vector<16x64xf32>
    %695 = arith.mulf %693, %694 : vector<16x64xf32>
    %696 = arith.truncf %695 : vector<16x64xf32> to vector<16x64xbf16>
    %c4_219 = arith.constant 4 : index
    %c0_220 = arith.constant 0 : index
    %c0_221 = arith.constant 0 : index
    %697 = vector.load %arg8[%c4_219, %c0_220, %c0_221] : memref<6x64x256xbf16, #tpu.memory_space<vmem>>, vector<1x64x256xbf16>
    %698 = vector.shape_cast %697 : vector<1x64x256xbf16> to vector<64x256xbf16>
    %cst_222 = arith.constant dense<0.000000e+00> : vector<16x256xf32>
    %699 = tpu.matmul %696, %698, %cst_222 {dimension_numbers = #tpu.dot_dimension_numbers<[1], [0], [0], [1], [0, 0, 1, 1], [], []>} : vector<16x64xbf16>, vector<64x256xbf16>, vector<16x256xf32> -> vector<16x256xf32>
    %700 = vector.extract_strided_slice %699 {offsets = [0, 0], sizes = [16, 128], strides = [1, 1]} : vector<16x256xf32> to vector<16x128xf32>
    %701 = vector.extract_strided_slice %699 {offsets = [0, 128], sizes = [16, 128], strides = [1, 1]} : vector<16x256xf32> to vector<16x128xf32>
    %702 = arith.negf %700 : vector<16x128xf32>
    %703 = math.exp %702 : vector<16x128xf32>
    %cst_223 = arith.constant 1.000000e+00 : f32
    %704 = vector.broadcast %cst_223 : f32 to vector<16x128xf32>
    %705 = arith.addf %704, %703 : vector<16x128xf32>
    %706 = arith.divf %704, %705 : vector<16x128xf32>
    %707 = arith.mulf %700, %706 : vector<16x128xf32>
    %708 = arith.mulf %707, %701 : vector<16x128xf32>
    %709 = arith.truncf %708 : vector<16x128xf32> to vector<16x128xbf16>
    %c4_224 = arith.constant 4 : index
    %c0_225 = arith.constant 0 : index
    %c0_226 = arith.constant 0 : index
    %710 = vector.load %arg9[%c4_224, %c0_225, %c0_226] : memref<6x128x64xbf16, #tpu.memory_space<vmem>>, vector<1x128x64xbf16>
    %711 = vector.shape_cast %710 : vector<1x128x64xbf16> to vector<128x64xbf16>
    %cst_227 = arith.constant dense<0.000000e+00> : vector<16x64xf32>
    %712 = tpu.matmul %709, %711, %cst_227 {dimension_numbers = #tpu.dot_dimension_numbers<[1], [0], [0], [1], [0, 0, 1, 1], [], []>} : vector<16x128xbf16>, vector<128x64xbf16>, vector<16x64xf32> -> vector<16x64xf32>
    %713 = arith.addf %681, %712 : vector<16x64xf32>
    %c5 = arith.constant 5 : index
    %c0_228 = arith.constant 0 : index
    %c0_229 = arith.constant 0 : index
    %714 = vector.load %arg4[%c5, %c0_228, %c0_229] : memref<6x1x64xf32, #tpu.memory_space<vmem>>, vector<1x1x64xf32>
    %715 = vector.shape_cast %714 : vector<1x1x64xf32> to vector<1x64xf32>
    %716 = arith.mulf %713, %713 : vector<16x64xf32>
    %cst_230 = arith.constant dense<0.000000e+00> : vector<16xf32>
    %717 = vector.multi_reduction <add>, %716, %cst_230 [1] : vector<16x64xf32> to vector<16xf32>
    %718 = vector.shape_cast %717 : vector<16xf32> to vector<16x1xf32>
    %cst_231 = arith.constant 6.400000e+01 : f32
    %719 = vector.broadcast %cst_231 : f32 to vector<16x1xf32>
    %720 = arith.divf %718, %719 : vector<16x1xf32>
    %cst_232 = arith.constant 9.99999997E-7 : f32
    %721 = vector.broadcast %cst_232 : f32 to vector<16x1xf32>
    %722 = arith.addf %720, %721 : vector<16x1xf32>
    %723 = math.rsqrt %722 : vector<16x1xf32>
    %724 = vector.broadcast %723 : vector<16x1xf32> to vector<16x64xf32>
    %725 = arith.mulf %713, %724 : vector<16x64xf32>
    %726 = vector.broadcast %715 : vector<1x64xf32> to vector<16x64xf32>
    %727 = arith.mulf %725, %726 : vector<16x64xf32>
    %728 = arith.truncf %727 : vector<16x64xf32> to vector<16x64xbf16>
    %c5_233 = arith.constant 5 : index
    %c0_234 = arith.constant 0 : index
    %c0_235 = arith.constant 0 : index
    %729 = vector.load %arg5[%c5_233, %c0_234, %c0_235] : memref<6x64x320xbf16, #tpu.memory_space<vmem>>, vector<1x64x320xbf16>
    %730 = vector.shape_cast %729 : vector<1x64x320xbf16> to vector<64x320xbf16>
    %cst_236 = arith.constant dense<0.000000e+00> : vector<16x320xf32>
    %731 = tpu.matmul %728, %730, %cst_236 {dimension_numbers = #tpu.dot_dimension_numbers<[1], [0], [0], [1], [0, 0, 1, 1], [], []>} : vector<16x64xbf16>, vector<64x320xbf16>, vector<16x320xf32> -> vector<16x320xf32>
    %732 = vector.extract_strided_slice %731 {offsets = [0, 0], sizes = [16, 64], strides = [1, 1]} : vector<16x320xf32> to vector<16x64xf32>
    %733 = arith.mulf %732, %1 : vector<16x64xf32>
    %734 = vector.extract_strided_slice %731 {offsets = [0, 64], sizes = [16, 64], strides = [1, 1]} : vector<16x320xf32> to vector<16x64xf32>
    %735 = arith.mulf %734, %2 : vector<16x64xf32>
    %736 = arith.addf %733, %735 : vector<16x64xf32>
    %737 = vector.extract_strided_slice %731 {offsets = [0, 128], sizes = [16, 64], strides = [1, 1]} : vector<16x320xf32> to vector<16x64xf32>
    %738 = arith.mulf %737, %1 : vector<16x64xf32>
    %739 = vector.extract_strided_slice %731 {offsets = [0, 192], sizes = [16, 64], strides = [1, 1]} : vector<16x320xf32> to vector<16x64xf32>
    %740 = arith.mulf %739, %2 : vector<16x64xf32>
    %741 = arith.addf %738, %740 : vector<16x64xf32>
    %742 = vector.extract_strided_slice %731 {offsets = [0, 256], sizes = [16, 64], strides = [1, 1]} : vector<16x320xf32> to vector<16x64xf32>
    %743 = arith.truncf %736 : vector<16x64xf32> to vector<16x64xbf16>
    %744 = vector.shape_cast %743 : vector<16x64xbf16> to vector<2x8x64xbf16>
    %745 = arith.truncf %741 : vector<16x64xf32> to vector<16x64xbf16>
    %746 = vector.shape_cast %745 : vector<16x64xbf16> to vector<2x8x64xbf16>
    %747 = arith.truncf %742 : vector<16x64xf32> to vector<16x64xbf16>
    %748 = vector.shape_cast %747 : vector<16x64xbf16> to vector<2x8x64xbf16>
    %749 = vector.extract_strided_slice %744 {offsets = [0, 0, 0], sizes = [2, 8, 16], strides = [1, 1, 1]} : vector<2x8x64xbf16> to vector<2x8x16xbf16>
    %750 = vector.extract_strided_slice %746 {offsets = [0, 0, 0], sizes = [2, 8, 16], strides = [1, 1, 1]} : vector<2x8x64xbf16> to vector<2x8x16xbf16>
    "tpu.trace_start"() <{level = 10 : i32, message = "bqd,bkd->bqk"}> : () -> ()
    %cst_237 = arith.constant dense<0.000000e+00> : vector<2x8x8xf32>
    %751 = tpu.matmul %749, %750, %cst_237 {dimension_numbers = #tpu.dot_dimension_numbers<[2], [2], [1], [1], [0, 0, 0, 1, 1, 1], [0], [0]>} : vector<2x8x16xbf16>, vector<2x8x16xbf16>, vector<2x8x8xf32> -> vector<2x8x8xf32>
    "tpu.trace_stop"() : () -> ()
    %752 = arith.addf %751, %3 : vector<2x8x8xf32>
    %cst_238 = arith.constant dense<0xFF800000> : vector<2x8xf32>
    %753 = vector.multi_reduction <maximumf>, %752, %cst_238 [2] : vector<2x8x8xf32> to vector<2x8xf32>
    %754 = vector.shape_cast %753 : vector<2x8xf32> to vector<2x8x1xf32>
    %755 = vector.broadcast %754 : vector<2x8x1xf32> to vector<2x8x8xf32>
    %756 = arith.subf %752, %755 : vector<2x8x8xf32>
    %757 = math.exp %756 : vector<2x8x8xf32>
    %cst_239 = arith.constant dense<0.000000e+00> : vector<2x8xf32>
    %758 = vector.multi_reduction <add>, %757, %cst_239 [2] : vector<2x8x8xf32> to vector<2x8xf32>
    %759 = vector.shape_cast %758 : vector<2x8xf32> to vector<2x8x1xf32>
    %760 = tpu.reciprocal %759 {approx = true} : vector<2x8x1xf32> -> vector<2x8x1xf32>
    %761 = vector.broadcast %760 : vector<2x8x1xf32> to vector<2x8x8xf32>
    %762 = arith.mulf %757, %761 : vector<2x8x8xf32>
    %763 = arith.truncf %762 : vector<2x8x8xf32> to vector<2x8x8xbf16>
    %764 = vector.extract_strided_slice %748 {offsets = [0, 0, 0], sizes = [2, 8, 16], strides = [1, 1, 1]} : vector<2x8x64xbf16> to vector<2x8x16xbf16>
    "tpu.trace_start"() <{level = 10 : i32, message = "bqk,bkd->bqd"}> : () -> ()
    %cst_240 = arith.constant dense<0.000000e+00> : vector<2x8x16xf32>
    %765 = tpu.matmul %763, %764, %cst_240 {dimension_numbers = #tpu.dot_dimension_numbers<[2], [1], [1], [2], [0, 0, 0, 1, 1, 2], [0], [0]>} : vector<2x8x8xbf16>, vector<2x8x16xbf16>, vector<2x8x16xf32> -> vector<2x8x16xf32>
    "tpu.trace_stop"() : () -> ()
    %766 = vector.extract_strided_slice %744 {offsets = [0, 0, 16], sizes = [2, 8, 16], strides = [1, 1, 1]} : vector<2x8x64xbf16> to vector<2x8x16xbf16>
    %767 = vector.extract_strided_slice %746 {offsets = [0, 0, 16], sizes = [2, 8, 16], strides = [1, 1, 1]} : vector<2x8x64xbf16> to vector<2x8x16xbf16>
    "tpu.trace_start"() <{level = 10 : i32, message = "bqd,bkd->bqk"}> : () -> ()
    %cst_241 = arith.constant dense<0.000000e+00> : vector<2x8x8xf32>
    %768 = tpu.matmul %766, %767, %cst_241 {dimension_numbers = #tpu.dot_dimension_numbers<[2], [2], [1], [1], [0, 0, 0, 1, 1, 1], [0], [0]>} : vector<2x8x16xbf16>, vector<2x8x16xbf16>, vector<2x8x8xf32> -> vector<2x8x8xf32>
    "tpu.trace_stop"() : () -> ()
    %769 = arith.addf %768, %3 : vector<2x8x8xf32>
    %cst_242 = arith.constant dense<0xFF800000> : vector<2x8xf32>
    %770 = vector.multi_reduction <maximumf>, %769, %cst_242 [2] : vector<2x8x8xf32> to vector<2x8xf32>
    %771 = vector.shape_cast %770 : vector<2x8xf32> to vector<2x8x1xf32>
    %772 = vector.broadcast %771 : vector<2x8x1xf32> to vector<2x8x8xf32>
    %773 = arith.subf %769, %772 : vector<2x8x8xf32>
    %774 = math.exp %773 : vector<2x8x8xf32>
    %cst_243 = arith.constant dense<0.000000e+00> : vector<2x8xf32>
    %775 = vector.multi_reduction <add>, %774, %cst_243 [2] : vector<2x8x8xf32> to vector<2x8xf32>
    %776 = vector.shape_cast %775 : vector<2x8xf32> to vector<2x8x1xf32>
    %777 = tpu.reciprocal %776 {approx = true} : vector<2x8x1xf32> -> vector<2x8x1xf32>
    %778 = vector.broadcast %777 : vector<2x8x1xf32> to vector<2x8x8xf32>
    %779 = arith.mulf %774, %778 : vector<2x8x8xf32>
    %780 = arith.truncf %779 : vector<2x8x8xf32> to vector<2x8x8xbf16>
    %781 = vector.extract_strided_slice %748 {offsets = [0, 0, 16], sizes = [2, 8, 16], strides = [1, 1, 1]} : vector<2x8x64xbf16> to vector<2x8x16xbf16>
    "tpu.trace_start"() <{level = 10 : i32, message = "bqk,bkd->bqd"}> : () -> ()
    %cst_244 = arith.constant dense<0.000000e+00> : vector<2x8x16xf32>
    %782 = tpu.matmul %780, %781, %cst_244 {dimension_numbers = #tpu.dot_dimension_numbers<[2], [1], [1], [2], [0, 0, 0, 1, 1, 2], [0], [0]>} : vector<2x8x8xbf16>, vector<2x8x16xbf16>, vector<2x8x16xf32> -> vector<2x8x16xf32>
    "tpu.trace_stop"() : () -> ()
    %783 = vector.extract_strided_slice %744 {offsets = [0, 0, 32], sizes = [2, 8, 16], strides = [1, 1, 1]} : vector<2x8x64xbf16> to vector<2x8x16xbf16>
    %784 = vector.extract_strided_slice %746 {offsets = [0, 0, 32], sizes = [2, 8, 16], strides = [1, 1, 1]} : vector<2x8x64xbf16> to vector<2x8x16xbf16>
    "tpu.trace_start"() <{level = 10 : i32, message = "bqd,bkd->bqk"}> : () -> ()
    %cst_245 = arith.constant dense<0.000000e+00> : vector<2x8x8xf32>
    %785 = tpu.matmul %783, %784, %cst_245 {dimension_numbers = #tpu.dot_dimension_numbers<[2], [2], [1], [1], [0, 0, 0, 1, 1, 1], [0], [0]>} : vector<2x8x16xbf16>, vector<2x8x16xbf16>, vector<2x8x8xf32> -> vector<2x8x8xf32>
    "tpu.trace_stop"() : () -> ()
    %786 = arith.addf %785, %3 : vector<2x8x8xf32>
    %cst_246 = arith.constant dense<0xFF800000> : vector<2x8xf32>
    %787 = vector.multi_reduction <maximumf>, %786, %cst_246 [2] : vector<2x8x8xf32> to vector<2x8xf32>
    %788 = vector.shape_cast %787 : vector<2x8xf32> to vector<2x8x1xf32>
    %789 = vector.broadcast %788 : vector<2x8x1xf32> to vector<2x8x8xf32>
    %790 = arith.subf %786, %789 : vector<2x8x8xf32>
    %791 = math.exp %790 : vector<2x8x8xf32>
    %cst_247 = arith.constant dense<0.000000e+00> : vector<2x8xf32>
    %792 = vector.multi_reduction <add>, %791, %cst_247 [2] : vector<2x8x8xf32> to vector<2x8xf32>
    %793 = vector.shape_cast %792 : vector<2x8xf32> to vector<2x8x1xf32>
    %794 = tpu.reciprocal %793 {approx = true} : vector<2x8x1xf32> -> vector<2x8x1xf32>
    %795 = vector.broadcast %794 : vector<2x8x1xf32> to vector<2x8x8xf32>
    %796 = arith.mulf %791, %795 : vector<2x8x8xf32>
    %797 = arith.truncf %796 : vector<2x8x8xf32> to vector<2x8x8xbf16>
    %798 = vector.extract_strided_slice %748 {offsets = [0, 0, 32], sizes = [2, 8, 16], strides = [1, 1, 1]} : vector<2x8x64xbf16> to vector<2x8x16xbf16>
    "tpu.trace_start"() <{level = 10 : i32, message = "bqk,bkd->bqd"}> : () -> ()
    %cst_248 = arith.constant dense<0.000000e+00> : vector<2x8x16xf32>
    %799 = tpu.matmul %797, %798, %cst_248 {dimension_numbers = #tpu.dot_dimension_numbers<[2], [1], [1], [2], [0, 0, 0, 1, 1, 2], [0], [0]>} : vector<2x8x8xbf16>, vector<2x8x16xbf16>, vector<2x8x16xf32> -> vector<2x8x16xf32>
    "tpu.trace_stop"() : () -> ()
    %800 = vector.extract_strided_slice %744 {offsets = [0, 0, 48], sizes = [2, 8, 16], strides = [1, 1, 1]} : vector<2x8x64xbf16> to vector<2x8x16xbf16>
    %801 = vector.extract_strided_slice %746 {offsets = [0, 0, 48], sizes = [2, 8, 16], strides = [1, 1, 1]} : vector<2x8x64xbf16> to vector<2x8x16xbf16>
    "tpu.trace_start"() <{level = 10 : i32, message = "bqd,bkd->bqk"}> : () -> ()
    %cst_249 = arith.constant dense<0.000000e+00> : vector<2x8x8xf32>
    %802 = tpu.matmul %800, %801, %cst_249 {dimension_numbers = #tpu.dot_dimension_numbers<[2], [2], [1], [1], [0, 0, 0, 1, 1, 1], [0], [0]>} : vector<2x8x16xbf16>, vector<2x8x16xbf16>, vector<2x8x8xf32> -> vector<2x8x8xf32>
    "tpu.trace_stop"() : () -> ()
    %803 = arith.addf %802, %3 : vector<2x8x8xf32>
    %cst_250 = arith.constant dense<0xFF800000> : vector<2x8xf32>
    %804 = vector.multi_reduction <maximumf>, %803, %cst_250 [2] : vector<2x8x8xf32> to vector<2x8xf32>
    %805 = vector.shape_cast %804 : vector<2x8xf32> to vector<2x8x1xf32>
    %806 = vector.broadcast %805 : vector<2x8x1xf32> to vector<2x8x8xf32>
    %807 = arith.subf %803, %806 : vector<2x8x8xf32>
    %808 = math.exp %807 : vector<2x8x8xf32>
    %cst_251 = arith.constant dense<0.000000e+00> : vector<2x8xf32>
    %809 = vector.multi_reduction <add>, %808, %cst_251 [2] : vector<2x8x8xf32> to vector<2x8xf32>
    %810 = vector.shape_cast %809 : vector<2x8xf32> to vector<2x8x1xf32>
    %811 = tpu.reciprocal %810 {approx = true} : vector<2x8x1xf32> -> vector<2x8x1xf32>
    %812 = vector.broadcast %811 : vector<2x8x1xf32> to vector<2x8x8xf32>
    %813 = arith.mulf %808, %812 : vector<2x8x8xf32>
    %814 = arith.truncf %813 : vector<2x8x8xf32> to vector<2x8x8xbf16>
    %815 = vector.extract_strided_slice %748 {offsets = [0, 0, 48], sizes = [2, 8, 16], strides = [1, 1, 1]} : vector<2x8x64xbf16> to vector<2x8x16xbf16>
    "tpu.trace_start"() <{level = 10 : i32, message = "bqk,bkd->bqd"}> : () -> ()
    %cst_252 = arith.constant dense<0.000000e+00> : vector<2x8x16xf32>
    %816 = tpu.matmul %814, %815, %cst_252 {dimension_numbers = #tpu.dot_dimension_numbers<[2], [1], [1], [2], [0, 0, 0, 1, 1, 2], [0], [0]>} : vector<2x8x8xbf16>, vector<2x8x16xbf16>, vector<2x8x16xf32> -> vector<2x8x16xf32>
    "tpu.trace_stop"() : () -> ()
    %817 = tpu.concatenate %765, %782, %799, %816 in 2 : vector<2x8x16xf32>, vector<2x8x16xf32>, vector<2x8x16xf32>, vector<2x8x16xf32> -> vector<2x8x64xf32>
    %818 = vector.shape_cast %817 : vector<2x8x64xf32> to vector<16x64xf32>
    %819 = arith.truncf %818 : vector<16x64xf32> to vector<16x64xbf16>
    %c5_253 = arith.constant 5 : index
    %c0_254 = arith.constant 0 : index
    %c0_255 = arith.constant 0 : index
    %820 = vector.load %arg6[%c5_253, %c0_254, %c0_255] : memref<6x64x64xbf16, #tpu.memory_space<vmem>>, vector<1x64x64xbf16>
    %821 = vector.shape_cast %820 : vector<1x64x64xbf16> to vector<64x64xbf16>
    %cst_256 = arith.constant dense<0.000000e+00> : vector<16x64xf32>
    %822 = tpu.matmul %819, %821, %cst_256 {dimension_numbers = #tpu.dot_dimension_numbers<[1], [0], [0], [1], [0, 0, 1, 1], [], []>} : vector<16x64xbf16>, vector<64x64xbf16>, vector<16x64xf32> -> vector<16x64xf32>
    %823 = arith.addf %713, %822 : vector<16x64xf32>
    %c5_257 = arith.constant 5 : index
    %c0_258 = arith.constant 0 : index
    %c0_259 = arith.constant 0 : index
    %824 = vector.load %arg7[%c5_257, %c0_258, %c0_259] : memref<6x1x64xf32, #tpu.memory_space<vmem>>, vector<1x1x64xf32>
    %825 = vector.shape_cast %824 : vector<1x1x64xf32> to vector<1x64xf32>
    %826 = arith.mulf %823, %823 : vector<16x64xf32>
    %cst_260 = arith.constant dense<0.000000e+00> : vector<16xf32>
    %827 = vector.multi_reduction <add>, %826, %cst_260 [1] : vector<16x64xf32> to vector<16xf32>
    %828 = vector.shape_cast %827 : vector<16xf32> to vector<16x1xf32>
    %cst_261 = arith.constant 6.400000e+01 : f32
    %829 = vector.broadcast %cst_261 : f32 to vector<16x1xf32>
    %830 = arith.divf %828, %829 : vector<16x1xf32>
    %cst_262 = arith.constant 9.99999997E-7 : f32
    %831 = vector.broadcast %cst_262 : f32 to vector<16x1xf32>
    %832 = arith.addf %830, %831 : vector<16x1xf32>
    %833 = math.rsqrt %832 : vector<16x1xf32>
    %834 = vector.broadcast %833 : vector<16x1xf32> to vector<16x64xf32>
    %835 = arith.mulf %823, %834 : vector<16x64xf32>
    %836 = vector.broadcast %825 : vector<1x64xf32> to vector<16x64xf32>
    %837 = arith.mulf %835, %836 : vector<16x64xf32>
    %838 = arith.truncf %837 : vector<16x64xf32> to vector<16x64xbf16>
    %c5_263 = arith.constant 5 : index
    %c0_264 = arith.constant 0 : index
    %c0_265 = arith.constant 0 : index
    %839 = vector.load %arg8[%c5_263, %c0_264, %c0_265] : memref<6x64x256xbf16, #tpu.memory_space<vmem>>, vector<1x64x256xbf16>
    %840 = vector.shape_cast %839 : vector<1x64x256xbf16> to vector<64x256xbf16>
    %cst_266 = arith.constant dense<0.000000e+00> : vector<16x256xf32>
    %841 = tpu.matmul %838, %840, %cst_266 {dimension_numbers = #tpu.dot_dimension_numbers<[1], [0], [0], [1], [0, 0, 1, 1], [], []>} : vector<16x64xbf16>, vector<64x256xbf16>, vector<16x256xf32> -> vector<16x256xf32>
    %842 = vector.extract_strided_slice %841 {offsets = [0, 0], sizes = [16, 128], strides = [1, 1]} : vector<16x256xf32> to vector<16x128xf32>
    %843 = vector.extract_strided_slice %841 {offsets = [0, 128], sizes = [16, 128], strides = [1, 1]} : vector<16x256xf32> to vector<16x128xf32>
    %844 = arith.negf %842 : vector<16x128xf32>
    %845 = math.exp %844 : vector<16x128xf32>
    %cst_267 = arith.constant 1.000000e+00 : f32
    %846 = vector.broadcast %cst_267 : f32 to vector<16x128xf32>
    %847 = arith.addf %846, %845 : vector<16x128xf32>
    %848 = arith.divf %846, %847 : vector<16x128xf32>
    %849 = arith.mulf %842, %848 : vector<16x128xf32>
    %850 = arith.mulf %849, %843 : vector<16x128xf32>
    %851 = arith.truncf %850 : vector<16x128xf32> to vector<16x128xbf16>
    %c5_268 = arith.constant 5 : index
    %c0_269 = arith.constant 0 : index
    %c0_270 = arith.constant 0 : index
    %852 = vector.load %arg9[%c5_268, %c0_269, %c0_270] : memref<6x128x64xbf16, #tpu.memory_space<vmem>>, vector<1x128x64xbf16>
    %853 = vector.shape_cast %852 : vector<1x128x64xbf16> to vector<128x64xbf16>
    %cst_271 = arith.constant dense<0.000000e+00> : vector<16x64xf32>
    %854 = tpu.matmul %851, %853, %cst_271 {dimension_numbers = #tpu.dot_dimension_numbers<[1], [0], [0], [1], [0, 0, 1, 1], [], []>} : vector<16x128xbf16>, vector<128x64xbf16>, vector<16x64xf32> -> vector<16x64xf32>
    %855 = arith.addf %823, %854 : vector<16x64xf32>
    %c0_272 = arith.constant 0 : index
    %c0_273 = arith.constant 0 : index
    %856 = vector.load %arg10[%c0_272, %c0_273] : memref<1x64xf32, #tpu.memory_space<vmem>>, vector<1x64xf32>
    %857 = arith.mulf %855, %855 : vector<16x64xf32>
    %cst_274 = arith.constant dense<0.000000e+00> : vector<16xf32>
    %858 = vector.multi_reduction <add>, %857, %cst_274 [1] : vector<16x64xf32> to vector<16xf32>
    %859 = vector.shape_cast %858 : vector<16xf32> to vector<16x1xf32>
    %cst_275 = arith.constant 6.400000e+01 : f32
    %860 = vector.broadcast %cst_275 : f32 to vector<16x1xf32>
    %861 = arith.divf %859, %860 : vector<16x1xf32>
    %cst_276 = arith.constant 9.99999997E-7 : f32
    %862 = vector.broadcast %cst_276 : f32 to vector<16x1xf32>
    %863 = arith.addf %861, %862 : vector<16x1xf32>
    %864 = math.rsqrt %863 : vector<16x1xf32>
    %865 = vector.broadcast %864 : vector<16x1xf32> to vector<16x64xf32>
    %866 = arith.mulf %855, %865 : vector<16x64xf32>
    %867 = vector.broadcast %856 : vector<1x64xf32> to vector<16x64xf32>
    %868 = arith.mulf %866, %867 : vector<16x64xf32>
    %c0_277 = arith.constant 0 : index
    %c0_278 = arith.constant 0 : index
    %869 = vector.load %arg11[%c0_277, %c0_278] : memref<16x64xf32, #tpu.memory_space<vmem>>, vector<16x64xf32>
    tpu.vector_store %arg11[%c0_277, %c0_278], %868 {strides = array<i32>} : memref<16x64xf32, #tpu.memory_space<vmem>>, vector<16x64xf32>,
    return
  }
}

</mosaic_0001>

<llo_original>
// kernel: llama_sub_model_forward.1
$region0: #{llama_sub_model_forward.1}
  #allocation0 [shape = 'u32[]', space=smem, size = 0x4, offset = 0x4, fixed_abs, tag = 'smem constant byte address 0x4 - core index']
  #allocation1 [shape = 'u32[144,128]{1,0:T(1,128)}', space=vmem, size = 0x12000, scoped, tag = 'internal scratch']
  %s0 = inlined_call_operand.vmem [shape: f32[16,64], index: 0, kind: input, shape index: {}]
  %s1 = inlined_call_operand.vmem [shape: f32[16,64], index: 1, kind: input, shape index: {}]
  %s2 = inlined_call_operand.vmem [shape: f32[16,64], index: 2, kind: input, shape index: {}]
  %s3 = inlined_call_operand.vmem [shape: f32[2,8,8], index: 3, kind: input, shape index: {}]
  %s4 = inlined_call_operand.vmem [shape: f32[6,1,64], index: 4, kind: input, shape index: {}]
  %s5 = inlined_call_operand.vmem [shape: bf16[6,64,320], index: 5, kind: input, shape index: {}]
  %s6 = inlined_call_operand.vmem [shape: bf16[6,64,64], index: 6, kind: input, shape index: {}]
  %s7 = inlined_call_operand.vmem [shape: f32[6,1,64], index: 7, kind: input, shape index: {}]
  %s8 = inlined_call_operand.vmem [shape: bf16[6,64,256], index: 8, kind: input, shape index: {}]
  %s9 = inlined_call_operand.vmem [shape: bf16[6,128,64], index: 9, kind: input, shape index: {}]
  %s10 = inlined_call_operand.vmem [shape: f32[1,64], index: 10, kind: input, shape index: {}]
  %s11 = inlined_call_operand.hbm [shape: f32[16,64], index: 11, kind: output, shape index: {}]
  %s12 = sld [smem:[#allocation0]]
  $region54: #{llama_sub_model_forward.1} parent=0
    _
  %s14 = ssub.s32 1, %s12
  %s15 = scalar_select 0, %s14, %s12
  $region1: #{llama_sub_model_forward.1} parent=0
    #allocation2 [shape = 'u8[8192]{0}', space=vmem, size = 0x2000, scoped, tag = 'output window, operand 0, single buffered']
    #allocation3 [shape = 's32[1]{0}', space=sflag, size = 0x4, scoped, tag = 'scoped memory for llama_sub_model_forward.1']
    %16 = vsyncpa [#allocation3], 0
    // Predicated region
    $region2: #{llama_sub_model_forward.1} parent=1 // pred_check
      _
    $region3: #{llama_sub_model_forward.1} parent=1 // pred_check_branch
      %18 = sbr.rel (0) target = $region5
    $region4: #{llama_sub_model_forward.1} parent=1 // pred_region
      _
    $region5: #{llama_sub_model_forward.1} parent=1 // pred_fallthru
      _
    // Predicated region
    $region6: #{llama_sub_model_forward.1} parent=1 // pred_check
      _
    $region7: #{llama_sub_model_forward.1} parent=1 // pred_check_branch
      %20 = sbr.rel (0) target = $region9
    $region8: #{llama_sub_model_forward.1} parent=1 // pred_region
      _
    $region9: #{llama_sub_model_forward.1} parent=1 // pred_fallthru
      _
    // Predicated region
    $region10: #{llama_sub_model_forward.1} parent=1 // pred_check
      _
    $region11: #{llama_sub_model_forward.1} parent=1 // pred_check_branch
      %22 = sbr.rel (0) target = $region13
    $region12: #{llama_sub_model_forward.1} parent=1 // pred_region
      _
    $region13: #{llama_sub_model_forward.1} parent=1 // pred_fallthru
      _
    // Predicated region
    $region14: #{llama_sub_model_forward.1} parent=1 // pred_check
      _
    $region15: #{llama_sub_model_forward.1} parent=1 // pred_check_branch
      %24 = sbr.rel (0) target = $region17
    $region16: #{llama_sub_model_forward.1} parent=1 // pred_region
      _
    $region17: #{llama_sub_model_forward.1} parent=1 // pred_fallthru
      _
    // Predicated region
    $region18: #{llama_sub_model_forward.1} parent=1 // pred_check
      _
    $region19: #{llama_sub_model_forward.1} parent=1 // pred_check_branch
      %26 = sbr.rel (0) target = $region21
    $region20: #{llama_sub_model_forward.1} parent=1 // pred_region
      _
    $region21: #{llama_sub_model_forward.1} parent=1 // pred_fallthru
      _
    // Predicated region
    $region22: #{llama_sub_model_forward.1} parent=1 // pred_check
      _
    $region23: #{llama_sub_model_forward.1} parent=1 // pred_check_branch
      %28 = sbr.rel (0) target = $region25
    $region24: #{llama_sub_model_forward.1} parent=1 // pred_region
      _
    $region25: #{llama_sub_model_forward.1} parent=1 // pred_fallthru
      _
    // Predicated region
    $region26: #{llama_sub_model_forward.1} parent=1 // pred_check
      _
    $region27: #{llama_sub_model_forward.1} parent=1 // pred_check_branch
      %30 = sbr.rel (0) target = $region29
    $region28: #{llama_sub_model_forward.1} parent=1 // pred_region
      _
    $region29: #{llama_sub_model_forward.1} parent=1 // pred_fallthru
      _
    // Predicated region
    $region30: #{llama_sub_model_forward.1} parent=1 // pred_check
      _
    $region31: #{llama_sub_model_forward.1} parent=1 // pred_check_branch
      %32 = sbr.rel (0) target = $region33
    $region32: #{llama_sub_model_forward.1} parent=1 // pred_region
      _
    $region33: #{llama_sub_model_forward.1} parent=1 // pred_fallthru
      _
    // Predicated region
    $region34: #{llama_sub_model_forward.1} parent=1 // pred_check
      _
    $region35: #{llama_sub_model_forward.1} parent=1 // pred_check_branch
      %34 = sbr.rel (0) target = $region37
    $region36: #{llama_sub_model_forward.1} parent=1 // pred_region
      _
    $region37: #{llama_sub_model_forward.1} parent=1 // pred_fallthru
      _
    // Predicated region
    $region38: #{llama_sub_model_forward.1} parent=1 // pred_check
      _
    $region39: #{llama_sub_model_forward.1} parent=1 // pred_check_branch
      %36 = sbr.rel (0) target = $region41
    $region40: #{llama_sub_model_forward.1} parent=1 // pred_region
      _
    $region41: #{llama_sub_model_forward.1} parent=1 // pred_fallthru
      _
    // Predicated region
    $region42: #{llama_sub_model_forward.1} parent=1 // pred_check
      _
    $region43: #{llama_sub_model_forward.1} parent=1 // pred_check_branch
      %38 = sbr.rel (0) target = $region45
    $region44: #{llama_sub_model_forward.1} parent=1 // pred_region
      _
    $region45: #{llama_sub_model_forward.1} parent=1 // pred_fallthru
      _
    %v40 = vld [vmem:[%s0] sm:$0xff]
    %v41 = vld [vmem:[%s0 + $0x8] sm:$0xff]
    %v42 = vld [vmem:[%s1] sm:$0xff]
    %v43 = vld [vmem:[%s1 + $0x8] sm:$0xff]
    %v44 = vld [vmem:[%s2] sm:$0xff]
    %v45 = vld [vmem:[%s2 + $0x8] sm:$0xff]
    %v46 = vld [vmem:[%s3] sm:$0xff]
    %v47 = vld [vmem:[%s3 + $0x8] sm:$0xff]
    %v48 = vld [vmem:[%s4] sm:$0x1]
    %v49 = vmul.f32 %v40, %v40
    %v50 = vmul.f32 %v41, %v41
    %vm51 = vcmask 523264
    %v52 = vsel %vm51, %v49, 0.0
    %53 = vadd.xlane.f32.xlu0 %v52
    %v54 = vpop.xlane.xlu0 %53
    %v55 = vsel %vm51, %v50, 0.0
    %56 = vadd.xlane.f32.xlu0 %v55
    %v57 = vpop.xlane.xlu0 %56
    %v58 = vrcp.pop 64.0
    %v59 = vmul.f32 %v54, %v58
    %v60 = vmul.f32 %v57, %v58
    %v61 = vadd.f32 %v59, 1e-06
    %v62 = vadd.f32 %v60, 1e-06
    %v63 = vrsqrt.pop %v61
    %v64 = vrsqrt.pop %v62
    %v65 = vmul.f32 %v40, %v63
    %v66 = vmul.f32 %v41, %v64
    %v68 = vlaneseq
    %v69 = vshrl.u32 %v68, 7
    %v70 = vsub.s32 0, %v69
    %v71 = vrot.slane %v48, %v70
    %v73 = vmul.f32 %v65, %v71
    %v74 = vmul.f32 %v66, %v71
    %v75 = vpack.c.bf16 %v74, %v73
    %v76 = vld [vmem:[%s5] sm:$0xff]
    %v77 = vld [vmem:[%s5 + $0x8] sm:$0xf]
    %v78 = vld [vmem:[%s5 + $0xc] sm:$0xff]
    %v79 = vld [vmem:[%s5 + $0x14] sm:$0xf]
    %v80 = vld [vmem:[%s5 + $0x18] sm:$0xff]
    %v81 = vld [vmem:[%s5 + $0x20] sm:$0xf]
    %v82 = vld [vmem:[%s5 + $0x24] sm:$0xff]
    %v83 = vld [vmem:[%s5 + $0x2c] sm:$0xf]
    %v84 = vld [vmem:[%s5 + $0x30] sm:$0xff]
    %v85 = vld [vmem:[%s5 + $0x38] sm:$0xf]
    %v86 = vld [vmem:[%s5 + $0x3c] sm:$0xff]
    %v87 = vld [vmem:[%s5 + $0x44] sm:$0xf]
    %v88 = vld [vmem:[%s5 + $0x48] sm:$0xff]
    %v89 = vld [vmem:[%s5 + $0x50] sm:$0xf]
    %v90 = vld [vmem:[%s5 + $0x54] sm:$0xff]
    %v91 = vld [vmem:[%s5 + $0x5c] sm:$0xf]
    %v108 = vunpack.c.l.b16 %v76
    %v109 = vunpack.c.h.b16 %v76
    %v110 = vunpack.c.l.b16 %v77
    %v111 = vunpack.c.l.b16 %v78
    %v112 = vunpack.c.h.b16 %v78
    %v113 = vunpack.c.l.b16 %v79
    %v114 = vunpack.c.l.b16 %v80
    %v115 = vunpack.c.h.b16 %v80
    %v116 = vunpack.c.l.b16 %v81
    %v117 = vunpack.c.l.b16 %v82
    %v118 = vunpack.c.h.b16 %v82
    %v119 = vunpack.c.l.b16 %v83
    %v120 = vunpack.c.l.b16 %v84
    %v121 = vunpack.c.h.b16 %v84
    %v122 = vunpack.c.l.b16 %v85
    %v123 = vunpack.c.l.b16 %v86
    %v124 = vunpack.c.h.b16 %v86
    %v125 = vunpack.c.l.b16 %v87
    %v126 = vunpack.c.l.b16 %v88
    %v127 = vunpack.c.h.b16 %v88
    %v128 = vunpack.c.l.b16 %v89
    %v129 = vunpack.c.l.b16 %v90
    %v130 = vunpack.c.h.b16 %v90
    %v131 = vunpack.c.l.b16 %v91
    %v132 = vpack.c.b16 %v111, %v108
    %v133 = vpack.c.b16 %v112, %v109
    %v134 = vpack.c.b16 %v113, %v110
    %v135 = vpack.c.b16 %v117, %v114
    %v136 = vpack.c.b16 %v118, %v115
    %v137 = vpack.c.b16 %v119, %v116
    %v138 = vpack.c.b16 %v123, %v120
    %v139 = vpack.c.b16 %v124, %v121
    %v140 = vpack.c.b16 %v125, %v122
    %v141 = vpack.c.b16 %v129, %v126
    %v142 = vpack.c.b16 %v130, %v127
    %v143 = vpack.c.b16 %v131, %v128
    %v157 = vsel %vm51, %v75, 0
    %159 = vmatprep.subr.bf16.mxu0 %v133
    %160 = vmatpush1.bf16.msra.mxu0 %v132
    %161 = vmatprep.subr.bf16.mxu0 %v136
    %162 = vmatpush1.bf16.msra.mxu0 %v135
    %163 = vmatprep.subr.bf16.mxu0 %v139
    %164 = vmatpush1.bf16.msra.mxu0 %v138
    %165 = vmatprep.subr.bf16.mxu0 %v142
    %166 = vmatpush1.bf16.msra.mxu0 %v141
    %167 = vmatprep.subr.bf16.mxu0 0
    %168 = vmatpush1.bf16.msra.mxu0 0
    %169 = vmatprep.subr.bf16.mxu0 0
    %170 = vmatpush1.bf16.msra.mxu0 0
    %171 = vmatprep.subr.bf16.mxu0 0
    %172 = vmatpush1.bf16.msra.mxu0 0
    %173 = vmatprep.subr.bf16.mxu0 0
    %174 = vmatpush1.bf16.msra.mxu0 0
    %175 = vmatprep.subr.bf16.mxu0 0
    %176 = vmatpush1.bf16.msra.mxu0 0
    %177 = vmatprep.subr.bf16.mxu0 0
    %178 = vmatpush1.bf16.msra.mxu0 0
    %179 = vmatprep.subr.bf16.mxu0 0
    %180 = vmatpush1.bf16.msra.mxu0 0
    %181 = vmatprep.subr.bf16.mxu0 0
    %182 = vmatpush1.bf16.msra.mxu0 0
    %183 = vmatprep.subr.bf16.mxu0 0
    %184 = vmatpush1.bf16.msra.mxu0 0
    %185 = vmatprep.subr.bf16.mxu0 0
    %186 = vmatpush1.bf16.msra.mxu0 0
    %187 = vmatprep.subr.bf16.mxu0 0
    %188 = vmatpush1.bf16.msra.mxu0 0
    %189 = vmatprep.subr.bf16.mxu0 0
    %190 = vmatpush1.bf16.msra.mxu0 0
    %191 = vmatprep.mubr.bf16.mxu0 0
    %192 = vmatmul.mubr.bf16.gmra.mrb[0].mxu0 %v157
    %v193 = vpop.f32.mrb[0].mxu0
    %v194 = vadd.f32 0.0, %v193
    %v195 = vpop.f32.mrb[0].mxu0
    %v196 = vadd.f32 0.0, %v195
    %v197 = vpop.f32.mrb[0].mxu0
    %v198 = vadd.f32 0.0, %v197
    %v199 = vpop.f32.mrb[0].mxu0
    %v200 = vadd.f32 0.0, %v199
    %201 = vdwg.mxu0
    %202 = vmatprep.subr.bf16.mxu0 0
    %203 = vmatpush1.bf16.msra.mxu0 %v134
    %204 = vmatprep.subr.bf16.mxu0 0
    %205 = vmatpush1.bf16.msra.mxu0 %v137
    %206 = vmatprep.subr.bf16.mxu0 0
    %207 = vmatpush1.bf16.msra.mxu0 %v140
    %208 = vmatprep.subr.bf16.mxu0 0
    %209 = vmatpush1.bf16.msra.mxu0 %v143
    %210 = vmatprep.subr.bf16.mxu0 0
    %211 = vmatpush1.bf16.msra.mxu0 0
    %212 = vmatprep.subr.bf16.mxu0 0
    %213 = vmatpush1.bf16.msra.mxu0 0
    %214 = vmatprep.subr.bf16.mxu0 0
    %215 = vmatpush1.bf16.msra.mxu0 0
    %216 = vmatprep.subr.bf16.mxu0 0
    %217 = vmatpush1.bf16.msra.mxu0 0
    %218 = vmatprep.subr.bf16.mxu0 0
    %219 = vmatpush1.bf16.msra.mxu0 0
    %220 = vmatprep.subr.bf16.mxu0 0
    %221 = vmatpush1.bf16.msra.mxu0 0
    %222 = vmatprep.subr.bf16.mxu0 0
    %223 = vmatpush1.bf16.msra.mxu0 0
    %224 = vmatprep.subr.bf16.mxu0 0
    %225 = vmatpush1.bf16.msra.mxu0 0
    %226 = vmatprep.subr.bf16.mxu0 0
    %227 = vmatpush1.bf16.msra.mxu0 0
    %228 = vmatprep.subr.bf16.mxu0 0
    %229 = vmatpush1.bf16.msra.mxu0 0
    %230 = vmatprep.subr.bf16.mxu0 0
    %231 = vmatpush1.bf16.msra.mxu0 0
    %232 = vmatprep.subr.bf16.mxu0 0
    %233 = vmatpush1.bf16.msra.mxu0 0
    %234 = vmatprep.mubr.bf16.mxu0 0
    %235 = vmatmul.mubr.bf16.gmra.mrb[0].mxu0 %v157
    %v236 = vpop.f32.mrb[0].mxu0
    %v237 = vadd.f32 0.0, %v236
    %v238 = vpop.f32.mrb[0].mxu0
    %v239 = vpop.f32.mrb[0].mxu0
    %v240 = vadd.f32 0.0, %v239
    %v241 = vpop.f32.mrb[0].mxu0
    %242 = vdwg.mxu0
    %v243 = vmul.f32 %v194, %v42
    %v244 = vmul.f32 %v198, %v43
    %247 = vrot.lane.b32.xlu0 %v44, 64
    %v248 = vpop.permute.xlu0 %247
    %249 = vrot.lane.b32.xlu0 %v45, 64
    %v250 = vpop.permute.xlu0 %249
    %v253 = vmul.f32 %v194, %v248
    %v254 = vmul.f32 %v198, %v250
    %257 = vrot.lane.b32.xlu0 %v253, 64
    %v258 = vpop.permute.xlu0 %257
    %259 = vrot.lane.b32.xlu0 %v254, 64
    %v260 = vpop.permute.xlu0 %259
    %v263 = vadd.f32 %v243, %v258
    %v264 = vadd.f32 %v244, %v260
    %v265 = vmul.f32 %v196, %v42
    %v266 = vmul.f32 %v200, %v43
    %v267 = vmul.f32 %v196, %v248
    %v268 = vmul.f32 %v200, %v250
    %271 = vrot.lane.b32.xlu0 %v267, 64
    %v272 = vpop.permute.xlu0 %271
    %273 = vrot.lane.b32.xlu0 %v268, 64
    %v274 = vpop.permute.xlu0 %273
    %v277 = vadd.f32 %v265, %v272
    %v278 = vadd.f32 %v266, %v274
    %v279 = vpack.c.bf16 %v264, %v263
    %v281 = vunpack.c.l.b16 %v279
    %v282 = vunpack.c.h.b16 %v279
    %v283 = vpack.c.b16 %v281, %v281
    %v284 = vpack.c.b16 %v282, %v282
    %v285 = vpack.c.bf16 %v278, %v277
    %v287 = vunpack.c.l.b16 %v285
    %v288 = vunpack.c.h.b16 %v285
    %v289 = vpack.c.b16 %v287, %v287
    %v290 = vpack.c.b16 %v288, %v288
    %v291 = vpack.c.bf16 %v240, %v237
    %v293 = vunpack.c.l.b16 %v291
    %v294 = vunpack.c.h.b16 %v291
    %v295 = vpack.c.b16 %v293, %v293
    %v296 = vpack.c.b16 %v294, %v294
    %vm297 = vcmask 130048
    %v299 = vsel %vm297, %v283, 0
    %v302 = vsel %vm297, %v289, 0
    %304 = vmatprep.subr.bf16.mxu0 0
    %305 = vmatpush1.bf16.xpose.msra.mxu0 %v302
    %306 = vmatprep.subr.bf16.mxu0 0
    %307 = vmatpush1.bf16.xpose.msra.mxu0 0
    %308 = vmatprep.subr.bf16.mxu0 0
    %309 = vmatpush1.bf16.xpose.msra.mxu0 0
    %310 = vmatprep.subr.bf16.mxu0 0
    %311 = vmatpush1.bf16.xpose.msra.mxu0 0
    %312 = vmatprep.subr.bf16.mxu0 0
    %313 = vmatpush1.bf16.xpose.msra.mxu0 0
    %314 = vmatprep.subr.bf16.mxu0 0
    %315 = vmatpush1.bf16.xpose.msra.mxu0 0
    %316 = vmatprep.subr.bf16.mxu0 0
    %317 = vmatpush1.bf16.xpose.msra.mxu0 0
    %318 = vmatprep.subr.bf16.mxu0 0
    %319 = vmatpush1.bf16.xpose.msra.mxu0 0
    %320 = vmatprep.subr.bf16.mxu0 0
    %321 = vmatpush1.bf16.xpose.msra.mxu0 0
    %322 = vmatprep.subr.bf16.mxu0 0
    %323 = vmatpush1.bf16.xpose.msra.mxu0 0
    %324 = vmatprep.subr.bf16.mxu0 0
    %325 = vmatpush1.bf16.xpose.msra.mxu0 0
    %326 = vmatprep.subr.bf16.mxu0 0
    %327 = vmatpush1.bf16.xpose.msra.mxu0 0
    %328 = vmatprep.subr.bf16.mxu0 0
    %329 = vmatpush1.bf16.xpose.msra.mxu0 0
    %330 = vmatprep.subr.bf16.mxu0 0
    %331 = vmatpush1.bf16.xpose.msra.mxu0 0
    %332 = vmatprep.subr.bf16.mxu0 0
    %333 = vmatpush1.bf16.xpose.msra.mxu0 0
    %334 = vmatprep.subr.bf16.mxu0 0
    %335 = vmatpush1.bf16.xpose.msra.mxu0 0
    %336 = vmatprep.mubr.bf16.mxu0 0
    %337 = vmatmul.mubr.bf16.gmra.mrb[0].mxu0 %v299
    %v338 = vpop.f32.mrb[0].mxu0
    %v339 = vadd.f32 %v46, %v338
    %v340 = vpop.f32.mrb[0].mxu0
    %v341 = vpop.f32.mrb[0].mxu0
    %v342 = vpop.f32.mrb[0].mxu0
    %343 = vdwg.mxu0
    %v345 = vsel %vm297, %v284, 0
    %v348 = vsel %vm297, %v290, 0
    %350 = vmatprep.subr.bf16.mxu0 0
    %351 = vmatpush1.bf16.xpose.msra.mxu0 %v348
    %352 = vmatprep.subr.bf16.mxu0 0
    %353 = vmatpush1.bf16.xpose.msra.mxu0 0
    %354 = vmatprep.subr.bf16.mxu0 0
    %355 = vmatpush1.bf16.xpose.msra.mxu0 0
    %356 = vmatprep.subr.bf16.mxu0 0
    %357 = vmatpush1.bf16.xpose.msra.mxu0 0
    %358 = vmatprep.subr.bf16.mxu0 0
    %359 = vmatpush1.bf16.xpose.msra.mxu0 0
    %360 = vmatprep.subr.bf16.mxu0 0
    %361 = vmatpush1.bf16.xpose.msra.mxu0 0
    %362 = vmatprep.subr.bf16.mxu0 0
    %363 = vmatpush1.bf16.xpose.msra.mxu0 0
    %364 = vmatprep.subr.bf16.mxu0 0
    %365 = vmatpush1.bf16.xpose.msra.mxu0 0
    %366 = vmatprep.subr.bf16.mxu0 0
    %367 = vmatpush1.bf16.xpose.msra.mxu0 0
    %368 = vmatprep.subr.bf16.mxu0 0
    %369 = vmatpush1.bf16.xpose.msra.mxu0 0
    %370 = vmatprep.subr.bf16.mxu0 0
    %371 = vmatpush1.bf16.xpose.msra.mxu0 0
    %372 = vmatprep.subr.bf16.mxu0 0
    %373 = vmatpush1.bf16.xpose.msra.mxu0 0
    %374 = vmatprep.subr.bf16.mxu0 0
    %375 = vmatpush1.bf16.xpose.msra.mxu0 0
    %376 = vmatprep.subr.bf16.mxu0 0
    %377 = vmatpush1.bf16.xpose.msra.mxu0 0
    %378 = vmatprep.subr.bf16.mxu0 0
    %379 = vmatpush1.bf16.xpose.msra.mxu0 0
    %380 = vmatprep.subr.bf16.mxu0 0
    %381 = vmatpush1.bf16.xpose.msra.mxu0 0
    %382 = vmatprep.mubr.bf16.mxu0 0
    %383 = vmatmul.mubr.bf16.gmra.mrb[0].mxu0 %v345
    %v384 = vpop.f32.mrb[0].mxu0
    %v385 = vadd.f32 %v47, %v384
    %v386 = vpop.f32.mrb[0].mxu0
    %v387 = vpop.f32.mrb[0].mxu0
    %v388 = vpop.f32.mrb[0].mxu0
    %389 = vdwg.mxu0
    %vm390 = vcmask 64512
    %v391 = vsel %vm390, %v339, -inf
    %392 = vmax.xlane.f32.xlu0 %v391
    %v393 = vpop.xlane.xlu0 %392
    %v394 = vsel %vm390, %v385, -inf
    %395 = vmax.xlane.f32.xlu0 %v394
    %v396 = vpop.xlane.xlu0 %395
    %v397 = vsub.f32 %v339, %v393
    %v398 = vsub.f32 %v385, %v396
    %v399 = vmul.f32 %v397, 1.442695
    %v400 = vpow.pop %v399
    %v401 = vmul.f32 %v398, 1.442695
    %v402 = vpow.pop %v401
    %v403 = vsel %vm390, %v400, 0.0
    %404 = vadd.xlane.f32.xlu0 %v403
    %v405 = vpop.xlane.xlu0 %404
    %v406 = vsel %vm390, %v402, 0.0
    %407 = vadd.xlane.f32.xlu0 %v406
    %v408 = vpop.xlane.xlu0 %407
    %v409 = vrcp.pop %v405
    %v410 = vrcp.pop %v408
    %v411 = vmul.f32 %v400, %v409
    %v412 = vmul.f32 %v402, %v410
    %v413 = vpack.c.bf16 %v411, %v411
    %v414 = vpack.c.bf16 %v412, %v412
    %v416 = vsel %vm390, %v413, 0
    %vm418 = vcmask 1043456
    %v420 = vsel %vm418, %v295, 0
    %422 = vmatprep.subr.bf16.mxu0 0
    %423 = vmatpush1.bf16.msra.mxu0 %v420
    %424 = vmatprep.subr.bf16.mxu0 0
    %425 = vmatpush1.bf16.msra.mxu0 0
    %426 = vmatprep.subr.bf16.mxu0 0
    %427 = vmatpush1.bf16.msra.mxu0 0
    %428 = vmatprep.subr.bf16.mxu0 0
    %429 = vmatpush1.bf16.msra.mxu0 0
    %430 = vmatprep.subr.bf16.mxu0 0
    %431 = vmatpush1.bf16.msra.mxu0 0
    %432 = vmatprep.subr.bf16.mxu0 0
    %433 = vmatpush1.bf16.msra.mxu0 0
    %434 = vmatprep.subr.bf16.mxu0 0
    %435 = vmatpush1.bf16.msra.mxu0 0
    %436 = vmatprep.subr.bf16.mxu0 0
    %437 = vmatpush1.bf16.msra.mxu0 0
    %438 = vmatprep.subr.bf16.mxu0 0
    %439 = vmatpush1.bf16.msra.mxu0 0
    %440 = vmatprep.subr.bf16.mxu0 0
    %441 = vmatpush1.bf16.msra.mxu0 0
    %442 = vmatprep.subr.bf16.mxu0 0
    %443 = vmatpush1.bf16.msra.mxu0 0
    %444 = vmatprep.subr.bf16.mxu0 0
    %445 = vmatpush1.bf16.msra.mxu0 0
    %446 = vmatprep.subr.bf16.mxu0 0
    %447 = vmatpush1.bf16.msra.mxu0 0
    %448 = vmatprep.subr.bf16.mxu0 0
    %449 = vmatpush1.bf16.msra.mxu0 0
    %450 = vmatprep.subr.bf16.mxu0 0
    %451 = vmatpush1.bf16.msra.mxu0 0
    %452 = vmatprep.subr.bf16.mxu0 0
    %453 = vmatpush1.bf16.msra.mxu0 0
    %454 = vmatprep.mubr.bf16.mxu0 0
    %455 = vmatmul.mubr.bf16.gmra.mrb[0].mxu0 %v416
    %v456 = vpop.f32.mrb[0].mxu0
    %v457 = vadd.f32 0.0, %v456
    %v458 = vpop.f32.mrb[0].mxu0
    %v459 = vpop.f32.mrb[0].mxu0
    %v460 = vpop.f32.mrb[0].mxu0
    %461 = vdwg.mxu0
    %v463 = vsel %vm390, %v414, 0
    %v466 = vsel %vm418, %v296, 0
    %468 = vmatprep.subr.bf16.mxu0 0
    %469 = vmatpush1.bf16.msra.mxu0 %v466
    %470 = vmatprep.subr.bf16.mxu0 0
    %471 = vmatpush1.bf16.msra.mxu0 0
    %472 = vmatprep.subr.bf16.mxu0 0
    %473 = vmatpush1.bf16.msra.mxu0 0
    %474 = vmatprep.subr.bf16.mxu0 0
    %475 = vmatpush1.bf16.msra.mxu0 0
    %476 = vmatprep.subr.bf16.mxu0 0
    %477 = vmatpush1.bf16.msra.mxu0 0
    %478 = vmatprep.subr.bf16.mxu0 0
    %479 = vmatpush1.bf16.msra.mxu0 0
    %480 = vmatprep.subr.bf16.mxu0 0
    %481 = vmatpush1.bf16.msra.mxu0 0
    %482 = vmatprep.subr.bf16.mxu0 0
    %483 = vmatpush1.bf16.msra.mxu0 0
    %484 = vmatprep.subr.bf16.mxu0 0
    %485 = vmatpush1.bf16.msra.mxu0 0
    %486 = vmatprep.subr.bf16.mxu0 0
    %487 = vmatpush1.bf16.msra.mxu0 0
    %488 = vmatprep.subr.bf16.mxu0 0
    %489 = vmatpush1.bf16.msra.mxu0 0
    %490 = vmatprep.subr.bf16.mxu0 0
    %491 = vmatpush1.bf16.msra.mxu0 0
    %492 = vmatprep.subr.bf16.mxu0 0
    %493 = vmatpush1.bf16.msra.mxu0 0
    %494 = vmatprep.subr.bf16.mxu0 0
    %495 = vmatpush1.bf16.msra.mxu0 0
    %496 = vmatprep.subr.bf16.mxu0 0
    %497 = vmatpush1.bf16.msra.mxu0 0
    %498 = vmatprep.subr.bf16.mxu0 0
    %499 = vmatpush1.bf16.msra.mxu0 0
    %500 = vmatprep.mubr.bf16.mxu0 0
    %501 = vmatmul.mubr.bf16.gmra.mrb[0].mxu0 %v463
    %v502 = vpop.f32.mrb[0].mxu0
    %v503 = vadd.f32 0.0, %v502
    %v504 = vpop.f32.mrb[0].mxu0
    %v505 = vpop.f32.mrb[0].mxu0
    %v506 = vpop.f32.mrb[0].mxu0
    %507 = vdwg.mxu0
    %508 = vrot.lane.b32.xlu0 %v283, 112
    %v509 = vpop.permute.xlu0 %508
    %510 = vrot.lane.b32.xlu0 %v289, 112
    %v511 = vpop.permute.xlu0 %510
    %v513 = vsel %vm297, %v509, 0
    %v516 = vsel %vm297, %v511, 0
    %518 = vmatprep.subr.bf16.mxu0 0
    %519 = vmatpush1.bf16.xpose.msra.mxu0 %v516
    %520 = vmatprep.subr.bf16.mxu0 0
    %521 = vmatpush1.bf16.xpose.msra.mxu0 0
    %522 = vmatprep.subr.bf16.mxu0 0
    %523 = vmatpush1.bf16.xpose.msra.mxu0 0
    %524 = vmatprep.subr.bf16.mxu0 0
    %525 = vmatpush1.bf16.xpose.msra.mxu0 0
    %526 = vmatprep.subr.bf16.mxu0 0
    %527 = vmatpush1.bf16.xpose.msra.mxu0 0
    %528 = vmatprep.subr.bf16.mxu0 0
    %529 = vmatpush1.bf16.xpose.msra.mxu0 0
    %530 = vmatprep.subr.bf16.mxu0 0
    %531 = vmatpush1.bf16.xpose.msra.mxu0 0
    %532 = vmatprep.subr.bf16.mxu0 0
    %533 = vmatpush1.bf16.xpose.msra.mxu0 0
    %534 = vmatprep.subr.bf16.mxu0 0
    %535 = vmatpush1.bf16.xpose.msra.mxu0 0
    %536 = vmatprep.subr.bf16.mxu0 0
    %537 = vmatpush1.bf16.xpose.msra.mxu0 0
    %538 = vmatprep.subr.bf16.mxu0 0
    %539 = vmatpush1.bf16.xpose.msra.mxu0 0
    %540 = vmatprep.subr.bf16.mxu0 0
    %541 = vmatpush1.bf16.xpose.msra.mxu0 0
    %542 = vmatprep.subr.bf16.mxu0 0
    %543 = vmatpush1.bf16.xpose.msra.mxu0 0
    %544 = vmatprep.subr.bf16.mxu0 0
    %545 = vmatpush1.bf16.xpose.msra.mxu0 0
    %546 = vmatprep.subr.bf16.mxu0 0
    %547 = vmatpush1.bf16.xpose.msra.mxu0 0
    %548 = vmatprep.subr.bf16.mxu0 0
    %549 = vmatpush1.bf16.xpose.msra.mxu0 0
    %550 = vmatprep.mubr.bf16.mxu0 0
    %551 = vmatmul.mubr.bf16.gmra.mrb[0].mxu0 %v513
    %v552 = vpop.f32.mrb[0].mxu0
    %v553 = vadd.f32 %v46, %v552
    %v554 = vpop.f32.mrb[0].mxu0
    %v555 = vpop.f32.mrb[0].mxu0
    %v556 = vpop.f32.mrb[0].mxu0
    %557 = vdwg.mxu0
    %558 = vrot.lane.b32.xlu0 %v284, 112
    %v559 = vpop.permute.xlu0 %558
    %560 = vrot.lane.b32.xlu0 %v290, 112
    %v561 = vpop.permute.xlu0 %560
    %v563 = vsel %vm297, %v559, 0
    %v566 = vsel %vm297, %v561, 0
    %568 = vmatprep.subr.bf16.mxu0 0
    %569 = vmatpush1.bf16.xpose.msra.mxu0 %v566
    %570 = vmatprep.subr.bf16.mxu0 0
    %571 = vmatpush1.bf16.xpose.msra.mxu0 0
    %572 = vmatprep.subr.bf16.mxu0 0
    %573 = vmatpush1.bf16.xpose.msra.mxu0 0
    %574 = vmatprep.subr.bf16.mxu0 0
    %575 = vmatpush1.bf16.xpose.msra.mxu0 0
    %576 = vmatprep.subr.bf16.mxu0 0
    %577 = vmatpush1.bf16.xpose.msra.mxu0 0
    %578 = vmatprep.subr.bf16.mxu0 0
    %579 = vmatpush1.bf16.xpose.msra.mxu0 0
    %580 = vmatprep.subr.bf16.mxu0 0
    %581 = vmatpush1.bf16.xpose.msra.mxu0 0
    %582 = vmatprep.subr.bf16.mxu0 0
    %583 = vmatpush1.bf16.xpose.msra.mxu0 0
    %584 = vmatprep.subr.bf16.mxu0 0
    %585 = vmatpush1.bf16.xpose.msra.mxu0 0
    %586 = vmatprep.subr.bf16.mxu0 0
    %587 = vmatpush1.bf16.xpose.msra.mxu0 0
    %588 = vmatprep.subr.bf16.mxu0 0
    %589 = vmatpush1.bf16.xpose.msra.mxu0 0
    %590 = vmatprep.subr.bf16.mxu0 0
    %591 = vmatpush1.bf16.xpose.msra.mxu0 0
    %592 = vmatprep.subr.bf16.mxu0 0
    %593 = vmatpush1.bf16.xpose.msra.mxu0 0
    %594 = vmatprep.subr.bf16.mxu0 0
    %595 = vmatpush1.bf16.xpose.msra.mxu0 0
    %596 = vmatprep.subr.bf16.mxu0 0
    %597 = vmatpush1.bf16.xpose.msra.mxu0 0
    %598 = vmatprep.subr.bf16.mxu0 0
    %599 = vmatpush1.bf16.xpose.msra.mxu0 0
    %600 = vmatprep.mubr.bf16.mxu0 0
    %601 = vmatmul.mubr.bf16.gmra.mrb[0].mxu0 %v563
    %v602 = vpop.f32.mrb[0].mxu0
    %v603 = vadd.f32 %v47, %v602
    %v604 = vpop.f32.mrb[0].mxu0
    %v605 = vpop.f32.mrb[0].mxu0
    %v606 = vpop.f32.mrb[0].mxu0
    %607 = vdwg.mxu0
    %v608 = vsel %vm390, %v553, -inf
    %609 = vmax.xlane.f32.xlu0 %v608
    %v610 = vpop.xlane.xlu0 %609
    %v611 = vsel %vm390, %v603, -inf
    %612 = vmax.xlane.f32.xlu0 %v611
    %v613 = vpop.xlane.xlu0 %612
    %v614 = vsub.f32 %v553, %v610
    %v615 = vsub.f32 %v603, %v613
    %v616 = vmul.f32 %v614, 1.442695
    %v617 = vpow.pop %v616
    %v618 = vmul.f32 %v615, 1.442695
    %v619 = vpow.pop %v618
    %v620 = vsel %vm390, %v617, 0.0
    %621 = vadd.xlane.f32.xlu0 %v620
    %v622 = vpop.xlane.xlu0 %621
    %v623 = vsel %vm390, %v619, 0.0
    %624 = vadd.xlane.f32.xlu0 %v623
    %v625 = vpop.xlane.xlu0 %624
    %v626 = vrcp.pop %v622
    %v627 = vrcp.pop %v625
    %v628 = vmul.f32 %v617, %v626
    %v629 = vmul.f32 %v619, %v627
    %v630 = vpack.c.bf16 %v628, %v628
    %v631 = vpack.c.bf16 %v629, %v629
    %632 = vrot.lane.b32.xlu0 %v295, 112
    %v633 = vpop.permute.xlu0 %632
    %v635 = vsel %vm390, %v630, 0
    %v638 = vsel %vm418, %v633, 0
    %640 = vmatprep.subr.bf16.mxu0 0
    %641 = vmatpush1.bf16.msra.mxu0 %v638
    %642 = vmatprep.subr.bf16.mxu0 0
    %643 = vmatpush1.bf16.msra.mxu0 0
    %644 = vmatprep.subr.bf16.mxu0 0
    %645 = vmatpush1.bf16.msra.mxu0 0
    %646 = vmatprep.subr.bf16.mxu0 0
    %647 = vmatpush1.bf16.msra.mxu0 0
    %648 = vmatprep.subr.bf16.mxu0 0
    %649 = vmatpush1.bf16.msra.mxu0 0
    %650 = vmatprep.subr.bf16.mxu0 0
    %651 = vmatpush1.bf16.msra.mxu0 0
    %652 = vmatprep.subr.bf16.mxu0 0
    %653 = vmatpush1.bf16.msra.mxu0 0
    %654 = vmatprep.subr.bf16.mxu0 0
    %655 = vmatpush1.bf16.msra.mxu0 0
    %656 = vmatprep.subr.bf16.mxu0 0
    %657 = vmatpush1.bf16.msra.mxu0 0
    %658 = vmatprep.subr.bf16.mxu0 0
    %659 = vmatpush1.bf16.msra.mxu0 0
    %660 = vmatprep.subr.bf16.mxu0 0
    %661 = vmatpush1.bf16.msra.mxu0 0
    %662 = vmatprep.subr.bf16.mxu0 0
    %663 = vmatpush1.bf16.msra.mxu0 0
    %664 = vmatprep.subr.bf16.mxu0 0
    %665 = vmatpush1.bf16.msra.mxu0 0
    %666 = vmatprep.subr.bf16.mxu0 0
    %667 = vmatpush1.bf16.msra.mxu0 0
    %668 = vmatprep.subr.bf16.mxu0 0
    %669 = vmatpush1.bf16.msra.mxu0 0
    %670 = vmatprep.subr.bf16.mxu0 0
    %671 = vmatpush1.bf16.msra.mxu0 0
    %672 = vmatprep.mubr.bf16.mxu0 0
    %673 = vmatmul.mubr.bf16.gmra.mrb[0].mxu0 %v635
    %v674 = vpop.f32.mrb[0].mxu0
    %v675 = vadd.f32 0.0, %v674
    %v676 = vpop.f32.mrb[0].mxu0
    %v677 = vpop.f32.mrb[0].mxu0
    %v678 = vpop.f32.mrb[0].mxu0
    %679 = vdwg.mxu0
    %680 = vrot.lane.b32.xlu0 %v296, 112
    %v681 = vpop.permute.xlu0 %680
    %v683 = vsel %vm390, %v631, 0
    %v686 = vsel %vm418, %v681, 0
    %688 = vmatprep.subr.bf16.mxu0 0
    %689 = vmatpush1.bf16.msra.mxu0 %v686
    %690 = vmatprep.subr.bf16.mxu0 0
    %691 = vmatpush1.bf16.msra.mxu0 0
    %692 = vmatprep.subr.bf16.mxu0 0
    %693 = vmatpush1.bf16.msra.mxu0 0
    %694 = vmatprep.subr.bf16.mxu0 0
    %695 = vmatpush1.bf16.msra.mxu0 0
    %696 = vmatprep.subr.bf16.mxu0 0
    %697 = vmatpush1.bf16.msra.mxu0 0
    %698 = vmatprep.subr.bf16.mxu0 0
    %699 = vmatpush1.bf16.msra.mxu0 0
    %700 = vmatprep.subr.bf16.mxu0 0
    %701 = vmatpush1.bf16.msra.mxu0 0
    %702 = vmatprep.subr.bf16.mxu0 0
    %703 = vmatpush1.bf16.msra.mxu0 0
    %704 = vmatprep.subr.bf16.mxu0 0
    %705 = vmatpush1.bf16.msra.mxu0 0
    %706 = vmatprep.subr.bf16.mxu0 0
    %707 = vmatpush1.bf16.msra.mxu0 0
    %708 = vmatprep.subr.bf16.mxu0 0
    %709 = vmatpush1.bf16.msra.mxu0 0
    %710 = vmatprep.subr.bf16.mxu0 0
    %711 = vmatpush1.bf16.msra.mxu0 0
    %712 = vmatprep.subr.bf16.mxu0 0
    %713 = vmatpush1.bf16.msra.mxu0 0
    %714 = vmatprep.subr.bf16.mxu0 0
    %715 = vmatpush1.bf16.msra.mxu0 0
    %716 = vmatprep.subr.bf16.mxu0 0
    %717 = vmatpush1.bf16.msra.mxu0 0
    %718 = vmatprep.subr.bf16.mxu0 0
    %719 = vmatpush1.bf16.msra.mxu0 0
    %720 = vmatprep.mubr.bf16.mxu0 0
    %721 = vmatmul.mubr.bf16.gmra.mrb[0].mxu0 %v683
    %v722 = vpop.f32.mrb[0].mxu0
    %v723 = vadd.f32 0.0, %v722
    %v724 = vpop.f32.mrb[0].mxu0
    %v725 = vpop.f32.mrb[0].mxu0
    %v726 = vpop.f32.mrb[0].mxu0
    %727 = vdwg.mxu0
    %728 = vrot.lane.b32.xlu0 %v283, 96
    %v729 = vpop.permute.xlu0 %728
    %730 = vrot.lane.b32.xlu0 %v289, 96
    %v731 = vpop.permute.xlu0 %730
    %v733 = vsel %vm297, %v729, 0
    %v736 = vsel %vm297, %v731, 0
    %738 = vmatprep.subr.bf16.mxu0 0
    %739 = vmatpush1.bf16.xpose.msra.mxu0 %v736
    %740 = vmatprep.subr.bf16.mxu0 0
    %741 = vmatpush1.bf16.xpose.msra.mxu0 0
    %742 = vmatprep.subr.bf16.mxu0 0
    %743 = vmatpush1.bf16.xpose.msra.mxu0 0
    %744 = vmatprep.subr.bf16.mxu0 0
    %745 = vmatpush1.bf16.xpose.msra.mxu0 0
    %746 = vmatprep.subr.bf16.mxu0 0
    %747 = vmatpush1.bf16.xpose.msra.mxu0 0
    %748 = vmatprep.subr.bf16.mxu0 0
    %749 = vmatpush1.bf16.xpose.msra.mxu0 0
    %750 = vmatprep.subr.bf16.mxu0 0
    %751 = vmatpush1.bf16.xpose.msra.mxu0 0
    %752 = vmatprep.subr.bf16.mxu0 0
    %753 = vmatpush1.bf16.xpose.msra.mxu0 0
    %754 = vmatprep.subr.bf16.mxu0 0
    %755 = vmatpush1.bf16.xpose.msra.mxu0 0
    %756 = vmatprep.subr.bf16.mxu0 0
    %757 = vmatpush1.bf16.xpose.msra.mxu0 0
    %758 = vmatprep.subr.bf16.mxu0 0
    %759 = vmatpush1.bf16.xpose.msra.mxu0 0
    %760 = vmatprep.subr.bf16.mxu0 0
    %761 = vmatpush1.bf16.xpose.msra.mxu0 0
    %762 = vmatprep.subr.bf16.mxu0 0
    %763 = vmatpush1.bf16.xpose.msra.mxu0 0
    %764 = vmatprep.subr.bf16.mxu0 0
    %765 = vmatpush1.bf16.xpose.msra.mxu0 0
    %766 = vmatprep.subr.bf16.mxu0 0
    %767 = vmatpush1.bf16.xpose.msra.mxu0 0
    %768 = vmatprep.subr.bf16.mxu0 0
    %769 = vmatpush1.bf16.xpose.msra.mxu0 0
    %770 = vmatprep.mubr.bf16.mxu0 0
    %771 = vmatmul.mubr.bf16.gmra.mrb[0].mxu0 %v733
    %v772 = vpop.f32.mrb[0].mxu0
    %v773 = vadd.f32 %v46, %v772
    %v774 = vpop.f32.mrb[0].mxu0
    %v775 = vpop.f32.mrb[0].mxu0
    %v776 = vpop.f32.mrb[0].mxu0
    %777 = vdwg.mxu0
    %778 = vrot.lane.b32.xlu0 %v284, 96
    %v779 = vpop.permute.xlu0 %778
    %780 = vrot.lane.b32.xlu0 %v290, 96
    %v781 = vpop.permute.xlu0 %780
    %v783 = vsel %vm297, %v779, 0
    %v786 = vsel %vm297, %v781, 0
    %788 = vmatprep.subr.bf16.mxu0 0
    %789 = vmatpush1.bf16.xpose.msra.mxu0 %v786
    %790 = vmatprep.subr.bf16.mxu0 0
    %791 = vmatpush1.bf16.xpose.msra.mxu0 0
    %792 = vmatprep.subr.bf16.mxu0 0
    %793 = vmatpush1.bf16.xpose.msra.mxu0 0
    %794 = vmatprep.subr.bf16.mxu0 0
    %795 = vmatpush1.bf16.xpose.msra.mxu0 0
    %796 = vmatprep.subr.bf16.mxu0 0
    %797 = vmatpush1.bf16.xpose.msra.mxu0 0
    %798 = vmatprep.subr.bf16.mxu0 0
    %799 = vmatpush1.bf16.xpose.msra.mxu0 0
    %800 = vmatprep.subr.bf16.mxu0 0
    %801 = vmatpush1.bf16.xpose.msra.mxu0 0
    %802 = vmatprep.subr.bf16.mxu0 0
    %803 = vmatpush1.bf16.xpose.msra.mxu0 0
    %804 = vmatprep.subr.bf16.mxu0 0
    %805 = vmatpush1.bf16.xpose.msra.mxu0 0
    %806 = vmatprep.subr.bf16.mxu0 0
    %807 = vmatpush1.bf16.xpose.msra.mxu0 0
    %808 = vmatprep.subr.bf16.mxu0 0
    %809 = vmatpush1.bf16.xpose.msra.mxu0 0
    %810 = vmatprep.subr.bf16.mxu0 0
    %811 = vmatpush1.bf16.xpose.msra.mxu0 0
    %812 = vmatprep.subr.bf16.mxu0 0
    %813 = vmatpush1.bf16.xpose.msra.mxu0 0
    %814 = vmatprep.subr.bf16.mxu0 0
    %815 = vmatpush1.bf16.xpose.msra.mxu0 0
    %816 = vmatprep.subr.bf16.mxu0 0
    %817 = vmatpush1.bf16.xpose.msra.mxu0 0
    %818 = vmatprep.subr.bf16.mxu0 0
    %819 = vmatpush1.bf16.xpose.msra.mxu0 0
    %820 = vmatprep.mubr.bf16.mxu0 0
    %821 = vmatmul.mubr.bf16.gmra.mrb[0].mxu0 %v783
    %v822 = vpop.f32.mrb[0].mxu0
    %v823 = vadd.f32 %v47, %v822
    %v824 = vpop.f32.mrb[0].mxu0
    %v825 = vpop.f32.mrb[0].mxu0
    %v826 = vpop.f32.mrb[0].mxu0
    %827 = vdwg.mxu0
    %v828 = vsel %vm390, %v773, -inf
    %829 = vmax.xlane.f32.xlu0 %v828
    %v830 = vpop.xlane.xlu0 %829
    %v831 = vsel %vm390, %v823, -inf
    %832 = vmax.xlane.f32.xlu0 %v831
    %v833 = vpop.xlane.xlu0 %832
    %v834 = vsub.f32 %v773, %v830
    %v835 = vsub.f32 %v823, %v833
    %v836 = vmul.f32 %v834, 1.442695
    %v837 = vpow.pop %v836
    %v838 = vmul.f32 %v835, 1.442695
    %v839 = vpow.pop %v838
    %v840 = vsel %vm390, %v837, 0.0
    %841 = vadd.xlane.f32.xlu0 %v840
    %v842 = vpop.xlane.xlu0 %841
    %v843 = vsel %vm390, %v839, 0.0
    %844 = vadd.xlane.f32.xlu0 %v843
    %v845 = vpop.xlane.xlu0 %844
    %v846 = vrcp.pop %v842
    %v847 = vrcp.pop %v845
    %v848 = vmul.f32 %v837, %v846
    %v849 = vmul.f32 %v839, %v847
    %v850 = vpack.c.bf16 %v848, %v848
    %v851 = vpack.c.bf16 %v849, %v849
    %852 = vrot.lane.b32.xlu0 %v295, 96
    %v853 = vpop.permute.xlu0 %852
    %v855 = vsel %vm390, %v850, 0
    %v858 = vsel %vm418, %v853, 0
    %860 = vmatprep.subr.bf16.mxu0 0
    %861 = vmatpush1.bf16.msra.mxu0 %v858
    %862 = vmatprep.subr.bf16.mxu0 0
    %863 = vmatpush1.bf16.msra.mxu0 0
    %864 = vmatprep.subr.bf16.mxu0 0
    %865 = vmatpush1.bf16.msra.mxu0 0
    %866 = vmatprep.subr.bf16.mxu0 0
    %867 = vmatpush1.bf16.msra.mxu0 0
    %868 = vmatprep.subr.bf16.mxu0 0
    %869 = vmatpush1.bf16.msra.mxu0 0
    %870 = vmatprep.subr.bf16.mxu0 0
    %871 = vmatpush1.bf16.msra.mxu0 0
    %872 = vmatprep.subr.bf16.mxu0 0
    %873 = vmatpush1.bf16.msra.mxu0 0
    %874 = vmatprep.subr.bf16.mxu0 0
    %875 = vmatpush1.bf16.msra.mxu0 0
    %876 = vmatprep.subr.bf16.mxu0 0
    %877 = vmatpush1.bf16.msra.mxu0 0
    %878 = vmatprep.subr.bf16.mxu0 0
    %879 = vmatpush1.bf16.msra.mxu0 0
    %880 = vmatprep.subr.bf16.mxu0 0
    %881 = vmatpush1.bf16.msra.mxu0 0
    %882 = vmatprep.subr.bf16.mxu0 0
    %883 = vmatpush1.bf16.msra.mxu0 0
    %884 = vmatprep.subr.bf16.mxu0 0
    %885 = vmatpush1.bf16.msra.mxu0 0
    %886 = vmatprep.subr.bf16.mxu0 0
    %887 = vmatpush1.bf16.msra.mxu0 0
    %888 = vmatprep.subr.bf16.mxu0 0
    %889 = vmatpush1.bf16.msra.mxu0 0
    %890 = vmatprep.subr.bf16.mxu0 0
    %891 = vmatpush1.bf16.msra.mxu0 0
    %892 = vmatprep.mubr.bf16.mxu0 0
    %893 = vmatmul.mubr.bf16.gmra.mrb[0].mxu0 %v855
    %v894 = vpop.f32.mrb[0].mxu0
    %v895 = vadd.f32 0.0, %v894
    %v896 = vpop.f32.mrb[0].mxu0
    %v897 = vpop.f32.mrb[0].mxu0
    %v898 = vpop.f32.mrb[0].mxu0
    %899 = vdwg.mxu0
    %900 = vrot.lane.b32.xlu0 %v296, 96
    %v901 = vpop.permute.xlu0 %900
    %v903 = vsel %vm390, %v851, 0
    %v906 = vsel %vm418, %v901, 0
    %908 = vmatprep.subr.bf16.mxu0 0
    %909 = vmatpush1.bf16.msra.mxu0 %v906
    %910 = vmatprep.subr.bf16.mxu0 0
    %911 = vmatpush1.bf16.msra.mxu0 0
    %912 = vmatprep.subr.bf16.mxu0 0
    %913 = vmatpush1.bf16.msra.mxu0 0
    %914 = vmatprep.subr.bf16.mxu0 0
    %915 = vmatpush1.bf16.msra.mxu0 0
    %916 = vmatprep.subr.bf16.mxu0 0
    %917 = vmatpush1.bf16.msra.mxu0 0
    %918 = vmatprep.subr.bf16.mxu0 0
    %919 = vmatpush1.bf16.msra.mxu0 0
    %920 = vmatprep.subr.bf16.mxu0 0
    %921 = vmatpush1.bf16.msra.mxu0 0
    %922 = vmatprep.subr.bf16.mxu0 0
    %923 = vmatpush1.bf16.msra.mxu0 0
    %924 = vmatprep.subr.bf16.mxu0 0
    %925 = vmatpush1.bf16.msra.mxu0 0
    %926 = vmatprep.subr.bf16.mxu0 0
    %927 = vmatpush1.bf16.msra.mxu0 0
    %928 = vmatprep.subr.bf16.mxu0 0
    %929 = vmatpush1.bf16.msra.mxu0 0
    %930 = vmatprep.subr.bf16.mxu0 0
    %931 = vmatpush1.bf16.msra.mxu0 0
    %932 = vmatprep.subr.bf16.mxu0 0
    %933 = vmatpush1.bf16.msra.mxu0 0
    %934 = vmatprep.subr.bf16.mxu0 0
    %935 = vmatpush1.bf16.msra.mxu0 0
    %936 = vmatprep.subr.bf16.mxu0 0
    %937 = vmatpush1.bf16.msra.mxu0 0
    %938 = vmatprep.subr.bf16.mxu0 0
    %939 = vmatpush1.bf16.msra.mxu0 0
    %940 = vmatprep.mubr.bf16.mxu0 0
    %941 = vmatmul.mubr.bf16.gmra.mrb[0].mxu0 %v903
    %v942 = vpop.f32.mrb[0].mxu0
    %v943 = vadd.f32 0.0, %v942
    %v944 = vpop.f32.mrb[0].mxu0
    %v945 = vpop.f32.mrb[0].mxu0
    %v946 = vpop.f32.mrb[0].mxu0
    %947 = vdwg.mxu0
    %948 = vrot.lane.b32.xlu0 %v283, 80
    %v949 = vpop.permute.xlu0 %948
    %950 = vrot.lane.b32.xlu0 %v289, 80
    %v951 = vpop.permute.xlu0 %950
    %v953 = vsel %vm297, %v949, 0
    %v956 = vsel %vm297, %v951, 0
    %958 = vmatprep.subr.bf16.mxu0 0
    %959 = vmatpush1.bf16.xpose.msra.mxu0 %v956
    %960 = vmatprep.subr.bf16.mxu0 0
    %961 = vmatpush1.bf16.xpose.msra.mxu0 0
    %962 = vmatprep.subr.bf16.mxu0 0
    %963 = vmatpush1.bf16.xpose.msra.mxu0 0
    %964 = vmatprep.subr.bf16.mxu0 0
    %965 = vmatpush1.bf16.xpose.msra.mxu0 0
    %966 = vmatprep.subr.bf16.mxu0 0
    %967 = vmatpush1.bf16.xpose.msra.mxu0 0
    %968 = vmatprep.subr.bf16.mxu0 0
    %969 = vmatpush1.bf16.xpose.msra.mxu0 0
    %970 = vmatprep.subr.bf16.mxu0 0
    %971 = vmatpush1.bf16.xpose.msra.mxu0 0
    %972 = vmatprep.subr.bf16.mxu0 0
    %973 = vmatpush1.bf16.xpose.msra.mxu0 0
    %974 = vmatprep.subr.bf16.mxu0 0
    %975 = vmatpush1.bf16.xpose.msra.mxu0 0
    %976 = vmatprep.subr.bf16.mxu0 0
    %977 = vmatpush1.bf16.xpose.msra.mxu0 0
    %978 = vmatprep.subr.bf16.mxu0 0
    %979 = vmatpush1.bf16.xpose.msra.mxu0 0
    %980 = vmatprep.subr.bf16.mxu0 0
    %981 = vmatpush1.bf16.xpose.msra.mxu0 0
    %982 = vmatprep.subr.bf16.mxu0 0
    %983 = vmatpush1.bf16.xpose.msra.mxu0 0
    %984 = vmatprep.subr.bf16.mxu0 0
    %985 = vmatpush1.bf16.xpose.msra.mxu0 0
    %986 = vmatprep.subr.bf16.mxu0 0
    %987 = vmatpush1.bf16.xpose.msra.mxu0 0
    %988 = vmatprep.subr.bf16.mxu0 0
    %989 = vmatpush1.bf16.xpose.msra.mxu0 0
    %990 = vmatprep.mubr.bf16.mxu0 0
    %991 = vmatmul.mubr.bf16.gmra.mrb[0].mxu0 %v953
    %v992 = vpop.f32.mrb[0].mxu0
    %v993 = vadd.f32 %v46, %v992
    %v994 = vpop.f32.mrb[0].mxu0
    %v995 = vpop.f32.mrb[0].mxu0
    %v996 = vpop.f32.mrb[0].mxu0
    %997 = vdwg.mxu0
    %998 = vrot.lane.b32.xlu0 %v284, 80
    %v999 = vpop.permute.xlu0 %998
    %1000 = vrot.lane.b32.xlu0 %v290, 80
    %v1001 = vpop.permute.xlu0 %1000
    %v1003 = vsel %vm297, %v999, 0
    %v1006 = vsel %vm297, %v1001, 0
    %1008 = vmatprep.subr.bf16.mxu0 0
    %1009 = vmatpush1.bf16.xpose.msra.mxu0 %v1006
    %1010 = vmatprep.subr.bf16.mxu0 0
    %1011 = vmatpush1.bf16.xpose.msra.mxu0 0
    %1012 = vmatprep.subr.bf16.mxu0 0
    %1013 = vmatpush1.bf16.xpose.msra.mxu0 0
    %1014 = vmatprep.subr.bf16.mxu0 0
    %1015 = vmatpush1.bf16.xpose.msra.mxu0 0
    %1016 = vmatprep.subr.bf16.mxu0 0
    %1017 = vmatpush1.bf16.xpose.msra.mxu0 0
    %1018 = vmatprep.subr.bf16.mxu0 0
    %1019 = vmatpush1.bf16.xpose.msra.mxu0 0
    %1020 = vmatprep.subr.bf16.mxu0 0
    %1021 = vmatpush1.bf16.xpose.msra.mxu0 0
    %1022 = vmatprep.subr.bf16.mxu0 0
    %1023 = vmatpush1.bf16.xpose.msra.mxu0 0
    %1024 = vmatprep.subr.bf16.mxu0 0
    %1025 = vmatpush1.bf16.xpose.msra.mxu0 0
    %1026 = vmatprep.subr.bf16.mxu0 0
    %1027 = vmatpush1.bf16.xpose.msra.mxu0 0
    %1028 = vmatprep.subr.bf16.mxu0 0
    %1029 = vmatpush1.bf16.xpose.msra.mxu0 0
    %1030 = vmatprep.subr.bf16.mxu0 0
    %1031 = vmatpush1.bf16.xpose.msra.mxu0 0
    %1032 = vmatprep.subr.bf16.mxu0 0
    %1033 = vmatpush1.bf16.xpose.msra.mxu0 0
    %1034 = vmatprep.subr.bf16.mxu0 0
    %1035 = vmatpush1.bf16.xpose.msra.mxu0 0
    %1036 = vmatprep.subr.bf16.mxu0 0
    %1037 = vmatpush1.bf16.xpose.msra.mxu0 0
    %1038 = vmatprep.subr.bf16.mxu0 0
    %1039 = vmatpush1.bf16.xpose.msra.mxu0 0
    %1040 = vmatprep.mubr.bf16.mxu0 0
    %1041 = vmatmul.mubr.bf16.gmra.mrb[0].mxu0 %v1003
    %v1042 = vpop.f32.mrb[0].mxu0
    %v1043 = vadd.f32 %v47, %v1042
    %v1044 = vpop.f32.mrb[0].mxu0
    %v1045 = vpop.f32.mrb[0].mxu0
    %v1046 = vpop.f32.mrb[0].mxu0
    %1047 = vdwg.mxu0
    %v1048 = vsel %vm390, %v993, -inf
    %1049 = vmax.xlane.f32.xlu0 %v1048
    %v1050 = vpop.xlane.xlu0 %1049
    %v1051 = vsel %vm390, %v1043, -inf
    %1052 = vmax.xlane.f32.xlu0 %v1051
    %v1053 = vpop.xlane.xlu0 %1052
    %v1054 = vsub.f32 %v993, %v1050
    %v1055 = vsub.f32 %v1043, %v1053
    %v1056 = vmul.f32 %v1054, 1.442695
    %v1057 = vpow.pop %v1056
    %v1058 = vmul.f32 %v1055, 1.442695
    %v1059 = vpow.pop %v1058
    %v1060 = vsel %vm390, %v1057, 0.0
    %1061 = vadd.xlane.f32.xlu0 %v1060
    %v1062 = vpop.xlane.xlu0 %1061
    %v1063 = vsel %vm390, %v1059, 0.0
    %1064 = vadd.xlane.f32.xlu0 %v1063
    %v1065 = vpop.xlane.xlu0 %1064
    %v1066 = vrcp.pop %v1062
    %v1067 = vrcp.pop %v1065
    %v1068 = vmul.f32 %v1057, %v1066
    %v1069 = vmul.f32 %v1059, %v1067
    %v1070 = vpack.c.bf16 %v1068, %v1068
    %v1071 = vpack.c.bf16 %v1069, %v1069
    %1072 = vrot.lane.b32.xlu0 %v295, 80
    %v1073 = vpop.permute.xlu0 %1072
    %v1075 = vsel %vm390, %v1070, 0
    %v1078 = vsel %vm418, %v1073, 0
    %1080 = vmatprep.subr.bf16.mxu0 0
    %1081 = vmatpush1.bf16.msra.mxu0 %v1078
    %1082 = vmatprep.subr.bf16.mxu0 0
    %1083 = vmatpush1.bf16.msra.mxu0 0
    %1084 = vmatprep.subr.bf16.mxu0 0
    %1085 = vmatpush1.bf16.msra.mxu0 0
    %1086 = vmatprep.subr.bf16.mxu0 0
    %1087 = vmatpush1.bf16.msra.mxu0 0
    %1088 = vmatprep.subr.bf16.mxu0 0
    %1089 = vmatpush1.bf16.msra.mxu0 0
    %1090 = vmatprep.subr.bf16.mxu0 0
    %1091 = vmatpush1.bf16.msra.mxu0 0
    %1092 = vmatprep.subr.bf16.mxu0 0
    %1093 = vmatpush1.bf16.msra.mxu0 0
    %1094 = vmatprep.subr.bf16.mxu0 0
    %1095 = vmatpush1.bf16.msra.mxu0 0
    %1096 = vmatprep.subr.bf16.mxu0 0
    %1097 = vmatpush1.bf16.msra.mxu0 0
    %1098 = vmatprep.subr.bf16.mxu0 0
    %1099 = vmatpush1.bf16.msra.mxu0 0
    %1100 = vmatprep.subr.bf16.mxu0 0
    %1101 = vmatpush1.bf16.msra.mxu0 0
    %1102 = vmatprep.subr.bf16.mxu0 0
    %1103 = vmatpush1.bf16.msra.mxu0 0
    %1104 = vmatprep.subr.bf16.mxu0 0
    %1105 = vmatpush1.bf16.msra.mxu0 0
    %1106 = vmatprep.subr.bf16.mxu0 0
    %1107 = vmatpush1.bf16.msra.mxu0 0
    %1108 = vmatprep.subr.bf16.mxu0 0
    %1109 = vmatpush1.bf16.msra.mxu0 0
    %1110 = vmatprep.subr.bf16.mxu0 0
    %1111 = vmatpush1.bf16.msra.mxu0 0
    %1112 = vmatprep.mubr.bf16.mxu0 0
    %1113 = vmatmul.mubr.bf16.gmra.mrb[0].mxu0 %v1075
    %v1114 = vpop.f32.mrb[0].mxu0
    %v1115 = vadd.f32 0.0, %v1114
    %v1116 = vpop.f32.mrb[0].mxu0
    %v1117 = vpop.f32.mrb[0].mxu0
    %v1118 = vpop.f32.mrb[0].mxu0
    %1119 = vdwg.mxu0
    %1120 = vrot.lane.b32.xlu0 %v296, 80
    %v1121 = vpop.permute.xlu0 %1120
    %v1123 = vsel %vm390, %v1071, 0
    %v1126 = vsel %vm418, %v1121, 0
    %1128 = vmatprep.subr.bf16.mxu0 0
    %1129 = vmatpush1.bf16.msra.mxu0 %v1126
    %1130 = vmatprep.subr.bf16.mxu0 0
    %1131 = vmatpush1.bf16.msra.mxu0 0
    %1132 = vmatprep.subr.bf16.mxu0 0
    %1133 = vmatpush1.bf16.msra.mxu0 0
    %1134 = vmatprep.subr.bf16.mxu0 0
    %1135 = vmatpush1.bf16.msra.mxu0 0
    %1136 = vmatprep.subr.bf16.mxu0 0
    %1137 = vmatpush1.bf16.msra.mxu0 0
    %1138 = vmatprep.subr.bf16.mxu0 0
    %1139 = vmatpush1.bf16.msra.mxu0 0
    %1140 = vmatprep.subr.bf16.mxu0 0
    %1141 = vmatpush1.bf16.msra.mxu0 0
    %1142 = vmatprep.subr.bf16.mxu0 0
    %1143 = vmatpush1.bf16.msra.mxu0 0
    %1144 = vmatprep.subr.bf16.mxu0 0
    %1145 = vmatpush1.bf16.msra.mxu0 0
    %1146 = vmatprep.subr.bf16.mxu0 0
    %1147 = vmatpush1.bf16.msra.mxu0 0
    %1148 = vmatprep.subr.bf16.mxu0 0
    %1149 = vmatpush1.bf16.msra.mxu0 0
    %1150 = vmatprep.subr.bf16.mxu0 0
    %1151 = vmatpush1.bf16.msra.mxu0 0
    %1152 = vmatprep.subr.bf16.mxu0 0
    %1153 = vmatpush1.bf16.msra.mxu0 0
    %1154 = vmatprep.subr.bf16.mxu0 0
    %1155 = vmatpush1.bf16.msra.mxu0 0
    %1156 = vmatprep.subr.bf16.mxu0 0
    %1157 = vmatpush1.bf16.msra.mxu0 0
    %1158 = vmatprep.subr.bf16.mxu0 0
    %1159 = vmatpush1.bf16.msra.mxu0 0
    %1160 = vmatprep.mubr.bf16.mxu0 0
    %1161 = vmatmul.mubr.bf16.gmra.mrb[0].mxu0 %v1123
    %v1162 = vpop.f32.mrb[0].mxu0
    %v1163 = vadd.f32 0.0, %v1162
    %v1164 = vpop.f32.mrb[0].mxu0
    %v1165 = vpop.f32.mrb[0].mxu0
    %v1166 = vpop.f32.mrb[0].mxu0
    %1167 = vdwg.mxu0
    %1170 = vrot.lane.b32.xlu0 %v675, 16
    %v1171 = vpop.permute.xlu0 %1170
    %1172 = vrot.lane.b32.xlu0 %v723, 16
    %v1173 = vpop.permute.xlu0 %1172
    %1178 = vrot.lane.b32.xlu0 %v895, 32
    %v1179 = vpop.permute.xlu0 %1178
    %1180 = vrot.lane.b32.xlu0 %v943, 32
    %v1181 = vpop.permute.xlu0 %1180
    %1186 = vrot.lane.b32.xlu0 %v1115, 48
    %v1187 = vpop.permute.xlu0 %1186
    %1188 = vrot.lane.b32.xlu0 %v1163, 48
    %v1189 = vpop.permute.xlu0 %1188
    %v1192 = vsel %vm297, %v457, %v1171
    %v1193 = vsel %vm297, %v503, %v1173
    %vm1194 = vcmask 261120
    %v1195 = vsel %vm1194, %v1192, %v1179
    %v1196 = vsel %vm1194, %v1193, %v1181
    %vm1197 = vcmask 392192
    %v1198 = vsel %vm1197, %v1195, %v1187
    %v1199 = vsel %vm1197, %v1196, %v1189
    %v1200 = vpack.c.bf16 %v1199, %v1198
    %v1201 = vld [vmem:[%s6] sm:$0xf]
    %v1202 = vld [vmem:[%s6 + $0x4] sm:$0xf]
    %v1203 = vld [vmem:[%s6 + $0x8] sm:$0xf]
    %v1204 = vld [vmem:[%s6 + $0xc] sm:$0xf]
    %v1205 = vld [vmem:[%s6 + $0x10] sm:$0xf]
    %v1206 = vld [vmem:[%s6 + $0x14] sm:$0xf]
    %v1207 = vld [vmem:[%s6 + $0x18] sm:$0xf]
    %v1208 = vld [vmem:[%s6 + $0x1c] sm:$0xf]
    %v1217 = vunpack.c.l.b16 %v1201
    %v1218 = vunpack.c.l.b16 %v1202
    %v1219 = vunpack.c.l.b16 %v1203
    %v1220 = vunpack.c.l.b16 %v1204
    %v1221 = vunpack.c.l.b16 %v1205
    %v1222 = vunpack.c.l.b16 %v1206
    %v1223 = vunpack.c.l.b16 %v1207
    %v1224 = vunpack.c.l.b16 %v1208
    %v1225 = vpack.c.b16 %v1218, %v1217
    %v1226 = vpack.c.b16 %v1220, %v1219
    %v1227 = vpack.c.b16 %v1222, %v1221
    %v1228 = vpack.c.b16 %v1224, %v1223
    %v1234 = vsel %vm51, %v1200, 0
    %1236 = vmatprep.subr.bf16.mxu0 0
    %1237 = vmatpush1.bf16.msra.mxu0 %v1225
    %1238 = vmatprep.subr.bf16.mxu0 0
    %1239 = vmatpush1.bf16.msra.mxu0 %v1226
    %1240 = vmatprep.subr.bf16.mxu0 0
    %1241 = vmatpush1.bf16.msra.mxu0 %v1227
    %1242 = vmatprep.subr.bf16.mxu0 0
    %1243 = vmatpush1.bf16.msra.mxu0 %v1228
    %1244 = vmatprep.subr.bf16.mxu0 0
    %1245 = vmatpush1.bf16.msra.mxu0 0
    %1246 = vmatprep.subr.bf16.mxu0 0
    %1247 = vmatpush1.bf16.msra.mxu0 0
    %1248 = vmatprep.subr.bf16.mxu0 0
    %1249 = vmatpush1.bf16.msra.mxu0 0
    %1250 = vmatprep.subr.bf16.mxu0 0
    %1251 = vmatpush1.bf16.msra.mxu0 0
    %1252 = vmatprep.subr.bf16.mxu0 0
    %1253 = vmatpush1.bf16.msra.mxu0 0
    %1254 = vmatprep.subr.bf16.mxu0 0
    %1255 = vmatpush1.bf16.msra.mxu0 0
    %1256 = vmatprep.subr.bf16.mxu0 0
    %1257 = vmatpush1.bf16.msra.mxu0 0
    %1258 = vmatprep.subr.bf16.mxu0 0
    %1259 = vmatpush1.bf16.msra.mxu0 0
    %1260 = vmatprep.subr.bf16.mxu0 0
    %1261 = vmatpush1.bf16.msra.mxu0 0
    %1262 = vmatprep.subr.bf16.mxu0 0
    %1263 = vmatpush1.bf16.msra.mxu0 0
    %1264 = vmatprep.subr.bf16.mxu0 0
    %1265 = vmatpush1.bf16.msra.mxu0 0
    %1266 = vmatprep.subr.bf16.mxu0 0
    %1267 = vmatpush1.bf16.msra.mxu0 0
    %1268 = vmatprep.mubr.bf16.mxu0 0
    %1269 = vmatmul.mubr.bf16.gmra.mrb[0].mxu0 %v1234
    %v1270 = vpop.f32.mrb[0].mxu0
    %v1271 = vadd.f32 0.0, %v1270
    %v1272 = vpop.f32.mrb[0].mxu0
    %v1273 = vpop.f32.mrb[0].mxu0
    %v1274 = vadd.f32 0.0, %v1273
    %v1275 = vpop.f32.mrb[0].mxu0
    %1276 = vdwg.mxu0
    %v1277 = vadd.f32 %v40, %v1271
    %v1278 = vadd.f32 %v41, %v1274
    %v1279 = vld [vmem:[%s7] sm:$0x1]
    %v1280 = vmul.f32 %v1277, %v1277
    %v1281 = vmul.f32 %v1278, %v1278
    %v1282 = vsel %vm51, %v1280, 0.0
    %1283 = vadd.xlane.f32.xlu0 %v1282
    %v1284 = vpop.xlane.xlu0 %1283
    %v1285 = vsel %vm51, %v1281, 0.0
    %1286 = vadd.xlane.f32.xlu0 %v1285
    %v1287 = vpop.xlane.xlu0 %1286
    %v1288 = vmul.f32 %v1284, %v58
    %v1289 = vmul.f32 %v1287, %v58
    %v1290 = vadd.f32 %v1288, 1e-06
    %v1291 = vadd.f32 %v1289, 1e-06
    %v1292 = vrsqrt.pop %v1290
    %v1293 = vrsqrt.pop %v1291
    %v1294 = vmul.f32 %v1277, %v1292
    %v1295 = vmul.f32 %v1278, %v1293
    %v1297 = vlaneseq
    %v1298 = vshrl.u32 %v1297, 7
    %v1299 = vsub.s32 0, %v1298
    %v1300 = vrot.slane %v1279, %v1299
    %v1302 = vmul.f32 %v1294, %v1300
    %v1303 = vmul.f32 %v1295, %v1300
    %v1304 = vpack.c.bf16 %v1303, %v1302
    %v1305 = vld [vmem:[%s8] sm:$0xff]
    %v1306 = vld [vmem:[%s8 + $0x8] sm:$0xff]
    %v1307 = vld [vmem:[%s8 + $0x10] sm:$0xff]
    %v1308 = vld [vmem:[%s8 + $0x18] sm:$0xff]
    %v1309 = vld [vmem:[%s8 + $0x20] sm:$0xff]
    %v1310 = vld [vmem:[%s8 + $0x28] sm:$0xff]
    %v1311 = vld [vmem:[%s8 + $0x30] sm:$0xff]
    %v1312 = vld [vmem:[%s8 + $0x38] sm:$0xff]
    %v1321 = vunpack.c.l.b16 %v1305
    %v1322 = vunpack.c.h.b16 %v1305
    %v1323 = vunpack.c.l.b16 %v1306
    %v1324 = vunpack.c.h.b16 %v1306
    %v1325 = vunpack.c.l.b16 %v1307
    %v1326 = vunpack.c.h.b16 %v1307
    %v1327 = vunpack.c.l.b16 %v1308
    %v1328 = vunpack.c.h.b16 %v1308
    %v1329 = vunpack.c.l.b16 %v1309
    %v1330 = vunpack.c.h.b16 %v1309
    %v1331 = vunpack.c.l.b16 %v1310
    %v1332 = vunpack.c.h.b16 %v1310
    %v1333 = vunpack.c.l.b16 %v1311
    %v1334 = vunpack.c.h.b16 %v1311
    %v1335 = vunpack.c.l.b16 %v1312
    %v1336 = vunpack.c.h.b16 %v1312
    %v1337 = vpack.c.b16 %v1323, %v1321
    %v1338 = vpack.c.b16 %v1324, %v1322
    %v1339 = vpack.c.b16 %v1327, %v1325
    %v1340 = vpack.c.b16 %v1328, %v1326
    %v1341 = vpack.c.b16 %v1331, %v1329
    %v1342 = vpack.c.b16 %v1332, %v1330
    %v1343 = vpack.c.b16 %v1335, %v1333
    %v1344 = vpack.c.b16 %v1336, %v1334
    %v1354 = vsel %vm51, %v1304, 0
    %1356 = vmatprep.subr.bf16.mxu0 %v1338
    %1357 = vmatpush1.bf16.msra.mxu0 %v1337
    %1358 = vmatprep.subr.bf16.mxu0 %v1340
    %1359 = vmatpush1.bf16.msra.mxu0 %v1339
    %1360 = vmatprep.subr.bf16.mxu0 %v1342
    %1361 = vmatpush1.bf16.msra.mxu0 %v1341
    %1362 = vmatprep.subr.bf16.mxu0 %v1344
    %1363 = vmatpush1.bf16.msra.mxu0 %v1343
    %1364 = vmatprep.subr.bf16.mxu0 0
    %1365 = vmatpush1.bf16.msra.mxu0 0
    %1366 = vmatprep.subr.bf16.mxu0 0
    %1367 = vmatpush1.bf16.msra.mxu0 0
    %1368 = vmatprep.subr.bf16.mxu0 0
    %1369 = vmatpush1.bf16.msra.mxu0 0
    %1370 = vmatprep.subr.bf16.mxu0 0
    %1371 = vmatpush1.bf16.msra.mxu0 0
    %1372 = vmatprep.subr.bf16.mxu0 0
    %1373 = vmatpush1.bf16.msra.mxu0 0
    %1374 = vmatprep.subr.bf16.mxu0 0
    %1375 = vmatpush1.bf16.msra.mxu0 0
    %1376 = vmatprep.subr.bf16.mxu0 0
    %1377 = vmatpush1.bf16.msra.mxu0 0
    %1378 = vmatprep.subr.bf16.mxu0 0
    %1379 = vmatpush1.bf16.msra.mxu0 0
    %1380 = vmatprep.subr.bf16.mxu0 0
    %1381 = vmatpush1.bf16.msra.mxu0 0
    %1382 = vmatprep.subr.bf16.mxu0 0
    %1383 = vmatpush1.bf16.msra.mxu0 0
    %1384 = vmatprep.subr.bf16.mxu0 0
    %1385 = vmatpush1.bf16.msra.mxu0 0
    %1386 = vmatprep.subr.bf16.mxu0 0
    %1387 = vmatpush1.bf16.msra.mxu0 0
    %1388 = vmatprep.mubr.bf16.mxu0 0
    %1389 = vmatmul.mubr.bf16.gmra.mrb[0].mxu0 %v1354
    %v1390 = vpop.f32.mrb[0].mxu0
    %v1391 = vadd.f32 0.0, %v1390
    %v1392 = vpop.f32.mrb[0].mxu0
    %v1393 = vadd.f32 0.0, %v1392
    %v1394 = vpop.f32.mrb[0].mxu0
    %v1395 = vadd.f32 0.0, %v1394
    %v1396 = vpop.f32.mrb[0].mxu0
    %v1397 = vadd.f32 0.0, %v1396
    %1398 = vdwg.mxu0
    %v1399 = vxor.u32 %v1391, 2147483648
    %v1400 = vxor.u32 %v1395, 2147483648
    %v1401 = vmul.f32 %v1399, 1.442695
    %v1402 = vpow.pop %v1401
    %v1403 = vmul.f32 %v1400, 1.442695
    %v1404 = vpow.pop %v1403
    %v1405 = vadd.f32 %v1402, 1.0
    %v1406 = vadd.f32 %v1404, 1.0
    %v1407 = vrcp.pop %v1405
    %v1408 = vmul.f32 1.0, %v1407
    %v1409 = vrcp.pop %v1406
    %v1410 = vmul.f32 1.0, %v1409
    %v1411 = vmul.f32 %v1391, %v1408
    %v1412 = vmul.f32 %v1395, %v1410
    %v1413 = vmul.f32 %v1411, %v1393
    %v1414 = vmul.f32 %v1412, %v1397
    %v1415 = vpack.c.bf16 %v1414, %v1413
    %v1416 = vld [vmem:[%s9] sm:$0xf]
    %v1417 = vld [vmem:[%s9 + $0x4] sm:$0xf]
    %v1418 = vld [vmem:[%s9 + $0x8] sm:$0xf]
    %v1419 = vld [vmem:[%s9 + $0xc] sm:$0xf]
    %v1420 = vld [vmem:[%s9 + $0x10] sm:$0xf]
    %v1421 = vld [vmem:[%s9 + $0x14] sm:$0xf]
    %v1422 = vld [vmem:[%s9 + $0x18] sm:$0xf]
    %v1423 = vld [vmem:[%s9 + $0x1c] sm:$0xf]
    %v1424 = vld [vmem:[%s9 + $0x20] sm:$0xf]
    %v1425 = vld [vmem:[%s9 + $0x24] sm:$0xf]
    %v1426 = vld [vmem:[%s9 + $0x28] sm:$0xf]
    %v1427 = vld [vmem:[%s9 + $0x2c] sm:$0xf]
    %v1428 = vld [vmem:[%s9 + $0x30] sm:$0xf]
    %v1429 = vld [vmem:[%s9 + $0x34] sm:$0xf]
    %v1430 = vld [vmem:[%s9 + $0x38] sm:$0xf]
    %v1431 = vld [vmem:[%s9 + $0x3c] sm:$0xf]
    %v1448 = vunpack.c.l.b16 %v1416
    %v1449 = vunpack.c.l.b16 %v1417
    %v1450 = vunpack.c.l.b16 %v1418
    %v1451 = vunpack.c.l.b16 %v1419
    %v1452 = vunpack.c.l.b16 %v1420
    %v1453 = vunpack.c.l.b16 %v1421
    %v1454 = vunpack.c.l.b16 %v1422
    %v1455 = vunpack.c.l.b16 %v1423
    %v1456 = vunpack.c.l.b16 %v1424
    %v1457 = vunpack.c.l.b16 %v1425
    %v1458 = vunpack.c.l.b16 %v1426
    %v1459 = vunpack.c.l.b16 %v1427
    %v1460 = vunpack.c.l.b16 %v1428
    %v1461 = vunpack.c.l.b16 %v1429
    %v1462 = vunpack.c.l.b16 %v1430
    %v1463 = vunpack.c.l.b16 %v1431
    %v1464 = vpack.c.b16 %v1449, %v1448
    %v1465 = vpack.c.b16 %v1451, %v1450
    %v1466 = vpack.c.b16 %v1453, %v1452
    %v1467 = vpack.c.b16 %v1455, %v1454
    %v1468 = vpack.c.b16 %v1457, %v1456
    %v1469 = vpack.c.b16 %v1459, %v1458
    %v1470 = vpack.c.b16 %v1461, %v1460
    %v1471 = vpack.c.b16 %v1463, %v1462
    %1480 = vmatprep.subr.bf16.mxu0 0
    %1481 = vmatpush1.bf16.msra.mxu0 %v1464
    %1482 = vmatprep.subr.bf16.mxu0 0
    %1483 = vmatpush1.bf16.msra.mxu0 %v1465
    %1484 = vmatprep.subr.bf16.mxu0 0
    %1485 = vmatpush1.bf16.msra.mxu0 %v1466
    %1486 = vmatprep.subr.bf16.mxu0 0
    %1487 = vmatpush1.bf16.msra.mxu0 %v1467
    %1488 = vmatprep.subr.bf16.mxu0 0
    %1489 = vmatpush1.bf16.msra.mxu0 %v1468
    %1490 = vmatprep.subr.bf16.mxu0 0
    %1491 = vmatpush1.bf16.msra.mxu0 %v1469
    %1492 = vmatprep.subr.bf16.mxu0 0
    %1493 = vmatpush1.bf16.msra.mxu0 %v1470
    %1494 = vmatprep.subr.bf16.mxu0 0
    %1495 = vmatpush1.bf16.msra.mxu0 %v1471
    %1496 = vmatprep.subr.bf16.mxu0 0
    %1497 = vmatpush1.bf16.msra.mxu0 0
    %1498 = vmatprep.subr.bf16.mxu0 0
    %1499 = vmatpush1.bf16.msra.mxu0 0
    %1500 = vmatprep.subr.bf16.mxu0 0
    %1501 = vmatpush1.bf16.msra.mxu0 0
    %1502 = vmatprep.subr.bf16.mxu0 0
    %1503 = vmatpush1.bf16.msra.mxu0 0
    %1504 = vmatprep.subr.bf16.mxu0 0
    %1505 = vmatpush1.bf16.msra.mxu0 0
    %1506 = vmatprep.subr.bf16.mxu0 0
    %1507 = vmatpush1.bf16.msra.mxu0 0
    %1508 = vmatprep.subr.bf16.mxu0 0
    %1509 = vmatpush1.bf16.msra.mxu0 0
    %1510 = vmatprep.subr.bf16.mxu0 0
    %1511 = vmatpush1.bf16.msra.mxu0 0
    %1512 = vmatprep.mubr.bf16.mxu0 0
    %1513 = vmatmul.mubr.bf16.gmra.mrb[0].mxu0 %v1415
    %v1514 = vpop.f32.mrb[0].mxu0
    %v1515 = vadd.f32 0.0, %v1514
    %v1516 = vpop.f32.mrb[0].mxu0
    %v1517 = vpop.f32.mrb[0].mxu0
    %v1518 = vadd.f32 0.0, %v1517
    %v1519 = vpop.f32.mrb[0].mxu0
    %1520 = vdwg.mxu0
    %v1521 = vadd.f32 %v1277, %v1515
    %v1522 = vadd.f32 %v1278, %v1518
    %s1523 = scalar_lea.vmem %s4, 1
    %v1524 = vld [vmem:[%s1523] sm:$0x1]
    %v1525 = vmul.f32 %v1521, %v1521
    %v1526 = vmul.f32 %v1522, %v1522
    %v1527 = vsel %vm51, %v1525, 0.0
    %1528 = vadd.xlane.f32.xlu0 %v1527
    %v1529 = vpop.xlane.xlu0 %1528
    %v1530 = vsel %vm51, %v1526, 0.0
    %1531 = vadd.xlane.f32.xlu0 %v1530
    %v1532 = vpop.xlane.xlu0 %1531
    %v1533 = vmul.f32 %v1529, %v58
    %v1534 = vmul.f32 %v1532, %v58
    %v1535 = vadd.f32 %v1533, 1e-06
    %v1536 = vadd.f32 %v1534, 1e-06
    %v1537 = vrsqrt.pop %v1535
    %v1538 = vrsqrt.pop %v1536
    %v1539 = vmul.f32 %v1521, %v1537
    %v1540 = vmul.f32 %v1522, %v1538
    %v1542 = vlaneseq
    %v1543 = vshrl.u32 %v1542, 7
    %v1544 = vsub.s32 0, %v1543
    %v1545 = vrot.slane %v1524, %v1544
    %v1547 = vmul.f32 %v1539, %v1545
    %v1548 = vmul.f32 %v1540, %v1545
    %v1549 = vpack.c.bf16 %v1548, %v1547
    %s1550 = scalar_lea.vmem %s5, 96
    %v1551 = vld [vmem:[%s1550] sm:$0xff]
    %v1552 = vld [vmem:[%s1550 + $0x8] sm:$0xf]
    %v1553 = vld [vmem:[%s1550 + $0xc] sm:$0xff]
    %v1554 = vld [vmem:[%s1550 + $0x14] sm:$0xf]
    %v1555 = vld [vmem:[%s1550 + $0x18] sm:$0xff]
    %v1556 = vld [vmem:[%s1550 + $0x20] sm:$0xf]
    %v1557 = vld [vmem:[%s1550 + $0x24] sm:$0xff]
    %v1558 = vld [vmem:[%s1550 + $0x2c] sm:$0xf]
    %v1559 = vld [vmem:[%s1550 + $0x30] sm:$0xff]
    %v1560 = vld [vmem:[%s1550 + $0x38] sm:$0xf]
    %v1561 = vld [vmem:[%s1550 + $0x3c] sm:$0xff]
    %v1562 = vld [vmem:[%s1550 + $0x44] sm:$0xf]
    %v1563 = vld [vmem:[%s1550 + $0x48] sm:$0xff]
    %v1564 = vld [vmem:[%s1550 + $0x50] sm:$0xf]
    %v1565 = vld [vmem:[%s1550 + $0x54] sm:$0xff]
    %v1566 = vld [vmem:[%s1550 + $0x5c] sm:$0xf]
    %v1583 = vunpack.c.l.b16 %v1551
    %v1584 = vunpack.c.h.b16 %v1551
    %v1585 = vunpack.c.l.b16 %v1552
    %v1586 = vunpack.c.l.b16 %v1553
    %v1587 = vunpack.c.h.b16 %v1553
    %v1588 = vunpack.c.l.b16 %v1554
    %v1589 = vunpack.c.l.b16 %v1555
    %v1590 = vunpack.c.h.b16 %v1555
    %v1591 = vunpack.c.l.b16 %v1556
    %v1592 = vunpack.c.l.b16 %v1557
    %v1593 = vunpack.c.h.b16 %v1557
    %v1594 = vunpack.c.l.b16 %v1558
    %v1595 = vunpack.c.l.b16 %v1559
    %v1596 = vunpack.c.h.b16 %v1559
    %v1597 = vunpack.c.l.b16 %v1560
    %v1598 = vunpack.c.l.b16 %v1561
    %v1599 = vunpack.c.h.b16 %v1561
    %v1600 = vunpack.c.l.b16 %v1562
    %v1601 = vunpack.c.l.b16 %v1563
    %v1602 = vunpack.c.h.b16 %v1563
    %v1603 = vunpack.c.l.b16 %v1564
    %v1604 = vunpack.c.l.b16 %v1565
    %v1605 = vunpack.c.h.b16 %v1565
    %v1606 = vunpack.c.l.b16 %v1566
    %v1607 = vpack.c.b16 %v1586, %v1583
    %v1608 = vpack.c.b16 %v1587, %v1584
    %v1609 = vpack.c.b16 %v1588, %v1585
    %v1610 = vpack.c.b16 %v1592, %v1589
    %v1611 = vpack.c.b16 %v1593, %v1590
    %v1612 = vpack.c.b16 %v1594, %v1591
    %v1613 = vpack.c.b16 %v1598, %v1595
    %v1614 = vpack.c.b16 %v1599, %v1596
    %v1615 = vpack.c.b16 %v1600, %v1597
    %v1616 = vpack.c.b16 %v1604, %v1601
    %v1617 = vpack.c.b16 %v1605, %v1602
    %v1618 = vpack.c.b16 %v1606, %v1603
    %v1632 = vsel %vm51, %v1549, 0
    %1634 = vmatprep.subr.bf16.mxu0 %v1608
    %1635 = vmatpush1.bf16.msra.mxu0 %v1607
    %1636 = vmatprep.subr.bf16.mxu0 %v1611
    %1637 = vmatpush1.bf16.msra.mxu0 %v1610
    %1638 = vmatprep.subr.bf16.mxu0 %v1614
    %1639 = vmatpush1.bf16.msra.mxu0 %v1613
    %1640 = vmatprep.subr.bf16.mxu0 %v1617
    %1641 = vmatpush1.bf16.msra.mxu0 %v1616
    %1642 = vmatprep.subr.bf16.mxu0 0
    %1643 = vmatpush1.bf16.msra.mxu0 0
    %1644 = vmatprep.subr.bf16.mxu0 0
    %1645 = vmatpush1.bf16.msra.mxu0 0
    %1646 = vmatprep.subr.bf16.mxu0 0
    %1647 = vmatpush1.bf16.msra.mxu0 0
    %1648 = vmatprep.subr.bf16.mxu0 0
    %1649 = vmatpush1.bf16.msra.mxu0 0
    %1650 = vmatprep.subr.bf16.mxu0 0
    %1651 = vmatpush1.bf16.msra.mxu0 0
    %1652 = vmatprep.subr.bf16.mxu0 0
    %1653 = vmatpush1.bf16.msra.mxu0 0
    %1654 = vmatprep.subr.bf16.mxu0 0
    %1655 = vmatpush1.bf16.msra.mxu0 0
    %1656 = vmatprep.subr.bf16.mxu0 0
    %1657 = vmatpush1.bf16.msra.mxu0 0
    %1658 = vmatprep.subr.bf16.mxu0 0
    %1659 = vmatpush1.bf16.msra.mxu0 0
    %1660 = vmatprep.subr.bf16.mxu0 0
    %1661 = vmatpush1.bf16.msra.mxu0 0
    %1662 = vmatprep.subr.bf16.mxu0 0
    %1663 = vmatpush1.bf16.msra.mxu0 0
    %1664 = vmatprep.subr.bf16.mxu0 0
    %1665 = vmatpush1.bf16.msra.mxu0 0
    %1666 = vmatprep.mubr.bf16.mxu0 0
    %1667 = vmatmul.mubr.bf16.gmra.mrb[0].mxu0 %v1632
    %v1668 = vpop.f32.mrb[0].mxu0
    %v1669 = vadd.f32 0.0, %v1668
    %v1670 = vpop.f32.mrb[0].mxu0
    %v1671 = vadd.f32 0.0, %v1670
    %v1672 = vpop.f32.mrb[0].mxu0
    %v1673 = vadd.f32 0.0, %v1672
    %v1674 = vpop.f32.mrb[0].mxu0
    %v1675 = vadd.f32 0.0, %v1674
    %1676 = vdwg.mxu0
    %1677 = vmatprep.subr.bf16.mxu0 0
    %1678 = vmatpush1.bf16.msra.mxu0 %v1609
    %1679 = vmatprep.subr.bf16.mxu0 0
    %1680 = vmatpush1.bf16.msra.mxu0 %v1612
    %1681 = vmatprep.subr.bf16.mxu0 0
    %1682 = vmatpush1.bf16.msra.mxu0 %v1615
    %1683 = vmatprep.subr.bf16.mxu0 0
    %1684 = vmatpush1.bf16.msra.mxu0 %v1618
    %1685 = vmatprep.subr.bf16.mxu0 0
    %1686 = vmatpush1.bf16.msra.mxu0 0
    %1687 = vmatprep.subr.bf16.mxu0 0
    %1688 = vmatpush1.bf16.msra.mxu0 0
    %1689 = vmatprep.subr.bf16.mxu0 0
    %1690 = vmatpush1.bf16.msra.mxu0 0
    %1691 = vmatprep.subr.bf16.mxu0 0
    %1692 = vmatpush1.bf16.msra.mxu0 0
    %1693 = vmatprep.subr.bf16.mxu0 0
    %1694 = vmatpush1.bf16.msra.mxu0 0
    %1695 = vmatprep.subr.bf16.mxu0 0
    %1696 = vmatpush1.bf16.msra.mxu0 0
    %1697 = vmatprep.subr.bf16.mxu0 0
    %1698 = vmatpush1.bf16.msra.mxu0 0
    %1699 = vmatprep.subr.bf16.mxu0 0
    %1700 = vmatpush1.bf16.msra.mxu0 0
    %1701 = vmatprep.subr.bf16.mxu0 0
    %1702 = vmatpush1.bf16.msra.mxu0 0
    %1703 = vmatprep.subr.bf16.mxu0 0
    %1704 = vmatpush1.bf16.msra.mxu0 0
    %1705 = vmatprep.subr.bf16.mxu0 0
    %1706 = vmatpush1.bf16.msra.mxu0 0
    %1707 = vmatprep.subr.bf16.mxu0 0
    %1708 = vmatpush1.bf16.msra.mxu0 0
    %1709 = vmatprep.mubr.bf16.mxu0 0
    %1710 = vmatmul.mubr.bf16.gmra.mrb[0].mxu0 %v1632
    %v1711 = vpop.f32.mrb[0].mxu0
    %v1712 = vadd.f32 0.0, %v1711
    %v1713 = vpop.f32.mrb[0].mxu0
    %v1714 = vpop.f32.mrb[0].mxu0
    %v1715 = vadd.f32 0.0, %v1714
    %v1716 = vpop.f32.mrb[0].mxu0
    %1717 = vdwg.mxu0
    %v1718 = vmul.f32 %v1669, %v42
    %v1719 = vmul.f32 %v1673, %v43
    %v1720 = vmul.f32 %v1669, %v248
    %v1721 = vmul.f32 %v1673, %v250
    %1724 = vrot.lane.b32.xlu0 %v1720, 64
    %v1725 = vpop.permute.xlu0 %1724
    %1726 = vrot.lane.b32.xlu0 %v1721, 64
    %v1727 = vpop.permute.xlu0 %1726
    %v1730 = vadd.f32 %v1718, %v1725
    %v1731 = vadd.f32 %v1719, %v1727
    %v1732 = vmul.f32 %v1671, %v42
    %v1733 = vmul.f32 %v1675, %v43
    %v1734 = vmul.f32 %v1671, %v248
    %v1735 = vmul.f32 %v1675, %v250
    %1738 = vrot.lane.b32.xlu0 %v1734, 64
    %v1739 = vpop.permute.xlu0 %1738
    %1740 = vrot.lane.b32.xlu0 %v1735, 64
    %v1741 = vpop.permute.xlu0 %1740
    %v1744 = vadd.f32 %v1732, %v1739
    %v1745 = vadd.f32 %v1733, %v1741
    %v1746 = vpack.c.bf16 %v1731, %v1730
    %v1748 = vunpack.c.l.b16 %v1746
    %v1749 = vunpack.c.h.b16 %v1746
    %v1750 = vpack.c.b16 %v1748, %v1748
    %v1751 = vpack.c.b16 %v1749, %v1749
    %v1752 = vpack.c.bf16 %v1745, %v1744
    %v1754 = vunpack.c.l.b16 %v1752
    %v1755 = vunpack.c.h.b16 %v1752
    %v1756 = vpack.c.b16 %v1754, %v1754
    %v1757 = vpack.c.b16 %v1755, %v1755
    %v1758 = vpack.c.bf16 %v1715, %v1712
    %v1760 = vunpack.c.l.b16 %v1758
    %v1761 = vunpack.c.h.b16 %v1758
    %v1762 = vpack.c.b16 %v1760, %v1760
    %v1763 = vpack.c.b16 %v1761, %v1761
    %v1765 = vsel %vm297, %v1750, 0
    %v1768 = vsel %vm297, %v1756, 0
    %1770 = vmatprep.subr.bf16.mxu0 0
    %1771 = vmatpush1.bf16.xpose.msra.mxu0 %v1768
    %1772 = vmatprep.subr.bf16.mxu0 0
    %1773 = vmatpush1.bf16.xpose.msra.mxu0 0
    %1774 = vmatprep.subr.bf16.mxu0 0
    %1775 = vmatpush1.bf16.xpose.msra.mxu0 0
    %1776 = vmatprep.subr.bf16.mxu0 0
    %1777 = vmatpush1.bf16.xpose.msra.mxu0 0
    %1778 = vmatprep.subr.bf16.mxu0 0
    %1779 = vmatpush1.bf16.xpose.msra.mxu0 0
    %1780 = vmatprep.subr.bf16.mxu0 0
    %1781 = vmatpush1.bf16.xpose.msra.mxu0 0
    %1782 = vmatprep.subr.bf16.mxu0 0
    %1783 = vmatpush1.bf16.xpose.msra.mxu0 0
    %1784 = vmatprep.subr.bf16.mxu0 0
    %1785 = vmatpush1.bf16.xpose.msra.mxu0 0
    %1786 = vmatprep.subr.bf16.mxu0 0
    %1787 = vmatpush1.bf16.xpose.msra.mxu0 0
    %1788 = vmatprep.subr.bf16.mxu0 0
    %1789 = vmatpush1.bf16.xpose.msra.mxu0 0
    %1790 = vmatprep.subr.bf16.mxu0 0
    %1791 = vmatpush1.bf16.xpose.msra.mxu0 0
    %1792 = vmatprep.subr.bf16.mxu0 0
    %1793 = vmatpush1.bf16.xpose.msra.mxu0 0
    %1794 = vmatprep.subr.bf16.mxu0 0
    %1795 = vmatpush1.bf16.xpose.msra.mxu0 0
    %1796 = vmatprep.subr.bf16.mxu0 0
    %1797 = vmatpush1.bf16.xpose.msra.mxu0 0
    %1798 = vmatprep.subr.bf16.mxu0 0
    %1799 = vmatpush1.bf16.xpose.msra.mxu0 0
    %1800 = vmatprep.subr.bf16.mxu0 0
    %1801 = vmatpush1.bf16.xpose.msra.mxu0 0
    %1802 = vmatprep.mubr.bf16.mxu0 0
    %1803 = vmatmul.mubr.bf16.gmra.mrb[0].mxu0 %v1765
    %v1804 = vpop.f32.mrb[0].mxu0
    %v1805 = vadd.f32 %v46, %v1804
    %v1806 = vpop.f32.mrb[0].mxu0
    %v1807 = vpop.f32.mrb[0].mxu0
    %v1808 = vpop.f32.mrb[0].mxu0
    %1809 = vdwg.mxu0
    %v1811 = vsel %vm297, %v1751, 0
    %v1814 = vsel %vm297, %v1757, 0
    %1816 = vmatprep.subr.bf16.mxu0 0
    %1817 = vmatpush1.bf16.xpose.msra.mxu0 %v1814
    %1818 = vmatprep.subr.bf16.mxu0 0
    %1819 = vmatpush1.bf16.xpose.msra.mxu0 0
    %1820 = vmatprep.subr.bf16.mxu0 0
    %1821 = vmatpush1.bf16.xpose.msra.mxu0 0
    %1822 = vmatprep.subr.bf16.mxu0 0
    %1823 = vmatpush1.bf16.xpose.msra.mxu0 0
    %1824 = vmatprep.subr.bf16.mxu0 0
    %1825 = vmatpush1.bf16.xpose.msra.mxu0 0
    %1826 = vmatprep.subr.bf16.mxu0 0
    %1827 = vmatpush1.bf16.xpose.msra.mxu0 0
    %1828 = vmatprep.subr.bf16.mxu0 0
    %1829 = vmatpush1.bf16.xpose.msra.mxu0 0
    %1830 = vmatprep.subr.bf16.mxu0 0
    %1831 = vmatpush1.bf16.xpose.msra.mxu0 0
    %1832 = vmatprep.subr.bf16.mxu0 0
    %1833 = vmatpush1.bf16.xpose.msra.mxu0 0
    %1834 = vmatprep.subr.bf16.mxu0 0
    %1835 = vmatpush1.bf16.xpose.msra.mxu0 0
    %1836 = vmatprep.subr.bf16.mxu0 0
    %1837 = vmatpush1.bf16.xpose.msra.mxu0 0
    %1838 = vmatprep.subr.bf16.mxu0 0
    %1839 = vmatpush1.bf16.xpose.msra.mxu0 0
    %1840 = vmatprep.subr.bf16.mxu0 0
    %1841 = vmatpush1.bf16.xpose.msra.mxu0 0
    %1842 = vmatprep.subr.bf16.mxu0 0
    %1843 = vmatpush1.bf16.xpose.msra.mxu0 0
    %1844 = vmatprep.subr.bf16.mxu0 0
    %1845 = vmatpush1.bf16.xpose.msra.mxu0 0
    %1846 = vmatprep.subr.bf16.mxu0 0
    %1847 = vmatpush1.bf16.xpose.msra.mxu0 0
    %1848 = vmatprep.mubr.bf16.mxu0 0
    %1849 = vmatmul.mubr.bf16.gmra.mrb[0].mxu0 %v1811
    %v1850 = vpop.f32.mrb[0].mxu0
    %v1851 = vadd.f32 %v47, %v1850
    %v1852 = vpop.f32.mrb[0].mxu0
    %v1853 = vpop.f32.mrb[0].mxu0
    %v1854 = vpop.f32.mrb[0].mxu0
    %1855 = vdwg.mxu0
    %v1856 = vsel %vm390, %v1805, -inf
    %1857 = vmax.xlane.f32.xlu0 %v1856
    %v1858 = vpop.xlane.xlu0 %1857
    %v1859 = vsel %vm390, %v1851, -inf
    %1860 = vmax.xlane.f32.xlu0 %v1859
    %v1861 = vpop.xlane.xlu0 %1860
    %v1862 = vsub.f32 %v1805, %v1858
    %v1863 = vsub.f32 %v1851, %v1861
    %v1864 = vmul.f32 %v1862, 1.442695
    %v1865 = vpow.pop %v1864
    %v1866 = vmul.f32 %v1863, 1.442695
    %v1867 = vpow.pop %v1866
    %v1868 = vsel %vm390, %v1865, 0.0
    %1869 = vadd.xlane.f32.xlu0 %v1868
    %v1870 = vpop.xlane.xlu0 %1869
    %v1871 = vsel %vm390, %v1867, 0.0
    %1872 = vadd.xlane.f32.xlu0 %v1871
    %v1873 = vpop.xlane.xlu0 %1872
    %v1874 = vrcp.pop %v1870
    %v1875 = vrcp.pop %v1873
    %v1876 = vmul.f32 %v1865, %v1874
    %v1877 = vmul.f32 %v1867, %v1875
    %v1878 = vpack.c.bf16 %v1876, %v1876
    %v1879 = vpack.c.bf16 %v1877, %v1877
    %v1881 = vsel %vm390, %v1878, 0
    %v1884 = vsel %vm418, %v1762, 0
    %1886 = vmatprep.subr.bf16.mxu0 0
    %1887 = vmatpush1.bf16.msra.mxu0 %v1884
    %1888 = vmatprep.subr.bf16.mxu0 0
    %1889 = vmatpush1.bf16.msra.mxu0 0
    %1890 = vmatprep.subr.bf16.mxu0 0
    %1891 = vmatpush1.bf16.msra.mxu0 0
    %1892 = vmatprep.subr.bf16.mxu0 0
    %1893 = vmatpush1.bf16.msra.mxu0 0
    %1894 = vmatprep.subr.bf16.mxu0 0
    %1895 = vmatpush1.bf16.msra.mxu0 0
    %1896 = vmatprep.subr.bf16.mxu0 0
    %1897 = vmatpush1.bf16.msra.mxu0 0
    %1898 = vmatprep.subr.bf16.mxu0 0
    %1899 = vmatpush1.bf16.msra.mxu0 0
    %1900 = vmatprep.subr.bf16.mxu0 0
    %1901 = vmatpush1.bf16.msra.mxu0 0
    %1902 = vmatprep.subr.bf16.mxu0 0
    %1903 = vmatpush1.bf16.msra.mxu0 0
    %1904 = vmatprep.subr.bf16.mxu0 0
    %1905 = vmatpush1.bf16.msra.mxu0 0
    %1906 = vmatprep.subr.bf16.mxu0 0
    %1907 = vmatpush1.bf16.msra.mxu0 0
    %1908 = vmatprep.subr.bf16.mxu0 0
    %1909 = vmatpush1.bf16.msra.mxu0 0
    %1910 = vmatprep.subr.bf16.mxu0 0
    %1911 = vmatpush1.bf16.msra.mxu0 0
    %1912 = vmatprep.subr.bf16.mxu0 0
    %1913 = vmatpush1.bf16.msra.mxu0 0
    %1914 = vmatprep.subr.bf16.mxu0 0
    %1915 = vmatpush1.bf16.msra.mxu0 0
    %1916 = vmatprep.subr.bf16.mxu0 0
    %1917 = vmatpush1.bf16.msra.mxu0 0
    %1918 = vmatprep.mubr.bf16.mxu0 0
    %1919 = vmatmul.mubr.bf16.gmra.mrb[0].mxu0 %v1881
    %v1920 = vpop.f32.mrb[0].mxu0
    %v1921 = vadd.f32 0.0, %v1920
    %v1922 = vpop.f32.mrb[0].mxu0
    %v1923 = vpop.f32.mrb[0].mxu0
    %v1924 = vpop.f32.mrb[0].mxu0
    %1925 = vdwg.mxu0
    %v1927 = vsel %vm390, %v1879, 0
    %v1930 = vsel %vm418, %v1763, 0
    %1932 = vmatprep.subr.bf16.mxu0 0
    %1933 = vmatpush1.bf16.msra.mxu0 %v1930
    %1934 = vmatprep.subr.bf16.mxu0 0
    %1935 = vmatpush1.bf16.msra.mxu0 0
    %1936 = vmatprep.subr.bf16.mxu0 0
    %1937 = vmatpush1.bf16.msra.mxu0 0
    %1938 = vmatprep.subr.bf16.mxu0 0
    %1939 = vmatpush1.bf16.msra.mxu0 0
    %1940 = vmatprep.subr.bf16.mxu0 0
    %1941 = vmatpush1.bf16.msra.mxu0 0
    %1942 = vmatprep.subr.bf16.mxu0 0
    %1943 = vmatpush1.bf16.msra.mxu0 0
    %1944 = vmatprep.subr.bf16.mxu0 0
    %1945 = vmatpush1.bf16.msra.mxu0 0
    %1946 = vmatprep.subr.bf16.mxu0 0
    %1947 = vmatpush1.bf16.msra.mxu0 0
    %1948 = vmatprep.subr.bf16.mxu0 0
    %1949 = vmatpush1.bf16.msra.mxu0 0
    %1950 = vmatprep.subr.bf16.mxu0 0
    %1951 = vmatpush1.bf16.msra.mxu0 0
    %1952 = vmatprep.subr.bf16.mxu0 0
    %1953 = vmatpush1.bf16.msra.mxu0 0
    %1954 = vmatprep.subr.bf16.mxu0 0
    %1955 = vmatpush1.bf16.msra.mxu0 0
    %1956 = vmatprep.subr.bf16.mxu0 0
    %1957 = vmatpush1.bf16.msra.mxu0 0
    %1958 = vmatprep.subr.bf16.mxu0 0
    %1959 = vmatpush1.bf16.msra.mxu0 0
    %1960 = vmatprep.subr.bf16.mxu0 0
    %1961 = vmatpush1.bf16.msra.mxu0 0
    %1962 = vmatprep.subr.bf16.mxu0 0
    %1963 = vmatpush1.bf16.msra.mxu0 0
    %1964 = vmatprep.mubr.bf16.mxu0 0
    %1965 = vmatmul.mubr.bf16.gmra.mrb[0].mxu0 %v1927
    %v1966 = vpop.f32.mrb[0].mxu0
    %v1967 = vadd.f32 0.0, %v1966
    %v1968 = vpop.f32.mrb[0].mxu0
    %v1969 = vpop.f32.mrb[0].mxu0
    %v1970 = vpop.f32.mrb[0].mxu0
    %1971 = vdwg.mxu0
    %1972 = vrot.lane.b32.xlu0 %v1750, 112
    %v1973 = vpop.permute.xlu0 %1972
    %1974 = vrot.lane.b32.xlu0 %v1756, 112
    %v1975 = vpop.permute.xlu0 %1974
    %v1977 = vsel %vm297, %v1973, 0
    %v1980 = vsel %vm297, %v1975, 0
    %1982 = vmatprep.subr.bf16.mxu0 0
    %1983 = vmatpush1.bf16.xpose.msra.mxu0 %v1980
    %1984 = vmatprep.subr.bf16.mxu0 0
    %1985 = vmatpush1.bf16.xpose.msra.mxu0 0
    %1986 = vmatprep.subr.bf16.mxu0 0
    %1987 = vmatpush1.bf16.xpose.msra.mxu0 0
    %1988 = vmatprep.subr.bf16.mxu0 0
    %1989 = vmatpush1.bf16.xpose.msra.mxu0 0
    %1990 = vmatprep.subr.bf16.mxu0 0
    %1991 = vmatpush1.bf16.xpose.msra.mxu0 0
    %1992 = vmatprep.subr.bf16.mxu0 0
    %1993 = vmatpush1.bf16.xpose.msra.mxu0 0
    %1994 = vmatprep.subr.bf16.mxu0 0
    %1995 = vmatpush1.bf16.xpose.msra.mxu0 0
    %1996 = vmatprep.subr.bf16.mxu0 0
    %1997 = vmatpush1.bf16.xpose.msra.mxu0 0
    %1998 = vmatprep.subr.bf16.mxu0 0
    %1999 = vmatpush1.bf16.xpose.msra.mxu0 0
    %2000 = vmatprep.subr.bf16.mxu0 0
    %2001 = vmatpush1.bf16.xpose.msra.mxu0 0
    %2002 = vmatprep.subr.bf16.mxu0 0
    %2003 = vmatpush1.bf16.xpose.msra.mxu0 0
    %2004 = vmatprep.subr.bf16.mxu0 0
    %2005 = vmatpush1.bf16.xpose.msra.mxu0 0
    %2006 = vmatprep.subr.bf16.mxu0 0
    %2007 = vmatpush1.bf16.xpose.msra.mxu0 0
    %2008 = vmatprep.subr.bf16.mxu0 0
    %2009 = vmatpush1.bf16.xpose.msra.mxu0 0
    %2010 = vmatprep.subr.bf16.mxu0 0
    %2011 = vmatpush1.bf16.xpose.msra.mxu0 0
    %2012 = vmatprep.subr.bf16.mxu0 0
    %2013 = vmatpush1.bf16.xpose.msra.mxu0 0
    %2014 = vmatprep.mubr.bf16.mxu0 0
    %2015 = vmatmul.mubr.bf16.gmra.mrb[0].mxu0 %v1977
    %v2016 = vpop.f32.mrb[0].mxu0
    %v2017 = vadd.f32 %v46, %v2016
    %v2018 = vpop.f32.mrb[0].mxu0
    %v2019 = vpop.f32.mrb[0].mxu0
    %v2020 = vpop.f32.mrb[0].mxu0
    %2021 = vdwg.mxu0
    %2022 = vrot.lane.b32.xlu0 %v1751, 112
    %v2023 = vpop.permute.xlu0 %2022
    %2024 = vrot.lane.b32.xlu0 %v1757, 112
    %v2025 = vpop.permute.xlu0 %2024
    %v2027 = vsel %vm297, %v2023, 0
    %v2030 = vsel %vm297, %v2025, 0
    %2032 = vmatprep.subr.bf16.mxu0 0
    %2033 = vmatpush1.bf16.xpose.msra.mxu0 %v2030
    %2034 = vmatprep.subr.bf16.mxu0 0
    %2035 = vmatpush1.bf16.xpose.msra.mxu0 0
    %2036 = vmatprep.subr.bf16.mxu0 0
    %2037 = vmatpush1.bf16.xpose.msra.mxu0 0
    %2038 = vmatprep.subr.bf16.mxu0 0
    %2039 = vmatpush1.bf16.xpose.msra.mxu0 0
    %2040 = vmatprep.subr.bf16.mxu0 0
    %2041 = vmatpush1.bf16.xpose.msra.mxu0 0
    %2042 = vmatprep.subr.bf16.mxu0 0
    %2043 = vmatpush1.bf16.xpose.msra.mxu0 0
    %2044 = vmatprep.subr.bf16.mxu0 0
    %2045 = vmatpush1.bf16.xpose.msra.mxu0 0
    %2046 = vmatprep.subr.bf16.mxu0 0
    %2047 = vmatpush1.bf16.xpose.msra.mxu0 0
    %2048 = vmatprep.subr.bf16.mxu0 0
    %2049 = vmatpush1.bf16.xpose.msra.mxu0 0
    %2050 = vmatprep.subr.bf16.mxu0 0
    %2051 = vmatpush1.bf16.xpose.msra.mxu0 0
    %2052 = vmatprep.subr.bf16.mxu0 0
    %2053 = vmatpush1.bf16.xpose.msra.mxu0 0
    %2054 = vmatprep.subr.bf16.mxu0 0
    %2055 = vmatpush1.bf16.xpose.msra.mxu0 0
    %2056 = vmatprep.subr.bf16.mxu0 0
    %2057 = vmatpush1.bf16.xpose.msra.mxu0 0
    %2058 = vmatprep.subr.bf16.mxu0 0
    %2059 = vmatpush1.bf16.xpose.msra.mxu0 0
    %2060 = vmatprep.subr.bf16.mxu0 0
    %2061 = vmatpush1.bf16.xpose.msra.mxu0 0
    %2062 = vmatprep.subr.bf16.mxu0 0
    %2063 = vmatpush1.bf16.xpose.msra.mxu0 0
    %2064 = vmatprep.mubr.bf16.mxu0 0
    %2065 = vmatmul.mubr.bf16.gmra.mrb[0].mxu0 %v2027
    %v2066 = vpop.f32.mrb[0].mxu0
    %v2067 = vadd.f32 %v47, %v2066
    %v2068 = vpop.f32.mrb[0].mxu0
    %v2069 = vpop.f32.mrb[0].mxu0
    %v2070 = vpop.f32.mrb[0].mxu0
    %2071 = vdwg.mxu0
    %v2072 = vsel %vm390, %v2017, -inf
    %2073 = vmax.xlane.f32.xlu0 %v2072
    %v2074 = vpop.xlane.xlu0 %2073
    %v2075 = vsel %vm390, %v2067, -inf
    %2076 = vmax.xlane.f32.xlu0 %v2075
    %v2077 = vpop.xlane.xlu0 %2076
    %v2078 = vsub.f32 %v2017, %v2074
    %v2079 = vsub.f32 %v2067, %v2077
    %v2080 = vmul.f32 %v2078, 1.442695
    %v2081 = vpow.pop %v2080
    %v2082 = vmul.f32 %v2079, 1.442695
    %v2083 = vpow.pop %v2082
    %v2084 = vsel %vm390, %v2081, 0.0
    %2085 = vadd.xlane.f32.xlu0 %v2084
    %v2086 = vpop.xlane.xlu0 %2085
    %v2087 = vsel %vm390, %v2083, 0.0
    %2088 = vadd.xlane.f32.xlu0 %v2087
    %v2089 = vpop.xlane.xlu0 %2088
    %v2090 = vrcp.pop %v2086
    %v2091 = vrcp.pop %v2089
    %v2092 = vmul.f32 %v2081, %v2090
    %v2093 = vmul.f32 %v2083, %v2091
    %v2094 = vpack.c.bf16 %v2092, %v2092
    %v2095 = vpack.c.bf16 %v2093, %v2093
    %2096 = vrot.lane.b32.xlu0 %v1762, 112
    %v2097 = vpop.permute.xlu0 %2096
    %v2099 = vsel %vm390, %v2094, 0
    %v2102 = vsel %vm418, %v2097, 0
    %2104 = vmatprep.subr.bf16.mxu0 0
    %2105 = vmatpush1.bf16.msra.mxu0 %v2102
    %2106 = vmatprep.subr.bf16.mxu0 0
    %2107 = vmatpush1.bf16.msra.mxu0 0
    %2108 = vmatprep.subr.bf16.mxu0 0
    %2109 = vmatpush1.bf16.msra.mxu0 0
    %2110 = vmatprep.subr.bf16.mxu0 0
    %2111 = vmatpush1.bf16.msra.mxu0 0
    %2112 = vmatprep.subr.bf16.mxu0 0
    %2113 = vmatpush1.bf16.msra.mxu0 0
    %2114 = vmatprep.subr.bf16.mxu0 0
    %2115 = vmatpush1.bf16.msra.mxu0 0
    %2116 = vmatprep.subr.bf16.mxu0 0
    %2117 = vmatpush1.bf16.msra.mxu0 0
    %2118 = vmatprep.subr.bf16.mxu0 0
    %2119 = vmatpush1.bf16.msra.mxu0 0
    %2120 = vmatprep.subr.bf16.mxu0 0
    %2121 = vmatpush1.bf16.msra.mxu0 0
    %2122 = vmatprep.subr.bf16.mxu0 0
    %2123 = vmatpush1.bf16.msra.mxu0 0
    %2124 = vmatprep.subr.bf16.mxu0 0
    %2125 = vmatpush1.bf16.msra.mxu0 0
    %2126 = vmatprep.subr.bf16.mxu0 0
    %2127 = vmatpush1.bf16.msra.mxu0 0
    %2128 = vmatprep.subr.bf16.mxu0 0
    %2129 = vmatpush1.bf16.msra.mxu0 0
    %2130 = vmatprep.subr.bf16.mxu0 0
    %2131 = vmatpush1.bf16.msra.mxu0 0
    %2132 = vmatprep.subr.bf16.mxu0 0
    %2133 = vmatpush1.bf16.msra.mxu0 0
    %2134 = vmatprep.subr.bf16.mxu0 0
    %2135 = vmatpush1.bf16.msra.mxu0 0
    %2136 = vmatprep.mubr.bf16.mxu0 0
    %2137 = vmatmul.mubr.bf16.gmra.mrb[0].mxu0 %v2099
    %v2138 = vpop.f32.mrb[0].mxu0
    %v2139 = vadd.f32 0.0, %v2138
    %v2140 = vpop.f32.mrb[0].mxu0
    %v2141 = vpop.f32.mrb[0].mxu0
    %v2142 = vpop.f32.mrb[0].mxu0
    %2143 = vdwg.mxu0
    %2144 = vrot.lane.b32.xlu0 %v1763, 112
    %v2145 = vpop.permute.xlu0 %2144
    %v2147 = vsel %vm390, %v2095, 0
    %v2150 = vsel %vm418, %v2145, 0
    %2152 = vmatprep.subr.bf16.mxu0 0
    %2153 = vmatpush1.bf16.msra.mxu0 %v2150
    %2154 = vmatprep.subr.bf16.mxu0 0
    %2155 = vmatpush1.bf16.msra.mxu0 0
    %2156 = vmatprep.subr.bf16.mxu0 0
    %2157 = vmatpush1.bf16.msra.mxu0 0
    %2158 = vmatprep.subr.bf16.mxu0 0
    %2159 = vmatpush1.bf16.msra.mxu0 0
    %2160 = vmatprep.subr.bf16.mxu0 0
    %2161 = vmatpush1.bf16.msra.mxu0 0
    %2162 = vmatprep.subr.bf16.mxu0 0
    %2163 = vmatpush1.bf16.msra.mxu0 0
    %2164 = vmatprep.subr.bf16.mxu0 0
    %2165 = vmatpush1.bf16.msra.mxu0 0
    %2166 = vmatprep.subr.bf16.mxu0 0
    %2167 = vmatpush1.bf16.msra.mxu0 0
    %2168 = vmatprep.subr.bf16.mxu0 0
    %2169 = vmatpush1.bf16.msra.mxu0 0
    %2170 = vmatprep.subr.bf16.mxu0 0
    %2171 = vmatpush1.bf16.msra.mxu0 0
    %2172 = vmatprep.subr.bf16.mxu0 0
    %2173 = vmatpush1.bf16.msra.mxu0 0
    %2174 = vmatprep.subr.bf16.mxu0 0
    %2175 = vmatpush1.bf16.msra.mxu0 0
    %2176 = vmatprep.subr.bf16.mxu0 0
    %2177 = vmatpush1.bf16.msra.mxu0 0
    %2178 = vmatprep.subr.bf16.mxu0 0
    %2179 = vmatpush1.bf16.msra.mxu0 0
    %2180 = vmatprep.subr.bf16.mxu0 0
    %2181 = vmatpush1.bf16.msra.mxu0 0
    %2182 = vmatprep.subr.bf16.mxu0 0
    %2183 = vmatpush1.bf16.msra.mxu0 0
    %2184 = vmatprep.mubr.bf16.mxu0 0
    %2185 = vmatmul.mubr.bf16.gmra.mrb[0].mxu0 %v2147
    %v2186 = vpop.f32.mrb[0].mxu0
    %v2187 = vadd.f32 0.0, %v2186
    %v2188 = vpop.f32.mrb[0].mxu0
    %v2189 = vpop.f32.mrb[0].mxu0
    %v2190 = vpop.f32.mrb[0].mxu0
    %2191 = vdwg.mxu0
    %2192 = vrot.lane.b32.xlu0 %v1750, 96
    %v2193 = vpop.permute.xlu0 %2192
    %2194 = vrot.lane.b32.xlu0 %v1756, 96
    %v2195 = vpop.permute.xlu0 %2194
    %v2197 = vsel %vm297, %v2193, 0
    %v2200 = vsel %vm297, %v2195, 0
    %2202 = vmatprep.subr.bf16.mxu0 0
    %2203 = vmatpush1.bf16.xpose.msra.mxu0 %v2200
    %2204 = vmatprep.subr.bf16.mxu0 0
    %2205 = vmatpush1.bf16.xpose.msra.mxu0 0
    %2206 = vmatprep.subr.bf16.mxu0 0
    %2207 = vmatpush1.bf16.xpose.msra.mxu0 0
    %2208 = vmatprep.subr.bf16.mxu0 0
    %2209 = vmatpush1.bf16.xpose.msra.mxu0 0
    %2210 = vmatprep.subr.bf16.mxu0 0
    %2211 = vmatpush1.bf16.xpose.msra.mxu0 0
    %2212 = vmatprep.subr.bf16.mxu0 0
    %2213 = vmatpush1.bf16.xpose.msra.mxu0 0
    %2214 = vmatprep.subr.bf16.mxu0 0
    %2215 = vmatpush1.bf16.xpose.msra.mxu0 0
    %2216 = vmatprep.subr.bf16.mxu0 0
    %2217 = vmatpush1.bf16.xpose.msra.mxu0 0
    %2218 = vmatprep.subr.bf16.mxu0 0
    %2219 = vmatpush1.bf16.xpose.msra.mxu0 0
    %2220 = vmatprep.subr.bf16.mxu0 0
    %2221 = vmatpush1.bf16.xpose.msra.mxu0 0
    %2222 = vmatprep.subr.bf16.mxu0 0
    %2223 = vmatpush1.bf16.xpose.msra.mxu0 0
    %2224 = vmatprep.subr.bf16.mxu0 0
    %2225 = vmatpush1.bf16.xpose.msra.mxu0 0
    %2226 = vmatprep.subr.bf16.mxu0 0
    %2227 = vmatpush1.bf16.xpose.msra.mxu0 0
    %2228 = vmatprep.subr.bf16.mxu0 0
    %2229 = vmatpush1.bf16.xpose.msra.mxu0 0
    %2230 = vmatprep.subr.bf16.mxu0 0
    %2231 = vmatpush1.bf16.xpose.msra.mxu0 0
    %2232 = vmatprep.subr.bf16.mxu0 0
    %2233 = vmatpush1.bf16.xpose.msra.mxu0 0
    %2234 = vmatprep.mubr.bf16.mxu0 0
    %2235 = vmatmul.mubr.bf16.gmra.mrb[0].mxu0 %v2197
    %v2236 = vpop.f32.mrb[0].mxu0
    %v2237 = vadd.f32 %v46, %v2236
    %v2238 = vpop.f32.mrb[0].mxu0
    %v2239 = vpop.f32.mrb[0].mxu0
    %v2240 = vpop.f32.mrb[0].mxu0
    %2241 = vdwg.mxu0
    %2242 = vrot.lane.b32.xlu0 %v1751, 96
    %v2243 = vpop.permute.xlu0 %2242
    %2244 = vrot.lane.b32.xlu0 %v1757, 96
    %v2245 = vpop.permute.xlu0 %2244
    %v2247 = vsel %vm297, %v2243, 0
    %v2250 = vsel %vm297, %v2245, 0
    %2252 = vmatprep.subr.bf16.mxu0 0
    %2253 = vmatpush1.bf16.xpose.msra.mxu0 %v2250
    %2254 = vmatprep.subr.bf16.mxu0 0
    %2255 = vmatpush1.bf16.xpose.msra.mxu0 0
    %2256 = vmatprep.subr.bf16.mxu0 0
    %2257 = vmatpush1.bf16.xpose.msra.mxu0 0
    %2258 = vmatprep.subr.bf16.mxu0 0
    %2259 = vmatpush1.bf16.xpose.msra.mxu0 0
    %2260 = vmatprep.subr.bf16.mxu0 0
    %2261 = vmatpush1.bf16.xpose.msra.mxu0 0
    %2262 = vmatprep.subr.bf16.mxu0 0
    %2263 = vmatpush1.bf16.xpose.msra.mxu0 0
    %2264 = vmatprep.subr.bf16.mxu0 0
    %2265 = vmatpush1.bf16.xpose.msra.mxu0 0
    %2266 = vmatprep.subr.bf16.mxu0 0
    %2267 = vmatpush1.bf16.xpose.msra.mxu0 0
    %2268 = vmatprep.subr.bf16.mxu0 0
    %2269 = vmatpush1.bf16.xpose.msra.mxu0 0
    %2270 = vmatprep.subr.bf16.mxu0 0
    %2271 = vmatpush1.bf16.xpose.msra.mxu0 0
    %2272 = vmatprep.subr.bf16.mxu0 0
    %2273 = vmatpush1.bf16.xpose.msra.mxu0 0
    %2274 = vmatprep.subr.bf16.mxu0 0
    %2275 = vmatpush1.bf16.xpose.msra.mxu0 0
    %2276 = vmatprep.subr.bf16.mxu0 0
    %2277 = vmatpush1.bf16.xpose.msra.mxu0 0
    %2278 = vmatprep.subr.bf16.mxu0 0
    %2279 = vmatpush1.bf16.xpose.msra.mxu0 0
    %2280 = vmatprep.subr.bf16.mxu0 0
    %2281 = vmatpush1.bf16.xpose.msra.mxu0 0
    %2282 = vmatprep.subr.bf16.mxu0 0
    %2283 = vmatpush1.bf16.xpose.msra.mxu0 0
    %2284 = vmatprep.mubr.bf16.mxu0 0
    %2285 = vmatmul.mubr.bf16.gmra.mrb[0].mxu0 %v2247
    %v2286 = vpop.f32.mrb[0].mxu0
    %v2287 = vadd.f32 %v47, %v2286
    %v2288 = vpop.f32.mrb[0].mxu0
    %v2289 = vpop.f32.mrb[0].mxu0
    %v2290 = vpop.f32.mrb[0].mxu0
    %2291 = vdwg.mxu0
    %v2292 = vsel %vm390, %v2237, -inf
    %2293 = vmax.xlane.f32.xlu0 %v2292
    %v2294 = vpop.xlane.xlu0 %2293
    %v2295 = vsel %vm390, %v2287, -inf
    %2296 = vmax.xlane.f32.xlu0 %v2295
    %v2297 = vpop.xlane.xlu0 %2296
    %v2298 = vsub.f32 %v2237, %v2294
    %v2299 = vsub.f32 %v2287, %v2297
    %v2300 = vmul.f32 %v2298, 1.442695
    %v2301 = vpow.pop %v2300
    %v2302 = vmul.f32 %v2299, 1.442695
    %v2303 = vpow.pop %v2302
    %v2304 = vsel %vm390, %v2301, 0.0
    %2305 = vadd.xlane.f32.xlu0 %v2304
    %v2306 = vpop.xlane.xlu0 %2305
    %v2307 = vsel %vm390, %v2303, 0.0
    %2308 = vadd.xlane.f32.xlu0 %v2307
    %v2309 = vpop.xlane.xlu0 %2308
    %v2310 = vrcp.pop %v2306
    %v2311 = vrcp.pop %v2309
    %v2312 = vmul.f32 %v2301, %v2310
    %v2313 = vmul.f32 %v2303, %v2311
    %v2314 = vpack.c.bf16 %v2312, %v2312
    %v2315 = vpack.c.bf16 %v2313, %v2313
    %2316 = vrot.lane.b32.xlu0 %v1762, 96
    %v2317 = vpop.permute.xlu0 %2316
    %v2319 = vsel %vm390, %v2314, 0
    %v2322 = vsel %vm418, %v2317, 0
    %2324 = vmatprep.subr.bf16.mxu0 0
    %2325 = vmatpush1.bf16.msra.mxu0 %v2322
    %2326 = vmatprep.subr.bf16.mxu0 0
    %2327 = vmatpush1.bf16.msra.mxu0 0
    %2328 = vmatprep.subr.bf16.mxu0 0
    %2329 = vmatpush1.bf16.msra.mxu0 0
    %2330 = vmatprep.subr.bf16.mxu0 0
    %2331 = vmatpush1.bf16.msra.mxu0 0
    %2332 = vmatprep.subr.bf16.mxu0 0
    %2333 = vmatpush1.bf16.msra.mxu0 0
    %2334 = vmatprep.subr.bf16.mxu0 0
    %2335 = vmatpush1.bf16.msra.mxu0 0
    %2336 = vmatprep.subr.bf16.mxu0 0
    %2337 = vmatpush1.bf16.msra.mxu0 0
    %2338 = vmatprep.subr.bf16.mxu0 0
    %2339 = vmatpush1.bf16.msra.mxu0 0
    %2340 = vmatprep.subr.bf16.mxu0 0
    %2341 = vmatpush1.bf16.msra.mxu0 0
    %2342 = vmatprep.subr.bf16.mxu0 0
    %2343 = vmatpush1.bf16.msra.mxu0 0
    %2344 = vmatprep.subr.bf16.mxu0 0
    %2345 = vmatpush1.bf16.msra.mxu0 0
    %2346 = vmatprep.subr.bf16.mxu0 0
    %2347 = vmatpush1.bf16.msra.mxu0 0
    %2348 = vmatprep.subr.bf16.mxu0 0
    %2349 = vmatpush1.bf16.msra.mxu0 0
    %2350 = vmatprep.subr.bf16.mxu0 0
    %2351 = vmatpush1.bf16.msra.mxu0 0
    %2352 = vmatprep.subr.bf16.mxu0 0
    %2353 = vmatpush1.bf16.msra.mxu0 0
    %2354 = vmatprep.subr.bf16.mxu0 0
    %2355 = vmatpush1.bf16.msra.mxu0 0
    %2356 = vmatprep.mubr.bf16.mxu0 0
    %2357 = vmatmul.mubr.bf16.gmra.mrb[0].mxu0 %v2319
    %v2358 = vpop.f32.mrb[0].mxu0
    %v2359 = vadd.f32 0.0, %v2358
    %v2360 = vpop.f32.mrb[0].mxu0
    %v2361 = vpop.f32.mrb[0].mxu0
    %v2362 = vpop.f32.mrb[0].mxu0
    %2363 = vdwg.mxu0
    %2364 = vrot.lane.b32.xlu0 %v1763, 96
    %v2365 = vpop.permute.xlu0 %2364
    %v2367 = vsel %vm390, %v2315, 0
    %v2370 = vsel %vm418, %v2365, 0
    %2372 = vmatprep.subr.bf16.mxu0 0
    %2373 = vmatpush1.bf16.msra.mxu0 %v2370
    %2374 = vmatprep.subr.bf16.mxu0 0
    %2375 = vmatpush1.bf16.msra.mxu0 0
    %2376 = vmatprep.subr.bf16.mxu0 0
    %2377 = vmatpush1.bf16.msra.mxu0 0
    %2378 = vmatprep.subr.bf16.mxu0 0
    %2379 = vmatpush1.bf16.msra.mxu0 0
    %2380 = vmatprep.subr.bf16.mxu0 0
    %2381 = vmatpush1.bf16.msra.mxu0 0
    %2382 = vmatprep.subr.bf16.mxu0 0
    %2383 = vmatpush1.bf16.msra.mxu0 0
    %2384 = vmatprep.subr.bf16.mxu0 0
    %2385 = vmatpush1.bf16.msra.mxu0 0
    %2386 = vmatprep.subr.bf16.mxu0 0
    %2387 = vmatpush1.bf16.msra.mxu0 0
    %2388 = vmatprep.subr.bf16.mxu0 0
    %2389 = vmatpush1.bf16.msra.mxu0 0
    %2390 = vmatprep.subr.bf16.mxu0 0
    %2391 = vmatpush1.bf16.msra.mxu0 0
    %2392 = vmatprep.subr.bf16.mxu0 0
    %2393 = vmatpush1.bf16.msra.mxu0 0
    %2394 = vmatprep.subr.bf16.mxu0 0
    %2395 = vmatpush1.bf16.msra.mxu0 0
    %2396 = vmatprep.subr.bf16.mxu0 0
    %2397 = vmatpush1.bf16.msra.mxu0 0
    %2398 = vmatprep.subr.bf16.mxu0 0
    %2399 = vmatpush1.bf16.msra.mxu0 0
    %2400 = vmatprep.subr.bf16.mxu0 0
    %2401 = vmatpush1.bf16.msra.mxu0 0
    %2402 = vmatprep.subr.bf16.mxu0 0
    %2403 = vmatpush1.bf16.msra.mxu0 0
    %2404 = vmatprep.mubr.bf16.mxu0 0
    %2405 = vmatmul.mubr.bf16.gmra.mrb[0].mxu0 %v2367
    %v2406 = vpop.f32.mrb[0].mxu0
    %v2407 = vadd.f32 0.0, %v2406
    %v2408 = vpop.f32.mrb[0].mxu0
    %v2409 = vpop.f32.mrb[0].mxu0
    %v2410 = vpop.f32.mrb[0].mxu0
    %2411 = vdwg.mxu0
    %2412 = vrot.lane.b32.xlu0 %v1750, 80
    %v2413 = vpop.permute.xlu0 %2412
    %2414 = vrot.lane.b32.xlu0 %v1756, 80
    %v2415 = vpop.permute.xlu0 %2414
    %v2417 = vsel %vm297, %v2413, 0
    %v2420 = vsel %vm297, %v2415, 0
    %2422 = vmatprep.subr.bf16.mxu0 0
    %2423 = vmatpush1.bf16.xpose.msra.mxu0 %v2420
    %2424 = vmatprep.subr.bf16.mxu0 0
    %2425 = vmatpush1.bf16.xpose.msra.mxu0 0
    %2426 = vmatprep.subr.bf16.mxu0 0
    %2427 = vmatpush1.bf16.xpose.msra.mxu0 0
    %2428 = vmatprep.subr.bf16.mxu0 0
    %2429 = vmatpush1.bf16.xpose.msra.mxu0 0
    %2430 = vmatprep.subr.bf16.mxu0 0
    %2431 = vmatpush1.bf16.xpose.msra.mxu0 0
    %2432 = vmatprep.subr.bf16.mxu0 0
    %2433 = vmatpush1.bf16.xpose.msra.mxu0 0
    %2434 = vmatprep.subr.bf16.mxu0 0
    %2435 = vmatpush1.bf16.xpose.msra.mxu0 0
    %2436 = vmatprep.subr.bf16.mxu0 0
    %2437 = vmatpush1.bf16.xpose.msra.mxu0 0
    %2438 = vmatprep.subr.bf16.mxu0 0
    %2439 = vmatpush1.bf16.xpose.msra.mxu0 0
    %2440 = vmatprep.subr.bf16.mxu0 0
    %2441 = vmatpush1.bf16.xpose.msra.mxu0 0
    %2442 = vmatprep.subr.bf16.mxu0 0
    %2443 = vmatpush1.bf16.xpose.msra.mxu0 0
    %2444 = vmatprep.subr.bf16.mxu0 0
    %2445 = vmatpush1.bf16.xpose.msra.mxu0 0
    %2446 = vmatprep.subr.bf16.mxu0 0
    %2447 = vmatpush1.bf16.xpose.msra.mxu0 0
    %2448 = vmatprep.subr.bf16.mxu0 0
    %2449 = vmatpush1.bf16.xpose.msra.mxu0 0
    %2450 = vmatprep.subr.bf16.mxu0 0
    %2451 = vmatpush1.bf16.xpose.msra.mxu0 0
    %2452 = vmatprep.subr.bf16.mxu0 0
    %2453 = vmatpush1.bf16.xpose.msra.mxu0 0
    %2454 = vmatprep.mubr.bf16.mxu0 0
    %2455 = vmatmul.mubr.bf16.gmra.mrb[0].mxu0 %v2417
    %v2456 = vpop.f32.mrb[0].mxu0
    %v2457 = vadd.f32 %v46, %v2456
    %v2458 = vpop.f32.mrb[0].mxu0
    %v2459 = vpop.f32.mrb[0].mxu0
    %v2460 = vpop.f32.mrb[0].mxu0
    %2461 = vdwg.mxu0
    %2462 = vrot.lane.b32.xlu0 %v1751, 80
    %v2463 = vpop.permute.xlu0 %2462
    %2464 = vrot.lane.b32.xlu0 %v1757, 80
    %v2465 = vpop.permute.xlu0 %2464
    %v2467 = vsel %vm297, %v2463, 0
    %v2470 = vsel %vm297, %v2465, 0
    %2472 = vmatprep.subr.bf16.mxu0 0
    %2473 = vmatpush1.bf16.xpose.msra.mxu0 %v2470
    %2474 = vmatprep.subr.bf16.mxu0 0
    %2475 = vmatpush1.bf16.xpose.msra.mxu0 0
    %2476 = vmatprep.subr.bf16.mxu0 0
    %2477 = vmatpush1.bf16.xpose.msra.mxu0 0
    %2478 = vmatprep.subr.bf16.mxu0 0
    %2479 = vmatpush1.bf16.xpose.msra.mxu0 0
    %2480 = vmatprep.subr.bf16.mxu0 0
    %2481 = vmatpush1.bf16.xpose.msra.mxu0 0
    %2482 = vmatprep.subr.bf16.mxu0 0
    %2483 = vmatpush1.bf16.xpose.msra.mxu0 0
    %2484 = vmatprep.subr.bf16.mxu0 0
    %2485 = vmatpush1.bf16.xpose.msra.mxu0 0
    %2486 = vmatprep.subr.bf16.mxu0 0
    %2487 = vmatpush1.bf16.xpose.msra.mxu0 0
    %2488 = vmatprep.subr.bf16.mxu0 0
    %2489 = vmatpush1.bf16.xpose.msra.mxu0 0
    %2490 = vmatprep.subr.bf16.mxu0 0
    %2491 = vmatpush1.bf16.xpose.msra.mxu0 0
    %2492 = vmatprep.subr.bf16.mxu0 0
    %2493 = vmatpush1.bf16.xpose.msra.mxu0 0
    %2494 = vmatprep.subr.bf16.mxu0 0
    %2495 = vmatpush1.bf16.xpose.msra.mxu0 0
    %2496 = vmatprep.subr.bf16.mxu0 0
    %2497 = vmatpush1.bf16.xpose.msra.mxu0 0
    %2498 = vmatprep.subr.bf16.mxu0 0
    %2499 = vmatpush1.bf16.xpose.msra.mxu0 0
    %2500 = vmatprep.subr.bf16.mxu0 0
    %2501 = vmatpush1.bf16.xpose.msra.mxu0 0
    %2502 = vmatprep.subr.bf16.mxu0 0
    %2503 = vmatpush1.bf16.xpose.msra.mxu0 0
    %2504 = vmatprep.mubr.bf16.mxu0 0
    %2505 = vmatmul.mubr.bf16.gmra.mrb[0].mxu0 %v2467
    %v2506 = vpop.f32.mrb[0].mxu0
    %v2507 = vadd.f32 %v47, %v2506
    %v2508 = vpop.f32.mrb[0].mxu0
    %v2509 = vpop.f32.mrb[0].mxu0
    %v2510 = vpop.f32.mrb[0].mxu0
    %2511 = vdwg.mxu0
    %v2512 = vsel %vm390, %v2457, -inf
    %2513 = vmax.xlane.f32.xlu0 %v2512
    %v2514 = vpop.xlane.xlu0 %2513
    %v2515 = vsel %vm390, %v2507, -inf
    %2516 = vmax.xlane.f32.xlu0 %v2515
    %v2517 = vpop.xlane.xlu0 %2516
    %v2518 = vsub.f32 %v2457, %v2514
    %v2519 = vsub.f32 %v2507, %v2517
    %v2520 = vmul.f32 %v2518, 1.442695
    %v2521 = vpow.pop %v2520
    %v2522 = vmul.f32 %v2519, 1.442695
    %v2523 = vpow.pop %v2522
    %v2524 = vsel %vm390, %v2521, 0.0
    %2525 = vadd.xlane.f32.xlu0 %v2524
    %v2526 = vpop.xlane.xlu0 %2525
    %v2527 = vsel %vm390, %v2523, 0.0
    %2528 = vadd.xlane.f32.xlu0 %v2527
    %v2529 = vpop.xlane.xlu0 %2528
    %v2530 = vrcp.pop %v2526
    %v2531 = vrcp.pop %v2529
    %v2532 = vmul.f32 %v2521, %v2530
    %v2533 = vmul.f32 %v2523, %v2531
    %v2534 = vpack.c.bf16 %v2532, %v2532
    %v2535 = vpack.c.bf16 %v2533, %v2533
    %2536 = vrot.lane.b32.xlu0 %v1762, 80
    %v2537 = vpop.permute.xlu0 %2536
    %v2539 = vsel %vm390, %v2534, 0
    %v2542 = vsel %vm418, %v2537, 0
    %2544 = vmatprep.subr.bf16.mxu0 0
    %2545 = vmatpush1.bf16.msra.mxu0 %v2542
    %2546 = vmatprep.subr.bf16.mxu0 0
    %2547 = vmatpush1.bf16.msra.mxu0 0
    %2548 = vmatprep.subr.bf16.mxu0 0
    %2549 = vmatpush1.bf16.msra.mxu0 0
    %2550 = vmatprep.subr.bf16.mxu0 0
    %2551 = vmatpush1.bf16.msra.mxu0 0
    %2552 = vmatprep.subr.bf16.mxu0 0
    %2553 = vmatpush1.bf16.msra.mxu0 0
    %2554 = vmatprep.subr.bf16.mxu0 0
    %2555 = vmatpush1.bf16.msra.mxu0 0
    %2556 = vmatprep.subr.bf16.mxu0 0
    %2557 = vmatpush1.bf16.msra.mxu0 0
    %2558 = vmatprep.subr.bf16.mxu0 0
    %2559 = vmatpush1.bf16.msra.mxu0 0
    %2560 = vmatprep.subr.bf16.mxu0 0
    %2561 = vmatpush1.bf16.msra.mxu0 0
    %2562 = vmatprep.subr.bf16.mxu0 0
    %2563 = vmatpush1.bf16.msra.mxu0 0
    %2564 = vmatprep.subr.bf16.mxu0 0
    %2565 = vmatpush1.bf16.msra.mxu0 0
    %2566 = vmatprep.subr.bf16.mxu0 0
    %2567 = vmatpush1.bf16.msra.mxu0 0
    %2568 = vmatprep.subr.bf16.mxu0 0
    %2569 = vmatpush1.bf16.msra.mxu0 0
    %2570 = vmatprep.subr.bf16.mxu0 0
    %2571 = vmatpush1.bf16.msra.mxu0 0
    %2572 = vmatprep.subr.bf16.mxu0 0
    %2573 = vmatpush1.bf16.msra.mxu0 0
    %2574 = vmatprep.subr.bf16.mxu0 0
    %2575 = vmatpush1.bf16.msra.mxu0 0
    %2576 = vmatprep.mubr.bf16.mxu0 0
    %2577 = vmatmul.mubr.bf16.gmra.mrb[0].mxu0 %v2539
    %v2578 = vpop.f32.mrb[0].mxu0
    %v2579 = vadd.f32 0.0, %v2578
    %v2580 = vpop.f32.mrb[0].mxu0
    %v2581 = vpop.f32.mrb[0].mxu0
    %v2582 = vpop.f32.mrb[0].mxu0
    %2583 = vdwg.mxu0
    %2584 = vrot.lane.b32.xlu0 %v1763, 80
    %v2585 = vpop.permute.xlu0 %2584
    %v2587 = vsel %vm390, %v2535, 0
    %v2590 = vsel %vm418, %v2585, 0
    %2592 = vmatprep.subr.bf16.mxu0 0
    %2593 = vmatpush1.bf16.msra.mxu0 %v2590
    %2594 = vmatprep.subr.bf16.mxu0 0
    %2595 = vmatpush1.bf16.msra.mxu0 0
    %2596 = vmatprep.subr.bf16.mxu0 0
    %2597 = vmatpush1.bf16.msra.mxu0 0
    %2598 = vmatprep.subr.bf16.mxu0 0
    %2599 = vmatpush1.bf16.msra.mxu0 0
    %2600 = vmatprep.subr.bf16.mxu0 0
    %2601 = vmatpush1.bf16.msra.mxu0 0
    %2602 = vmatprep.subr.bf16.mxu0 0
    %2603 = vmatpush1.bf16.msra.mxu0 0
    %2604 = vmatprep.subr.bf16.mxu0 0
    %2605 = vmatpush1.bf16.msra.mxu0 0
    %2606 = vmatprep.subr.bf16.mxu0 0
    %2607 = vmatpush1.bf16.msra.mxu0 0
    %2608 = vmatprep.subr.bf16.mxu0 0
    %2609 = vmatpush1.bf16.msra.mxu0 0
    %2610 = vmatprep.subr.bf16.mxu0 0
    %2611 = vmatpush1.bf16.msra.mxu0 0
    %2612 = vmatprep.subr.bf16.mxu0 0
    %2613 = vmatpush1.bf16.msra.mxu0 0
    %2614 = vmatprep.subr.bf16.mxu0 0
    %2615 = vmatpush1.bf16.msra.mxu0 0
    %2616 = vmatprep.subr.bf16.mxu0 0
    %2617 = vmatpush1.bf16.msra.mxu0 0
    %2618 = vmatprep.subr.bf16.mxu0 0
    %2619 = vmatpush1.bf16.msra.mxu0 0
    %2620 = vmatprep.subr.bf16.mxu0 0
    %2621 = vmatpush1.bf16.msra.mxu0 0
    %2622 = vmatprep.subr.bf16.mxu0 0
    %2623 = vmatpush1.bf16.msra.mxu0 0
    %2624 = vmatprep.mubr.bf16.mxu0 0
    %2625 = vmatmul.mubr.bf16.gmra.mrb[0].mxu0 %v2587
    %v2626 = vpop.f32.mrb[0].mxu0
    %v2627 = vadd.f32 0.0, %v2626
    %v2628 = vpop.f32.mrb[0].mxu0
    %v2629 = vpop.f32.mrb[0].mxu0
    %v2630 = vpop.f32.mrb[0].mxu0
    %2631 = vdwg.mxu0
    %2634 = vrot.lane.b32.xlu0 %v2139, 16
    %v2635 = vpop.permute.xlu0 %2634
    %2636 = vrot.lane.b32.xlu0 %v2187, 16
    %v2637 = vpop.permute.xlu0 %2636
    %2642 = vrot.lane.b32.xlu0 %v2359, 32
    %v2643 = vpop.permute.xlu0 %2642
    %2644 = vrot.lane.b32.xlu0 %v2407, 32
    %v2645 = vpop.permute.xlu0 %2644
    %2650 = vrot.lane.b32.xlu0 %v2579, 48
    %v2651 = vpop.permute.xlu0 %2650
    %2652 = vrot.lane.b32.xlu0 %v2627, 48
    %v2653 = vpop.permute.xlu0 %2652
    %v2656 = vsel %vm297, %v1921, %v2635
    %v2657 = vsel %vm297, %v1967, %v2637
    %v2658 = vsel %vm1194, %v2656, %v2643
    %v2659 = vsel %vm1194, %v2657, %v2645
    %v2660 = vsel %vm1197, %v2658, %v2651
    %v2661 = vsel %vm1197, %v2659, %v2653
    %v2662 = vpack.c.bf16 %v2661, %v2660
    %s2663 = scalar_lea.vmem %s6, 32
    %v2664 = vld [vmem:[%s2663] sm:$0xf]
    %v2665 = vld [vmem:[%s2663 + $0x4] sm:$0xf]
    %v2666 = vld [vmem:[%s2663 + $0x8] sm:$0xf]
    %v2667 = vld [vmem:[%s2663 + $0xc] sm:$0xf]
    %v2668 = vld [vmem:[%s2663 + $0x10] sm:$0xf]
    %v2669 = vld [vmem:[%s2663 + $0x14] sm:$0xf]
    %v2670 = vld [vmem:[%s2663 + $0x18] sm:$0xf]
    %v2671 = vld [vmem:[%s2663 + $0x1c] sm:$0xf]
    %v2680 = vunpack.c.l.b16 %v2664
    %v2681 = vunpack.c.l.b16 %v2665
    %v2682 = vunpack.c.l.b16 %v2666
    %v2683 = vunpack.c.l.b16 %v2667
    %v2684 = vunpack.c.l.b16 %v2668
    %v2685 = vunpack.c.l.b16 %v2669
    %v2686 = vunpack.c.l.b16 %v2670
    %v2687 = vunpack.c.l.b16 %v2671
    %v2688 = vpack.c.b16 %v2681, %v2680
    %v2689 = vpack.c.b16 %v2683, %v2682
    %v2690 = vpack.c.b16 %v2685, %v2684
    %v2691 = vpack.c.b16 %v2687, %v2686
    %v2697 = vsel %vm51, %v2662, 0
    %2699 = vmatprep.subr.bf16.mxu0 0
    %2700 = vmatpush1.bf16.msra.mxu0 %v2688
    %2701 = vmatprep.subr.bf16.mxu0 0
    %2702 = vmatpush1.bf16.msra.mxu0 %v2689
    %2703 = vmatprep.subr.bf16.mxu0 0
    %2704 = vmatpush1.bf16.msra.mxu0 %v2690
    %2705 = vmatprep.subr.bf16.mxu0 0
    %2706 = vmatpush1.bf16.msra.mxu0 %v2691
    %2707 = vmatprep.subr.bf16.mxu0 0
    %2708 = vmatpush1.bf16.msra.mxu0 0
    %2709 = vmatprep.subr.bf16.mxu0 0
    %2710 = vmatpush1.bf16.msra.mxu0 0
    %2711 = vmatprep.subr.bf16.mxu0 0
    %2712 = vmatpush1.bf16.msra.mxu0 0
    %2713 = vmatprep.subr.bf16.mxu0 0
    %2714 = vmatpush1.bf16.msra.mxu0 0
    %2715 = vmatprep.subr.bf16.mxu0 0
    %2716 = vmatpush1.bf16.msra.mxu0 0
    %2717 = vmatprep.subr.bf16.mxu0 0
    %2718 = vmatpush1.bf16.msra.mxu0 0
    %2719 = vmatprep.subr.bf16.mxu0 0
    %2720 = vmatpush1.bf16.msra.mxu0 0
    %2721 = vmatprep.subr.bf16.mxu0 0
    %2722 = vmatpush1.bf16.msra.mxu0 0
    %2723 = vmatprep.subr.bf16.mxu0 0
    %2724 = vmatpush1.bf16.msra.mxu0 0
    %2725 = vmatprep.subr.bf16.mxu0 0
    %2726 = vmatpush1.bf16.msra.mxu0 0
    %2727 = vmatprep.subr.bf16.mxu0 0
    %2728 = vmatpush1.bf16.msra.mxu0 0
    %2729 = vmatprep.subr.bf16.mxu0 0
    %2730 = vmatpush1.bf16.msra.mxu0 0
    %2731 = vmatprep.mubr.bf16.mxu0 0
    %2732 = vmatmul.mubr.bf16.gmra.mrb[0].mxu0 %v2697
    %v2733 = vpop.f32.mrb[0].mxu0
    %v2734 = vadd.f32 0.0, %v2733
    %v2735 = vpop.f32.mrb[0].mxu0
    %v2736 = vpop.f32.mrb[0].mxu0
    %v2737 = vadd.f32 0.0, %v2736
    %v2738 = vpop.f32.mrb[0].mxu0
    %2739 = vdwg.mxu0
    %v2740 = vadd.f32 %v1521, %v2734
    %v2741 = vadd.f32 %v1522, %v2737
    %s2742 = scalar_lea.vmem %s7, 1
    %v2743 = vld [vmem:[%s2742] sm:$0x1]
    %v2744 = vmul.f32 %v2740, %v2740
    %v2745 = vmul.f32 %v2741, %v2741
    %v2746 = vsel %vm51, %v2744, 0.0
    %2747 = vadd.xlane.f32.xlu0 %v2746
    %v2748 = vpop.xlane.xlu0 %2747
    %v2749 = vsel %vm51, %v2745, 0.0
    %2750 = vadd.xlane.f32.xlu0 %v2749
    %v2751 = vpop.xlane.xlu0 %2750
    %v2752 = vmul.f32 %v2748, %v58
    %v2753 = vmul.f32 %v2751, %v58
    %v2754 = vadd.f32 %v2752, 1e-06
    %v2755 = vadd.f32 %v2753, 1e-06
    %v2756 = vrsqrt.pop %v2754
    %v2757 = vrsqrt.pop %v2755
    %v2758 = vmul.f32 %v2740, %v2756
    %v2759 = vmul.f32 %v2741, %v2757
    %v2761 = vlaneseq
    %v2762 = vshrl.u32 %v2761, 7
    %v2763 = vsub.s32 0, %v2762
    %v2764 = vrot.slane %v2743, %v2763
    %v2766 = vmul.f32 %v2758, %v2764
    %v2767 = vmul.f32 %v2759, %v2764
    %v2768 = vpack.c.bf16 %v2767, %v2766
    %s2769 = scalar_lea.vmem %s8, 64
    %v2770 = vld [vmem:[%s2769] sm:$0xff]
    %v2771 = vld [vmem:[%s2769 + $0x8] sm:$0xff]
    %v2772 = vld [vmem:[%s2769 + $0x10] sm:$0xff]
    %v2773 = vld [vmem:[%s2769 + $0x18] sm:$0xff]
    %v2774 = vld [vmem:[%s2769 + $0x20] sm:$0xff]
    %v2775 = vld [vmem:[%s2769 + $0x28] sm:$0xff]
    %v2776 = vld [vmem:[%s2769 + $0x30] sm:$0xff]
    %v2777 = vld [vmem:[%s2769 + $0x38] sm:$0xff]
    %v2786 = vunpack.c.l.b16 %v2770
    %v2787 = vunpack.c.h.b16 %v2770
    %v2788 = vunpack.c.l.b16 %v2771
    %v2789 = vunpack.c.h.b16 %v2771
    %v2790 = vunpack.c.l.b16 %v2772
    %v2791 = vunpack.c.h.b16 %v2772
    %v2792 = vunpack.c.l.b16 %v2773
    %v2793 = vunpack.c.h.b16 %v2773
    %v2794 = vunpack.c.l.b16 %v2774
    %v2795 = vunpack.c.h.b16 %v2774
    %v2796 = vunpack.c.l.b16 %v2775
    %v2797 = vunpack.c.h.b16 %v2775
    %v2798 = vunpack.c.l.b16 %v2776
    %v2799 = vunpack.c.h.b16 %v2776
    %v2800 = vunpack.c.l.b16 %v2777
    %v2801 = vunpack.c.h.b16 %v2777
    %v2802 = vpack.c.b16 %v2788, %v2786
    %v2803 = vpack.c.b16 %v2789, %v2787
    %v2804 = vpack.c.b16 %v2792, %v2790
    %v2805 = vpack.c.b16 %v2793, %v2791
    %v2806 = vpack.c.b16 %v2796, %v2794
    %v2807 = vpack.c.b16 %v2797, %v2795
    %v2808 = vpack.c.b16 %v2800, %v2798
    %v2809 = vpack.c.b16 %v2801, %v2799
    %v2819 = vsel %vm51, %v2768, 0
    %2821 = vmatprep.subr.bf16.mxu0 %v2803
    %2822 = vmatpush1.bf16.msra.mxu0 %v2802
    %2823 = vmatprep.subr.bf16.mxu0 %v2805
    %2824 = vmatpush1.bf16.msra.mxu0 %v2804
    %2825 = vmatprep.subr.bf16.mxu0 %v2807
    %2826 = vmatpush1.bf16.msra.mxu0 %v2806
    %2827 = vmatprep.subr.bf16.mxu0 %v2809
    %2828 = vmatpush1.bf16.msra.mxu0 %v2808
    %2829 = vmatprep.subr.bf16.mxu0 0
    %2830 = vmatpush1.bf16.msra.mxu0 0
    %2831 = vmatprep.subr.bf16.mxu0 0
    %2832 = vmatpush1.bf16.msra.mxu0 0
    %2833 = vmatprep.subr.bf16.mxu0 0
    %2834 = vmatpush1.bf16.msra.mxu0 0
    %2835 = vmatprep.subr.bf16.mxu0 0
    %2836 = vmatpush1.bf16.msra.mxu0 0
    %2837 = vmatprep.subr.bf16.mxu0 0
    %2838 = vmatpush1.bf16.msra.mxu0 0
    %2839 = vmatprep.subr.bf16.mxu0 0
    %2840 = vmatpush1.bf16.msra.mxu0 0
    %2841 = vmatprep.subr.bf16.mxu0 0
    %2842 = vmatpush1.bf16.msra.mxu0 0
    %2843 = vmatprep.subr.bf16.mxu0 0
    %2844 = vmatpush1.bf16.msra.mxu0 0
    %2845 = vmatprep.subr.bf16.mxu0 0
    %2846 = vmatpush1.bf16.msra.mxu0 0
    %2847 = vmatprep.subr.bf16.mxu0 0
    %2848 = vmatpush1.bf16.msra.mxu0 0
    %2849 = vmatprep.subr.bf16.mxu0 0
    %2850 = vmatpush1.bf16.msra.mxu0 0
    %2851 = vmatprep.subr.bf16.mxu0 0
    %2852 = vmatpush1.bf16.msra.mxu0 0
    %2853 = vmatprep.mubr.bf16.mxu0 0
    %2854 = vmatmul.mubr.bf16.gmra.mrb[0].mxu0 %v2819
    %v2855 = vpop.f32.mrb[0].mxu0
    %v2856 = vadd.f32 0.0, %v2855
    %v2857 = vpop.f32.mrb[0].mxu0
    %v2858 = vadd.f32 0.0, %v2857
    %v2859 = vpop.f32.mrb[0].mxu0
    %v2860 = vadd.f32 0.0, %v2859
    %v2861 = vpop.f32.mrb[0].mxu0
    %v2862 = vadd.f32 0.0, %v2861
    %2863 = vdwg.mxu0
    %v2864 = vxor.u32 %v2856, 2147483648
    %v2865 = vxor.u32 %v2860, 2147483648
    %v2866 = vmul.f32 %v2864, 1.442695
    %v2867 = vpow.pop %v2866
    %v2868 = vmul.f32 %v2865, 1.442695
    %v2869 = vpow.pop %v2868
    %v2870 = vadd.f32 %v2867, 1.0
    %v2871 = vadd.f32 %v2869, 1.0
    %v2872 = vrcp.pop %v2870
    %v2873 = vmul.f32 1.0, %v2872
    %v2874 = vrcp.pop %v2871
    %v2875 = vmul.f32 1.0, %v2874
    %v2876 = vmul.f32 %v2856, %v2873
    %v2877 = vmul.f32 %v2860, %v2875
    %v2878 = vmul.f32 %v2876, %v2858
    %v2879 = vmul.f32 %v2877, %v2862
    %v2880 = vpack.c.bf16 %v2879, %v2878
    %s2881 = scalar_lea.vmem %s9, 64
    %v2882 = vld [vmem:[%s2881] sm:$0xf]
    %v2883 = vld [vmem:[%s2881 + $0x4] sm:$0xf]
    %v2884 = vld [vmem:[%s2881 + $0x8] sm:$0xf]
    %v2885 = vld [vmem:[%s2881 + $0xc] sm:$0xf]
    %v2886 = vld [vmem:[%s2881 + $0x10] sm:$0xf]
    %v2887 = vld [vmem:[%s2881 + $0x14] sm:$0xf]
    %v2888 = vld [vmem:[%s2881 + $0x18] sm:$0xf]
    %v2889 = vld [vmem:[%s2881 + $0x1c] sm:$0xf]
    %v2890 = vld [vmem:[%s2881 + $0x20] sm:$0xf]
    %v2891 = vld [vmem:[%s2881 + $0x24] sm:$0xf]
    %v2892 = vld [vmem:[%s2881 + $0x28] sm:$0xf]
    %v2893 = vld [vmem:[%s2881 + $0x2c] sm:$0xf]
    %v2894 = vld [vmem:[%s2881 + $0x30] sm:$0xf]
    %v2895 = vld [vmem:[%s2881 + $0x34] sm:$0xf]
    %v2896 = vld [vmem:[%s2881 + $0x38] sm:$0xf]
    %v2897 = vld [vmem:[%s2881 + $0x3c] sm:$0xf]
    %v2914 = vunpack.c.l.b16 %v2882
    %v2915 = vunpack.c.l.b16 %v2883
    %v2916 = vunpack.c.l.b16 %v2884
    %v2917 = vunpack.c.l.b16 %v2885
    %v2918 = vunpack.c.l.b16 %v2886
    %v2919 = vunpack.c.l.b16 %v2887
    %v2920 = vunpack.c.l.b16 %v2888
    %v2921 = vunpack.c.l.b16 %v2889
    %v2922 = vunpack.c.l.b16 %v2890
    %v2923 = vunpack.c.l.b16 %v2891
    %v2924 = vunpack.c.l.b16 %v2892
    %v2925 = vunpack.c.l.b16 %v2893
    %v2926 = vunpack.c.l.b16 %v2894
    %v2927 = vunpack.c.l.b16 %v2895
    %v2928 = vunpack.c.l.b16 %v2896
    %v2929 = vunpack.c.l.b16 %v2897
    %v2930 = vpack.c.b16 %v2915, %v2914
    %v2931 = vpack.c.b16 %v2917, %v2916
    %v2932 = vpack.c.b16 %v2919, %v2918
    %v2933 = vpack.c.b16 %v2921, %v2920
    %v2934 = vpack.c.b16 %v2923, %v2922
    %v2935 = vpack.c.b16 %v2925, %v2924
    %v2936 = vpack.c.b16 %v2927, %v2926
    %v2937 = vpack.c.b16 %v2929, %v2928
    %2946 = vmatprep.subr.bf16.mxu0 0
    %2947 = vmatpush1.bf16.msra.mxu0 %v2930
    %2948 = vmatprep.subr.bf16.mxu0 0
    %2949 = vmatpush1.bf16.msra.mxu0 %v2931
    %2950 = vmatprep.subr.bf16.mxu0 0
    %2951 = vmatpush1.bf16.msra.mxu0 %v2932
    %2952 = vmatprep.subr.bf16.mxu0 0
    %2953 = vmatpush1.bf16.msra.mxu0 %v2933
    %2954 = vmatprep.subr.bf16.mxu0 0
    %2955 = vmatpush1.bf16.msra.mxu0 %v2934
    %2956 = vmatprep.subr.bf16.mxu0 0
    %2957 = vmatpush1.bf16.msra.mxu0 %v2935
    %2958 = vmatprep.subr.bf16.mxu0 0
    %2959 = vmatpush1.bf16.msra.mxu0 %v2936
    %2960 = vmatprep.subr.bf16.mxu0 0
    %2961 = vmatpush1.bf16.msra.mxu0 %v2937
    %2962 = vmatprep.subr.bf16.mxu0 0
    %2963 = vmatpush1.bf16.msra.mxu0 0
    %2964 = vmatprep.subr.bf16.mxu0 0
    %2965 = vmatpush1.bf16.msra.mxu0 0
    %2966 = vmatprep.subr.bf16.mxu0 0
    %2967 = vmatpush1.bf16.msra.mxu0 0
    %2968 = vmatprep.subr.bf16.mxu0 0
    %2969 = vmatpush1.bf16.msra.mxu0 0
    %2970 = vmatprep.subr.bf16.mxu0 0
    %2971 = vmatpush1.bf16.msra.mxu0 0
    %2972 = vmatprep.subr.bf16.mxu0 0
    %2973 = vmatpush1.bf16.msra.mxu0 0
    %2974 = vmatprep.subr.bf16.mxu0 0
    %2975 = vmatpush1.bf16.msra.mxu0 0
    %2976 = vmatprep.subr.bf16.mxu0 0
    %2977 = vmatpush1.bf16.msra.mxu0 0
    %2978 = vmatprep.mubr.bf16.mxu0 0
    %2979 = vmatmul.mubr.bf16.gmra.mrb[0].mxu0 %v2880
    %v2980 = vpop.f32.mrb[0].mxu0
    %v2981 = vadd.f32 0.0, %v2980
    %v2982 = vpop.f32.mrb[0].mxu0
    %v2983 = vpop.f32.mrb[0].mxu0
    %v2984 = vadd.f32 0.0, %v2983
    %v2985 = vpop.f32.mrb[0].mxu0
    %2986 = vdwg.mxu0
    %v2987 = vadd.f32 %v2740, %v2981
    %v2988 = vadd.f32 %v2741, %v2984
    %s2989 = scalar_lea.vmem %s4, 2
    %v2990 = vld [vmem:[%s2989] sm:$0x1]
    %v2991 = vmul.f32 %v2987, %v2987
    %v2992 = vmul.f32 %v2988, %v2988
    %v2993 = vsel %vm51, %v2991, 0.0
    %2994 = vadd.xlane.f32.xlu0 %v2993
    %v2995 = vpop.xlane.xlu0 %2994
    %v2996 = vsel %vm51, %v2992, 0.0
    %2997 = vadd.xlane.f32.xlu0 %v2996
    %v2998 = vpop.xlane.xlu0 %2997
    %v2999 = vmul.f32 %v2995, %v58
    %v3000 = vmul.f32 %v2998, %v58
    %v3001 = vadd.f32 %v2999, 1e-06
    %v3002 = vadd.f32 %v3000, 1e-06
    %v3003 = vrsqrt.pop %v3001
    %v3004 = vrsqrt.pop %v3002
    %v3005 = vmul.f32 %v2987, %v3003
    %v3006 = vmul.f32 %v2988, %v3004
    %v3008 = vlaneseq
    %v3009 = vshrl.u32 %v3008, 7
    %v3010 = vsub.s32 0, %v3009
    %v3011 = vrot.slane %v2990, %v3010
    %v3013 = vmul.f32 %v3005, %v3011
    %v3014 = vmul.f32 %v3006, %v3011
    %v3015 = vpack.c.bf16 %v3014, %v3013
    %s3016 = scalar_lea.vmem %s5, 192
    %v3017 = vld [vmem:[%s3016] sm:$0xff]
    %v3018 = vld [vmem:[%s3016 + $0x8] sm:$0xf]
    %v3019 = vld [vmem:[%s3016 + $0xc] sm:$0xff]
    %v3020 = vld [vmem:[%s3016 + $0x14] sm:$0xf]
    %v3021 = vld [vmem:[%s3016 + $0x18] sm:$0xff]
    %v3022 = vld [vmem:[%s3016 + $0x20] sm:$0xf]
    %v3023 = vld [vmem:[%s3016 + $0x24] sm:$0xff]
    %v3024 = vld [vmem:[%s3016 + $0x2c] sm:$0xf]
    %v3025 = vld [vmem:[%s3016 + $0x30] sm:$0xff]
    %v3026 = vld [vmem:[%s3016 + $0x38] sm:$0xf]
    %v3027 = vld [vmem:[%s3016 + $0x3c] sm:$0xff]
    %v3028 = vld [vmem:[%s3016 + $0x44] sm:$0xf]
    %v3029 = vld [vmem:[%s3016 + $0x48] sm:$0xff]
    %v3030 = vld [vmem:[%s3016 + $0x50] sm:$0xf]
    %v3031 = vld [vmem:[%s3016 + $0x54] sm:$0xff]
    %v3032 = vld [vmem:[%s3016 + $0x5c] sm:$0xf]
    %v3049 = vunpack.c.l.b16 %v3017
    %v3050 = vunpack.c.h.b16 %v3017
    %v3051 = vunpack.c.l.b16 %v3018
    %v3052 = vunpack.c.l.b16 %v3019
    %v3053 = vunpack.c.h.b16 %v3019
    %v3054 = vunpack.c.l.b16 %v3020
    %v3055 = vunpack.c.l.b16 %v3021
    %v3056 = vunpack.c.h.b16 %v3021
    %v3057 = vunpack.c.l.b16 %v3022
    %v3058 = vunpack.c.l.b16 %v3023
    %v3059 = vunpack.c.h.b16 %v3023
    %v3060 = vunpack.c.l.b16 %v3024
    %v3061 = vunpack.c.l.b16 %v3025
    %v3062 = vunpack.c.h.b16 %v3025
    %v3063 = vunpack.c.l.b16 %v3026
    %v3064 = vunpack.c.l.b16 %v3027
    %v3065 = vunpack.c.h.b16 %v3027
    %v3066 = vunpack.c.l.b16 %v3028
    %v3067 = vunpack.c.l.b16 %v3029
    %v3068 = vunpack.c.h.b16 %v3029
    %v3069 = vunpack.c.l.b16 %v3030
    %v3070 = vunpack.c.l.b16 %v3031
    %v3071 = vunpack.c.h.b16 %v3031
    %v3072 = vunpack.c.l.b16 %v3032
    %v3073 = vpack.c.b16 %v3052, %v3049
    %v3074 = vpack.c.b16 %v3053, %v3050
    %v3075 = vpack.c.b16 %v3054, %v3051
    %v3076 = vpack.c.b16 %v3058, %v3055
    %v3077 = vpack.c.b16 %v3059, %v3056
    %v3078 = vpack.c.b16 %v3060, %v3057
    %v3079 = vpack.c.b16 %v3064, %v3061
    %v3080 = vpack.c.b16 %v3065, %v3062
    %v3081 = vpack.c.b16 %v3066, %v3063
    %v3082 = vpack.c.b16 %v3070, %v3067
    %v3083 = vpack.c.b16 %v3071, %v3068
    %v3084 = vpack.c.b16 %v3072, %v3069
    %v3098 = vsel %vm51, %v3015, 0
    %3100 = vmatprep.subr.bf16.mxu0 %v3074
    %3101 = vmatpush1.bf16.msra.mxu0 %v3073
    %3102 = vmatprep.subr.bf16.mxu0 %v3077
    %3103 = vmatpush1.bf16.msra.mxu0 %v3076
    %3104 = vmatprep.subr.bf16.mxu0 %v3080
    %3105 = vmatpush1.bf16.msra.mxu0 %v3079
    %3106 = vmatprep.subr.bf16.mxu0 %v3083
    %3107 = vmatpush1.bf16.msra.mxu0 %v3082
    %3108 = vmatprep.subr.bf16.mxu0 0
    %3109 = vmatpush1.bf16.msra.mxu0 0
    %3110 = vmatprep.subr.bf16.mxu0 0
    %3111 = vmatpush1.bf16.msra.mxu0 0
    %3112 = vmatprep.subr.bf16.mxu0 0
    %3113 = vmatpush1.bf16.msra.mxu0 0
    %3114 = vmatprep.subr.bf16.mxu0 0
    %3115 = vmatpush1.bf16.msra.mxu0 0
    %3116 = vmatprep.subr.bf16.mxu0 0
    %3117 = vmatpush1.bf16.msra.mxu0 0
    %3118 = vmatprep.subr.bf16.mxu0 0
    %3119 = vmatpush1.bf16.msra.mxu0 0
    %3120 = vmatprep.subr.bf16.mxu0 0
    %3121 = vmatpush1.bf16.msra.mxu0 0
    %3122 = vmatprep.subr.bf16.mxu0 0
    %3123 = vmatpush1.bf16.msra.mxu0 0
    %3124 = vmatprep.subr.bf16.mxu0 0
    %3125 = vmatpush1.bf16.msra.mxu0 0
    %3126 = vmatprep.subr.bf16.mxu0 0
    %3127 = vmatpush1.bf16.msra.mxu0 0
    %3128 = vmatprep.subr.bf16.mxu0 0
    %3129 = vmatpush1.bf16.msra.mxu0 0
    %3130 = vmatprep.subr.bf16.mxu0 0
    %3131 = vmatpush1.bf16.msra.mxu0 0
    %3132 = vmatprep.mubr.bf16.mxu0 0
    %3133 = vmatmul.mubr.bf16.gmra.mrb[0].mxu0 %v3098
    %v3134 = vpop.f32.mrb[0].mxu0
    %v3135 = vadd.f32 0.0, %v3134
    %v3136 = vpop.f32.mrb[0].mxu0
    %v3137 = vadd.f32 0.0, %v3136
    %v3138 = vpop.f32.mrb[0].mxu0
    %v3139 = vadd.f32 0.0, %v3138
    %v3140 = vpop.f32.mrb[0].mxu0
    %v3141 = vadd.f32 0.0, %v3140
    %3142 = vdwg.mxu0
    %3143 = vmatprep.subr.bf16.mxu0 0
    %3144 = vmatpush1.bf16.msra.mxu0 %v3075
    %3145 = vmatprep.subr.bf16.mxu0 0
    %3146 = vmatpush1.bf16.msra.mxu0 %v3078
    %3147 = vmatprep.subr.bf16.mxu0 0
    %3148 = vmatpush1.bf16.msra.mxu0 %v3081
    %3149 = vmatprep.subr.bf16.mxu0 0
    %3150 = vmatpush1.bf16.msra.mxu0 %v3084
    %3151 = vmatprep.subr.bf16.mxu0 0
    %3152 = vmatpush1.bf16.msra.mxu0 0
    %3153 = vmatprep.subr.bf16.mxu0 0
    %3154 = vmatpush1.bf16.msra.mxu0 0
    %3155 = vmatprep.subr.bf16.mxu0 0
    %3156 = vmatpush1.bf16.msra.mxu0 0
    %3157 = vmatprep.subr.bf16.mxu0 0
    %3158 = vmatpush1.bf16.msra.mxu0 0
    %3159 = vmatprep.subr.bf16.mxu0 0
    %3160 = vmatpush1.bf16.msra.mxu0 0
    %3161 = vmatprep.subr.bf16.mxu0 0
    %3162 = vmatpush1.bf16.msra.mxu0 0
    %3163 = vmatprep.subr.bf16.mxu0 0
    %3164 = vmatpush1.bf16.msra.mxu0 0
    %3165 = vmatprep.subr.bf16.mxu0 0
    %3166 = vmatpush1.bf16.msra.mxu0 0
    %3167 = vmatprep.subr.bf16.mxu0 0
    %3168 = vmatpush1.bf16.msra.mxu0 0
    %3169 = vmatprep.subr.bf16.mxu0 0
    %3170 = vmatpush1.bf16.msra.mxu0 0
    %3171 = vmatprep.subr.bf16.mxu0 0
    %3172 = vmatpush1.bf16.msra.mxu0 0
    %3173 = vmatprep.subr.bf16.mxu0 0
    %3174 = vmatpush1.bf16.msra.mxu0 0
    %3175 = vmatprep.mubr.bf16.mxu0 0
    %3176 = vmatmul.mubr.bf16.gmra.mrb[0].mxu0 %v3098
    %v3177 = vpop.f32.mrb[0].mxu0
    %v3178 = vadd.f32 0.0, %v3177
    %v3179 = vpop.f32.mrb[0].mxu0
    %v3180 = vpop.f32.mrb[0].mxu0
    %v3181 = vadd.f32 0.0, %v3180
    %v3182 = vpop.f32.mrb[0].mxu0
    %3183 = vdwg.mxu0
    %v3184 = vmul.f32 %v3135, %v42
    %v3185 = vmul.f32 %v3139, %v43
    %v3186 = vmul.f32 %v3135, %v248
    %v3187 = vmul.f32 %v3139, %v250
    %3190 = vrot.lane.b32.xlu0 %v3186, 64
    %v3191 = vpop.permute.xlu0 %3190
    %3192 = vrot.lane.b32.xlu0 %v3187, 64
    %v3193 = vpop.permute.xlu0 %3192
    %v3196 = vadd.f32 %v3184, %v3191
    %v3197 = vadd.f32 %v3185, %v3193
    %v3198 = vmul.f32 %v3137, %v42
    %v3199 = vmul.f32 %v3141, %v43
    %v3200 = vmul.f32 %v3137, %v248
    %v3201 = vmul.f32 %v3141, %v250
    %3204 = vrot.lane.b32.xlu0 %v3200, 64
    %v3205 = vpop.permute.xlu0 %3204
    %3206 = vrot.lane.b32.xlu0 %v3201, 64
    %v3207 = vpop.permute.xlu0 %3206
    %v3210 = vadd.f32 %v3198, %v3205
    %v3211 = vadd.f32 %v3199, %v3207
    %v3212 = vpack.c.bf16 %v3197, %v3196
    %v3214 = vunpack.c.l.b16 %v3212
    %v3215 = vunpack.c.h.b16 %v3212
    %v3216 = vpack.c.b16 %v3214, %v3214
    %v3217 = vpack.c.b16 %v3215, %v3215
    %v3218 = vpack.c.bf16 %v3211, %v3210
    %v3220 = vunpack.c.l.b16 %v3218
    %v3221 = vunpack.c.h.b16 %v3218
    %v3222 = vpack.c.b16 %v3220, %v3220
    %v3223 = vpack.c.b16 %v3221, %v3221
    %v3224 = vpack.c.bf16 %v3181, %v3178
    %v3226 = vunpack.c.l.b16 %v3224
    %v3227 = vunpack.c.h.b16 %v3224
    %v3228 = vpack.c.b16 %v3226, %v3226
    %v3229 = vpack.c.b16 %v3227, %v3227
    %v3231 = vsel %vm297, %v3216, 0
    %v3234 = vsel %vm297, %v3222, 0
    %3236 = vmatprep.subr.bf16.mxu0 0
    %3237 = vmatpush1.bf16.xpose.msra.mxu0 %v3234
    %3238 = vmatprep.subr.bf16.mxu0 0
    %3239 = vmatpush1.bf16.xpose.msra.mxu0 0
    %3240 = vmatprep.subr.bf16.mxu0 0
    %3241 = vmatpush1.bf16.xpose.msra.mxu0 0
    %3242 = vmatprep.subr.bf16.mxu0 0
    %3243 = vmatpush1.bf16.xpose.msra.mxu0 0
    %3244 = vmatprep.subr.bf16.mxu0 0
    %3245 = vmatpush1.bf16.xpose.msra.mxu0 0
    %3246 = vmatprep.subr.bf16.mxu0 0
    %3247 = vmatpush1.bf16.xpose.msra.mxu0 0
    %3248 = vmatprep.subr.bf16.mxu0 0
    %3249 = vmatpush1.bf16.xpose.msra.mxu0 0
    %3250 = vmatprep.subr.bf16.mxu0 0
    %3251 = vmatpush1.bf16.xpose.msra.mxu0 0
    %3252 = vmatprep.subr.bf16.mxu0 0
    %3253 = vmatpush1.bf16.xpose.msra.mxu0 0
    %3254 = vmatprep.subr.bf16.mxu0 0
    %3255 = vmatpush1.bf16.xpose.msra.mxu0 0
    %3256 = vmatprep.subr.bf16.mxu0 0
    %3257 = vmatpush1.bf16.xpose.msra.mxu0 0
    %3258 = vmatprep.subr.bf16.mxu0 0
    %3259 = vmatpush1.bf16.xpose.msra.mxu0 0
    %3260 = vmatprep.subr.bf16.mxu0 0
    %3261 = vmatpush1.bf16.xpose.msra.mxu0 0
    %3262 = vmatprep.subr.bf16.mxu0 0
    %3263 = vmatpush1.bf16.xpose.msra.mxu0 0
    %3264 = vmatprep.subr.bf16.mxu0 0
    %3265 = vmatpush1.bf16.xpose.msra.mxu0 0
    %3266 = vmatprep.subr.bf16.mxu0 0
    %3267 = vmatpush1.bf16.xpose.msra.mxu0 0
    %3268 = vmatprep.mubr.bf16.mxu0 0
    %3269 = vmatmul.mubr.bf16.gmra.mrb[0].mxu0 %v3231
    %v3270 = vpop.f32.mrb[0].mxu0
    %v3271 = vadd.f32 %v46, %v3270
    %v3272 = vpop.f32.mrb[0].mxu0
    %v3273 = vpop.f32.mrb[0].mxu0
    %v3274 = vpop.f32.mrb[0].mxu0
    %3275 = vdwg.mxu0
    %v3277 = vsel %vm297, %v3217, 0
    %v3280 = vsel %vm297, %v3223, 0
    %3282 = vmatprep.subr.bf16.mxu0 0
    %3283 = vmatpush1.bf16.xpose.msra.mxu0 %v3280
    %3284 = vmatprep.subr.bf16.mxu0 0
    %3285 = vmatpush1.bf16.xpose.msra.mxu0 0
    %3286 = vmatprep.subr.bf16.mxu0 0
    %3287 = vmatpush1.bf16.xpose.msra.mxu0 0
    %3288 = vmatprep.subr.bf16.mxu0 0
    %3289 = vmatpush1.bf16.xpose.msra.mxu0 0
    %3290 = vmatprep.subr.bf16.mxu0 0
    %3291 = vmatpush1.bf16.xpose.msra.mxu0 0
    %3292 = vmatprep.subr.bf16.mxu0 0
    %3293 = vmatpush1.bf16.xpose.msra.mxu0 0
    %3294 = vmatprep.subr.bf16.mxu0 0
    %3295 = vmatpush1.bf16.xpose.msra.mxu0 0
    %3296 = vmatprep.subr.bf16.mxu0 0
    %3297 = vmatpush1.bf16.xpose.msra.mxu0 0
    %3298 = vmatprep.subr.bf16.mxu0 0
    %3299 = vmatpush1.bf16.xpose.msra.mxu0 0
    %3300 = vmatprep.subr.bf16.mxu0 0
    %3301 = vmatpush1.bf16.xpose.msra.mxu0 0
    %3302 = vmatprep.subr.bf16.mxu0 0
    %3303 = vmatpush1.bf16.xpose.msra.mxu0 0
    %3304 = vmatprep.subr.bf16.mxu0 0
    %3305 = vmatpush1.bf16.xpose.msra.mxu0 0
    %3306 = vmatprep.subr.bf16.mxu0 0
    %3307 = vmatpush1.bf16.xpose.msra.mxu0 0
    %3308 = vmatprep.subr.bf16.mxu0 0
    %3309 = vmatpush1.bf16.xpose.msra.mxu0 0
    %3310 = vmatprep.subr.bf16.mxu0 0
    %3311 = vmatpush1.bf16.xpose.msra.mxu0 0
    %3312 = vmatprep.subr.bf16.mxu0 0
    %3313 = vmatpush1.bf16.xpose.msra.mxu0 0
    %3314 = vmatprep.mubr.bf16.mxu0 0
    %3315 = vmatmul.mubr.bf16.gmra.mrb[0].mxu0 %v3277
    %v3316 = vpop.f32.mrb[0].mxu0
    %v3317 = vadd.f32 %v47, %v3316
    %v3318 = vpop.f32.mrb[0].mxu0
    %v3319 = vpop.f32.mrb[0].mxu0
    %v3320 = vpop.f32.mrb[0].mxu0
    %3321 = vdwg.mxu0
    %v3322 = vsel %vm390, %v3271, -inf
    %3323 = vmax.xlane.f32.xlu0 %v3322
    %v3324 = vpop.xlane.xlu0 %3323
    %v3325 = vsel %vm390, %v3317, -inf
    %3326 = vmax.xlane.f32.xlu0 %v3325
    %v3327 = vpop.xlane.xlu0 %3326
    %v3328 = vsub.f32 %v3271, %v3324
    %v3329 = vsub.f32 %v3317, %v3327
    %v3330 = vmul.f32 %v3328, 1.442695
    %v3331 = vpow.pop %v3330
    %v3332 = vmul.f32 %v3329, 1.442695
    %v3333 = vpow.pop %v3332
    %v3334 = vsel %vm390, %v3331, 0.0
    %3335 = vadd.xlane.f32.xlu0 %v3334
    %v3336 = vpop.xlane.xlu0 %3335
    %v3337 = vsel %vm390, %v3333, 0.0
    %3338 = vadd.xlane.f32.xlu0 %v3337
    %v3339 = vpop.xlane.xlu0 %3338
    %v3340 = vrcp.pop %v3336
    %v3341 = vrcp.pop %v3339
    %v3342 = vmul.f32 %v3331, %v3340
    %v3343 = vmul.f32 %v3333, %v3341
    %v3344 = vpack.c.bf16 %v3342, %v3342
    %v3345 = vpack.c.bf16 %v3343, %v3343
    %v3347 = vsel %vm390, %v3344, 0
    %v3350 = vsel %vm418, %v3228, 0
    %3352 = vmatprep.subr.bf16.mxu0 0
    %3353 = vmatpush1.bf16.msra.mxu0 %v3350
    %3354 = vmatprep.subr.bf16.mxu0 0
    %3355 = vmatpush1.bf16.msra.mxu0 0
    %3356 = vmatprep.subr.bf16.mxu0 0
    %3357 = vmatpush1.bf16.msra.mxu0 0
    %3358 = vmatprep.subr.bf16.mxu0 0
    %3359 = vmatpush1.bf16.msra.mxu0 0
    %3360 = vmatprep.subr.bf16.mxu0 0
    %3361 = vmatpush1.bf16.msra.mxu0 0
    %3362 = vmatprep.subr.bf16.mxu0 0
    %3363 = vmatpush1.bf16.msra.mxu0 0
    %3364 = vmatprep.subr.bf16.mxu0 0
    %3365 = vmatpush1.bf16.msra.mxu0 0
    %3366 = vmatprep.subr.bf16.mxu0 0
    %3367 = vmatpush1.bf16.msra.mxu0 0
    %3368 = vmatprep.subr.bf16.mxu0 0
    %3369 = vmatpush1.bf16.msra.mxu0 0
    %3370 = vmatprep.subr.bf16.mxu0 0
    %3371 = vmatpush1.bf16.msra.mxu0 0
    %3372 = vmatprep.subr.bf16.mxu0 0
    %3373 = vmatpush1.bf16.msra.mxu0 0
    %3374 = vmatprep.subr.bf16.mxu0 0
    %3375 = vmatpush1.bf16.msra.mxu0 0
    %3376 = vmatprep.subr.bf16.mxu0 0
    %3377 = vmatpush1.bf16.msra.mxu0 0
    %3378 = vmatprep.subr.bf16.mxu0 0
    %3379 = vmatpush1.bf16.msra.mxu0 0
    %3380 = vmatprep.subr.bf16.mxu0 0
    %3381 = vmatpush1.bf16.msra.mxu0 0
    %3382 = vmatprep.subr.bf16.mxu0 0
    %3383 = vmatpush1.bf16.msra.mxu0 0
    %3384 = vmatprep.mubr.bf16.mxu0 0
    %3385 = vmatmul.mubr.bf16.gmra.mrb[0].mxu0 %v3347
    %v3386 = vpop.f32.mrb[0].mxu0
    %v3387 = vadd.f32 0.0, %v3386
    %v3388 = vpop.f32.mrb[0].mxu0
    %v3389 = vpop.f32.mrb[0].mxu0
    %v3390 = vpop.f32.mrb[0].mxu0
    %3391 = vdwg.mxu0
    %v3393 = vsel %vm390, %v3345, 0
    %v3396 = vsel %vm418, %v3229, 0
    %3398 = vmatprep.subr.bf16.mxu0 0
    %3399 = vmatpush1.bf16.msra.mxu0 %v3396
    %3400 = vmatprep.subr.bf16.mxu0 0
    %3401 = vmatpush1.bf16.msra.mxu0 0
    %3402 = vmatprep.subr.bf16.mxu0 0
    %3403 = vmatpush1.bf16.msra.mxu0 0
    %3404 = vmatprep.subr.bf16.mxu0 0
    %3405 = vmatpush1.bf16.msra.mxu0 0
    %3406 = vmatprep.subr.bf16.mxu0 0
    %3407 = vmatpush1.bf16.msra.mxu0 0
    %3408 = vmatprep.subr.bf16.mxu0 0
    %3409 = vmatpush1.bf16.msra.mxu0 0
    %3410 = vmatprep.subr.bf16.mxu0 0
    %3411 = vmatpush1.bf16.msra.mxu0 0
    %3412 = vmatprep.subr.bf16.mxu0 0
    %3413 = vmatpush1.bf16.msra.mxu0 0
    %3414 = vmatprep.subr.bf16.mxu0 0
    %3415 = vmatpush1.bf16.msra.mxu0 0
    %3416 = vmatprep.subr.bf16.mxu0 0
    %3417 = vmatpush1.bf16.msra.mxu0 0
    %3418 = vmatprep.subr.bf16.mxu0 0
    %3419 = vmatpush1.bf16.msra.mxu0 0
    %3420 = vmatprep.subr.bf16.mxu0 0
    %3421 = vmatpush1.bf16.msra.mxu0 0
    %3422 = vmatprep.subr.bf16.mxu0 0
    %3423 = vmatpush1.bf16.msra.mxu0 0
    %3424 = vmatprep.subr.bf16.mxu0 0
    %3425 = vmatpush1.bf16.msra.mxu0 0
    %3426 = vmatprep.subr.bf16.mxu0 0
    %3427 = vmatpush1.bf16.msra.mxu0 0
    %3428 = vmatprep.subr.bf16.mxu0 0
    %3429 = vmatpush1.bf16.msra.mxu0 0
    %3430 = vmatprep.mubr.bf16.mxu0 0
    %3431 = vmatmul.mubr.bf16.gmra.mrb[0].mxu0 %v3393
    %v3432 = vpop.f32.mrb[0].mxu0
    %v3433 = vadd.f32 0.0, %v3432
    %v3434 = vpop.f32.mrb[0].mxu0
    %v3435 = vpop.f32.mrb[0].mxu0
    %v3436 = vpop.f32.mrb[0].mxu0
    %3437 = vdwg.mxu0
    %3438 = vrot.lane.b32.xlu0 %v3216, 112
    %v3439 = vpop.permute.xlu0 %3438
    %3440 = vrot.lane.b32.xlu0 %v3222, 112
    %v3441 = vpop.permute.xlu0 %3440
    %v3443 = vsel %vm297, %v3439, 0
    %v3446 = vsel %vm297, %v3441, 0
    %3448 = vmatprep.subr.bf16.mxu0 0
    %3449 = vmatpush1.bf16.xpose.msra.mxu0 %v3446
    %3450 = vmatprep.subr.bf16.mxu0 0
    %3451 = vmatpush1.bf16.xpose.msra.mxu0 0
    %3452 = vmatprep.subr.bf16.mxu0 0
    %3453 = vmatpush1.bf16.xpose.msra.mxu0 0
    %3454 = vmatprep.subr.bf16.mxu0 0
    %3455 = vmatpush1.bf16.xpose.msra.mxu0 0
    %3456 = vmatprep.subr.bf16.mxu0 0
    %3457 = vmatpush1.bf16.xpose.msra.mxu0 0
    %3458 = vmatprep.subr.bf16.mxu0 0
    %3459 = vmatpush1.bf16.xpose.msra.mxu0 0
    %3460 = vmatprep.subr.bf16.mxu0 0
    %3461 = vmatpush1.bf16.xpose.msra.mxu0 0
    %3462 = vmatprep.subr.bf16.mxu0 0
    %3463 = vmatpush1.bf16.xpose.msra.mxu0 0
    %3464 = vmatprep.subr.bf16.mxu0 0
    %3465 = vmatpush1.bf16.xpose.msra.mxu0 0
    %3466 = vmatprep.subr.bf16.mxu0 0
    %3467 = vmatpush1.bf16.xpose.msra.mxu0 0
    %3468 = vmatprep.subr.bf16.mxu0 0
    %3469 = vmatpush1.bf16.xpose.msra.mxu0 0
    %3470 = vmatprep.subr.bf16.mxu0 0
    %3471 = vmatpush1.bf16.xpose.msra.mxu0 0
    %3472 = vmatprep.subr.bf16.mxu0 0
    %3473 = vmatpush1.bf16.xpose.msra.mxu0 0
    %3474 = vmatprep.subr.bf16.mxu0 0
    %3475 = vmatpush1.bf16.xpose.msra.mxu0 0
    %3476 = vmatprep.subr.bf16.mxu0 0
    %3477 = vmatpush1.bf16.xpose.msra.mxu0 0
    %3478 = vmatprep.subr.bf16.mxu0 0
    %3479 = vmatpush1.bf16.xpose.msra.mxu0 0
    %3480 = vmatprep.mubr.bf16.mxu0 0
    %3481 = vmatmul.mubr.bf16.gmra.mrb[0].mxu0 %v3443
    %v3482 = vpop.f32.mrb[0].mxu0
    %v3483 = vadd.f32 %v46, %v3482
    %v3484 = vpop.f32.mrb[0].mxu0
    %v3485 = vpop.f32.mrb[0].mxu0
    %v3486 = vpop.f32.mrb[0].mxu0
    %3487 = vdwg.mxu0
    %3488 = vrot.lane.b32.xlu0 %v3217, 112
    %v3489 = vpop.permute.xlu0 %3488
    %3490 = vrot.lane.b32.xlu0 %v3223, 112
    %v3491 = vpop.permute.xlu0 %3490
    %v3493 = vsel %vm297, %v3489, 0
    %v3496 = vsel %vm297, %v3491, 0
    %3498 = vmatprep.subr.bf16.mxu0 0
    %3499 = vmatpush1.bf16.xpose.msra.mxu0 %v3496
    %3500 = vmatprep.subr.bf16.mxu0 0
    %3501 = vmatpush1.bf16.xpose.msra.mxu0 0
    %3502 = vmatprep.subr.bf16.mxu0 0
    %3503 = vmatpush1.bf16.xpose.msra.mxu0 0
    %3504 = vmatprep.subr.bf16.mxu0 0
    %3505 = vmatpush1.bf16.xpose.msra.mxu0 0
    %3506 = vmatprep.subr.bf16.mxu0 0
    %3507 = vmatpush1.bf16.xpose.msra.mxu0 0
    %3508 = vmatprep.subr.bf16.mxu0 0
    %3509 = vmatpush1.bf16.xpose.msra.mxu0 0
    %3510 = vmatprep.subr.bf16.mxu0 0
    %3511 = vmatpush1.bf16.xpose.msra.mxu0 0
    %3512 = vmatprep.subr.bf16.mxu0 0
    %3513 = vmatpush1.bf16.xpose.msra.mxu0 0
    %3514 = vmatprep.subr.bf16.mxu0 0
    %3515 = vmatpush1.bf16.xpose.msra.mxu0 0
    %3516 = vmatprep.subr.bf16.mxu0 0
    %3517 = vmatpush1.bf16.xpose.msra.mxu0 0
    %3518 = vmatprep.subr.bf16.mxu0 0
    %3519 = vmatpush1.bf16.xpose.msra.mxu0 0
    %3520 = vmatprep.subr.bf16.mxu0 0
    %3521 = vmatpush1.bf16.xpose.msra.mxu0 0
    %3522 = vmatprep.subr.bf16.mxu0 0
    %3523 = vmatpush1.bf16.xpose.msra.mxu0 0
    %3524 = vmatprep.subr.bf16.mxu0 0
    %3525 = vmatpush1.bf16.xpose.msra.mxu0 0
    %3526 = vmatprep.subr.bf16.mxu0 0
    %3527 = vmatpush1.bf16.xpose.msra.mxu0 0
    %3528 = vmatprep.subr.bf16.mxu0 0
    %3529 = vmatpush1.bf16.xpose.msra.mxu0 0
    %3530 = vmatprep.mubr.bf16.mxu0 0
    %3531 = vmatmul.mubr.bf16.gmra.mrb[0].mxu0 %v3493
    %v3532 = vpop.f32.mrb[0].mxu0
    %v3533 = vadd.f32 %v47, %v3532
    %v3534 = vpop.f32.mrb[0].mxu0
    %v3535 = vpop.f32.mrb[0].mxu0
    %v3536 = vpop.f32.mrb[0].mxu0
    %3537 = vdwg.mxu0
    %v3538 = vsel %vm390, %v3483, -inf
    %3539 = vmax.xlane.f32.xlu0 %v3538
    %v3540 = vpop.xlane.xlu0 %3539
    %v3541 = vsel %vm390, %v3533, -inf
    %3542 = vmax.xlane.f32.xlu0 %v3541
    %v3543 = vpop.xlane.xlu0 %3542
    %v3544 = vsub.f32 %v3483, %v3540
    %v3545 = vsub.f32 %v3533, %v3543
    %v3546 = vmul.f32 %v3544, 1.442695
    %v3547 = vpow.pop %v3546
    %v3548 = vmul.f32 %v3545, 1.442695
    %v3549 = vpow.pop %v3548
    %v3550 = vsel %vm390, %v3547, 0.0
    %3551 = vadd.xlane.f32.xlu0 %v3550
    %v3552 = vpop.xlane.xlu0 %3551
    %v3553 = vsel %vm390, %v3549, 0.0
    %3554 = vadd.xlane.f32.xlu0 %v3553
    %v3555 = vpop.xlane.xlu0 %3554
    %v3556 = vrcp.pop %v3552
    %v3557 = vrcp.pop %v3555
    %v3558 = vmul.f32 %v3547, %v3556
    %v3559 = vmul.f32 %v3549, %v3557
    %v3560 = vpack.c.bf16 %v3558, %v3558
    %v3561 = vpack.c.bf16 %v3559, %v3559
    %3562 = vrot.lane.b32.xlu0 %v3228, 112
    %v3563 = vpop.permute.xlu0 %3562
    %v3565 = vsel %vm390, %v3560, 0
    %v3568 = vsel %vm418, %v3563, 0
    %3570 = vmatprep.subr.bf16.mxu0 0
    %3571 = vmatpush1.bf16.msra.mxu0 %v3568
    %3572 = vmatprep.subr.bf16.mxu0 0
    %3573 = vmatpush1.bf16.msra.mxu0 0
    %3574 = vmatprep.subr.bf16.mxu0 0
    %3575 = vmatpush1.bf16.msra.mxu0 0
    %3576 = vmatprep.subr.bf16.mxu0 0
    %3577 = vmatpush1.bf16.msra.mxu0 0
    %3578 = vmatprep.subr.bf16.mxu0 0
    %3579 = vmatpush1.bf16.msra.mxu0 0
    %3580 = vmatprep.subr.bf16.mxu0 0
    %3581 = vmatpush1.bf16.msra.mxu0 0
    %3582 = vmatprep.subr.bf16.mxu0 0
    %3583 = vmatpush1.bf16.msra.mxu0 0
    %3584 = vmatprep.subr.bf16.mxu0 0
    %3585 = vmatpush1.bf16.msra.mxu0 0
    %3586 = vmatprep.subr.bf16.mxu0 0
    %3587 = vmatpush1.bf16.msra.mxu0 0
    %3588 = vmatprep.subr.bf16.mxu0 0
    %3589 = vmatpush1.bf16.msra.mxu0 0
    %3590 = vmatprep.subr.bf16.mxu0 0
    %3591 = vmatpush1.bf16.msra.mxu0 0
    %3592 = vmatprep.subr.bf16.mxu0 0
    %3593 = vmatpush1.bf16.msra.mxu0 0
    %3594 = vmatprep.subr.bf16.mxu0 0
    %3595 = vmatpush1.bf16.msra.mxu0 0
    %3596 = vmatprep.subr.bf16.mxu0 0
    %3597 = vmatpush1.bf16.msra.mxu0 0
    %3598 = vmatprep.subr.bf16.mxu0 0
    %3599 = vmatpush1.bf16.msra.mxu0 0
    %3600 = vmatprep.subr.bf16.mxu0 0
    %3601 = vmatpush1.bf16.msra.mxu0 0
    %3602 = vmatprep.mubr.bf16.mxu0 0
    %3603 = vmatmul.mubr.bf16.gmra.mrb[0].mxu0 %v3565
    %v3604 = vpop.f32.mrb[0].mxu0
    %v3605 = vadd.f32 0.0, %v3604
    %v3606 = vpop.f32.mrb[0].mxu0
    %v3607 = vpop.f32.mrb[0].mxu0
    %v3608 = vpop.f32.mrb[0].mxu0
    %3609 = vdwg.mxu0
    %3610 = vrot.lane.b32.xlu0 %v3229, 112
    %v3611 = vpop.permute.xlu0 %3610
    %v3613 = vsel %vm390, %v3561, 0
    %v3616 = vsel %vm418, %v3611, 0
    %3618 = vmatprep.subr.bf16.mxu0 0
    %3619 = vmatpush1.bf16.msra.mxu0 %v3616
    %3620 = vmatprep.subr.bf16.mxu0 0
    %3621 = vmatpush1.bf16.msra.mxu0 0
    %3622 = vmatprep.subr.bf16.mxu0 0
    %3623 = vmatpush1.bf16.msra.mxu0 0
    %3624 = vmatprep.subr.bf16.mxu0 0
    %3625 = vmatpush1.bf16.msra.mxu0 0
    %3626 = vmatprep.subr.bf16.mxu0 0
    %3627 = vmatpush1.bf16.msra.mxu0 0
    %3628 = vmatprep.subr.bf16.mxu0 0
    %3629 = vmatpush1.bf16.msra.mxu0 0
    %3630 = vmatprep.subr.bf16.mxu0 0
    %3631 = vmatpush1.bf16.msra.mxu0 0
    %3632 = vmatprep.subr.bf16.mxu0 0
    %3633 = vmatpush1.bf16.msra.mxu0 0
    %3634 = vmatprep.subr.bf16.mxu0 0
    %3635 = vmatpush1.bf16.msra.mxu0 0
    %3636 = vmatprep.subr.bf16.mxu0 0
    %3637 = vmatpush1.bf16.msra.mxu0 0
    %3638 = vmatprep.subr.bf16.mxu0 0
    %3639 = vmatpush1.bf16.msra.mxu0 0
    %3640 = vmatprep.subr.bf16.mxu0 0
    %3641 = vmatpush1.bf16.msra.mxu0 0
    %3642 = vmatprep.subr.bf16.mxu0 0
    %3643 = vmatpush1.bf16.msra.mxu0 0
    %3644 = vmatprep.subr.bf16.mxu0 0
    %3645 = vmatpush1.bf16.msra.mxu0 0
    %3646 = vmatprep.subr.bf16.mxu0 0
    %3647 = vmatpush1.bf16.msra.mxu0 0
    %3648 = vmatprep.subr.bf16.mxu0 0
    %3649 = vmatpush1.bf16.msra.mxu0 0
    %3650 = vmatprep.mubr.bf16.mxu0 0
    %3651 = vmatmul.mubr.bf16.gmra.mrb[0].mxu0 %v3613
    %v3652 = vpop.f32.mrb[0].mxu0
    %v3653 = vadd.f32 0.0, %v3652
    %v3654 = vpop.f32.mrb[0].mxu0
    %v3655 = vpop.f32.mrb[0].mxu0
    %v3656 = vpop.f32.mrb[0].mxu0
    %3657 = vdwg.mxu0
    %3658 = vrot.lane.b32.xlu0 %v3216, 96
    %v3659 = vpop.permute.xlu0 %3658
    %3660 = vrot.lane.b32.xlu0 %v3222, 96
    %v3661 = vpop.permute.xlu0 %3660
    %v3663 = vsel %vm297, %v3659, 0
    %v3666 = vsel %vm297, %v3661, 0
    %3668 = vmatprep.subr.bf16.mxu0 0
    %3669 = vmatpush1.bf16.xpose.msra.mxu0 %v3666
    %3670 = vmatprep.subr.bf16.mxu0 0
    %3671 = vmatpush1.bf16.xpose.msra.mxu0 0
    %3672 = vmatprep.subr.bf16.mxu0 0
    %3673 = vmatpush1.bf16.xpose.msra.mxu0 0
    %3674 = vmatprep.subr.bf16.mxu0 0
    %3675 = vmatpush1.bf16.xpose.msra.mxu0 0
    %3676 = vmatprep.subr.bf16.mxu0 0
    %3677 = vmatpush1.bf16.xpose.msra.mxu0 0
    %3678 = vmatprep.subr.bf16.mxu0 0
    %3679 = vmatpush1.bf16.xpose.msra.mxu0 0
    %3680 = vmatprep.subr.bf16.mxu0 0
    %3681 = vmatpush1.bf16.xpose.msra.mxu0 0
    %3682 = vmatprep.subr.bf16.mxu0 0
    %3683 = vmatpush1.bf16.xpose.msra.mxu0 0
    %3684 = vmatprep.subr.bf16.mxu0 0
    %3685 = vmatpush1.bf16.xpose.msra.mxu0 0
    %3686 = vmatprep.subr.bf16.mxu0 0
    %3687 = vmatpush1.bf16.xpose.msra.mxu0 0
    %3688 = vmatprep.subr.bf16.mxu0 0
    %3689 = vmatpush1.bf16.xpose.msra.mxu0 0
    %3690 = vmatprep.subr.bf16.mxu0 0
    %3691 = vmatpush1.bf16.xpose.msra.mxu0 0
    %3692 = vmatprep.subr.bf16.mxu0 0
    %3693 = vmatpush1.bf16.xpose.msra.mxu0 0
    %3694 = vmatprep.subr.bf16.mxu0 0
    %3695 = vmatpush1.bf16.xpose.msra.mxu0 0
    %3696 = vmatprep.subr.bf16.mxu0 0
    %3697 = vmatpush1.bf16.xpose.msra.mxu0 0
    %3698 = vmatprep.subr.bf16.mxu0 0
    %3699 = vmatpush1.bf16.xpose.msra.mxu0 0
    %3700 = vmatprep.mubr.bf16.mxu0 0
    %3701 = vmatmul.mubr.bf16.gmra.mrb[0].mxu0 %v3663
    %v3702 = vpop.f32.mrb[0].mxu0
    %v3703 = vadd.f32 %v46, %v3702
    %v3704 = vpop.f32.mrb[0].mxu0
    %v3705 = vpop.f32.mrb[0].mxu0
    %v3706 = vpop.f32.mrb[0].mxu0
    %3707 = vdwg.mxu0
    %3708 = vrot.lane.b32.xlu0 %v3217, 96
    %v3709 = vpop.permute.xlu0 %3708
    %3710 = vrot.lane.b32.xlu0 %v3223, 96
    %v3711 = vpop.permute.xlu0 %3710
    %v3713 = vsel %vm297, %v3709, 0
    %v3716 = vsel %vm297, %v3711, 0
    %3718 = vmatprep.subr.bf16.mxu0 0
    %3719 = vmatpush1.bf16.xpose.msra.mxu0 %v3716
    %3720 = vmatprep.subr.bf16.mxu0 0
    %3721 = vmatpush1.bf16.xpose.msra.mxu0 0
    %3722 = vmatprep.subr.bf16.mxu0 0
    %3723 = vmatpush1.bf16.xpose.msra.mxu0 0
    %3724 = vmatprep.subr.bf16.mxu0 0
    %3725 = vmatpush1.bf16.xpose.msra.mxu0 0
    %3726 = vmatprep.subr.bf16.mxu0 0
    %3727 = vmatpush1.bf16.xpose.msra.mxu0 0
    %3728 = vmatprep.subr.bf16.mxu0 0
    %3729 = vmatpush1.bf16.xpose.msra.mxu0 0
    %3730 = vmatprep.subr.bf16.mxu0 0
    %3731 = vmatpush1.bf16.xpose.msra.mxu0 0
    %3732 = vmatprep.subr.bf16.mxu0 0
    %3733 = vmatpush1.bf16.xpose.msra.mxu0 0
    %3734 = vmatprep.subr.bf16.mxu0 0
    %3735 = vmatpush1.bf16.xpose.msra.mxu0 0
    %3736 = vmatprep.subr.bf16.mxu0 0
    %3737 = vmatpush1.bf16.xpose.msra.mxu0 0
    %3738 = vmatprep.subr.bf16.mxu0 0
    %3739 = vmatpush1.bf16.xpose.msra.mxu0 0
    %3740 = vmatprep.subr.bf16.mxu0 0
    %3741 = vmatpush1.bf16.xpose.msra.mxu0 0
    %3742 = vmatprep.subr.bf16.mxu0 0
    %3743 = vmatpush1.bf16.xpose.msra.mxu0 0
    %3744 = vmatprep.subr.bf16.mxu0 0
    %3745 = vmatpush1.bf16.xpose.msra.mxu0 0
    %3746 = vmatprep.subr.bf16.mxu0 0
    %3747 = vmatpush1.bf16.xpose.msra.mxu0 0
    %3748 = vmatprep.subr.bf16.mxu0 0
    %3749 = vmatpush1.bf16.xpose.msra.mxu0 0
    %3750 = vmatprep.mubr.bf16.mxu0 0
    %3751 = vmatmul.mubr.bf16.gmra.mrb[0].mxu0 %v3713
    %v3752 = vpop.f32.mrb[0].mxu0
    %v3753 = vadd.f32 %v47, %v3752
    %v3754 = vpop.f32.mrb[0].mxu0
    %v3755 = vpop.f32.mrb[0].mxu0
    %v3756 = vpop.f32.mrb[0].mxu0
    %3757 = vdwg.mxu0
    %v3758 = vsel %vm390, %v3703, -inf
    %3759 = vmax.xlane.f32.xlu0 %v3758
    %v3760 = vpop.xlane.xlu0 %3759
    %v3761 = vsel %vm390, %v3753, -inf
    %3762 = vmax.xlane.f32.xlu0 %v3761
    %v3763 = vpop.xlane.xlu0 %3762
    %v3764 = vsub.f32 %v3703, %v3760
    %v3765 = vsub.f32 %v3753, %v3763
    %v3766 = vmul.f32 %v3764, 1.442695
    %v3767 = vpow.pop %v3766
    %v3768 = vmul.f32 %v3765, 1.442695
    %v3769 = vpow.pop %v3768
    %v3770 = vsel %vm390, %v3767, 0.0
    %3771 = vadd.xlane.f32.xlu0 %v3770
    %v3772 = vpop.xlane.xlu0 %3771
    %v3773 = vsel %vm390, %v3769, 0.0
    %3774 = vadd.xlane.f32.xlu0 %v3773
    %v3775 = vpop.xlane.xlu0 %3774
    %v3776 = vrcp.pop %v3772
    %v3777 = vrcp.pop %v3775
    %v3778 = vmul.f32 %v3767, %v3776
    %v3779 = vmul.f32 %v3769, %v3777
    %v3780 = vpack.c.bf16 %v3778, %v3778
    %v3781 = vpack.c.bf16 %v3779, %v3779
    %3782 = vrot.lane.b32.xlu0 %v3228, 96
    %v3783 = vpop.permute.xlu0 %3782
    %v3785 = vsel %vm390, %v3780, 0
    %v3788 = vsel %vm418, %v3783, 0
    %3790 = vmatprep.subr.bf16.mxu0 0
    %3791 = vmatpush1.bf16.msra.mxu0 %v3788
    %3792 = vmatprep.subr.bf16.mxu0 0
    %3793 = vmatpush1.bf16.msra.mxu0 0
    %3794 = vmatprep.subr.bf16.mxu0 0
    %3795 = vmatpush1.bf16.msra.mxu0 0
    %3796 = vmatprep.subr.bf16.mxu0 0
    %3797 = vmatpush1.bf16.msra.mxu0 0
    %3798 = vmatprep.subr.bf16.mxu0 0
    %3799 = vmatpush1.bf16.msra.mxu0 0
    %3800 = vmatprep.subr.bf16.mxu0 0
    %3801 = vmatpush1.bf16.msra.mxu0 0
    %3802 = vmatprep.subr.bf16.mxu0 0
    %3803 = vmatpush1.bf16.msra.mxu0 0
    %3804 = vmatprep.subr.bf16.mxu0 0
    %3805 = vmatpush1.bf16.msra.mxu0 0
    %3806 = vmatprep.subr.bf16.mxu0 0
    %3807 = vmatpush1.bf16.msra.mxu0 0
    %3808 = vmatprep.subr.bf16.mxu0 0
    %3809 = vmatpush1.bf16.msra.mxu0 0
    %3810 = vmatprep.subr.bf16.mxu0 0
    %3811 = vmatpush1.bf16.msra.mxu0 0
    %3812 = vmatprep.subr.bf16.mxu0 0
    %3813 = vmatpush1.bf16.msra.mxu0 0
    %3814 = vmatprep.subr.bf16.mxu0 0
    %3815 = vmatpush1.bf16.msra.mxu0 0
    %3816 = vmatprep.subr.bf16.mxu0 0
    %3817 = vmatpush1.bf16.msra.mxu0 0
    %3818 = vmatprep.subr.bf16.mxu0 0
    %3819 = vmatpush1.bf16.msra.mxu0 0
    %3820 = vmatprep.subr.bf16.mxu0 0
    %3821 = vmatpush1.bf16.msra.mxu0 0
    %3822 = vmatprep.mubr.bf16.mxu0 0
    %3823 = vmatmul.mubr.bf16.gmra.mrb[0].mxu0 %v3785
    %v3824 = vpop.f32.mrb[0].mxu0
    %v3825 = vadd.f32 0.0, %v3824
    %v3826 = vpop.f32.mrb[0].mxu0
    %v3827 = vpop.f32.mrb[0].mxu0
    %v3828 = vpop.f32.mrb[0].mxu0
    %3829 = vdwg.mxu0
    %3830 = vrot.lane.b32.xlu0 %v3229, 96
    %v3831 = vpop.permute.xlu0 %3830
    %v3833 = vsel %vm390, %v3781, 0
    %v3836 = vsel %vm418, %v3831, 0
    %3838 = vmatprep.subr.bf16.mxu0 0
    %3839 = vmatpush1.bf16.msra.mxu0 %v3836
    %3840 = vmatprep.subr.bf16.mxu0 0
    %3841 = vmatpush1.bf16.msra.mxu0 0
    %3842 = vmatprep.subr.bf16.mxu0 0
    %3843 = vmatpush1.bf16.msra.mxu0 0
    %3844 = vmatprep.subr.bf16.mxu0 0
    %3845 = vmatpush1.bf16.msra.mxu0 0
    %3846 = vmatprep.subr.bf16.mxu0 0
    %3847 = vmatpush1.bf16.msra.mxu0 0
    %3848 = vmatprep.subr.bf16.mxu0 0
    %3849 = vmatpush1.bf16.msra.mxu0 0
    %3850 = vmatprep.subr.bf16.mxu0 0
    %3851 = vmatpush1.bf16.msra.mxu0 0
    %3852 = vmatprep.subr.bf16.mxu0 0
    %3853 = vmatpush1.bf16.msra.mxu0 0
    %3854 = vmatprep.subr.bf16.mxu0 0
    %3855 = vmatpush1.bf16.msra.mxu0 0
    %3856 = vmatprep.subr.bf16.mxu0 0
    %3857 = vmatpush1.bf16.msra.mxu0 0
    %3858 = vmatprep.subr.bf16.mxu0 0
    %3859 = vmatpush1.bf16.msra.mxu0 0
    %3860 = vmatprep.subr.bf16.mxu0 0
    %3861 = vmatpush1.bf16.msra.mxu0 0
    %3862 = vmatprep.subr.bf16.mxu0 0
    %3863 = vmatpush1.bf16.msra.mxu0 0
    %3864 = vmatprep.subr.bf16.mxu0 0
    %3865 = vmatpush1.bf16.msra.mxu0 0
    %3866 = vmatprep.subr.bf16.mxu0 0
    %3867 = vmatpush1.bf16.msra.mxu0 0
    %3868 = vmatprep.subr.bf16.mxu0 0
    %3869 = vmatpush1.bf16.msra.mxu0 0
    %3870 = vmatprep.mubr.bf16.mxu0 0
    %3871 = vmatmul.mubr.bf16.gmra.mrb[0].mxu0 %v3833
    %v3872 = vpop.f32.mrb[0].mxu0
    %v3873 = vadd.f32 0.0, %v3872
    %v3874 = vpop.f32.mrb[0].mxu0
    %v3875 = vpop.f32.mrb[0].mxu0
    %v3876 = vpop.f32.mrb[0].mxu0
    %3877 = vdwg.mxu0
    %3878 = vrot.lane.b32.xlu0 %v3216, 80
    %v3879 = vpop.permute.xlu0 %3878
    %3880 = vrot.lane.b32.xlu0 %v3222, 80
    %v3881 = vpop.permute.xlu0 %3880
    %v3883 = vsel %vm297, %v3879, 0
    %v3886 = vsel %vm297, %v3881, 0
    %3888 = vmatprep.subr.bf16.mxu0 0
    %3889 = vmatpush1.bf16.xpose.msra.mxu0 %v3886
    %3890 = vmatprep.subr.bf16.mxu0 0
    %3891 = vmatpush1.bf16.xpose.msra.mxu0 0
    %3892 = vmatprep.subr.bf16.mxu0 0
    %3893 = vmatpush1.bf16.xpose.msra.mxu0 0
    %3894 = vmatprep.subr.bf16.mxu0 0
    %3895 = vmatpush1.bf16.xpose.msra.mxu0 0
    %3896 = vmatprep.subr.bf16.mxu0 0
    %3897 = vmatpush1.bf16.xpose.msra.mxu0 0
    %3898 = vmatprep.subr.bf16.mxu0 0
    %3899 = vmatpush1.bf16.xpose.msra.mxu0 0
    %3900 = vmatprep.subr.bf16.mxu0 0
    %3901 = vmatpush1.bf16.xpose.msra.mxu0 0
    %3902 = vmatprep.subr.bf16.mxu0 0
    %3903 = vmatpush1.bf16.xpose.msra.mxu0 0
    %3904 = vmatprep.subr.bf16.mxu0 0
    %3905 = vmatpush1.bf16.xpose.msra.mxu0 0
    %3906 = vmatprep.subr.bf16.mxu0 0
    %3907 = vmatpush1.bf16.xpose.msra.mxu0 0
    %3908 = vmatprep.subr.bf16.mxu0 0
    %3909 = vmatpush1.bf16.xpose.msra.mxu0 0
    %3910 = vmatprep.subr.bf16.mxu0 0
    %3911 = vmatpush1.bf16.xpose.msra.mxu0 0
    %3912 = vmatprep.subr.bf16.mxu0 0
    %3913 = vmatpush1.bf16.xpose.msra.mxu0 0
    %3914 = vmatprep.subr.bf16.mxu0 0
    %3915 = vmatpush1.bf16.xpose.msra.mxu0 0
    %3916 = vmatprep.subr.bf16.mxu0 0
    %3917 = vmatpush1.bf16.xpose.msra.mxu0 0
    %3918 = vmatprep.subr.bf16.mxu0 0
    %3919 = vmatpush1.bf16.xpose.msra.mxu0 0
    %3920 = vmatprep.mubr.bf16.mxu0 0
    %3921 = vmatmul.mubr.bf16.gmra.mrb[0].mxu0 %v3883
    %v3922 = vpop.f32.mrb[0].mxu0
    %v3923 = vadd.f32 %v46, %v3922
    %v3924 = vpop.f32.mrb[0].mxu0
    %v3925 = vpop.f32.mrb[0].mxu0
    %v3926 = vpop.f32.mrb[0].mxu0
    %3927 = vdwg.mxu0
    %3928 = vrot.lane.b32.xlu0 %v3217, 80
    %v3929 = vpop.permute.xlu0 %3928
    %3930 = vrot.lane.b32.xlu0 %v3223, 80
    %v3931 = vpop.permute.xlu0 %3930
    %v3933 = vsel %vm297, %v3929, 0
    %v3936 = vsel %vm297, %v3931, 0
    %3938 = vmatprep.subr.bf16.mxu0 0
    %3939 = vmatpush1.bf16.xpose.msra.mxu0 %v3936
    %3940 = vmatprep.subr.bf16.mxu0 0
    %3941 = vmatpush1.bf16.xpose.msra.mxu0 0
    %3942 = vmatprep.subr.bf16.mxu0 0
    %3943 = vmatpush1.bf16.xpose.msra.mxu0 0
    %3944 = vmatprep.subr.bf16.mxu0 0
    %3945 = vmatpush1.bf16.xpose.msra.mxu0 0
    %3946 = vmatprep.subr.bf16.mxu0 0
    %3947 = vmatpush1.bf16.xpose.msra.mxu0 0
    %3948 = vmatprep.subr.bf16.mxu0 0
    %3949 = vmatpush1.bf16.xpose.msra.mxu0 0
    %3950 = vmatprep.subr.bf16.mxu0 0
    %3951 = vmatpush1.bf16.xpose.msra.mxu0 0
    %3952 = vmatprep.subr.bf16.mxu0 0
    %3953 = vmatpush1.bf16.xpose.msra.mxu0 0
    %3954 = vmatprep.subr.bf16.mxu0 0
    %3955 = vmatpush1.bf16.xpose.msra.mxu0 0
    %3956 = vmatprep.subr.bf16.mxu0 0
    %3957 = vmatpush1.bf16.xpose.msra.mxu0 0
    %3958 = vmatprep.subr.bf16.mxu0 0
    %3959 = vmatpush1.bf16.xpose.msra.mxu0 0
    %3960 = vmatprep.subr.bf16.mxu0 0
    %3961 = vmatpush1.bf16.xpose.msra.mxu0 0
    %3962 = vmatprep.subr.bf16.mxu0 0
    %3963 = vmatpush1.bf16.xpose.msra.mxu0 0
    %3964 = vmatprep.subr.bf16.mxu0 0
    %3965 = vmatpush1.bf16.xpose.msra.mxu0 0
    %3966 = vmatprep.subr.bf16.mxu0 0
    %3967 = vmatpush1.bf16.xpose.msra.mxu0 0
    %3968 = vmatprep.subr.bf16.mxu0 0
    %3969 = vmatpush1.bf16.xpose.msra.mxu0 0
    %3970 = vmatprep.mubr.bf16.mxu0 0
    %3971 = vmatmul.mubr.bf16.gmra.mrb[0].mxu0 %v3933
    %v3972 = vpop.f32.mrb[0].mxu0
    %v3973 = vadd.f32 %v47, %v3972
    %v3974 = vpop.f32.mrb[0].mxu0
    %v3975 = vpop.f32.mrb[0].mxu0
    %v3976 = vpop.f32.mrb[0].mxu0
    %3977 = vdwg.mxu0
    %v3978 = vsel %vm390, %v3923, -inf
    %3979 = vmax.xlane.f32.xlu0 %v3978
    %v3980 = vpop.xlane.xlu0 %3979
    %v3981 = vsel %vm390, %v3973, -inf
    %3982 = vmax.xlane.f32.xlu0 %v3981
    %v3983 = vpop.xlane.xlu0 %3982
    %v3984 = vsub.f32 %v3923, %v3980
    %v3985 = vsub.f32 %v3973, %v3983
    %v3986 = vmul.f32 %v3984, 1.442695
    %v3987 = vpow.pop %v3986
    %v3988 = vmul.f32 %v3985, 1.442695
    %v3989 = vpow.pop %v3988
    %v3990 = vsel %vm390, %v3987, 0.0
    %3991 = vadd.xlane.f32.xlu0 %v3990
    %v3992 = vpop.xlane.xlu0 %3991
    %v3993 = vsel %vm390, %v3989, 0.0
    %3994 = vadd.xlane.f32.xlu0 %v3993
    %v3995 = vpop.xlane.xlu0 %3994
    %v3996 = vrcp.pop %v3992
    %v3997 = vrcp.pop %v3995
    %v3998 = vmul.f32 %v3987, %v3996
    %v3999 = vmul.f32 %v3989, %v3997
    %v4000 = vpack.c.bf16 %v3998, %v3998
    %v4001 = vpack.c.bf16 %v3999, %v3999
    %4002 = vrot.lane.b32.xlu0 %v3228, 80
    %v4003 = vpop.permute.xlu0 %4002
    %v4005 = vsel %vm390, %v4000, 0
    %v4008 = vsel %vm418, %v4003, 0
    %4010 = vmatprep.subr.bf16.mxu0 0
    %4011 = vmatpush1.bf16.msra.mxu0 %v4008
    %4012 = vmatprep.subr.bf16.mxu0 0
    %4013 = vmatpush1.bf16.msra.mxu0 0
    %4014 = vmatprep.subr.bf16.mxu0 0
    %4015 = vmatpush1.bf16.msra.mxu0 0
    %4016 = vmatprep.subr.bf16.mxu0 0
    %4017 = vmatpush1.bf16.msra.mxu0 0
    %4018 = vmatprep.subr.bf16.mxu0 0
    %4019 = vmatpush1.bf16.msra.mxu0 0
    %4020 = vmatprep.subr.bf16.mxu0 0
    %4021 = vmatpush1.bf16.msra.mxu0 0
    %4022 = vmatprep.subr.bf16.mxu0 0
    %4023 = vmatpush1.bf16.msra.mxu0 0
    %4024 = vmatprep.subr.bf16.mxu0 0
    %4025 = vmatpush1.bf16.msra.mxu0 0
    %4026 = vmatprep.subr.bf16.mxu0 0
    %4027 = vmatpush1.bf16.msra.mxu0 0
    %4028 = vmatprep.subr.bf16.mxu0 0
    %4029 = vmatpush1.bf16.msra.mxu0 0
    %4030 = vmatprep.subr.bf16.mxu0 0
    %4031 = vmatpush1.bf16.msra.mxu0 0
    %4032 = vmatprep.subr.bf16.mxu0 0
    %4033 = vmatpush1.bf16.msra.mxu0 0
    %4034 = vmatprep.subr.bf16.mxu0 0
    %4035 = vmatpush1.bf16.msra.mxu0 0
    %4036 = vmatprep.subr.bf16.mxu0 0
    %4037 = vmatpush1.bf16.msra.mxu0 0
    %4038 = vmatprep.subr.bf16.mxu0 0
    %4039 = vmatpush1.bf16.msra.mxu0 0
    %4040 = vmatprep.subr.bf16.mxu0 0
    %4041 = vmatpush1.bf16.msra.mxu0 0
    %4042 = vmatprep.mubr.bf16.mxu0 0
    %4043 = vmatmul.mubr.bf16.gmra.mrb[0].mxu0 %v4005
    %v4044 = vpop.f32.mrb[0].mxu0
    %v4045 = vadd.f32 0.0, %v4044
    %v4046 = vpop.f32.mrb[0].mxu0
    %v4047 = vpop.f32.mrb[0].mxu0
    %v4048 = vpop.f32.mrb[0].mxu0
    %4049 = vdwg.mxu0
    %4050 = vrot.lane.b32.xlu0 %v3229, 80
    %v4051 = vpop.permute.xlu0 %4050
    %v4053 = vsel %vm390, %v4001, 0
    %v4056 = vsel %vm418, %v4051, 0
    %4058 = vmatprep.subr.bf16.mxu0 0
    %4059 = vmatpush1.bf16.msra.mxu0 %v4056
    %4060 = vmatprep.subr.bf16.mxu0 0
    %4061 = vmatpush1.bf16.msra.mxu0 0
    %4062 = vmatprep.subr.bf16.mxu0 0
    %4063 = vmatpush1.bf16.msra.mxu0 0
    %4064 = vmatprep.subr.bf16.mxu0 0
    %4065 = vmatpush1.bf16.msra.mxu0 0
    %4066 = vmatprep.subr.bf16.mxu0 0
    %4067 = vmatpush1.bf16.msra.mxu0 0
    %4068 = vmatprep.subr.bf16.mxu0 0
    %4069 = vmatpush1.bf16.msra.mxu0 0
    %4070 = vmatprep.subr.bf16.mxu0 0
    %4071 = vmatpush1.bf16.msra.mxu0 0
    %4072 = vmatprep.subr.bf16.mxu0 0
    %4073 = vmatpush1.bf16.msra.mxu0 0
    %4074 = vmatprep.subr.bf16.mxu0 0
    %4075 = vmatpush1.bf16.msra.mxu0 0
    %4076 = vmatprep.subr.bf16.mxu0 0
    %4077 = vmatpush1.bf16.msra.mxu0 0
    %4078 = vmatprep.subr.bf16.mxu0 0
    %4079 = vmatpush1.bf16.msra.mxu0 0
    %4080 = vmatprep.subr.bf16.mxu0 0
    %4081 = vmatpush1.bf16.msra.mxu0 0
    %4082 = vmatprep.subr.bf16.mxu0 0
    %4083 = vmatpush1.bf16.msra.mxu0 0
    %4084 = vmatprep.subr.bf16.mxu0 0
    %4085 = vmatpush1.bf16.msra.mxu0 0
    %4086 = vmatprep.subr.bf16.mxu0 0
    %4087 = vmatpush1.bf16.msra.mxu0 0
    %4088 = vmatprep.subr.bf16.mxu0 0
    %4089 = vmatpush1.bf16.msra.mxu0 0
    %4090 = vmatprep.mubr.bf16.mxu0 0
    %4091 = vmatmul.mubr.bf16.gmra.mrb[0].mxu0 %v4053
    %v4092 = vpop.f32.mrb[0].mxu0
    %v4093 = vadd.f32 0.0, %v4092
    %v4094 = vpop.f32.mrb[0].mxu0
    %v4095 = vpop.f32.mrb[0].mxu0
    %v4096 = vpop.f32.mrb[0].mxu0
    %4097 = vdwg.mxu0
    %4100 = vrot.lane.b32.xlu0 %v3605, 16
    %v4101 = vpop.permute.xlu0 %4100
    %4102 = vrot.lane.b32.xlu0 %v3653, 16
    %v4103 = vpop.permute.xlu0 %4102
    %4108 = vrot.lane.b32.xlu0 %v3825, 32
    %v4109 = vpop.permute.xlu0 %4108
    %4110 = vrot.lane.b32.xlu0 %v3873, 32
    %v4111 = vpop.permute.xlu0 %4110
    %4116 = vrot.lane.b32.xlu0 %v4045, 48
    %v4117 = vpop.permute.xlu0 %4116
    %4118 = vrot.lane.b32.xlu0 %v4093, 48
    %v4119 = vpop.permute.xlu0 %4118
    %v4122 = vsel %vm297, %v3387, %v4101
    %v4123 = vsel %vm297, %v3433, %v4103
    %v4124 = vsel %vm1194, %v4122, %v4109
    %v4125 = vsel %vm1194, %v4123, %v4111
    %v4126 = vsel %vm1197, %v4124, %v4117
    %v4127 = vsel %vm1197, %v4125, %v4119
    %v4128 = vpack.c.bf16 %v4127, %v4126
    %s4129 = scalar_lea.vmem %s6, 64
    %v4130 = vld [vmem:[%s4129] sm:$0xf]
    %v4131 = vld [vmem:[%s4129 + $0x4] sm:$0xf]
    %v4132 = vld [vmem:[%s4129 + $0x8] sm:$0xf]
    %v4133 = vld [vmem:[%s4129 + $0xc] sm:$0xf]
    %v4134 = vld [vmem:[%s4129 + $0x10] sm:$0xf]
    %v4135 = vld [vmem:[%s4129 + $0x14] sm:$0xf]
    %v4136 = vld [vmem:[%s4129 + $0x18] sm:$0xf]
    %v4137 = vld [vmem:[%s4129 + $0x1c] sm:$0xf]
    %v4146 = vunpack.c.l.b16 %v4130
    %v4147 = vunpack.c.l.b16 %v4131
    %v4148 = vunpack.c.l.b16 %v4132
    %v4149 = vunpack.c.l.b16 %v4133
    %v4150 = vunpack.c.l.b16 %v4134
    %v4151 = vunpack.c.l.b16 %v4135
    %v4152 = vunpack.c.l.b16 %v4136
    %v4153 = vunpack.c.l.b16 %v4137
    %v4154 = vpack.c.b16 %v4147, %v4146
    %v4155 = vpack.c.b16 %v4149, %v4148
    %v4156 = vpack.c.b16 %v4151, %v4150
    %v4157 = vpack.c.b16 %v4153, %v4152
    %v4163 = vsel %vm51, %v4128, 0
    %4165 = vmatprep.subr.bf16.mxu0 0
    %4166 = vmatpush1.bf16.msra.mxu0 %v4154
    %4167 = vmatprep.subr.bf16.mxu0 0
    %4168 = vmatpush1.bf16.msra.mxu0 %v4155
    %4169 = vmatprep.subr.bf16.mxu0 0
    %4170 = vmatpush1.bf16.msra.mxu0 %v4156
    %4171 = vmatprep.subr.bf16.mxu0 0
    %4172 = vmatpush1.bf16.msra.mxu0 %v4157
    %4173 = vmatprep.subr.bf16.mxu0 0
    %4174 = vmatpush1.bf16.msra.mxu0 0
    %4175 = vmatprep.subr.bf16.mxu0 0
    %4176 = vmatpush1.bf16.msra.mxu0 0
    %4177 = vmatprep.subr.bf16.mxu0 0
    %4178 = vmatpush1.bf16.msra.mxu0 0
    %4179 = vmatprep.subr.bf16.mxu0 0
    %4180 = vmatpush1.bf16.msra.mxu0 0
    %4181 = vmatprep.subr.bf16.mxu0 0
    %4182 = vmatpush1.bf16.msra.mxu0 0
    %4183 = vmatprep.subr.bf16.mxu0 0
    %4184 = vmatpush1.bf16.msra.mxu0 0
    %4185 = vmatprep.subr.bf16.mxu0 0
    %4186 = vmatpush1.bf16.msra.mxu0 0
    %4187 = vmatprep.subr.bf16.mxu0 0
    %4188 = vmatpush1.bf16.msra.mxu0 0
    %4189 = vmatprep.subr.bf16.mxu0 0
    %4190 = vmatpush1.bf16.msra.mxu0 0
    %4191 = vmatprep.subr.bf16.mxu0 0
    %4192 = vmatpush1.bf16.msra.mxu0 0
    %4193 = vmatprep.subr.bf16.mxu0 0
    %4194 = vmatpush1.bf16.msra.mxu0 0
    %4195 = vmatprep.subr.bf16.mxu0 0
    %4196 = vmatpush1.bf16.msra.mxu0 0
    %4197 = vmatprep.mubr.bf16.mxu0 0
    %4198 = vmatmul.mubr.bf16.gmra.mrb[0].mxu0 %v4163
    %v4199 = vpop.f32.mrb[0].mxu0
    %v4200 = vadd.f32 0.0, %v4199
    %v4201 = vpop.f32.mrb[0].mxu0
    %v4202 = vpop.f32.mrb[0].mxu0
    %v4203 = vadd.f32 0.0, %v4202
    %v4204 = vpop.f32.mrb[0].mxu0
    %4205 = vdwg.mxu0
    %v4206 = vadd.f32 %v2987, %v4200
    %v4207 = vadd.f32 %v2988, %v4203
    %s4208 = scalar_lea.vmem %s7, 2
    %v4209 = vld [vmem:[%s4208] sm:$0x1]
    %v4210 = vmul.f32 %v4206, %v4206
    %v4211 = vmul.f32 %v4207, %v4207
    %v4212 = vsel %vm51, %v4210, 0.0
    %4213 = vadd.xlane.f32.xlu0 %v4212
    %v4214 = vpop.xlane.xlu0 %4213
    %v4215 = vsel %vm51, %v4211, 0.0
    %4216 = vadd.xlane.f32.xlu0 %v4215
    %v4217 = vpop.xlane.xlu0 %4216
    %v4218 = vmul.f32 %v4214, %v58
    %v4219 = vmul.f32 %v4217, %v58
    %v4220 = vadd.f32 %v4218, 1e-06
    %v4221 = vadd.f32 %v4219, 1e-06
    %v4222 = vrsqrt.pop %v4220
    %v4223 = vrsqrt.pop %v4221
    %v4224 = vmul.f32 %v4206, %v4222
    %v4225 = vmul.f32 %v4207, %v4223
    %v4227 = vlaneseq
    %v4228 = vshrl.u32 %v4227, 7
    %v4229 = vsub.s32 0, %v4228
    %v4230 = vrot.slane %v4209, %v4229
    %v4232 = vmul.f32 %v4224, %v4230
    %v4233 = vmul.f32 %v4225, %v4230
    %v4234 = vpack.c.bf16 %v4233, %v4232
    %s4235 = scalar_lea.vmem %s8, 128
    %v4236 = vld [vmem:[%s4235] sm:$0xff]
    %v4237 = vld [vmem:[%s4235 + $0x8] sm:$0xff]
    %v4238 = vld [vmem:[%s4235 + $0x10] sm:$0xff]
    %v4239 = vld [vmem:[%s4235 + $0x18] sm:$0xff]
    %v4240 = vld [vmem:[%s4235 + $0x20] sm:$0xff]
    %v4241 = vld [vmem:[%s4235 + $0x28] sm:$0xff]
    %v4242 = vld [vmem:[%s4235 + $0x30] sm:$0xff]
    %v4243 = vld [vmem:[%s4235 + $0x38] sm:$0xff]
    %v4252 = vunpack.c.l.b16 %v4236
    %v4253 = vunpack.c.h.b16 %v4236
    %v4254 = vunpack.c.l.b16 %v4237
    %v4255 = vunpack.c.h.b16 %v4237
    %v4256 = vunpack.c.l.b16 %v4238
    %v4257 = vunpack.c.h.b16 %v4238
    %v4258 = vunpack.c.l.b16 %v4239
    %v4259 = vunpack.c.h.b16 %v4239
    %v4260 = vunpack.c.l.b16 %v4240
    %v4261 = vunpack.c.h.b16 %v4240
    %v4262 = vunpack.c.l.b16 %v4241
    %v4263 = vunpack.c.h.b16 %v4241
    %v4264 = vunpack.c.l.b16 %v4242
    %v4265 = vunpack.c.h.b16 %v4242
    %v4266 = vunpack.c.l.b16 %v4243
    %v4267 = vunpack.c.h.b16 %v4243
    %v4268 = vpack.c.b16 %v4254, %v4252
    %v4269 = vpack.c.b16 %v4255, %v4253
    %v4270 = vpack.c.b16 %v4258, %v4256
    %v4271 = vpack.c.b16 %v4259, %v4257
    %v4272 = vpack.c.b16 %v4262, %v4260
    %v4273 = vpack.c.b16 %v4263, %v4261
    %v4274 = vpack.c.b16 %v4266, %v4264
    %v4275 = vpack.c.b16 %v4267, %v4265
    %v4285 = vsel %vm51, %v4234, 0
    %4287 = vmatprep.subr.bf16.mxu0 %v4269
    %4288 = vmatpush1.bf16.msra.mxu0 %v4268
    %4289 = vmatprep.subr.bf16.mxu0 %v4271
    %4290 = vmatpush1.bf16.msra.mxu0 %v4270
    %4291 = vmatprep.subr.bf16.mxu0 %v4273
    %4292 = vmatpush1.bf16.msra.mxu0 %v4272
    %4293 = vmatprep.subr.bf16.mxu0 %v4275
    %4294 = vmatpush1.bf16.msra.mxu0 %v4274
    %4295 = vmatprep.subr.bf16.mxu0 0
    %4296 = vmatpush1.bf16.msra.mxu0 0
    %4297 = vmatprep.subr.bf16.mxu0 0
    %4298 = vmatpush1.bf16.msra.mxu0 0
    %4299 = vmatprep.subr.bf16.mxu0 0
    %4300 = vmatpush1.bf16.msra.mxu0 0
    %4301 = vmatprep.subr.bf16.mxu0 0
    %4302 = vmatpush1.bf16.msra.mxu0 0
    %4303 = vmatprep.subr.bf16.mxu0 0
    %4304 = vmatpush1.bf16.msra.mxu0 0
    %4305 = vmatprep.subr.bf16.mxu0 0
    %4306 = vmatpush1.bf16.msra.mxu0 0
    %4307 = vmatprep.subr.bf16.mxu0 0
    %4308 = vmatpush1.bf16.msra.mxu0 0
    %4309 = vmatprep.subr.bf16.mxu0 0
    %4310 = vmatpush1.bf16.msra.mxu0 0
    %4311 = vmatprep.subr.bf16.mxu0 0
    %4312 = vmatpush1.bf16.msra.mxu0 0
    %4313 = vmatprep.subr.bf16.mxu0 0
    %4314 = vmatpush1.bf16.msra.mxu0 0
    %4315 = vmatprep.subr.bf16.mxu0 0
    %4316 = vmatpush1.bf16.msra.mxu0 0
    %4317 = vmatprep.subr.bf16.mxu0 0
    %4318 = vmatpush1.bf16.msra.mxu0 0
    %4319 = vmatprep.mubr.bf16.mxu0 0
    %4320 = vmatmul.mubr.bf16.gmra.mrb[0].mxu0 %v4285
    %v4321 = vpop.f32.mrb[0].mxu0
    %v4322 = vadd.f32 0.0, %v4321
    %v4323 = vpop.f32.mrb[0].mxu0
    %v4324 = vadd.f32 0.0, %v4323
    %v4325 = vpop.f32.mrb[0].mxu0
    %v4326 = vadd.f32 0.0, %v4325
    %v4327 = vpop.f32.mrb[0].mxu0
    %v4328 = vadd.f32 0.0, %v4327
    %4329 = vdwg.mxu0
    %v4330 = vxor.u32 %v4322, 2147483648
    %v4331 = vxor.u32 %v4326, 2147483648
    %v4332 = vmul.f32 %v4330, 1.442695
    %v4333 = vpow.pop %v4332
    %v4334 = vmul.f32 %v4331, 1.442695
    %v4335 = vpow.pop %v4334
    %v4336 = vadd.f32 %v4333, 1.0
    %v4337 = vadd.f32 %v4335, 1.0
    %v4338 = vrcp.pop %v4336
    %v4339 = vmul.f32 1.0, %v4338
    %v4340 = vrcp.pop %v4337
    %v4341 = vmul.f32 1.0, %v4340
    %v4342 = vmul.f32 %v4322, %v4339
    %v4343 = vmul.f32 %v4326, %v4341
    %v4344 = vmul.f32 %v4342, %v4324
    %v4345 = vmul.f32 %v4343, %v4328
    %v4346 = vpack.c.bf16 %v4345, %v4344
    %s4347 = scalar_lea.vmem %s9, 128
    %v4348 = vld [vmem:[%s4347] sm:$0xf]
    %v4349 = vld [vmem:[%s4347 + $0x4] sm:$0xf]
    %v4350 = vld [vmem:[%s4347 + $0x8] sm:$0xf]
    %v4351 = vld [vmem:[%s4347 + $0xc] sm:$0xf]
    %v4352 = vld [vmem:[%s4347 + $0x10] sm:$0xf]
    %v4353 = vld [vmem:[%s4347 + $0x14] sm:$0xf]
    %v4354 = vld [vmem:[%s4347 + $0x18] sm:$0xf]
    %v4355 = vld [vmem:[%s4347 + $0x1c] sm:$0xf]
    %v4356 = vld [vmem:[%s4347 + $0x20] sm:$0xf]
    %v4357 = vld [vmem:[%s4347 + $0x24] sm:$0xf]
    %v4358 = vld [vmem:[%s4347 + $0x28] sm:$0xf]
    %v4359 = vld [vmem:[%s4347 + $0x2c] sm:$0xf]
    %v4360 = vld [vmem:[%s4347 + $0x30] sm:$0xf]
    %v4361 = vld [vmem:[%s4347 + $0x34] sm:$0xf]
    %v4362 = vld [vmem:[%s4347 + $0x38] sm:$0xf]
    %v4363 = vld [vmem:[%s4347 + $0x3c] sm:$0xf]
    %v4380 = vunpack.c.l.b16 %v4348
    %v4381 = vunpack.c.l.b16 %v4349
    %v4382 = vunpack.c.l.b16 %v4350
    %v4383 = vunpack.c.l.b16 %v4351
    %v4384 = vunpack.c.l.b16 %v4352
    %v4385 = vunpack.c.l.b16 %v4353
    %v4386 = vunpack.c.l.b16 %v4354
    %v4387 = vunpack.c.l.b16 %v4355
    %v4388 = vunpack.c.l.b16 %v4356
    %v4389 = vunpack.c.l.b16 %v4357
    %v4390 = vunpack.c.l.b16 %v4358
    %v4391 = vunpack.c.l.b16 %v4359
    %v4392 = vunpack.c.l.b16 %v4360
    %v4393 = vunpack.c.l.b16 %v4361
    %v4394 = vunpack.c.l.b16 %v4362
    %v4395 = vunpack.c.l.b16 %v4363
    %v4396 = vpack.c.b16 %v4381, %v4380
    %v4397 = vpack.c.b16 %v4383, %v4382
    %v4398 = vpack.c.b16 %v4385, %v4384
    %v4399 = vpack.c.b16 %v4387, %v4386
    %v4400 = vpack.c.b16 %v4389, %v4388
    %v4401 = vpack.c.b16 %v4391, %v4390
    %v4402 = vpack.c.b16 %v4393, %v4392
    %v4403 = vpack.c.b16 %v4395, %v4394
    %4412 = vmatprep.subr.bf16.mxu0 0
    %4413 = vmatpush1.bf16.msra.mxu0 %v4396
    %4414 = vmatprep.subr.bf16.mxu0 0
    %4415 = vmatpush1.bf16.msra.mxu0 %v4397
    %4416 = vmatprep.subr.bf16.mxu0 0
    %4417 = vmatpush1.bf16.msra.mxu0 %v4398
    %4418 = vmatprep.subr.bf16.mxu0 0
    %4419 = vmatpush1.bf16.msra.mxu0 %v4399
    %4420 = vmatprep.subr.bf16.mxu0 0
    %4421 = vmatpush1.bf16.msra.mxu0 %v4400
    %4422 = vmatprep.subr.bf16.mxu0 0
    %4423 = vmatpush1.bf16.msra.mxu0 %v4401
    %4424 = vmatprep.subr.bf16.mxu0 0
    %4425 = vmatpush1.bf16.msra.mxu0 %v4402
    %4426 = vmatprep.subr.bf16.mxu0 0
    %4427 = vmatpush1.bf16.msra.mxu0 %v4403
    %4428 = vmatprep.subr.bf16.mxu0 0
    %4429 = vmatpush1.bf16.msra.mxu0 0
    %4430 = vmatprep.subr.bf16.mxu0 0
    %4431 = vmatpush1.bf16.msra.mxu0 0
    %4432 = vmatprep.subr.bf16.mxu0 0
    %4433 = vmatpush1.bf16.msra.mxu0 0
    %4434 = vmatprep.subr.bf16.mxu0 0
    %4435 = vmatpush1.bf16.msra.mxu0 0
    %4436 = vmatprep.subr.bf16.mxu0 0
    %4437 = vmatpush1.bf16.msra.mxu0 0
    %4438 = vmatprep.subr.bf16.mxu0 0
    %4439 = vmatpush1.bf16.msra.mxu0 0
    %4440 = vmatprep.subr.bf16.mxu0 0
    %4441 = vmatpush1.bf16.msra.mxu0 0
    %4442 = vmatprep.subr.bf16.mxu0 0
    %4443 = vmatpush1.bf16.msra.mxu0 0
    %4444 = vmatprep.mubr.bf16.mxu0 0
    %4445 = vmatmul.mubr.bf16.gmra.mrb[0].mxu0 %v4346
    %v4446 = vpop.f32.mrb[0].mxu0
    %v4447 = vadd.f32 0.0, %v4446
    %v4448 = vpop.f32.mrb[0].mxu0
    %v4449 = vpop.f32.mrb[0].mxu0
    %v4450 = vadd.f32 0.0, %v4449
    %v4451 = vpop.f32.mrb[0].mxu0
    %4452 = vdwg.mxu0
    %v4453 = vadd.f32 %v4206, %v4447
    %v4454 = vadd.f32 %v4207, %v4450
    %s4455 = scalar_lea.vmem %s4, 3
    %v4456 = vld [vmem:[%s4455] sm:$0x1]
    %v4457 = vmul.f32 %v4453, %v4453
    %v4458 = vmul.f32 %v4454, %v4454
    %v4459 = vsel %vm51, %v4457, 0.0
    %4460 = vadd.xlane.f32.xlu0 %v4459
    %v4461 = vpop.xlane.xlu0 %4460
    %v4462 = vsel %vm51, %v4458, 0.0
    %4463 = vadd.xlane.f32.xlu0 %v4462
    %v4464 = vpop.xlane.xlu0 %4463
    %v4465 = vmul.f32 %v4461, %v58
    %v4466 = vmul.f32 %v4464, %v58
    %v4467 = vadd.f32 %v4465, 1e-06
    %v4468 = vadd.f32 %v4466, 1e-06
    %v4469 = vrsqrt.pop %v4467
    %v4470 = vrsqrt.pop %v4468
    %v4471 = vmul.f32 %v4453, %v4469
    %v4472 = vmul.f32 %v4454, %v4470
    %v4474 = vlaneseq
    %v4475 = vshrl.u32 %v4474, 7
    %v4476 = vsub.s32 0, %v4475
    %v4477 = vrot.slane %v4456, %v4476
    %v4479 = vmul.f32 %v4471, %v4477
    %v4480 = vmul.f32 %v4472, %v4477
    %v4481 = vpack.c.bf16 %v4480, %v4479
    %s4482 = scalar_lea.vmem %s5, 288
    %v4483 = vld [vmem:[%s4482] sm:$0xff]
    %v4484 = vld [vmem:[%s4482 + $0x8] sm:$0xf]
    %v4485 = vld [vmem:[%s4482 + $0xc] sm:$0xff]
    %v4486 = vld [vmem:[%s4482 + $0x14] sm:$0xf]
    %v4487 = vld [vmem:[%s4482 + $0x18] sm:$0xff]
    %v4488 = vld [vmem:[%s4482 + $0x20] sm:$0xf]
    %v4489 = vld [vmem:[%s4482 + $0x24] sm:$0xff]
    %v4490 = vld [vmem:[%s4482 + $0x2c] sm:$0xf]
    %v4491 = vld [vmem:[%s4482 + $0x30] sm:$0xff]
    %v4492 = vld [vmem:[%s4482 + $0x38] sm:$0xf]
    %v4493 = vld [vmem:[%s4482 + $0x3c] sm:$0xff]
    %v4494 = vld [vmem:[%s4482 + $0x44] sm:$0xf]
    %v4495 = vld [vmem:[%s4482 + $0x48] sm:$0xff]
    %v4496 = vld [vmem:[%s4482 + $0x50] sm:$0xf]
    %v4497 = vld [vmem:[%s4482 + $0x54] sm:$0xff]
    %v4498 = vld [vmem:[%s4482 + $0x5c] sm:$0xf]
    %v4515 = vunpack.c.l.b16 %v4483
    %v4516 = vunpack.c.h.b16 %v4483
    %v4517 = vunpack.c.l.b16 %v4484
    %v4518 = vunpack.c.l.b16 %v4485
    %v4519 = vunpack.c.h.b16 %v4485
    %v4520 = vunpack.c.l.b16 %v4486
    %v4521 = vunpack.c.l.b16 %v4487
    %v4522 = vunpack.c.h.b16 %v4487
    %v4523 = vunpack.c.l.b16 %v4488
    %v4524 = vunpack.c.l.b16 %v4489
    %v4525 = vunpack.c.h.b16 %v4489
    %v4526 = vunpack.c.l.b16 %v4490
    %v4527 = vunpack.c.l.b16 %v4491
    %v4528 = vunpack.c.h.b16 %v4491
    %v4529 = vunpack.c.l.b16 %v4492
    %v4530 = vunpack.c.l.b16 %v4493
    %v4531 = vunpack.c.h.b16 %v4493
    %v4532 = vunpack.c.l.b16 %v4494
    %v4533 = vunpack.c.l.b16 %v4495
    %v4534 = vunpack.c.h.b16 %v4495
    %v4535 = vunpack.c.l.b16 %v4496
    %v4536 = vunpack.c.l.b16 %v4497
    %v4537 = vunpack.c.h.b16 %v4497
    %v4538 = vunpack.c.l.b16 %v4498
    %v4539 = vpack.c.b16 %v4518, %v4515
    %v4540 = vpack.c.b16 %v4519, %v4516
    %v4541 = vpack.c.b16 %v4520, %v4517
    %v4542 = vpack.c.b16 %v4524, %v4521
    %v4543 = vpack.c.b16 %v4525, %v4522
    %v4544 = vpack.c.b16 %v4526, %v4523
    %v4545 = vpack.c.b16 %v4530, %v4527
    %v4546 = vpack.c.b16 %v4531, %v4528
    %v4547 = vpack.c.b16 %v4532, %v4529
    %v4548 = vpack.c.b16 %v4536, %v4533
    %v4549 = vpack.c.b16 %v4537, %v4534
    %v4550 = vpack.c.b16 %v4538, %v4535
    %v4564 = vsel %vm51, %v4481, 0
    %4566 = vmatprep.subr.bf16.mxu0 %v4540
    %4567 = vmatpush1.bf16.msra.mxu0 %v4539
    %4568 = vmatprep.subr.bf16.mxu0 %v4543
    %4569 = vmatpush1.bf16.msra.mxu0 %v4542
    %4570 = vmatprep.subr.bf16.mxu0 %v4546
    %4571 = vmatpush1.bf16.msra.mxu0 %v4545
    %4572 = vmatprep.subr.bf16.mxu0 %v4549
    %4573 = vmatpush1.bf16.msra.mxu0 %v4548
    %4574 = vmatprep.subr.bf16.mxu0 0
    %4575 = vmatpush1.bf16.msra.mxu0 0
    %4576 = vmatprep.subr.bf16.mxu0 0
    %4577 = vmatpush1.bf16.msra.mxu0 0
    %4578 = vmatprep.subr.bf16.mxu0 0
    %4579 = vmatpush1.bf16.msra.mxu0 0
    %4580 = vmatprep.subr.bf16.mxu0 0
    %4581 = vmatpush1.bf16.msra.mxu0 0
    %4582 = vmatprep.subr.bf16.mxu0 0
    %4583 = vmatpush1.bf16.msra.mxu0 0
    %4584 = vmatprep.subr.bf16.mxu0 0
    %4585 = vmatpush1.bf16.msra.mxu0 0
    %4586 = vmatprep.subr.bf16.mxu0 0
    %4587 = vmatpush1.bf16.msra.mxu0 0
    %4588 = vmatprep.subr.bf16.mxu0 0
    %4589 = vmatpush1.bf16.msra.mxu0 0
    %4590 = vmatprep.subr.bf16.mxu0 0
    %4591 = vmatpush1.bf16.msra.mxu0 0
    %4592 = vmatprep.subr.bf16.mxu0 0
    %4593 = vmatpush1.bf16.msra.mxu0 0
    %4594 = vmatprep.subr.bf16.mxu0 0
    %4595 = vmatpush1.bf16.msra.mxu0 0
    %4596 = vmatprep.subr.bf16.mxu0 0
    %4597 = vmatpush1.bf16.msra.mxu0 0
    %4598 = vmatprep.mubr.bf16.mxu0 0
    %4599 = vmatmul.mubr.bf16.gmra.mrb[0].mxu0 %v4564
    %v4600 = vpop.f32.mrb[0].mxu0
    %v4601 = vadd.f32 0.0, %v4600
    %v4602 = vpop.f32.mrb[0].mxu0
    %v4603 = vadd.f32 0.0, %v4602
    %v4604 = vpop.f32.mrb[0].mxu0
    %v4605 = vadd.f32 0.0, %v4604
    %v4606 = vpop.f32.mrb[0].mxu0
    %v4607 = vadd.f32 0.0, %v4606
    %4608 = vdwg.mxu0
    %4609 = vmatprep.subr.bf16.mxu0 0
    %4610 = vmatpush1.bf16.msra.mxu0 %v4541
    %4611 = vmatprep.subr.bf16.mxu0 0
    %4612 = vmatpush1.bf16.msra.mxu0 %v4544
    %4613 = vmatprep.subr.bf16.mxu0 0
    %4614 = vmatpush1.bf16.msra.mxu0 %v4547
    %4615 = vmatprep.subr.bf16.mxu0 0
    %4616 = vmatpush1.bf16.msra.mxu0 %v4550
    %4617 = vmatprep.subr.bf16.mxu0 0
    %4618 = vmatpush1.bf16.msra.mxu0 0
    %4619 = vmatprep.subr.bf16.mxu0 0
    %4620 = vmatpush1.bf16.msra.mxu0 0
    %4621 = vmatprep.subr.bf16.mxu0 0
    %4622 = vmatpush1.bf16.msra.mxu0 0
    %4623 = vmatprep.subr.bf16.mxu0 0
    %4624 = vmatpush1.bf16.msra.mxu0 0
    %4625 = vmatprep.subr.bf16.mxu0 0
    %4626 = vmatpush1.bf16.msra.mxu0 0
    %4627 = vmatprep.subr.bf16.mxu0 0
    %4628 = vmatpush1.bf16.msra.mxu0 0
    %4629 = vmatprep.subr.bf16.mxu0 0
    %4630 = vmatpush1.bf16.msra.mxu0 0
    %4631 = vmatprep.subr.bf16.mxu0 0
    %4632 = vmatpush1.bf16.msra.mxu0 0
    %4633 = vmatprep.subr.bf16.mxu0 0
    %4634 = vmatpush1.bf16.msra.mxu0 0
    %4635 = vmatprep.subr.bf16.mxu0 0
    %4636 = vmatpush1.bf16.msra.mxu0 0
    %4637 = vmatprep.subr.bf16.mxu0 0
    %4638 = vmatpush1.bf16.msra.mxu0 0
    %4639 = vmatprep.subr.bf16.mxu0 0
    %4640 = vmatpush1.bf16.msra.mxu0 0
    %4641 = vmatprep.mubr.bf16.mxu0 0
    %4642 = vmatmul.mubr.bf16.gmra.mrb[0].mxu0 %v4564
    %v4643 = vpop.f32.mrb[0].mxu0
    %v4644 = vadd.f32 0.0, %v4643
    %v4645 = vpop.f32.mrb[0].mxu0
    %v4646 = vpop.f32.mrb[0].mxu0
    %v4647 = vadd.f32 0.0, %v4646
    %v4648 = vpop.f32.mrb[0].mxu0
    %4649 = vdwg.mxu0
    %v4650 = vmul.f32 %v4601, %v42
    %v4651 = vmul.f32 %v4605, %v43
    %v4652 = vmul.f32 %v4601, %v248
    %v4653 = vmul.f32 %v4605, %v250
    %4656 = vrot.lane.b32.xlu0 %v4652, 64
    %v4657 = vpop.permute.xlu0 %4656
    %4658 = vrot.lane.b32.xlu0 %v4653, 64
    %v4659 = vpop.permute.xlu0 %4658
    %v4662 = vadd.f32 %v4650, %v4657
    %v4663 = vadd.f32 %v4651, %v4659
    %v4664 = vmul.f32 %v4603, %v42
    %v4665 = vmul.f32 %v4607, %v43
    %v4666 = vmul.f32 %v4603, %v248
    %v4667 = vmul.f32 %v4607, %v250
    %4670 = vrot.lane.b32.xlu0 %v4666, 64
    %v4671 = vpop.permute.xlu0 %4670
    %4672 = vrot.lane.b32.xlu0 %v4667, 64
    %v4673 = vpop.permute.xlu0 %4672
    %v4676 = vadd.f32 %v4664, %v4671
    %v4677 = vadd.f32 %v4665, %v4673
    %v4678 = vpack.c.bf16 %v4663, %v4662
    %v4680 = vunpack.c.l.b16 %v4678
    %v4681 = vunpack.c.h.b16 %v4678
    %v4682 = vpack.c.b16 %v4680, %v4680
    %v4683 = vpack.c.b16 %v4681, %v4681
    %v4684 = vpack.c.bf16 %v4677, %v4676
    %v4686 = vunpack.c.l.b16 %v4684
    %v4687 = vunpack.c.h.b16 %v4684
    %v4688 = vpack.c.b16 %v4686, %v4686
    %v4689 = vpack.c.b16 %v4687, %v4687
    %v4690 = vpack.c.bf16 %v4647, %v4644
    %v4692 = vunpack.c.l.b16 %v4690
    %v4693 = vunpack.c.h.b16 %v4690
    %v4694 = vpack.c.b16 %v4692, %v4692
    %v4695 = vpack.c.b16 %v4693, %v4693
    %v4697 = vsel %vm297, %v4682, 0
    %v4700 = vsel %vm297, %v4688, 0
    %4702 = vmatprep.subr.bf16.mxu0 0
    %4703 = vmatpush1.bf16.xpose.msra.mxu0 %v4700
    %4704 = vmatprep.subr.bf16.mxu0 0
    %4705 = vmatpush1.bf16.xpose.msra.mxu0 0
    %4706 = vmatprep.subr.bf16.mxu0 0
    %4707 = vmatpush1.bf16.xpose.msra.mxu0 0
    %4708 = vmatprep.subr.bf16.mxu0 0
    %4709 = vmatpush1.bf16.xpose.msra.mxu0 0
    %4710 = vmatprep.subr.bf16.mxu0 0
    %4711 = vmatpush1.bf16.xpose.msra.mxu0 0
    %4712 = vmatprep.subr.bf16.mxu0 0
    %4713 = vmatpush1.bf16.xpose.msra.mxu0 0
    %4714 = vmatprep.subr.bf16.mxu0 0
    %4715 = vmatpush1.bf16.xpose.msra.mxu0 0
    %4716 = vmatprep.subr.bf16.mxu0 0
    %4717 = vmatpush1.bf16.xpose.msra.mxu0 0
    %4718 = vmatprep.subr.bf16.mxu0 0
    %4719 = vmatpush1.bf16.xpose.msra.mxu0 0
    %4720 = vmatprep.subr.bf16.mxu0 0
    %4721 = vmatpush1.bf16.xpose.msra.mxu0 0
    %4722 = vmatprep.subr.bf16.mxu0 0
    %4723 = vmatpush1.bf16.xpose.msra.mxu0 0
    %4724 = vmatprep.subr.bf16.mxu0 0
    %4725 = vmatpush1.bf16.xpose.msra.mxu0 0
    %4726 = vmatprep.subr.bf16.mxu0 0
    %4727 = vmatpush1.bf16.xpose.msra.mxu0 0
    %4728 = vmatprep.subr.bf16.mxu0 0
    %4729 = vmatpush1.bf16.xpose.msra.mxu0 0
    %4730 = vmatprep.subr.bf16.mxu0 0
    %4731 = vmatpush1.bf16.xpose.msra.mxu0 0
    %4732 = vmatprep.subr.bf16.mxu0 0
    %4733 = vmatpush1.bf16.xpose.msra.mxu0 0
    %4734 = vmatprep.mubr.bf16.mxu0 0
    %4735 = vmatmul.mubr.bf16.gmra.mrb[0].mxu0 %v4697
    %v4736 = vpop.f32.mrb[0].mxu0
    %v4737 = vadd.f32 %v46, %v4736
    %v4738 = vpop.f32.mrb[0].mxu0
    %v4739 = vpop.f32.mrb[0].mxu0
    %v4740 = vpop.f32.mrb[0].mxu0
    %4741 = vdwg.mxu0
    %v4743 = vsel %vm297, %v4683, 0
    %v4746 = vsel %vm297, %v4689, 0
    %4748 = vmatprep.subr.bf16.mxu0 0
    %4749 = vmatpush1.bf16.xpose.msra.mxu0 %v4746
    %4750 = vmatprep.subr.bf16.mxu0 0
    %4751 = vmatpush1.bf16.xpose.msra.mxu0 0
    %4752 = vmatprep.subr.bf16.mxu0 0
    %4753 = vmatpush1.bf16.xpose.msra.mxu0 0
    %4754 = vmatprep.subr.bf16.mxu0 0
    %4755 = vmatpush1.bf16.xpose.msra.mxu0 0
    %4756 = vmatprep.subr.bf16.mxu0 0
    %4757 = vmatpush1.bf16.xpose.msra.mxu0 0
    %4758 = vmatprep.subr.bf16.mxu0 0
    %4759 = vmatpush1.bf16.xpose.msra.mxu0 0
    %4760 = vmatprep.subr.bf16.mxu0 0
    %4761 = vmatpush1.bf16.xpose.msra.mxu0 0
    %4762 = vmatprep.subr.bf16.mxu0 0
    %4763 = vmatpush1.bf16.xpose.msra.mxu0 0
    %4764 = vmatprep.subr.bf16.mxu0 0
    %4765 = vmatpush1.bf16.xpose.msra.mxu0 0
    %4766 = vmatprep.subr.bf16.mxu0 0
    %4767 = vmatpush1.bf16.xpose.msra.mxu0 0
    %4768 = vmatprep.subr.bf16.mxu0 0
    %4769 = vmatpush1.bf16.xpose.msra.mxu0 0
    %4770 = vmatprep.subr.bf16.mxu0 0
    %4771 = vmatpush1.bf16.xpose.msra.mxu0 0
    %4772 = vmatprep.subr.bf16.mxu0 0
    %4773 = vmatpush1.bf16.xpose.msra.mxu0 0
    %4774 = vmatprep.subr.bf16.mxu0 0
    %4775 = vmatpush1.bf16.xpose.msra.mxu0 0
    %4776 = vmatprep.subr.bf16.mxu0 0
    %4777 = vmatpush1.bf16.xpose.msra.mxu0 0
    %4778 = vmatprep.subr.bf16.mxu0 0
    %4779 = vmatpush1.bf16.xpose.msra.mxu0 0
    %4780 = vmatprep.mubr.bf16.mxu0 0
    %4781 = vmatmul.mubr.bf16.gmra.mrb[0].mxu0 %v4743
    %v4782 = vpop.f32.mrb[0].mxu0
    %v4783 = vadd.f32 %v47, %v4782
    %v4784 = vpop.f32.mrb[0].mxu0
    %v4785 = vpop.f32.mrb[0].mxu0
    %v4786 = vpop.f32.mrb[0].mxu0
    %4787 = vdwg.mxu0
    %v4788 = vsel %vm390, %v4737, -inf
    %4789 = vmax.xlane.f32.xlu0 %v4788
    %v4790 = vpop.xlane.xlu0 %4789
    %v4791 = vsel %vm390, %v4783, -inf
    %4792 = vmax.xlane.f32.xlu0 %v4791
    %v4793 = vpop.xlane.xlu0 %4792
    %v4794 = vsub.f32 %v4737, %v4790
    %v4795 = vsub.f32 %v4783, %v4793
    %v4796 = vmul.f32 %v4794, 1.442695
    %v4797 = vpow.pop %v4796
    %v4798 = vmul.f32 %v4795, 1.442695
    %v4799 = vpow.pop %v4798
    %v4800 = vsel %vm390, %v4797, 0.0
    %4801 = vadd.xlane.f32.xlu0 %v4800
    %v4802 = vpop.xlane.xlu0 %4801
    %v4803 = vsel %vm390, %v4799, 0.0
    %4804 = vadd.xlane.f32.xlu0 %v4803
    %v4805 = vpop.xlane.xlu0 %4804
    %v4806 = vrcp.pop %v4802
    %v4807 = vrcp.pop %v4805
    %v4808 = vmul.f32 %v4797, %v4806
    %v4809 = vmul.f32 %v4799, %v4807
    %v4810 = vpack.c.bf16 %v4808, %v4808
    %v4811 = vpack.c.bf16 %v4809, %v4809
    %v4813 = vsel %vm390, %v4810, 0
    %v4816 = vsel %vm418, %v4694, 0
    %4818 = vmatprep.subr.bf16.mxu0 0
    %4819 = vmatpush1.bf16.msra.mxu0 %v4816
    %4820 = vmatprep.subr.bf16.mxu0 0
    %4821 = vmatpush1.bf16.msra.mxu0 0
    %4822 = vmatprep.subr.bf16.mxu0 0
    %4823 = vmatpush1.bf16.msra.mxu0 0
    %4824 = vmatprep.subr.bf16.mxu0 0
    %4825 = vmatpush1.bf16.msra.mxu0 0
    %4826 = vmatprep.subr.bf16.mxu0 0
    %4827 = vmatpush1.bf16.msra.mxu0 0
    %4828 = vmatprep.subr.bf16.mxu0 0
    %4829 = vmatpush1.bf16.msra.mxu0 0
    %4830 = vmatprep.subr.bf16.mxu0 0
    %4831 = vmatpush1.bf16.msra.mxu0 0
    %4832 = vmatprep.subr.bf16.mxu0 0
    %4833 = vmatpush1.bf16.msra.mxu0 0
    %4834 = vmatprep.subr.bf16.mxu0 0
    %4835 = vmatpush1.bf16.msra.mxu0 0
    %4836 = vmatprep.subr.bf16.mxu0 0
    %4837 = vmatpush1.bf16.msra.mxu0 0
    %4838 = vmatprep.subr.bf16.mxu0 0
    %4839 = vmatpush1.bf16.msra.mxu0 0
    %4840 = vmatprep.subr.bf16.mxu0 0
    %4841 = vmatpush1.bf16.msra.mxu0 0
    %4842 = vmatprep.subr.bf16.mxu0 0
    %4843 = vmatpush1.bf16.msra.mxu0 0
    %4844 = vmatprep.subr.bf16.mxu0 0
    %4845 = vmatpush1.bf16.msra.mxu0 0
    %4846 = vmatprep.subr.bf16.mxu0 0
    %4847 = vmatpush1.bf16.msra.mxu0 0
    %4848 = vmatprep.subr.bf16.mxu0 0
    %4849 = vmatpush1.bf16.msra.mxu0 0
    %4850 = vmatprep.mubr.bf16.mxu0 0
    %4851 = vmatmul.mubr.bf16.gmra.mrb[0].mxu0 %v4813
    %v4852 = vpop.f32.mrb[0].mxu0
    %v4853 = vadd.f32 0.0, %v4852
    %v4854 = vpop.f32.mrb[0].mxu0
    %v4855 = vpop.f32.mrb[0].mxu0
    %v4856 = vpop.f32.mrb[0].mxu0
    %4857 = vdwg.mxu0
    %v4859 = vsel %vm390, %v4811, 0
    %v4862 = vsel %vm418, %v4695, 0
    %4864 = vmatprep.subr.bf16.mxu0 0
    %4865 = vmatpush1.bf16.msra.mxu0 %v4862
    %4866 = vmatprep.subr.bf16.mxu0 0
    %4867 = vmatpush1.bf16.msra.mxu0 0
    %4868 = vmatprep.subr.bf16.mxu0 0
    %4869 = vmatpush1.bf16.msra.mxu0 0
    %4870 = vmatprep.subr.bf16.mxu0 0
    %4871 = vmatpush1.bf16.msra.mxu0 0
    %4872 = vmatprep.subr.bf16.mxu0 0
    %4873 = vmatpush1.bf16.msra.mxu0 0
    %4874 = vmatprep.subr.bf16.mxu0 0
    %4875 = vmatpush1.bf16.msra.mxu0 0
    %4876 = vmatprep.subr.bf16.mxu0 0
    %4877 = vmatpush1.bf16.msra.mxu0 0
    %4878 = vmatprep.subr.bf16.mxu0 0
    %4879 = vmatpush1.bf16.msra.mxu0 0
    %4880 = vmatprep.subr.bf16.mxu0 0
    %4881 = vmatpush1.bf16.msra.mxu0 0
    %4882 = vmatprep.subr.bf16.mxu0 0
    %4883 = vmatpush1.bf16.msra.mxu0 0
    %4884 = vmatprep.subr.bf16.mxu0 0
    %4885 = vmatpush1.bf16.msra.mxu0 0
    %4886 = vmatprep.subr.bf16.mxu0 0
    %4887 = vmatpush1.bf16.msra.mxu0 0
    %4888 = vmatprep.subr.bf16.mxu0 0
    %4889 = vmatpush1.bf16.msra.mxu0 0
    %4890 = vmatprep.subr.bf16.mxu0 0
    %4891 = vmatpush1.bf16.msra.mxu0 0
    %4892 = vmatprep.subr.bf16.mxu0 0
    %4893 = vmatpush1.bf16.msra.mxu0 0
    %4894 = vmatprep.subr.bf16.mxu0 0
    %4895 = vmatpush1.bf16.msra.mxu0 0
    %4896 = vmatprep.mubr.bf16.mxu0 0
    %4897 = vmatmul.mubr.bf16.gmra.mrb[0].mxu0 %v4859
    %v4898 = vpop.f32.mrb[0].mxu0
    %v4899 = vadd.f32 0.0, %v4898
    %v4900 = vpop.f32.mrb[0].mxu0
    %v4901 = vpop.f32.mrb[0].mxu0
    %v4902 = vpop.f32.mrb[0].mxu0
    %4903 = vdwg.mxu0
    %4904 = vrot.lane.b32.xlu0 %v4682, 112
    %v4905 = vpop.permute.xlu0 %4904
    %4906 = vrot.lane.b32.xlu0 %v4688, 112
    %v4907 = vpop.permute.xlu0 %4906
    %v4909 = vsel %vm297, %v4905, 0
    %v4912 = vsel %vm297, %v4907, 0
    %4914 = vmatprep.subr.bf16.mxu0 0
    %4915 = vmatpush1.bf16.xpose.msra.mxu0 %v4912
    %4916 = vmatprep.subr.bf16.mxu0 0
    %4917 = vmatpush1.bf16.xpose.msra.mxu0 0
    %4918 = vmatprep.subr.bf16.mxu0 0
    %4919 = vmatpush1.bf16.xpose.msra.mxu0 0
    %4920 = vmatprep.subr.bf16.mxu0 0
    %4921 = vmatpush1.bf16.xpose.msra.mxu0 0
    %4922 = vmatprep.subr.bf16.mxu0 0
    %4923 = vmatpush1.bf16.xpose.msra.mxu0 0
    %4924 = vmatprep.subr.bf16.mxu0 0
    %4925 = vmatpush1.bf16.xpose.msra.mxu0 0
    %4926 = vmatprep.subr.bf16.mxu0 0
    %4927 = vmatpush1.bf16.xpose.msra.mxu0 0
    %4928 = vmatprep.subr.bf16.mxu0 0
    %4929 = vmatpush1.bf16.xpose.msra.mxu0 0
    %4930 = vmatprep.subr.bf16.mxu0 0
    %4931 = vmatpush1.bf16.xpose.msra.mxu0 0
    %4932 = vmatprep.subr.bf16.mxu0 0
    %4933 = vmatpush1.bf16.xpose.msra.mxu0 0
    %4934 = vmatprep.subr.bf16.mxu0 0
    %4935 = vmatpush1.bf16.xpose.msra.mxu0 0
    %4936 = vmatprep.subr.bf16.mxu0 0
    %4937 = vmatpush1.bf16.xpose.msra.mxu0 0
    %4938 = vmatprep.subr.bf16.mxu0 0
    %4939 = vmatpush1.bf16.xpose.msra.mxu0 0
    %4940 = vmatprep.subr.bf16.mxu0 0
    %4941 = vmatpush1.bf16.xpose.msra.mxu0 0
    %4942 = vmatprep.subr.bf16.mxu0 0
    %4943 = vmatpush1.bf16.xpose.msra.mxu0 0
    %4944 = vmatprep.subr.bf16.mxu0 0
    %4945 = vmatpush1.bf16.xpose.msra.mxu0 0
    %4946 = vmatprep.mubr.bf16.mxu0 0
    %4947 = vmatmul.mubr.bf16.gmra.mrb[0].mxu0 %v4909
    %v4948 = vpop.f32.mrb[0].mxu0
    %v4949 = vadd.f32 %v46, %v4948
    %v4950 = vpop.f32.mrb[0].mxu0
    %v4951 = vpop.f32.mrb[0].mxu0
    %v4952 = vpop.f32.mrb[0].mxu0
    %4953 = vdwg.mxu0
    %4954 = vrot.lane.b32.xlu0 %v4683, 112
    %v4955 = vpop.permute.xlu0 %4954
    %4956 = vrot.lane.b32.xlu0 %v4689, 112
    %v4957 = vpop.permute.xlu0 %4956
    %v4959 = vsel %vm297, %v4955, 0
    %v4962 = vsel %vm297, %v4957, 0
    %4964 = vmatprep.subr.bf16.mxu0 0
    %4965 = vmatpush1.bf16.xpose.msra.mxu0 %v4962
    %4966 = vmatprep.subr.bf16.mxu0 0
    %4967 = vmatpush1.bf16.xpose.msra.mxu0 0
    %4968 = vmatprep.subr.bf16.mxu0 0
    %4969 = vmatpush1.bf16.xpose.msra.mxu0 0
    %4970 = vmatprep.subr.bf16.mxu0 0
    %4971 = vmatpush1.bf16.xpose.msra.mxu0 0
    %4972 = vmatprep.subr.bf16.mxu0 0
    %4973 = vmatpush1.bf16.xpose.msra.mxu0 0
    %4974 = vmatprep.subr.bf16.mxu0 0
    %4975 = vmatpush1.bf16.xpose.msra.mxu0 0
    %4976 = vmatprep.subr.bf16.mxu0 0
    %4977 = vmatpush1.bf16.xpose.msra.mxu0 0
    %4978 = vmatprep.subr.bf16.mxu0 0
    %4979 = vmatpush1.bf16.xpose.msra.mxu0 0
    %4980 = vmatprep.subr.bf16.mxu0 0
    %4981 = vmatpush1.bf16.xpose.msra.mxu0 0
    %4982 = vmatprep.subr.bf16.mxu0 0
    %4983 = vmatpush1.bf16.xpose.msra.mxu0 0
    %4984 = vmatprep.subr.bf16.mxu0 0
    %4985 = vmatpush1.bf16.xpose.msra.mxu0 0
    %4986 = vmatprep.subr.bf16.mxu0 0
    %4987 = vmatpush1.bf16.xpose.msra.mxu0 0
    %4988 = vmatprep.subr.bf16.mxu0 0
    %4989 = vmatpush1.bf16.xpose.msra.mxu0 0
    %4990 = vmatprep.subr.bf16.mxu0 0
    %4991 = vmatpush1.bf16.xpose.msra.mxu0 0
    %4992 = vmatprep.subr.bf16.mxu0 0
    %4993 = vmatpush1.bf16.xpose.msra.mxu0 0
    %4994 = vmatprep.subr.bf16.mxu0 0
    %4995 = vmatpush1.bf16.xpose.msra.mxu0 0
    %4996 = vmatprep.mubr.bf16.mxu0 0
    %4997 = vmatmul.mubr.bf16.gmra.mrb[0].mxu0 %v4959
    %v4998 = vpop.f32.mrb[0].mxu0
    %v4999 = vadd.f32 %v47, %v4998
    %v5000 = vpop.f32.mrb[0].mxu0
    %v5001 = vpop.f32.mrb[0].mxu0
    %v5002 = vpop.f32.mrb[0].mxu0
    %5003 = vdwg.mxu0
    %v5004 = vsel %vm390, %v4949, -inf
    %5005 = vmax.xlane.f32.xlu0 %v5004
    %v5006 = vpop.xlane.xlu0 %5005
    %v5007 = vsel %vm390, %v4999, -inf
    %5008 = vmax.xlane.f32.xlu0 %v5007
    %v5009 = vpop.xlane.xlu0 %5008
    %v5010 = vsub.f32 %v4949, %v5006
    %v5011 = vsub.f32 %v4999, %v5009
    %v5012 = vmul.f32 %v5010, 1.442695
    %v5013 = vpow.pop %v5012
    %v5014 = vmul.f32 %v5011, 1.442695
    %v5015 = vpow.pop %v5014
    %v5016 = vsel %vm390, %v5013, 0.0
    %5017 = vadd.xlane.f32.xlu0 %v5016
    %v5018 = vpop.xlane.xlu0 %5017
    %v5019 = vsel %vm390, %v5015, 0.0
    %5020 = vadd.xlane.f32.xlu0 %v5019
    %v5021 = vpop.xlane.xlu0 %5020
    %v5022 = vrcp.pop %v5018
    %v5023 = vrcp.pop %v5021
    %v5024 = vmul.f32 %v5013, %v5022
    %v5025 = vmul.f32 %v5015, %v5023
    %v5026 = vpack.c.bf16 %v5024, %v5024
    %v5027 = vpack.c.bf16 %v5025, %v5025
    %5028 = vrot.lane.b32.xlu0 %v4694, 112
    %v5029 = vpop.permute.xlu0 %5028
    %v5031 = vsel %vm390, %v5026, 0
    %v5034 = vsel %vm418, %v5029, 0
    %5036 = vmatprep.subr.bf16.mxu0 0
    %5037 = vmatpush1.bf16.msra.mxu0 %v5034
    %5038 = vmatprep.subr.bf16.mxu0 0
    %5039 = vmatpush1.bf16.msra.mxu0 0
    %5040 = vmatprep.subr.bf16.mxu0 0
    %5041 = vmatpush1.bf16.msra.mxu0 0
    %5042 = vmatprep.subr.bf16.mxu0 0
    %5043 = vmatpush1.bf16.msra.mxu0 0
    %5044 = vmatprep.subr.bf16.mxu0 0
    %5045 = vmatpush1.bf16.msra.mxu0 0
    %5046 = vmatprep.subr.bf16.mxu0 0
    %5047 = vmatpush1.bf16.msra.mxu0 0
    %5048 = vmatprep.subr.bf16.mxu0 0
    %5049 = vmatpush1.bf16.msra.mxu0 0
    %5050 = vmatprep.subr.bf16.mxu0 0
    %5051 = vmatpush1.bf16.msra.mxu0 0
    %5052 = vmatprep.subr.bf16.mxu0 0
    %5053 = vmatpush1.bf16.msra.mxu0 0
    %5054 = vmatprep.subr.bf16.mxu0 0
    %5055 = vmatpush1.bf16.msra.mxu0 0
    %5056 = vmatprep.subr.bf16.mxu0 0
    %5057 = vmatpush1.bf16.msra.mxu0 0
    %5058 = vmatprep.subr.bf16.mxu0 0
    %5059 = vmatpush1.bf16.msra.mxu0 0
    %5060 = vmatprep.subr.bf16.mxu0 0
    %5061 = vmatpush1.bf16.msra.mxu0 0
    %5062 = vmatprep.subr.bf16.mxu0 0
    %5063 = vmatpush1.bf16.msra.mxu0 0
    %5064 = vmatprep.subr.bf16.mxu0 0
    %5065 = vmatpush1.bf16.msra.mxu0 0
    %5066 = vmatprep.subr.bf16.mxu0 0
    %5067 = vmatpush1.bf16.msra.mxu0 0
    %5068 = vmatprep.mubr.bf16.mxu0 0
    %5069 = vmatmul.mubr.bf16.gmra.mrb[0].mxu0 %v5031
    %v5070 = vpop.f32.mrb[0].mxu0
    %v5071 = vadd.f32 0.0, %v5070
    %v5072 = vpop.f32.mrb[0].mxu0
    %v5073 = vpop.f32.mrb[0].mxu0
    %v5074 = vpop.f32.mrb[0].mxu0
    %5075 = vdwg.mxu0
    %5076 = vrot.lane.b32.xlu0 %v4695, 112
    %v5077 = vpop.permute.xlu0 %5076
    %v5079 = vsel %vm390, %v5027, 0
    %v5082 = vsel %vm418, %v5077, 0
    %5084 = vmatprep.subr.bf16.mxu0 0
    %5085 = vmatpush1.bf16.msra.mxu0 %v5082
    %5086 = vmatprep.subr.bf16.mxu0 0
    %5087 = vmatpush1.bf16.msra.mxu0 0
    %5088 = vmatprep.subr.bf16.mxu0 0
    %5089 = vmatpush1.bf16.msra.mxu0 0
    %5090 = vmatprep.subr.bf16.mxu0 0
    %5091 = vmatpush1.bf16.msra.mxu0 0
    %5092 = vmatprep.subr.bf16.mxu0 0
    %5093 = vmatpush1.bf16.msra.mxu0 0
    %5094 = vmatprep.subr.bf16.mxu0 0
    %5095 = vmatpush1.bf16.msra.mxu0 0
    %5096 = vmatprep.subr.bf16.mxu0 0
    %5097 = vmatpush1.bf16.msra.mxu0 0
    %5098 = vmatprep.subr.bf16.mxu0 0
    %5099 = vmatpush1.bf16.msra.mxu0 0
    %5100 = vmatprep.subr.bf16.mxu0 0
    %5101 = vmatpush1.bf16.msra.mxu0 0
    %5102 = vmatprep.subr.bf16.mxu0 0
    %5103 = vmatpush1.bf16.msra.mxu0 0
    %5104 = vmatprep.subr.bf16.mxu0 0
    %5105 = vmatpush1.bf16.msra.mxu0 0
    %5106 = vmatprep.subr.bf16.mxu0 0
    %5107 = vmatpush1.bf16.msra.mxu0 0
    %5108 = vmatprep.subr.bf16.mxu0 0
    %5109 = vmatpush1.bf16.msra.mxu0 0
    %5110 = vmatprep.subr.bf16.mxu0 0
    %5111 = vmatpush1.bf16.msra.mxu0 0
    %5112 = vmatprep.subr.bf16.mxu0 0
    %5113 = vmatpush1.bf16.msra.mxu0 0
    %5114 = vmatprep.subr.bf16.mxu0 0
    %5115 = vmatpush1.bf16.msra.mxu0 0
    %5116 = vmatprep.mubr.bf16.mxu0 0
    %5117 = vmatmul.mubr.bf16.gmra.mrb[0].mxu0 %v5079
    %v5118 = vpop.f32.mrb[0].mxu0
    %v5119 = vadd.f32 0.0, %v5118
    %v5120 = vpop.f32.mrb[0].mxu0
    %v5121 = vpop.f32.mrb[0].mxu0
    %v5122 = vpop.f32.mrb[0].mxu0
    %5123 = vdwg.mxu0
    %5124 = vrot.lane.b32.xlu0 %v4682, 96
    %v5125 = vpop.permute.xlu0 %5124
    %5126 = vrot.lane.b32.xlu0 %v4688, 96
    %v5127 = vpop.permute.xlu0 %5126
    %v5129 = vsel %vm297, %v5125, 0
    %v5132 = vsel %vm297, %v5127, 0
    %5134 = vmatprep.subr.bf16.mxu0 0
    %5135 = vmatpush1.bf16.xpose.msra.mxu0 %v5132
    %5136 = vmatprep.subr.bf16.mxu0 0
    %5137 = vmatpush1.bf16.xpose.msra.mxu0 0
    %5138 = vmatprep.subr.bf16.mxu0 0
    %5139 = vmatpush1.bf16.xpose.msra.mxu0 0
    %5140 = vmatprep.subr.bf16.mxu0 0
    %5141 = vmatpush1.bf16.xpose.msra.mxu0 0
    %5142 = vmatprep.subr.bf16.mxu0 0
    %5143 = vmatpush1.bf16.xpose.msra.mxu0 0
    %5144 = vmatprep.subr.bf16.mxu0 0
    %5145 = vmatpush1.bf16.xpose.msra.mxu0 0
    %5146 = vmatprep.subr.bf16.mxu0 0
    %5147 = vmatpush1.bf16.xpose.msra.mxu0 0
    %5148 = vmatprep.subr.bf16.mxu0 0
    %5149 = vmatpush1.bf16.xpose.msra.mxu0 0
    %5150 = vmatprep.subr.bf16.mxu0 0
    %5151 = vmatpush1.bf16.xpose.msra.mxu0 0
    %5152 = vmatprep.subr.bf16.mxu0 0
    %5153 = vmatpush1.bf16.xpose.msra.mxu0 0
    %5154 = vmatprep.subr.bf16.mxu0 0
    %5155 = vmatpush1.bf16.xpose.msra.mxu0 0
    %5156 = vmatprep.subr.bf16.mxu0 0
    %5157 = vmatpush1.bf16.xpose.msra.mxu0 0
    %5158 = vmatprep.subr.bf16.mxu0 0
    %5159 = vmatpush1.bf16.xpose.msra.mxu0 0
    %5160 = vmatprep.subr.bf16.mxu0 0
    %5161 = vmatpush1.bf16.xpose.msra.mxu0 0
    %5162 = vmatprep.subr.bf16.mxu0 0
    %5163 = vmatpush1.bf16.xpose.msra.mxu0 0
    %5164 = vmatprep.subr.bf16.mxu0 0
    %5165 = vmatpush1.bf16.xpose.msra.mxu0 0
    %5166 = vmatprep.mubr.bf16.mxu0 0
    %5167 = vmatmul.mubr.bf16.gmra.mrb[0].mxu0 %v5129
    %v5168 = vpop.f32.mrb[0].mxu0
    %v5169 = vadd.f32 %v46, %v5168
    %v5170 = vpop.f32.mrb[0].mxu0
    %v5171 = vpop.f32.mrb[0].mxu0
    %v5172 = vpop.f32.mrb[0].mxu0
    %5173 = vdwg.mxu0
    %5174 = vrot.lane.b32.xlu0 %v4683, 96
    %v5175 = vpop.permute.xlu0 %5174
    %5176 = vrot.lane.b32.xlu0 %v4689, 96
    %v5177 = vpop.permute.xlu0 %5176
    %v5179 = vsel %vm297, %v5175, 0
    %v5182 = vsel %vm297, %v5177, 0
    %5184 = vmatprep.subr.bf16.mxu0 0
    %5185 = vmatpush1.bf16.xpose.msra.mxu0 %v5182
    %5186 = vmatprep.subr.bf16.mxu0 0
    %5187 = vmatpush1.bf16.xpose.msra.mxu0 0
    %5188 = vmatprep.subr.bf16.mxu0 0
    %5189 = vmatpush1.bf16.xpose.msra.mxu0 0
    %5190 = vmatprep.subr.bf16.mxu0 0
    %5191 = vmatpush1.bf16.xpose.msra.mxu0 0
    %5192 = vmatprep.subr.bf16.mxu0 0
    %5193 = vmatpush1.bf16.xpose.msra.mxu0 0
    %5194 = vmatprep.subr.bf16.mxu0 0
    %5195 = vmatpush1.bf16.xpose.msra.mxu0 0
    %5196 = vmatprep.subr.bf16.mxu0 0
    %5197 = vmatpush1.bf16.xpose.msra.mxu0 0
    %5198 = vmatprep.subr.bf16.mxu0 0
    %5199 = vmatpush1.bf16.xpose.msra.mxu0 0
    %5200 = vmatprep.subr.bf16.mxu0 0
    %5201 = vmatpush1.bf16.xpose.msra.mxu0 0
    %5202 = vmatprep.subr.bf16.mxu0 0
    %5203 = vmatpush1.bf16.xpose.msra.mxu0 0
    %5204 = vmatprep.subr.bf16.mxu0 0
    %5205 = vmatpush1.bf16.xpose.msra.mxu0 0
    %5206 = vmatprep.subr.bf16.mxu0 0
    %5207 = vmatpush1.bf16.xpose.msra.mxu0 0
    %5208 = vmatprep.subr.bf16.mxu0 0
    %5209 = vmatpush1.bf16.xpose.msra.mxu0 0
    %5210 = vmatprep.subr.bf16.mxu0 0
    %5211 = vmatpush1.bf16.xpose.msra.mxu0 0
    %5212 = vmatprep.subr.bf16.mxu0 0
    %5213 = vmatpush1.bf16.xpose.msra.mxu0 0
    %5214 = vmatprep.subr.bf16.mxu0 0
    %5215 = vmatpush1.bf16.xpose.msra.mxu0 0
    %5216 = vmatprep.mubr.bf16.mxu0 0
    %5217 = vmatmul.mubr.bf16.gmra.mrb[0].mxu0 %v5179
    %v5218 = vpop.f32.mrb[0].mxu0
    %v5219 = vadd.f32 %v47, %v5218
    %v5220 = vpop.f32.mrb[0].mxu0
    %v5221 = vpop.f32.mrb[0].mxu0
    %v5222 = vpop.f32.mrb[0].mxu0
    %5223 = vdwg.mxu0
    %v5224 = vsel %vm390, %v5169, -inf
    %5225 = vmax.xlane.f32.xlu0 %v5224
    %v5226 = vpop.xlane.xlu0 %5225
    %v5227 = vsel %vm390, %v5219, -inf
    %5228 = vmax.xlane.f32.xlu0 %v5227
    %v5229 = vpop.xlane.xlu0 %5228
    %v5230 = vsub.f32 %v5169, %v5226
    %v5231 = vsub.f32 %v5219, %v5229
    %v5232 = vmul.f32 %v5230, 1.442695
    %v5233 = vpow.pop %v5232
    %v5234 = vmul.f32 %v5231, 1.442695
    %v5235 = vpow.pop %v5234
    %v5236 = vsel %vm390, %v5233, 0.0
    %5237 = vadd.xlane.f32.xlu0 %v5236
    %v5238 = vpop.xlane.xlu0 %5237
    %v5239 = vsel %vm390, %v5235, 0.0
    %5240 = vadd.xlane.f32.xlu0 %v5239
    %v5241 = vpop.xlane.xlu0 %5240
    %v5242 = vrcp.pop %v5238
    %v5243 = vrcp.pop %v5241
    %v5244 = vmul.f32 %v5233, %v5242
    %v5245 = vmul.f32 %v5235, %v5243
    %v5246 = vpack.c.bf16 %v5244, %v5244
    %v5247 = vpack.c.bf16 %v5245, %v5245
    %5248 = vrot.lane.b32.xlu0 %v4694, 96
    %v5249 = vpop.permute.xlu0 %5248
    %v5251 = vsel %vm390, %v5246, 0
    %v5254 = vsel %vm418, %v5249, 0
    %5256 = vmatprep.subr.bf16.mxu0 0
    %5257 = vmatpush1.bf16.msra.mxu0 %v5254
    %5258 = vmatprep.subr.bf16.mxu0 0
    %5259 = vmatpush1.bf16.msra.mxu0 0
    %5260 = vmatprep.subr.bf16.mxu0 0
    %5261 = vmatpush1.bf16.msra.mxu0 0
    %5262 = vmatprep.subr.bf16.mxu0 0
    %5263 = vmatpush1.bf16.msra.mxu0 0
    %5264 = vmatprep.subr.bf16.mxu0 0
    %5265 = vmatpush1.bf16.msra.mxu0 0
    %5266 = vmatprep.subr.bf16.mxu0 0
    %5267 = vmatpush1.bf16.msra.mxu0 0
    %5268 = vmatprep.subr.bf16.mxu0 0
    %5269 = vmatpush1.bf16.msra.mxu0 0
    %5270 = vmatprep.subr.bf16.mxu0 0
    %5271 = vmatpush1.bf16.msra.mxu0 0
    %5272 = vmatprep.subr.bf16.mxu0 0
    %5273 = vmatpush1.bf16.msra.mxu0 0
    %5274 = vmatprep.subr.bf16.mxu0 0
    %5275 = vmatpush1.bf16.msra.mxu0 0
    %5276 = vmatprep.subr.bf16.mxu0 0
    %5277 = vmatpush1.bf16.msra.mxu0 0
    %5278 = vmatprep.subr.bf16.mxu0 0
    %5279 = vmatpush1.bf16.msra.mxu0 0
    %5280 = vmatprep.subr.bf16.mxu0 0
    %5281 = vmatpush1.bf16.msra.mxu0 0
    %5282 = vmatprep.subr.bf16.mxu0 0
    %5283 = vmatpush1.bf16.msra.mxu0 0
    %5284 = vmatprep.subr.bf16.mxu0 0
    %5285 = vmatpush1.bf16.msra.mxu0 0
    %5286 = vmatprep.subr.bf16.mxu0 0
    %5287 = vmatpush1.bf16.msra.mxu0 0
    %5288 = vmatprep.mubr.bf16.mxu0 0
    %5289 = vmatmul.mubr.bf16.gmra.mrb[0].mxu0 %v5251
    %v5290 = vpop.f32.mrb[0].mxu0
    %v5291 = vadd.f32 0.0, %v5290
    %v5292 = vpop.f32.mrb[0].mxu0
    %v5293 = vpop.f32.mrb[0].mxu0
    %v5294 = vpop.f32.mrb[0].mxu0
    %5295 = vdwg.mxu0
    %5296 = vrot.lane.b32.xlu0 %v4695, 96
    %v5297 = vpop.permute.xlu0 %5296
    %v5299 = vsel %vm390, %v5247, 0
    %v5302 = vsel %vm418, %v5297, 0
    %5304 = vmatprep.subr.bf16.mxu0 0
    %5305 = vmatpush1.bf16.msra.mxu0 %v5302
    %5306 = vmatprep.subr.bf16.mxu0 0
    %5307 = vmatpush1.bf16.msra.mxu0 0
    %5308 = vmatprep.subr.bf16.mxu0 0
    %5309 = vmatpush1.bf16.msra.mxu0 0
    %5310 = vmatprep.subr.bf16.mxu0 0
    %5311 = vmatpush1.bf16.msra.mxu0 0
    %5312 = vmatprep.subr.bf16.mxu0 0
    %5313 = vmatpush1.bf16.msra.mxu0 0
    %5314 = vmatprep.subr.bf16.mxu0 0
    %5315 = vmatpush1.bf16.msra.mxu0 0
    %5316 = vmatprep.subr.bf16.mxu0 0
    %5317 = vmatpush1.bf16.msra.mxu0 0
    %5318 = vmatprep.subr.bf16.mxu0 0
    %5319 = vmatpush1.bf16.msra.mxu0 0
    %5320 = vmatprep.subr.bf16.mxu0 0
    %5321 = vmatpush1.bf16.msra.mxu0 0
    %5322 = vmatprep.subr.bf16.mxu0 0
    %5323 = vmatpush1.bf16.msra.mxu0 0
    %5324 = vmatprep.subr.bf16.mxu0 0
    %5325 = vmatpush1.bf16.msra.mxu0 0
    %5326 = vmatprep.subr.bf16.mxu0 0
    %5327 = vmatpush1.bf16.msra.mxu0 0
    %5328 = vmatprep.subr.bf16.mxu0 0
    %5329 = vmatpush1.bf16.msra.mxu0 0
    %5330 = vmatprep.subr.bf16.mxu0 0
    %5331 = vmatpush1.bf16.msra.mxu0 0
    %5332 = vmatprep.subr.bf16.mxu0 0
    %5333 = vmatpush1.bf16.msra.mxu0 0
    %5334 = vmatprep.subr.bf16.mxu0 0
    %5335 = vmatpush1.bf16.msra.mxu0 0
    %5336 = vmatprep.mubr.bf16.mxu0 0
    %5337 = vmatmul.mubr.bf16.gmra.mrb[0].mxu0 %v5299
    %v5338 = vpop.f32.mrb[0].mxu0
    %v5339 = vadd.f32 0.0, %v5338
    %v5340 = vpop.f32.mrb[0].mxu0
    %v5341 = vpop.f32.mrb[0].mxu0
    %v5342 = vpop.f32.mrb[0].mxu0
    %5343 = vdwg.mxu0
    %5344 = vrot.lane.b32.xlu0 %v4682, 80
    %v5345 = vpop.permute.xlu0 %5344
    %5346 = vrot.lane.b32.xlu0 %v4688, 80
    %v5347 = vpop.permute.xlu0 %5346
    %v5349 = vsel %vm297, %v5345, 0
    %v5352 = vsel %vm297, %v5347, 0
    %5354 = vmatprep.subr.bf16.mxu0 0
    %5355 = vmatpush1.bf16.xpose.msra.mxu0 %v5352
    %5356 = vmatprep.subr.bf16.mxu0 0
    %5357 = vmatpush1.bf16.xpose.msra.mxu0 0
    %5358 = vmatprep.subr.bf16.mxu0 0
    %5359 = vmatpush1.bf16.xpose.msra.mxu0 0
    %5360 = vmatprep.subr.bf16.mxu0 0
    %5361 = vmatpush1.bf16.xpose.msra.mxu0 0
    %5362 = vmatprep.subr.bf16.mxu0 0
    %5363 = vmatpush1.bf16.xpose.msra.mxu0 0
    %5364 = vmatprep.subr.bf16.mxu0 0
    %5365 = vmatpush1.bf16.xpose.msra.mxu0 0
    %5366 = vmatprep.subr.bf16.mxu0 0
    %5367 = vmatpush1.bf16.xpose.msra.mxu0 0
    %5368 = vmatprep.subr.bf16.mxu0 0
    %5369 = vmatpush1.bf16.xpose.msra.mxu0 0
    %5370 = vmatprep.subr.bf16.mxu0 0
    %5371 = vmatpush1.bf16.xpose.msra.mxu0 0
    %5372 = vmatprep.subr.bf16.mxu0 0
    %5373 = vmatpush1.bf16.xpose.msra.mxu0 0
    %5374 = vmatprep.subr.bf16.mxu0 0
    %5375 = vmatpush1.bf16.xpose.msra.mxu0 0
    %5376 = vmatprep.subr.bf16.mxu0 0
    %5377 = vmatpush1.bf16.xpose.msra.mxu0 0
    %5378 = vmatprep.subr.bf16.mxu0 0
    %5379 = vmatpush1.bf16.xpose.msra.mxu0 0
    %5380 = vmatprep.subr.bf16.mxu0 0
    %5381 = vmatpush1.bf16.xpose.msra.mxu0 0
    %5382 = vmatprep.subr.bf16.mxu0 0
    %5383 = vmatpush1.bf16.xpose.msra.mxu0 0
    %5384 = vmatprep.subr.bf16.mxu0 0
    %5385 = vmatpush1.bf16.xpose.msra.mxu0 0
    %5386 = vmatprep.mubr.bf16.mxu0 0
    %5387 = vmatmul.mubr.bf16.gmra.mrb[0].mxu0 %v5349
    %v5388 = vpop.f32.mrb[0].mxu0
    %v5389 = vadd.f32 %v46, %v5388
    %v5390 = vpop.f32.mrb[0].mxu0
    %v5391 = vpop.f32.mrb[0].mxu0
    %v5392 = vpop.f32.mrb[0].mxu0
    %5393 = vdwg.mxu0
    %5394 = vrot.lane.b32.xlu0 %v4683, 80
    %v5395 = vpop.permute.xlu0 %5394
    %5396 = vrot.lane.b32.xlu0 %v4689, 80
    %v5397 = vpop.permute.xlu0 %5396
    %v5399 = vsel %vm297, %v5395, 0
    %v5402 = vsel %vm297, %v5397, 0
    %5404 = vmatprep.subr.bf16.mxu0 0
    %5405 = vmatpush1.bf16.xpose.msra.mxu0 %v5402
    %5406 = vmatprep.subr.bf16.mxu0 0
    %5407 = vmatpush1.bf16.xpose.msra.mxu0 0
    %5408 = vmatprep.subr.bf16.mxu0 0
    %5409 = vmatpush1.bf16.xpose.msra.mxu0 0
    %5410 = vmatprep.subr.bf16.mxu0 0
    %5411 = vmatpush1.bf16.xpose.msra.mxu0 0
    %5412 = vmatprep.subr.bf16.mxu0 0
    %5413 = vmatpush1.bf16.xpose.msra.mxu0 0
    %5414 = vmatprep.subr.bf16.mxu0 0
    %5415 = vmatpush1.bf16.xpose.msra.mxu0 0
    %5416 = vmatprep.subr.bf16.mxu0 0
    %5417 = vmatpush1.bf16.xpose.msra.mxu0 0
    %5418 = vmatprep.subr.bf16.mxu0 0
    %5419 = vmatpush1.bf16.xpose.msra.mxu0 0
    %5420 = vmatprep.subr.bf16.mxu0 0
    %5421 = vmatpush1.bf16.xpose.msra.mxu0 0
    %5422 = vmatprep.subr.bf16.mxu0 0
    %5423 = vmatpush1.bf16.xpose.msra.mxu0 0
    %5424 = vmatprep.subr.bf16.mxu0 0
    %5425 = vmatpush1.bf16.xpose.msra.mxu0 0
    %5426 = vmatprep.subr.bf16.mxu0 0
    %5427 = vmatpush1.bf16.xpose.msra.mxu0 0
    %5428 = vmatprep.subr.bf16.mxu0 0
    %5429 = vmatpush1.bf16.xpose.msra.mxu0 0
    %5430 = vmatprep.subr.bf16.mxu0 0
    %5431 = vmatpush1.bf16.xpose.msra.mxu0 0
    %5432 = vmatprep.subr.bf16.mxu0 0
    %5433 = vmatpush1.bf16.xpose.msra.mxu0 0
    %5434 = vmatprep.subr.bf16.mxu0 0
    %5435 = vmatpush1.bf16.xpose.msra.mxu0 0
    %5436 = vmatprep.mubr.bf16.mxu0 0
    %5437 = vmatmul.mubr.bf16.gmra.mrb[0].mxu0 %v5399
    %v5438 = vpop.f32.mrb[0].mxu0
    %v5439 = vadd.f32 %v47, %v5438
    %v5440 = vpop.f32.mrb[0].mxu0
    %v5441 = vpop.f32.mrb[0].mxu0
    %v5442 = vpop.f32.mrb[0].mxu0
    %5443 = vdwg.mxu0
    %v5444 = vsel %vm390, %v5389, -inf
    %5445 = vmax.xlane.f32.xlu0 %v5444
    %v5446 = vpop.xlane.xlu0 %5445
    %v5447 = vsel %vm390, %v5439, -inf
    %5448 = vmax.xlane.f32.xlu0 %v5447
    %v5449 = vpop.xlane.xlu0 %5448
    %v5450 = vsub.f32 %v5389, %v5446
    %v5451 = vsub.f32 %v5439, %v5449
    %v5452 = vmul.f32 %v5450, 1.442695
    %v5453 = vpow.pop %v5452
    %v5454 = vmul.f32 %v5451, 1.442695
    %v5455 = vpow.pop %v5454
    %v5456 = vsel %vm390, %v5453, 0.0
    %5457 = vadd.xlane.f32.xlu0 %v5456
    %v5458 = vpop.xlane.xlu0 %5457
    %v5459 = vsel %vm390, %v5455, 0.0
    %5460 = vadd.xlane.f32.xlu0 %v5459
    %v5461 = vpop.xlane.xlu0 %5460
    %v5462 = vrcp.pop %v5458
    %v5463 = vrcp.pop %v5461
    %v5464 = vmul.f32 %v5453, %v5462
    %v5465 = vmul.f32 %v5455, %v5463
    %v5466 = vpack.c.bf16 %v5464, %v5464
    %v5467 = vpack.c.bf16 %v5465, %v5465
    %5468 = vrot.lane.b32.xlu0 %v4694, 80
    %v5469 = vpop.permute.xlu0 %5468
    %v5471 = vsel %vm390, %v5466, 0
    %v5474 = vsel %vm418, %v5469, 0
    %5476 = vmatprep.subr.bf16.mxu0 0
    %5477 = vmatpush1.bf16.msra.mxu0 %v5474
    %5478 = vmatprep.subr.bf16.mxu0 0
    %5479 = vmatpush1.bf16.msra.mxu0 0
    %5480 = vmatprep.subr.bf16.mxu0 0
    %5481 = vmatpush1.bf16.msra.mxu0 0
    %5482 = vmatprep.subr.bf16.mxu0 0
    %5483 = vmatpush1.bf16.msra.mxu0 0
    %5484 = vmatprep.subr.bf16.mxu0 0
    %5485 = vmatpush1.bf16.msra.mxu0 0
    %5486 = vmatprep.subr.bf16.mxu0 0
    %5487 = vmatpush1.bf16.msra.mxu0 0
    %5488 = vmatprep.subr.bf16.mxu0 0
    %5489 = vmatpush1.bf16.msra.mxu0 0
    %5490 = vmatprep.subr.bf16.mxu0 0
    %5491 = vmatpush1.bf16.msra.mxu0 0
    %5492 = vmatprep.subr.bf16.mxu0 0
    %5493 = vmatpush1.bf16.msra.mxu0 0
    %5494 = vmatprep.subr.bf16.mxu0 0
    %5495 = vmatpush1.bf16.msra.mxu0 0
    %5496 = vmatprep.subr.bf16.mxu0 0
    %5497 = vmatpush1.bf16.msra.mxu0 0
    %5498 = vmatprep.subr.bf16.mxu0 0
    %5499 = vmatpush1.bf16.msra.mxu0 0
    %5500 = vmatprep.subr.bf16.mxu0 0
    %5501 = vmatpush1.bf16.msra.mxu0 0
    %5502 = vmatprep.subr.bf16.mxu0 0
    %5503 = vmatpush1.bf16.msra.mxu0 0
    %5504 = vmatprep.subr.bf16.mxu0 0
    %5505 = vmatpush1.bf16.msra.mxu0 0
    %5506 = vmatprep.subr.bf16.mxu0 0
    %5507 = vmatpush1.bf16.msra.mxu0 0
    %5508 = vmatprep.mubr.bf16.mxu0 0
    %5509 = vmatmul.mubr.bf16.gmra.mrb[0].mxu0 %v5471
    %v5510 = vpop.f32.mrb[0].mxu0
    %v5511 = vadd.f32 0.0, %v5510
    %v5512 = vpop.f32.mrb[0].mxu0
    %v5513 = vpop.f32.mrb[0].mxu0
    %v5514 = vpop.f32.mrb[0].mxu0
    %5515 = vdwg.mxu0
    %5516 = vrot.lane.b32.xlu0 %v4695, 80
    %v5517 = vpop.permute.xlu0 %5516
    %v5519 = vsel %vm390, %v5467, 0
    %v5522 = vsel %vm418, %v5517, 0
    %5524 = vmatprep.subr.bf16.mxu0 0
    %5525 = vmatpush1.bf16.msra.mxu0 %v5522
    %5526 = vmatprep.subr.bf16.mxu0 0
    %5527 = vmatpush1.bf16.msra.mxu0 0
    %5528 = vmatprep.subr.bf16.mxu0 0
    %5529 = vmatpush1.bf16.msra.mxu0 0
    %5530 = vmatprep.subr.bf16.mxu0 0
    %5531 = vmatpush1.bf16.msra.mxu0 0
    %5532 = vmatprep.subr.bf16.mxu0 0
    %5533 = vmatpush1.bf16.msra.mxu0 0
    %5534 = vmatprep.subr.bf16.mxu0 0
    %5535 = vmatpush1.bf16.msra.mxu0 0
    %5536 = vmatprep.subr.bf16.mxu0 0
    %5537 = vmatpush1.bf16.msra.mxu0 0
    %5538 = vmatprep.subr.bf16.mxu0 0
    %5539 = vmatpush1.bf16.msra.mxu0 0
    %5540 = vmatprep.subr.bf16.mxu0 0
    %5541 = vmatpush1.bf16.msra.mxu0 0
    %5542 = vmatprep.subr.bf16.mxu0 0
    %5543 = vmatpush1.bf16.msra.mxu0 0
    %5544 = vmatprep.subr.bf16.mxu0 0
    %5545 = vmatpush1.bf16.msra.mxu0 0
    %5546 = vmatprep.subr.bf16.mxu0 0
    %5547 = vmatpush1.bf16.msra.mxu0 0
    %5548 = vmatprep.subr.bf16.mxu0 0
    %5549 = vmatpush1.bf16.msra.mxu0 0
    %5550 = vmatprep.subr.bf16.mxu0 0
    %5551 = vmatpush1.bf16.msra.mxu0 0
    %5552 = vmatprep.subr.bf16.mxu0 0
    %5553 = vmatpush1.bf16.msra.mxu0 0
    %5554 = vmatprep.subr.bf16.mxu0 0
    %5555 = vmatpush1.bf16.msra.mxu0 0
    %5556 = vmatprep.mubr.bf16.mxu0 0
    %5557 = vmatmul.mubr.bf16.gmra.mrb[0].mxu0 %v5519
    %v5558 = vpop.f32.mrb[0].mxu0
    %v5559 = vadd.f32 0.0, %v5558
    %v5560 = vpop.f32.mrb[0].mxu0
    %v5561 = vpop.f32.mrb[0].mxu0
    %v5562 = vpop.f32.mrb[0].mxu0
    %5563 = vdwg.mxu0
    %5566 = vrot.lane.b32.xlu0 %v5071, 16
    %v5567 = vpop.permute.xlu0 %5566
    %5568 = vrot.lane.b32.xlu0 %v5119, 16
    %v5569 = vpop.permute.xlu0 %5568
    %5574 = vrot.lane.b32.xlu0 %v5291, 32
    %v5575 = vpop.permute.xlu0 %5574
    %5576 = vrot.lane.b32.xlu0 %v5339, 32
    %v5577 = vpop.permute.xlu0 %5576
    %5582 = vrot.lane.b32.xlu0 %v5511, 48
    %v5583 = vpop.permute.xlu0 %5582
    %5584 = vrot.lane.b32.xlu0 %v5559, 48
    %v5585 = vpop.permute.xlu0 %5584
    %v5588 = vsel %vm297, %v4853, %v5567
    %v5589 = vsel %vm297, %v4899, %v5569
    %v5590 = vsel %vm1194, %v5588, %v5575
    %v5591 = vsel %vm1194, %v5589, %v5577
    %v5592 = vsel %vm1197, %v5590, %v5583
    %v5593 = vsel %vm1197, %v5591, %v5585
    %v5594 = vpack.c.bf16 %v5593, %v5592
    %s5595 = scalar_lea.vmem %s6, 96
    %v5596 = vld [vmem:[%s5595] sm:$0xf]
    %v5597 = vld [vmem:[%s5595 + $0x4] sm:$0xf]
    %v5598 = vld [vmem:[%s5595 + $0x8] sm:$0xf]
    %v5599 = vld [vmem:[%s5595 + $0xc] sm:$0xf]
    %v5600 = vld [vmem:[%s5595 + $0x10] sm:$0xf]
    %v5601 = vld [vmem:[%s5595 + $0x14] sm:$0xf]
    %v5602 = vld [vmem:[%s5595 + $0x18] sm:$0xf]
    %v5603 = vld [vmem:[%s5595 + $0x1c] sm:$0xf]
    %v5612 = vunpack.c.l.b16 %v5596
    %v5613 = vunpack.c.l.b16 %v5597
    %v5614 = vunpack.c.l.b16 %v5598
    %v5615 = vunpack.c.l.b16 %v5599
    %v5616 = vunpack.c.l.b16 %v5600
    %v5617 = vunpack.c.l.b16 %v5601
    %v5618 = vunpack.c.l.b16 %v5602
    %v5619 = vunpack.c.l.b16 %v5603
    %v5620 = vpack.c.b16 %v5613, %v5612
    %v5621 = vpack.c.b16 %v5615, %v5614
    %v5622 = vpack.c.b16 %v5617, %v5616
    %v5623 = vpack.c.b16 %v5619, %v5618
    %v5629 = vsel %vm51, %v5594, 0
    %5631 = vmatprep.subr.bf16.mxu0 0
    %5632 = vmatpush1.bf16.msra.mxu0 %v5620
    %5633 = vmatprep.subr.bf16.mxu0 0
    %5634 = vmatpush1.bf16.msra.mxu0 %v5621
    %5635 = vmatprep.subr.bf16.mxu0 0
    %5636 = vmatpush1.bf16.msra.mxu0 %v5622
    %5637 = vmatprep.subr.bf16.mxu0 0
    %5638 = vmatpush1.bf16.msra.mxu0 %v5623
    %5639 = vmatprep.subr.bf16.mxu0 0
    %5640 = vmatpush1.bf16.msra.mxu0 0
    %5641 = vmatprep.subr.bf16.mxu0 0
    %5642 = vmatpush1.bf16.msra.mxu0 0
    %5643 = vmatprep.subr.bf16.mxu0 0
    %5644 = vmatpush1.bf16.msra.mxu0 0
    %5645 = vmatprep.subr.bf16.mxu0 0
    %5646 = vmatpush1.bf16.msra.mxu0 0
    %5647 = vmatprep.subr.bf16.mxu0 0
    %5648 = vmatpush1.bf16.msra.mxu0 0
    %5649 = vmatprep.subr.bf16.mxu0 0
    %5650 = vmatpush1.bf16.msra.mxu0 0
    %5651 = vmatprep.subr.bf16.mxu0 0
    %5652 = vmatpush1.bf16.msra.mxu0 0
    %5653 = vmatprep.subr.bf16.mxu0 0
    %5654 = vmatpush1.bf16.msra.mxu0 0
    %5655 = vmatprep.subr.bf16.mxu0 0
    %5656 = vmatpush1.bf16.msra.mxu0 0
    %5657 = vmatprep.subr.bf16.mxu0 0
    %5658 = vmatpush1.bf16.msra.mxu0 0
    %5659 = vmatprep.subr.bf16.mxu0 0
    %5660 = vmatpush1.bf16.msra.mxu0 0
    %5661 = vmatprep.subr.bf16.mxu0 0
    %5662 = vmatpush1.bf16.msra.mxu0 0
    %5663 = vmatprep.mubr.bf16.mxu0 0
    %5664 = vmatmul.mubr.bf16.gmra.mrb[0].mxu0 %v5629
    %v5665 = vpop.f32.mrb[0].mxu0
    %v5666 = vadd.f32 0.0, %v5665
    %v5667 = vpop.f32.mrb[0].mxu0
    %v5668 = vpop.f32.mrb[0].mxu0
    %v5669 = vadd.f32 0.0, %v5668
    %v5670 = vpop.f32.mrb[0].mxu0
    %5671 = vdwg.mxu0
    %v5672 = vadd.f32 %v4453, %v5666
    %v5673 = vadd.f32 %v4454, %v5669
    %s5674 = scalar_lea.vmem %s7, 3
    %v5675 = vld [vmem:[%s5674] sm:$0x1]
    %v5676 = vmul.f32 %v5672, %v5672
    %v5677 = vmul.f32 %v5673, %v5673
    %v5678 = vsel %vm51, %v5676, 0.0
    %5679 = vadd.xlane.f32.xlu0 %v5678
    %v5680 = vpop.xlane.xlu0 %5679
    %v5681 = vsel %vm51, %v5677, 0.0
    %5682 = vadd.xlane.f32.xlu0 %v5681
    %v5683 = vpop.xlane.xlu0 %5682
    %v5684 = vmul.f32 %v5680, %v58
    %v5685 = vmul.f32 %v5683, %v58
    %v5686 = vadd.f32 %v5684, 1e-06
    %v5687 = vadd.f32 %v5685, 1e-06
    %v5688 = vrsqrt.pop %v5686
    %v5689 = vrsqrt.pop %v5687
    %v5690 = vmul.f32 %v5672, %v5688
    %v5691 = vmul.f32 %v5673, %v5689
    %v5693 = vlaneseq
    %v5694 = vshrl.u32 %v5693, 7
    %v5695 = vsub.s32 0, %v5694
    %v5696 = vrot.slane %v5675, %v5695
    %v5698 = vmul.f32 %v5690, %v5696
    %v5699 = vmul.f32 %v5691, %v5696
    %v5700 = vpack.c.bf16 %v5699, %v5698
    %s5701 = scalar_lea.vmem %s8, 192
    %v5702 = vld [vmem:[%s5701] sm:$0xff]
    %v5703 = vld [vmem:[%s5701 + $0x8] sm:$0xff]
    %v5704 = vld [vmem:[%s5701 + $0x10] sm:$0xff]
    %v5705 = vld [vmem:[%s5701 + $0x18] sm:$0xff]
    %v5706 = vld [vmem:[%s5701 + $0x20] sm:$0xff]
    %v5707 = vld [vmem:[%s5701 + $0x28] sm:$0xff]
    %v5708 = vld [vmem:[%s5701 + $0x30] sm:$0xff]
    %v5709 = vld [vmem:[%s5701 + $0x38] sm:$0xff]
    %v5718 = vunpack.c.l.b16 %v5702
    %v5719 = vunpack.c.h.b16 %v5702
    %v5720 = vunpack.c.l.b16 %v5703
    %v5721 = vunpack.c.h.b16 %v5703
    %v5722 = vunpack.c.l.b16 %v5704
    %v5723 = vunpack.c.h.b16 %v5704
    %v5724 = vunpack.c.l.b16 %v5705
    %v5725 = vunpack.c.h.b16 %v5705
    %v5726 = vunpack.c.l.b16 %v5706
    %v5727 = vunpack.c.h.b16 %v5706
    %v5728 = vunpack.c.l.b16 %v5707
    %v5729 = vunpack.c.h.b16 %v5707
    %v5730 = vunpack.c.l.b16 %v5708
    %v5731 = vunpack.c.h.b16 %v5708
    %v5732 = vunpack.c.l.b16 %v5709
    %v5733 = vunpack.c.h.b16 %v5709
    %v5734 = vpack.c.b16 %v5720, %v5718
    %v5735 = vpack.c.b16 %v5721, %v5719
    %v5736 = vpack.c.b16 %v5724, %v5722
    %v5737 = vpack.c.b16 %v5725, %v5723
    %v5738 = vpack.c.b16 %v5728, %v5726
    %v5739 = vpack.c.b16 %v5729, %v5727
    %v5740 = vpack.c.b16 %v5732, %v5730
    %v5741 = vpack.c.b16 %v5733, %v5731
    %v5751 = vsel %vm51, %v5700, 0
    %5753 = vmatprep.subr.bf16.mxu0 %v5735
    %5754 = vmatpush1.bf16.msra.mxu0 %v5734
    %5755 = vmatprep.subr.bf16.mxu0 %v5737
    %5756 = vmatpush1.bf16.msra.mxu0 %v5736
    %5757 = vmatprep.subr.bf16.mxu0 %v5739
    %5758 = vmatpush1.bf16.msra.mxu0 %v5738
    %5759 = vmatprep.subr.bf16.mxu0 %v5741
    %5760 = vmatpush1.bf16.msra.mxu0 %v5740
    %5761 = vmatprep.subr.bf16.mxu0 0
    %5762 = vmatpush1.bf16.msra.mxu0 0
    %5763 = vmatprep.subr.bf16.mxu0 0
    %5764 = vmatpush1.bf16.msra.mxu0 0
    %5765 = vmatprep.subr.bf16.mxu0 0
    %5766 = vmatpush1.bf16.msra.mxu0 0
    %5767 = vmatprep.subr.bf16.mxu0 0
    %5768 = vmatpush1.bf16.msra.mxu0 0
    %5769 = vmatprep.subr.bf16.mxu0 0
    %5770 = vmatpush1.bf16.msra.mxu0 0
    %5771 = vmatprep.subr.bf16.mxu0 0
    %5772 = vmatpush1.bf16.msra.mxu0 0
    %5773 = vmatprep.subr.bf16.mxu0 0
    %5774 = vmatpush1.bf16.msra.mxu0 0
    %5775 = vmatprep.subr.bf16.mxu0 0
    %5776 = vmatpush1.bf16.msra.mxu0 0
    %5777 = vmatprep.subr.bf16.mxu0 0
    %5778 = vmatpush1.bf16.msra.mxu0 0
    %5779 = vmatprep.subr.bf16.mxu0 0
    %5780 = vmatpush1.bf16.msra.mxu0 0
    %5781 = vmatprep.subr.bf16.mxu0 0
    %5782 = vmatpush1.bf16.msra.mxu0 0
    %5783 = vmatprep.subr.bf16.mxu0 0
    %5784 = vmatpush1.bf16.msra.mxu0 0
    %5785 = vmatprep.mubr.bf16.mxu0 0
    %5786 = vmatmul.mubr.bf16.gmra.mrb[0].mxu0 %v5751
    %v5787 = vpop.f32.mrb[0].mxu0
    %v5788 = vadd.f32 0.0, %v5787
    %v5789 = vpop.f32.mrb[0].mxu0
    %v5790 = vadd.f32 0.0, %v5789
    %v5791 = vpop.f32.mrb[0].mxu0
    %v5792 = vadd.f32 0.0, %v5791
    %v5793 = vpop.f32.mrb[0].mxu0
    %v5794 = vadd.f32 0.0, %v5793
    %5795 = vdwg.mxu0
    %v5796 = vxor.u32 %v5788, 2147483648
    %v5797 = vxor.u32 %v5792, 2147483648
    %v5798 = vmul.f32 %v5796, 1.442695
    %v5799 = vpow.pop %v5798
    %v5800 = vmul.f32 %v5797, 1.442695
    %v5801 = vpow.pop %v5800
    %v5802 = vadd.f32 %v5799, 1.0
    %v5803 = vadd.f32 %v5801, 1.0
    %v5804 = vrcp.pop %v5802
    %v5805 = vmul.f32 1.0, %v5804
    %v5806 = vrcp.pop %v5803
    %v5807 = vmul.f32 1.0, %v5806
    %v5808 = vmul.f32 %v5788, %v5805
    %v5809 = vmul.f32 %v5792, %v5807
    %v5810 = vmul.f32 %v5808, %v5790
    %v5811 = vmul.f32 %v5809, %v5794
    %v5812 = vpack.c.bf16 %v5811, %v5810
    %s5813 = scalar_lea.vmem %s9, 192
    %v5814 = vld [vmem:[%s5813] sm:$0xf]
    %v5815 = vld [vmem:[%s5813 + $0x4] sm:$0xf]
    %v5816 = vld [vmem:[%s5813 + $0x8] sm:$0xf]
    %v5817 = vld [vmem:[%s5813 + $0xc] sm:$0xf]
    %v5818 = vld [vmem:[%s5813 + $0x10] sm:$0xf]
    %v5819 = vld [vmem:[%s5813 + $0x14] sm:$0xf]
    %v5820 = vld [vmem:[%s5813 + $0x18] sm:$0xf]
    %v5821 = vld [vmem:[%s5813 + $0x1c] sm:$0xf]
    %v5822 = vld [vmem:[%s5813 + $0x20] sm:$0xf]
    %v5823 = vld [vmem:[%s5813 + $0x24] sm:$0xf]
    %v5824 = vld [vmem:[%s5813 + $0x28] sm:$0xf]
    %v5825 = vld [vmem:[%s5813 + $0x2c] sm:$0xf]
    %v5826 = vld [vmem:[%s5813 + $0x30] sm:$0xf]
    %v5827 = vld [vmem:[%s5813 + $0x34] sm:$0xf]
    %v5828 = vld [vmem:[%s5813 + $0x38] sm:$0xf]
    %v5829 = vld [vmem:[%s5813 + $0x3c] sm:$0xf]
    %v5846 = vunpack.c.l.b16 %v5814
    %v5847 = vunpack.c.l.b16 %v5815
    %v5848 = vunpack.c.l.b16 %v5816
    %v5849 = vunpack.c.l.b16 %v5817
    %v5850 = vunpack.c.l.b16 %v5818
    %v5851 = vunpack.c.l.b16 %v5819
    %v5852 = vunpack.c.l.b16 %v5820
    %v5853 = vunpack.c.l.b16 %v5821
    %v5854 = vunpack.c.l.b16 %v5822
    %v5855 = vunpack.c.l.b16 %v5823
    %v5856 = vunpack.c.l.b16 %v5824
    %v5857 = vunpack.c.l.b16 %v5825
    %v5858 = vunpack.c.l.b16 %v5826
    %v5859 = vunpack.c.l.b16 %v5827
    %v5860 = vunpack.c.l.b16 %v5828
    %v5861 = vunpack.c.l.b16 %v5829
    %v5862 = vpack.c.b16 %v5847, %v5846
    %v5863 = vpack.c.b16 %v5849, %v5848
    %v5864 = vpack.c.b16 %v5851, %v5850
    %v5865 = vpack.c.b16 %v5853, %v5852
    %v5866 = vpack.c.b16 %v5855, %v5854
    %v5867 = vpack.c.b16 %v5857, %v5856
    %v5868 = vpack.c.b16 %v5859, %v5858
    %v5869 = vpack.c.b16 %v5861, %v5860
    %5878 = vmatprep.subr.bf16.mxu0 0
    %5879 = vmatpush1.bf16.msra.mxu0 %v5862
    %5880 = vmatprep.subr.bf16.mxu0 0
    %5881 = vmatpush1.bf16.msra.mxu0 %v5863
    %5882 = vmatprep.subr.bf16.mxu0 0
    %5883 = vmatpush1.bf16.msra.mxu0 %v5864
    %5884 = vmatprep.subr.bf16.mxu0 0
    %5885 = vmatpush1.bf16.msra.mxu0 %v5865
    %5886 = vmatprep.subr.bf16.mxu0 0
    %5887 = vmatpush1.bf16.msra.mxu0 %v5866
    %5888 = vmatprep.subr.bf16.mxu0 0
    %5889 = vmatpush1.bf16.msra.mxu0 %v5867
    %5890 = vmatprep.subr.bf16.mxu0 0
    %5891 = vmatpush1.bf16.msra.mxu0 %v5868
    %5892 = vmatprep.subr.bf16.mxu0 0
    %5893 = vmatpush1.bf16.msra.mxu0 %v5869
    %5894 = vmatprep.subr.bf16.mxu0 0
    %5895 = vmatpush1.bf16.msra.mxu0 0
    %5896 = vmatprep.subr.bf16.mxu0 0
    %5897 = vmatpush1.bf16.msra.mxu0 0
    %5898 = vmatprep.subr.bf16.mxu0 0
    %5899 = vmatpush1.bf16.msra.mxu0 0
    %5900 = vmatprep.subr.bf16.mxu0 0
    %5901 = vmatpush1.bf16.msra.mxu0 0
    %5902 = vmatprep.subr.bf16.mxu0 0
    %5903 = vmatpush1.bf16.msra.mxu0 0
    %5904 = vmatprep.subr.bf16.mxu0 0
    %5905 = vmatpush1.bf16.msra.mxu0 0
    %5906 = vmatprep.subr.bf16.mxu0 0
    %5907 = vmatpush1.bf16.msra.mxu0 0
    %5908 = vmatprep.subr.bf16.mxu0 0
    %5909 = vmatpush1.bf16.msra.mxu0 0
    %5910 = vmatprep.mubr.bf16.mxu0 0
    %5911 = vmatmul.mubr.bf16.gmra.mrb[0].mxu0 %v5812
    %v5912 = vpop.f32.mrb[0].mxu0
    %v5913 = vadd.f32 0.0, %v5912
    %v5914 = vpop.f32.mrb[0].mxu0
    %v5915 = vpop.f32.mrb[0].mxu0
    %v5916 = vadd.f32 0.0, %v5915
    %v5917 = vpop.f32.mrb[0].mxu0
    %5918 = vdwg.mxu0
    %v5919 = vadd.f32 %v5672, %v5913
    %v5920 = vadd.f32 %v5673, %v5916
    %s5921 = scalar_lea.vmem %s4, 4
    %v5922 = vld [vmem:[%s5921] sm:$0x1]
    %v5923 = vmul.f32 %v5919, %v5919
    %v5924 = vmul.f32 %v5920, %v5920
    %v5925 = vsel %vm51, %v5923, 0.0
    %5926 = vadd.xlane.f32.xlu0 %v5925
    %v5927 = vpop.xlane.xlu0 %5926
    %v5928 = vsel %vm51, %v5924, 0.0
    %5929 = vadd.xlane.f32.xlu0 %v5928
    %v5930 = vpop.xlane.xlu0 %5929
    %v5931 = vmul.f32 %v5927, %v58
    %v5932 = vmul.f32 %v5930, %v58
    %v5933 = vadd.f32 %v5931, 1e-06
    %v5934 = vadd.f32 %v5932, 1e-06
    %v5935 = vrsqrt.pop %v5933
    %v5936 = vrsqrt.pop %v5934
    %v5937 = vmul.f32 %v5919, %v5935
    %v5938 = vmul.f32 %v5920, %v5936
    %v5940 = vlaneseq
    %v5941 = vshrl.u32 %v5940, 7
    %v5942 = vsub.s32 0, %v5941
    %v5943 = vrot.slane %v5922, %v5942
    %v5945 = vmul.f32 %v5937, %v5943
    %v5946 = vmul.f32 %v5938, %v5943
    %v5947 = vpack.c.bf16 %v5946, %v5945
    %s5948 = scalar_lea.vmem %s5, 384
    %v5949 = vld [vmem:[%s5948] sm:$0xff]
    %v5950 = vld [vmem:[%s5948 + $0x8] sm:$0xf]
    %v5951 = vld [vmem:[%s5948 + $0xc] sm:$0xff]
    %v5952 = vld [vmem:[%s5948 + $0x14] sm:$0xf]
    %v5953 = vld [vmem:[%s5948 + $0x18] sm:$0xff]
    %v5954 = vld [vmem:[%s5948 + $0x20] sm:$0xf]
    %v5955 = vld [vmem:[%s5948 + $0x24] sm:$0xff]
    %v5956 = vld [vmem:[%s5948 + $0x2c] sm:$0xf]
    %v5957 = vld [vmem:[%s5948 + $0x30] sm:$0xff]
    %v5958 = vld [vmem:[%s5948 + $0x38] sm:$0xf]
    %v5959 = vld [vmem:[%s5948 + $0x3c] sm:$0xff]
    %v5960 = vld [vmem:[%s5948 + $0x44] sm:$0xf]
    %v5961 = vld [vmem:[%s5948 + $0x48] sm:$0xff]
    %v5962 = vld [vmem:[%s5948 + $0x50] sm:$0xf]
    %v5963 = vld [vmem:[%s5948 + $0x54] sm:$0xff]
    %v5964 = vld [vmem:[%s5948 + $0x5c] sm:$0xf]
    %v5981 = vunpack.c.l.b16 %v5949
    %v5982 = vunpack.c.h.b16 %v5949
    %v5983 = vunpack.c.l.b16 %v5950
    %v5984 = vunpack.c.l.b16 %v5951
    %v5985 = vunpack.c.h.b16 %v5951
    %v5986 = vunpack.c.l.b16 %v5952
    %v5987 = vunpack.c.l.b16 %v5953
    %v5988 = vunpack.c.h.b16 %v5953
    %v5989 = vunpack.c.l.b16 %v5954
    %v5990 = vunpack.c.l.b16 %v5955
    %v5991 = vunpack.c.h.b16 %v5955
    %v5992 = vunpack.c.l.b16 %v5956
    %v5993 = vunpack.c.l.b16 %v5957
    %v5994 = vunpack.c.h.b16 %v5957
    %v5995 = vunpack.c.l.b16 %v5958
    %v5996 = vunpack.c.l.b16 %v5959
    %v5997 = vunpack.c.h.b16 %v5959
    %v5998 = vunpack.c.l.b16 %v5960
    %v5999 = vunpack.c.l.b16 %v5961
    %v6000 = vunpack.c.h.b16 %v5961
    %v6001 = vunpack.c.l.b16 %v5962
    %v6002 = vunpack.c.l.b16 %v5963
    %v6003 = vunpack.c.h.b16 %v5963
    %v6004 = vunpack.c.l.b16 %v5964
    %v6005 = vpack.c.b16 %v5984, %v5981
    %v6006 = vpack.c.b16 %v5985, %v5982
    %v6007 = vpack.c.b16 %v5986, %v5983
    %v6008 = vpack.c.b16 %v5990, %v5987
    %v6009 = vpack.c.b16 %v5991, %v5988
    %v6010 = vpack.c.b16 %v5992, %v5989
    %v6011 = vpack.c.b16 %v5996, %v5993
    %v6012 = vpack.c.b16 %v5997, %v5994
    %v6013 = vpack.c.b16 %v5998, %v5995
    %v6014 = vpack.c.b16 %v6002, %v5999
    %v6015 = vpack.c.b16 %v6003, %v6000
    %v6016 = vpack.c.b16 %v6004, %v6001
    %v6030 = vsel %vm51, %v5947, 0
    %6032 = vmatprep.subr.bf16.mxu0 %v6006
    %6033 = vmatpush1.bf16.msra.mxu0 %v6005
    %6034 = vmatprep.subr.bf16.mxu0 %v6009
    %6035 = vmatpush1.bf16.msra.mxu0 %v6008
    %6036 = vmatprep.subr.bf16.mxu0 %v6012
    %6037 = vmatpush1.bf16.msra.mxu0 %v6011
    %6038 = vmatprep.subr.bf16.mxu0 %v6015
    %6039 = vmatpush1.bf16.msra.mxu0 %v6014
    %6040 = vmatprep.subr.bf16.mxu0 0
    %6041 = vmatpush1.bf16.msra.mxu0 0
    %6042 = vmatprep.subr.bf16.mxu0 0
    %6043 = vmatpush1.bf16.msra.mxu0 0
    %6044 = vmatprep.subr.bf16.mxu0 0
    %6045 = vmatpush1.bf16.msra.mxu0 0
    %6046 = vmatprep.subr.bf16.mxu0 0
    %6047 = vmatpush1.bf16.msra.mxu0 0
    %6048 = vmatprep.subr.bf16.mxu0 0
    %6049 = vmatpush1.bf16.msra.mxu0 0
    %6050 = vmatprep.subr.bf16.mxu0 0
    %6051 = vmatpush1.bf16.msra.mxu0 0
    %6052 = vmatprep.subr.bf16.mxu0 0
    %6053 = vmatpush1.bf16.msra.mxu0 0
    %6054 = vmatprep.subr.bf16.mxu0 0
    %6055 = vmatpush1.bf16.msra.mxu0 0
    %6056 = vmatprep.subr.bf16.mxu0 0
    %6057 = vmatpush1.bf16.msra.mxu0 0
    %6058 = vmatprep.subr.bf16.mxu0 0
    %6059 = vmatpush1.bf16.msra.mxu0 0
    %6060 = vmatprep.subr.bf16.mxu0 0
    %6061 = vmatpush1.bf16.msra.mxu0 0
    %6062 = vmatprep.subr.bf16.mxu0 0
    %6063 = vmatpush1.bf16.msra.mxu0 0
    %6064 = vmatprep.mubr.bf16.mxu0 0
    %6065 = vmatmul.mubr.bf16.gmra.mrb[0].mxu0 %v6030
    %v6066 = vpop.f32.mrb[0].mxu0
    %v6067 = vadd.f32 0.0, %v6066
    %v6068 = vpop.f32.mrb[0].mxu0
    %v6069 = vadd.f32 0.0, %v6068
    %v6070 = vpop.f32.mrb[0].mxu0
    %v6071 = vadd.f32 0.0, %v6070
    %v6072 = vpop.f32.mrb[0].mxu0
    %v6073 = vadd.f32 0.0, %v6072
    %6074 = vdwg.mxu0
    %6075 = vmatprep.subr.bf16.mxu0 0
    %6076 = vmatpush1.bf16.msra.mxu0 %v6007
    %6077 = vmatprep.subr.bf16.mxu0 0
    %6078 = vmatpush1.bf16.msra.mxu0 %v6010
    %6079 = vmatprep.subr.bf16.mxu0 0
    %6080 = vmatpush1.bf16.msra.mxu0 %v6013
    %6081 = vmatprep.subr.bf16.mxu0 0
    %6082 = vmatpush1.bf16.msra.mxu0 %v6016
    %6083 = vmatprep.subr.bf16.mxu0 0
    %6084 = vmatpush1.bf16.msra.mxu0 0
    %6085 = vmatprep.subr.bf16.mxu0 0
    %6086 = vmatpush1.bf16.msra.mxu0 0
    %6087 = vmatprep.subr.bf16.mxu0 0
    %6088 = vmatpush1.bf16.msra.mxu0 0
    %6089 = vmatprep.subr.bf16.mxu0 0
    %6090 = vmatpush1.bf16.msra.mxu0 0
    %6091 = vmatprep.subr.bf16.mxu0 0
    %6092 = vmatpush1.bf16.msra.mxu0 0
    %6093 = vmatprep.subr.bf16.mxu0 0
    %6094 = vmatpush1.bf16.msra.mxu0 0
    %6095 = vmatprep.subr.bf16.mxu0 0
    %6096 = vmatpush1.bf16.msra.mxu0 0
    %6097 = vmatprep.subr.bf16.mxu0 0
    %6098 = vmatpush1.bf16.msra.mxu0 0
    %6099 = vmatprep.subr.bf16.mxu0 0
    %6100 = vmatpush1.bf16.msra.mxu0 0
    %6101 = vmatprep.subr.bf16.mxu0 0
    %6102 = vmatpush1.bf16.msra.mxu0 0
    %6103 = vmatprep.subr.bf16.mxu0 0
    %6104 = vmatpush1.bf16.msra.mxu0 0
    %6105 = vmatprep.subr.bf16.mxu0 0
    %6106 = vmatpush1.bf16.msra.mxu0 0
    %6107 = vmatprep.mubr.bf16.mxu0 0
    %6108 = vmatmul.mubr.bf16.gmra.mrb[0].mxu0 %v6030
    %v6109 = vpop.f32.mrb[0].mxu0
    %v6110 = vadd.f32 0.0, %v6109
    %v6111 = vpop.f32.mrb[0].mxu0
    %v6112 = vpop.f32.mrb[0].mxu0
    %v6113 = vadd.f32 0.0, %v6112
    %v6114 = vpop.f32.mrb[0].mxu0
    %6115 = vdwg.mxu0
    %v6116 = vmul.f32 %v6067, %v42
    %v6117 = vmul.f32 %v6071, %v43
    %v6118 = vmul.f32 %v6067, %v248
    %v6119 = vmul.f32 %v6071, %v250
    %6122 = vrot.lane.b32.xlu0 %v6118, 64
    %v6123 = vpop.permute.xlu0 %6122
    %6124 = vrot.lane.b32.xlu0 %v6119, 64
    %v6125 = vpop.permute.xlu0 %6124
    %v6128 = vadd.f32 %v6116, %v6123
    %v6129 = vadd.f32 %v6117, %v6125
    %v6130 = vmul.f32 %v6069, %v42
    %v6131 = vmul.f32 %v6073, %v43
    %v6132 = vmul.f32 %v6069, %v248
    %v6133 = vmul.f32 %v6073, %v250
    %6136 = vrot.lane.b32.xlu0 %v6132, 64
    %v6137 = vpop.permute.xlu0 %6136
    %6138 = vrot.lane.b32.xlu0 %v6133, 64
    %v6139 = vpop.permute.xlu0 %6138
    %v6142 = vadd.f32 %v6130, %v6137
    %v6143 = vadd.f32 %v6131, %v6139
    %v6144 = vpack.c.bf16 %v6129, %v6128
    %v6146 = vunpack.c.l.b16 %v6144
    %v6147 = vunpack.c.h.b16 %v6144
    %v6148 = vpack.c.b16 %v6146, %v6146
    %v6149 = vpack.c.b16 %v6147, %v6147
    %v6150 = vpack.c.bf16 %v6143, %v6142
    %v6152 = vunpack.c.l.b16 %v6150
    %v6153 = vunpack.c.h.b16 %v6150
    %v6154 = vpack.c.b16 %v6152, %v6152
    %v6155 = vpack.c.b16 %v6153, %v6153
    %v6156 = vpack.c.bf16 %v6113, %v6110
    %v6158 = vunpack.c.l.b16 %v6156
    %v6159 = vunpack.c.h.b16 %v6156
    %v6160 = vpack.c.b16 %v6158, %v6158
    %v6161 = vpack.c.b16 %v6159, %v6159
    %v6163 = vsel %vm297, %v6148, 0
    %v6166 = vsel %vm297, %v6154, 0
    %6168 = vmatprep.subr.bf16.mxu0 0
    %6169 = vmatpush1.bf16.xpose.msra.mxu0 %v6166
    %6170 = vmatprep.subr.bf16.mxu0 0
    %6171 = vmatpush1.bf16.xpose.msra.mxu0 0
    %6172 = vmatprep.subr.bf16.mxu0 0
    %6173 = vmatpush1.bf16.xpose.msra.mxu0 0
    %6174 = vmatprep.subr.bf16.mxu0 0
    %6175 = vmatpush1.bf16.xpose.msra.mxu0 0
    %6176 = vmatprep.subr.bf16.mxu0 0
    %6177 = vmatpush1.bf16.xpose.msra.mxu0 0
    %6178 = vmatprep.subr.bf16.mxu0 0
    %6179 = vmatpush1.bf16.xpose.msra.mxu0 0
    %6180 = vmatprep.subr.bf16.mxu0 0
    %6181 = vmatpush1.bf16.xpose.msra.mxu0 0
    %6182 = vmatprep.subr.bf16.mxu0 0
    %6183 = vmatpush1.bf16.xpose.msra.mxu0 0
    %6184 = vmatprep.subr.bf16.mxu0 0
    %6185 = vmatpush1.bf16.xpose.msra.mxu0 0
    %6186 = vmatprep.subr.bf16.mxu0 0
    %6187 = vmatpush1.bf16.xpose.msra.mxu0 0
    %6188 = vmatprep.subr.bf16.mxu0 0
    %6189 = vmatpush1.bf16.xpose.msra.mxu0 0
    %6190 = vmatprep.subr.bf16.mxu0 0
    %6191 = vmatpush1.bf16.xpose.msra.mxu0 0
    %6192 = vmatprep.subr.bf16.mxu0 0
    %6193 = vmatpush1.bf16.xpose.msra.mxu0 0
    %6194 = vmatprep.subr.bf16.mxu0 0
    %6195 = vmatpush1.bf16.xpose.msra.mxu0 0
    %6196 = vmatprep.subr.bf16.mxu0 0
    %6197 = vmatpush1.bf16.xpose.msra.mxu0 0
    %6198 = vmatprep.subr.bf16.mxu0 0
    %6199 = vmatpush1.bf16.xpose.msra.mxu0 0
    %6200 = vmatprep.mubr.bf16.mxu0 0
    %6201 = vmatmul.mubr.bf16.gmra.mrb[0].mxu0 %v6163
    %v6202 = vpop.f32.mrb[0].mxu0
    %v6203 = vadd.f32 %v46, %v6202
    %v6204 = vpop.f32.mrb[0].mxu0
    %v6205 = vpop.f32.mrb[0].mxu0
    %v6206 = vpop.f32.mrb[0].mxu0
    %6207 = vdwg.mxu0
    %v6209 = vsel %vm297, %v6149, 0
    %v6212 = vsel %vm297, %v6155, 0
    %6214 = vmatprep.subr.bf16.mxu0 0
    %6215 = vmatpush1.bf16.xpose.msra.mxu0 %v6212
    %6216 = vmatprep.subr.bf16.mxu0 0
    %6217 = vmatpush1.bf16.xpose.msra.mxu0 0
    %6218 = vmatprep.subr.bf16.mxu0 0
    %6219 = vmatpush1.bf16.xpose.msra.mxu0 0
    %6220 = vmatprep.subr.bf16.mxu0 0
    %6221 = vmatpush1.bf16.xpose.msra.mxu0 0
    %6222 = vmatprep.subr.bf16.mxu0 0
    %6223 = vmatpush1.bf16.xpose.msra.mxu0 0
    %6224 = vmatprep.subr.bf16.mxu0 0
    %6225 = vmatpush1.bf16.xpose.msra.mxu0 0
    %6226 = vmatprep.subr.bf16.mxu0 0
    %6227 = vmatpush1.bf16.xpose.msra.mxu0 0
    %6228 = vmatprep.subr.bf16.mxu0 0
    %6229 = vmatpush1.bf16.xpose.msra.mxu0 0
    %6230 = vmatprep.subr.bf16.mxu0 0
    %6231 = vmatpush1.bf16.xpose.msra.mxu0 0
    %6232 = vmatprep.subr.bf16.mxu0 0
    %6233 = vmatpush1.bf16.xpose.msra.mxu0 0
    %6234 = vmatprep.subr.bf16.mxu0 0
    %6235 = vmatpush1.bf16.xpose.msra.mxu0 0
    %6236 = vmatprep.subr.bf16.mxu0 0
    %6237 = vmatpush1.bf16.xpose.msra.mxu0 0
    %6238 = vmatprep.subr.bf16.mxu0 0
    %6239 = vmatpush1.bf16.xpose.msra.mxu0 0
    %6240 = vmatprep.subr.bf16.mxu0 0
    %6241 = vmatpush1.bf16.xpose.msra.mxu0 0
    %6242 = vmatprep.subr.bf16.mxu0 0
    %6243 = vmatpush1.bf16.xpose.msra.mxu0 0
    %6244 = vmatprep.subr.bf16.mxu0 0
    %6245 = vmatpush1.bf16.xpose.msra.mxu0 0
    %6246 = vmatprep.mubr.bf16.mxu0 0
    %6247 = vmatmul.mubr.bf16.gmra.mrb[0].mxu0 %v6209
    %v6248 = vpop.f32.mrb[0].mxu0
    %v6249 = vadd.f32 %v47, %v6248
    %v6250 = vpop.f32.mrb[0].mxu0
    %v6251 = vpop.f32.mrb[0].mxu0
    %v6252 = vpop.f32.mrb[0].mxu0
    %6253 = vdwg.mxu0
    %v6254 = vsel %vm390, %v6203, -inf
    %6255 = vmax.xlane.f32.xlu0 %v6254
    %v6256 = vpop.xlane.xlu0 %6255
    %v6257 = vsel %vm390, %v6249, -inf
    %6258 = vmax.xlane.f32.xlu0 %v6257
    %v6259 = vpop.xlane.xlu0 %6258
    %v6260 = vsub.f32 %v6203, %v6256
    %v6261 = vsub.f32 %v6249, %v6259
    %v6262 = vmul.f32 %v6260, 1.442695
    %v6263 = vpow.pop %v6262
    %v6264 = vmul.f32 %v6261, 1.442695
    %v6265 = vpow.pop %v6264
    %v6266 = vsel %vm390, %v6263, 0.0
    %6267 = vadd.xlane.f32.xlu0 %v6266
    %v6268 = vpop.xlane.xlu0 %6267
    %v6269 = vsel %vm390, %v6265, 0.0
    %6270 = vadd.xlane.f32.xlu0 %v6269
    %v6271 = vpop.xlane.xlu0 %6270
    %v6272 = vrcp.pop %v6268
    %v6273 = vrcp.pop %v6271
    %v6274 = vmul.f32 %v6263, %v6272
    %v6275 = vmul.f32 %v6265, %v6273
    %v6276 = vpack.c.bf16 %v6274, %v6274
    %v6277 = vpack.c.bf16 %v6275, %v6275
    %v6279 = vsel %vm390, %v6276, 0
    %v6282 = vsel %vm418, %v6160, 0
    %6284 = vmatprep.subr.bf16.mxu0 0
    %6285 = vmatpush1.bf16.msra.mxu0 %v6282
    %6286 = vmatprep.subr.bf16.mxu0 0
    %6287 = vmatpush1.bf16.msra.mxu0 0
    %6288 = vmatprep.subr.bf16.mxu0 0
    %6289 = vmatpush1.bf16.msra.mxu0 0
    %6290 = vmatprep.subr.bf16.mxu0 0
    %6291 = vmatpush1.bf16.msra.mxu0 0
    %6292 = vmatprep.subr.bf16.mxu0 0
    %6293 = vmatpush1.bf16.msra.mxu0 0
    %6294 = vmatprep.subr.bf16.mxu0 0
    %6295 = vmatpush1.bf16.msra.mxu0 0
    %6296 = vmatprep.subr.bf16.mxu0 0
    %6297 = vmatpush1.bf16.msra.mxu0 0
    %6298 = vmatprep.subr.bf16.mxu0 0
    %6299 = vmatpush1.bf16.msra.mxu0 0
    %6300 = vmatprep.subr.bf16.mxu0 0
    %6301 = vmatpush1.bf16.msra.mxu0 0
    %6302 = vmatprep.subr.bf16.mxu0 0
    %6303 = vmatpush1.bf16.msra.mxu0 0
    %6304 = vmatprep.subr.bf16.mxu0 0
    %6305 = vmatpush1.bf16.msra.mxu0 0
    %6306 = vmatprep.subr.bf16.mxu0 0
    %6307 = vmatpush1.bf16.msra.mxu0 0
    %6308 = vmatprep.subr.bf16.mxu0 0
    %6309 = vmatpush1.bf16.msra.mxu0 0
    %6310 = vmatprep.subr.bf16.mxu0 0
    %6311 = vmatpush1.bf16.msra.mxu0 0
    %6312 = vmatprep.subr.bf16.mxu0 0
    %6313 = vmatpush1.bf16.msra.mxu0 0
    %6314 = vmatprep.subr.bf16.mxu0 0
    %6315 = vmatpush1.bf16.msra.mxu0 0
    %6316 = vmatprep.mubr.bf16.mxu0 0
    %6317 = vmatmul.mubr.bf16.gmra.mrb[0].mxu0 %v6279
    %v6318 = vpop.f32.mrb[0].mxu0
    %v6319 = vadd.f32 0.0, %v6318
    %v6320 = vpop.f32.mrb[0].mxu0
    %v6321 = vpop.f32.mrb[0].mxu0
    %v6322 = vpop.f32.mrb[0].mxu0
    %6323 = vdwg.mxu0
    %v6325 = vsel %vm390, %v6277, 0
    %v6328 = vsel %vm418, %v6161, 0
    %6330 = vmatprep.subr.bf16.mxu0 0
    %6331 = vmatpush1.bf16.msra.mxu0 %v6328
    %6332 = vmatprep.subr.bf16.mxu0 0
    %6333 = vmatpush1.bf16.msra.mxu0 0
    %6334 = vmatprep.subr.bf16.mxu0 0
    %6335 = vmatpush1.bf16.msra.mxu0 0
    %6336 = vmatprep.subr.bf16.mxu0 0
    %6337 = vmatpush1.bf16.msra.mxu0 0
    %6338 = vmatprep.subr.bf16.mxu0 0
    %6339 = vmatpush1.bf16.msra.mxu0 0
    %6340 = vmatprep.subr.bf16.mxu0 0
    %6341 = vmatpush1.bf16.msra.mxu0 0
    %6342 = vmatprep.subr.bf16.mxu0 0
    %6343 = vmatpush1.bf16.msra.mxu0 0
    %6344 = vmatprep.subr.bf16.mxu0 0
    %6345 = vmatpush1.bf16.msra.mxu0 0
    %6346 = vmatprep.subr.bf16.mxu0 0
    %6347 = vmatpush1.bf16.msra.mxu0 0
    %6348 = vmatprep.subr.bf16.mxu0 0
    %6349 = vmatpush1.bf16.msra.mxu0 0
    %6350 = vmatprep.subr.bf16.mxu0 0
    %6351 = vmatpush1.bf16.msra.mxu0 0
    %6352 = vmatprep.subr.bf16.mxu0 0
    %6353 = vmatpush1.bf16.msra.mxu0 0
    %6354 = vmatprep.subr.bf16.mxu0 0
    %6355 = vmatpush1.bf16.msra.mxu0 0
    %6356 = vmatprep.subr.bf16.mxu0 0
    %6357 = vmatpush1.bf16.msra.mxu0 0
    %6358 = vmatprep.subr.bf16.mxu0 0
    %6359 = vmatpush1.bf16.msra.mxu0 0
    %6360 = vmatprep.subr.bf16.mxu0 0
    %6361 = vmatpush1.bf16.msra.mxu0 0
    %6362 = vmatprep.mubr.bf16.mxu0 0
    %6363 = vmatmul.mubr.bf16.gmra.mrb[0].mxu0 %v6325
    %v6364 = vpop.f32.mrb[0].mxu0
    %v6365 = vadd.f32 0.0, %v6364
    %v6366 = vpop.f32.mrb[0].mxu0
    %v6367 = vpop.f32.mrb[0].mxu0
    %v6368 = vpop.f32.mrb[0].mxu0
    %6369 = vdwg.mxu0
    %6370 = vrot.lane.b32.xlu0 %v6148, 112
    %v6371 = vpop.permute.xlu0 %6370
    %6372 = vrot.lane.b32.xlu0 %v6154, 112
    %v6373 = vpop.permute.xlu0 %6372
    %v6375 = vsel %vm297, %v6371, 0
    %v6378 = vsel %vm297, %v6373, 0
    %6380 = vmatprep.subr.bf16.mxu0 0
    %6381 = vmatpush1.bf16.xpose.msra.mxu0 %v6378
    %6382 = vmatprep.subr.bf16.mxu0 0
    %6383 = vmatpush1.bf16.xpose.msra.mxu0 0
    %6384 = vmatprep.subr.bf16.mxu0 0
    %6385 = vmatpush1.bf16.xpose.msra.mxu0 0
    %6386 = vmatprep.subr.bf16.mxu0 0
    %6387 = vmatpush1.bf16.xpose.msra.mxu0 0
    %6388 = vmatprep.subr.bf16.mxu0 0
    %6389 = vmatpush1.bf16.xpose.msra.mxu0 0
    %6390 = vmatprep.subr.bf16.mxu0 0
    %6391 = vmatpush1.bf16.xpose.msra.mxu0 0
    %6392 = vmatprep.subr.bf16.mxu0 0
    %6393 = vmatpush1.bf16.xpose.msra.mxu0 0
    %6394 = vmatprep.subr.bf16.mxu0 0
    %6395 = vmatpush1.bf16.xpose.msra.mxu0 0
    %6396 = vmatprep.subr.bf16.mxu0 0
    %6397 = vmatpush1.bf16.xpose.msra.mxu0 0
    %6398 = vmatprep.subr.bf16.mxu0 0
    %6399 = vmatpush1.bf16.xpose.msra.mxu0 0
    %6400 = vmatprep.subr.bf16.mxu0 0
    %6401 = vmatpush1.bf16.xpose.msra.mxu0 0
    %6402 = vmatprep.subr.bf16.mxu0 0
    %6403 = vmatpush1.bf16.xpose.msra.mxu0 0
    %6404 = vmatprep.subr.bf16.mxu0 0
    %6405 = vmatpush1.bf16.xpose.msra.mxu0 0
    %6406 = vmatprep.subr.bf16.mxu0 0
    %6407 = vmatpush1.bf16.xpose.msra.mxu0 0
    %6408 = vmatprep.subr.bf16.mxu0 0
    %6409 = vmatpush1.bf16.xpose.msra.mxu0 0
    %6410 = vmatprep.subr.bf16.mxu0 0
    %6411 = vmatpush1.bf16.xpose.msra.mxu0 0
    %6412 = vmatprep.mubr.bf16.mxu0 0
    %6413 = vmatmul.mubr.bf16.gmra.mrb[0].mxu0 %v6375
    %v6414 = vpop.f32.mrb[0].mxu0
    %v6415 = vadd.f32 %v46, %v6414
    %v6416 = vpop.f32.mrb[0].mxu0
    %v6417 = vpop.f32.mrb[0].mxu0
    %v6418 = vpop.f32.mrb[0].mxu0
    %6419 = vdwg.mxu0
    %6420 = vrot.lane.b32.xlu0 %v6149, 112
    %v6421 = vpop.permute.xlu0 %6420
    %6422 = vrot.lane.b32.xlu0 %v6155, 112
    %v6423 = vpop.permute.xlu0 %6422
    %v6425 = vsel %vm297, %v6421, 0
    %v6428 = vsel %vm297, %v6423, 0
    %6430 = vmatprep.subr.bf16.mxu0 0
    %6431 = vmatpush1.bf16.xpose.msra.mxu0 %v6428
    %6432 = vmatprep.subr.bf16.mxu0 0
    %6433 = vmatpush1.bf16.xpose.msra.mxu0 0
    %6434 = vmatprep.subr.bf16.mxu0 0
    %6435 = vmatpush1.bf16.xpose.msra.mxu0 0
    %6436 = vmatprep.subr.bf16.mxu0 0
    %6437 = vmatpush1.bf16.xpose.msra.mxu0 0
    %6438 = vmatprep.subr.bf16.mxu0 0
    %6439 = vmatpush1.bf16.xpose.msra.mxu0 0
    %6440 = vmatprep.subr.bf16.mxu0 0
    %6441 = vmatpush1.bf16.xpose.msra.mxu0 0
    %6442 = vmatprep.subr.bf16.mxu0 0
    %6443 = vmatpush1.bf16.xpose.msra.mxu0 0
    %6444 = vmatprep.subr.bf16.mxu0 0
    %6445 = vmatpush1.bf16.xpose.msra.mxu0 0
    %6446 = vmatprep.subr.bf16.mxu0 0
    %6447 = vmatpush1.bf16.xpose.msra.mxu0 0
    %6448 = vmatprep.subr.bf16.mxu0 0
    %6449 = vmatpush1.bf16.xpose.msra.mxu0 0
    %6450 = vmatprep.subr.bf16.mxu0 0
    %6451 = vmatpush1.bf16.xpose.msra.mxu0 0
    %6452 = vmatprep.subr.bf16.mxu0 0
    %6453 = vmatpush1.bf16.xpose.msra.mxu0 0
    %6454 = vmatprep.subr.bf16.mxu0 0
    %6455 = vmatpush1.bf16.xpose.msra.mxu0 0
    %6456 = vmatprep.subr.bf16.mxu0 0
    %6457 = vmatpush1.bf16.xpose.msra.mxu0 0
    %6458 = vmatprep.subr.bf16.mxu0 0
    %6459 = vmatpush1.bf16.xpose.msra.mxu0 0
    %6460 = vmatprep.subr.bf16.mxu0 0
    %6461 = vmatpush1.bf16.xpose.msra.mxu0 0
    %6462 = vmatprep.mubr.bf16.mxu0 0
    %6463 = vmatmul.mubr.bf16.gmra.mrb[0].mxu0 %v6425
    %v6464 = vpop.f32.mrb[0].mxu0
    %v6465 = vadd.f32 %v47, %v6464
    %v6466 = vpop.f32.mrb[0].mxu0
    %v6467 = vpop.f32.mrb[0].mxu0
    %v6468 = vpop.f32.mrb[0].mxu0
    %6469 = vdwg.mxu0
    %v6470 = vsel %vm390, %v6415, -inf
    %6471 = vmax.xlane.f32.xlu0 %v6470
    %v6472 = vpop.xlane.xlu0 %6471
    %v6473 = vsel %vm390, %v6465, -inf
    %6474 = vmax.xlane.f32.xlu0 %v6473
    %v6475 = vpop.xlane.xlu0 %6474
    %v6476 = vsub.f32 %v6415, %v6472
    %v6477 = vsub.f32 %v6465, %v6475
    %v6478 = vmul.f32 %v6476, 1.442695
    %v6479 = vpow.pop %v6478
    %v6480 = vmul.f32 %v6477, 1.442695
    %v6481 = vpow.pop %v6480
    %v6482 = vsel %vm390, %v6479, 0.0
    %6483 = vadd.xlane.f32.xlu0 %v6482
    %v6484 = vpop.xlane.xlu0 %6483
    %v6485 = vsel %vm390, %v6481, 0.0
    %6486 = vadd.xlane.f32.xlu0 %v6485
    %v6487 = vpop.xlane.xlu0 %6486
    %v6488 = vrcp.pop %v6484
    %v6489 = vrcp.pop %v6487
    %v6490 = vmul.f32 %v6479, %v6488
    %v6491 = vmul.f32 %v6481, %v6489
    %v6492 = vpack.c.bf16 %v6490, %v6490
    %v6493 = vpack.c.bf16 %v6491, %v6491
    %6494 = vrot.lane.b32.xlu0 %v6160, 112
    %v6495 = vpop.permute.xlu0 %6494
    %v6497 = vsel %vm390, %v6492, 0
    %v6500 = vsel %vm418, %v6495, 0
    %6502 = vmatprep.subr.bf16.mxu0 0
    %6503 = vmatpush1.bf16.msra.mxu0 %v6500
    %6504 = vmatprep.subr.bf16.mxu0 0
    %6505 = vmatpush1.bf16.msra.mxu0 0
    %6506 = vmatprep.subr.bf16.mxu0 0
    %6507 = vmatpush1.bf16.msra.mxu0 0
    %6508 = vmatprep.subr.bf16.mxu0 0
    %6509 = vmatpush1.bf16.msra.mxu0 0
    %6510 = vmatprep.subr.bf16.mxu0 0
    %6511 = vmatpush1.bf16.msra.mxu0 0
    %6512 = vmatprep.subr.bf16.mxu0 0
    %6513 = vmatpush1.bf16.msra.mxu0 0
    %6514 = vmatprep.subr.bf16.mxu0 0
    %6515 = vmatpush1.bf16.msra.mxu0 0
    %6516 = vmatprep.subr.bf16.mxu0 0
    %6517 = vmatpush1.bf16.msra.mxu0 0
    %6518 = vmatprep.subr.bf16.mxu0 0
    %6519 = vmatpush1.bf16.msra.mxu0 0
    %6520 = vmatprep.subr.bf16.mxu0 0
    %6521 = vmatpush1.bf16.msra.mxu0 0
    %6522 = vmatprep.subr.bf16.mxu0 0
    %6523 = vmatpush1.bf16.msra.mxu0 0
    %6524 = vmatprep.subr.bf16.mxu0 0
    %6525 = vmatpush1.bf16.msra.mxu0 0
    %6526 = vmatprep.subr.bf16.mxu0 0
    %6527 = vmatpush1.bf16.msra.mxu0 0
    %6528 = vmatprep.subr.bf16.mxu0 0
    %6529 = vmatpush1.bf16.msra.mxu0 0
    %6530 = vmatprep.subr.bf16.mxu0 0
    %6531 = vmatpush1.bf16.msra.mxu0 0
    %6532 = vmatprep.subr.bf16.mxu0 0
    %6533 = vmatpush1.bf16.msra.mxu0 0
    %6534 = vmatprep.mubr.bf16.mxu0 0
    %6535 = vmatmul.mubr.bf16.gmra.mrb[0].mxu0 %v6497
    %v6536 = vpop.f32.mrb[0].mxu0
    %v6537 = vadd.f32 0.0, %v6536
    %v6538 = vpop.f32.mrb[0].mxu0
    %v6539 = vpop.f32.mrb[0].mxu0
    %v6540 = vpop.f32.mrb[0].mxu0
    %6541 = vdwg.mxu0
    %6542 = vrot.lane.b32.xlu0 %v6161, 112
    %v6543 = vpop.permute.xlu0 %6542
    %v6545 = vsel %vm390, %v6493, 0
    %v6548 = vsel %vm418, %v6543, 0
    %6550 = vmatprep.subr.bf16.mxu0 0
    %6551 = vmatpush1.bf16.msra.mxu0 %v6548
    %6552 = vmatprep.subr.bf16.mxu0 0
    %6553 = vmatpush1.bf16.msra.mxu0 0
    %6554 = vmatprep.subr.bf16.mxu0 0
    %6555 = vmatpush1.bf16.msra.mxu0 0
    %6556 = vmatprep.subr.bf16.mxu0 0
    %6557 = vmatpush1.bf16.msra.mxu0 0
    %6558 = vmatprep.subr.bf16.mxu0 0
    %6559 = vmatpush1.bf16.msra.mxu0 0
    %6560 = vmatprep.subr.bf16.mxu0 0
    %6561 = vmatpush1.bf16.msra.mxu0 0
    %6562 = vmatprep.subr.bf16.mxu0 0
    %6563 = vmatpush1.bf16.msra.mxu0 0
    %6564 = vmatprep.subr.bf16.mxu0 0
    %6565 = vmatpush1.bf16.msra.mxu0 0
    %6566 = vmatprep.subr.bf16.mxu0 0
    %6567 = vmatpush1.bf16.msra.mxu0 0
    %6568 = vmatprep.subr.bf16.mxu0 0
    %6569 = vmatpush1.bf16.msra.mxu0 0
    %6570 = vmatprep.subr.bf16.mxu0 0
    %6571 = vmatpush1.bf16.msra.mxu0 0
    %6572 = vmatprep.subr.bf16.mxu0 0
    %6573 = vmatpush1.bf16.msra.mxu0 0
    %6574 = vmatprep.subr.bf16.mxu0 0
    %6575 = vmatpush1.bf16.msra.mxu0 0
    %6576 = vmatprep.subr.bf16.mxu0 0
    %6577 = vmatpush1.bf16.msra.mxu0 0
    %6578 = vmatprep.subr.bf16.mxu0 0
    %6579 = vmatpush1.bf16.msra.mxu0 0
    %6580 = vmatprep.subr.bf16.mxu0 0
    %6581 = vmatpush1.bf16.msra.mxu0 0
    %6582 = vmatprep.mubr.bf16.mxu0 0
    %6583 = vmatmul.mubr.bf16.gmra.mrb[0].mxu0 %v6545
    %v6584 = vpop.f32.mrb[0].mxu0
    %v6585 = vadd.f32 0.0, %v6584
    %v6586 = vpop.f32.mrb[0].mxu0
    %v6587 = vpop.f32.mrb[0].mxu0
    %v6588 = vpop.f32.mrb[0].mxu0
    %6589 = vdwg.mxu0
    %6590 = vrot.lane.b32.xlu0 %v6148, 96
    %v6591 = vpop.permute.xlu0 %6590
    %6592 = vrot.lane.b32.xlu0 %v6154, 96
    %v6593 = vpop.permute.xlu0 %6592
    %v6595 = vsel %vm297, %v6591, 0
    %v6598 = vsel %vm297, %v6593, 0
    %6600 = vmatprep.subr.bf16.mxu0 0
    %6601 = vmatpush1.bf16.xpose.msra.mxu0 %v6598
    %6602 = vmatprep.subr.bf16.mxu0 0
    %6603 = vmatpush1.bf16.xpose.msra.mxu0 0
    %6604 = vmatprep.subr.bf16.mxu0 0
    %6605 = vmatpush1.bf16.xpose.msra.mxu0 0
    %6606 = vmatprep.subr.bf16.mxu0 0
    %6607 = vmatpush1.bf16.xpose.msra.mxu0 0
    %6608 = vmatprep.subr.bf16.mxu0 0
    %6609 = vmatpush1.bf16.xpose.msra.mxu0 0
    %6610 = vmatprep.subr.bf16.mxu0 0
    %6611 = vmatpush1.bf16.xpose.msra.mxu0 0
    %6612 = vmatprep.subr.bf16.mxu0 0
    %6613 = vmatpush1.bf16.xpose.msra.mxu0 0
    %6614 = vmatprep.subr.bf16.mxu0 0
    %6615 = vmatpush1.bf16.xpose.msra.mxu0 0
    %6616 = vmatprep.subr.bf16.mxu0 0
    %6617 = vmatpush1.bf16.xpose.msra.mxu0 0
    %6618 = vmatprep.subr.bf16.mxu0 0
    %6619 = vmatpush1.bf16.xpose.msra.mxu0 0
    %6620 = vmatprep.subr.bf16.mxu0 0
    %6621 = vmatpush1.bf16.xpose.msra.mxu0 0
    %6622 = vmatprep.subr.bf16.mxu0 0
    %6623 = vmatpush1.bf16.xpose.msra.mxu0 0
    %6624 = vmatprep.subr.bf16.mxu0 0
    %6625 = vmatpush1.bf16.xpose.msra.mxu0 0
    %6626 = vmatprep.subr.bf16.mxu0 0
    %6627 = vmatpush1.bf16.xpose.msra.mxu0 0
    %6628 = vmatprep.subr.bf16.mxu0 0
    %6629 = vmatpush1.bf16.xpose.msra.mxu0 0
    %6630 = vmatprep.subr.bf16.mxu0 0
    %6631 = vmatpush1.bf16.xpose.msra.mxu0 0
    %6632 = vmatprep.mubr.bf16.mxu0 0
    %6633 = vmatmul.mubr.bf16.gmra.mrb[0].mxu0 %v6595
    %v6634 = vpop.f32.mrb[0].mxu0
    %v6635 = vadd.f32 %v46, %v6634
    %v6636 = vpop.f32.mrb[0].mxu0
    %v6637 = vpop.f32.mrb[0].mxu0
    %v6638 = vpop.f32.mrb[0].mxu0
    %6639 = vdwg.mxu0
    %6640 = vrot.lane.b32.xlu0 %v6149, 96
    %v6641 = vpop.permute.xlu0 %6640
    %6642 = vrot.lane.b32.xlu0 %v6155, 96
    %v6643 = vpop.permute.xlu0 %6642
    %v6645 = vsel %vm297, %v6641, 0
    %v6648 = vsel %vm297, %v6643, 0
    %6650 = vmatprep.subr.bf16.mxu0 0
    %6651 = vmatpush1.bf16.xpose.msra.mxu0 %v6648
    %6652 = vmatprep.subr.bf16.mxu0 0
    %6653 = vmatpush1.bf16.xpose.msra.mxu0 0
    %6654 = vmatprep.subr.bf16.mxu0 0
    %6655 = vmatpush1.bf16.xpose.msra.mxu0 0
    %6656 = vmatprep.subr.bf16.mxu0 0
    %6657 = vmatpush1.bf16.xpose.msra.mxu0 0
    %6658 = vmatprep.subr.bf16.mxu0 0
    %6659 = vmatpush1.bf16.xpose.msra.mxu0 0
    %6660 = vmatprep.subr.bf16.mxu0 0
    %6661 = vmatpush1.bf16.xpose.msra.mxu0 0
    %6662 = vmatprep.subr.bf16.mxu0 0
    %6663 = vmatpush1.bf16.xpose.msra.mxu0 0
    %6664 = vmatprep.subr.bf16.mxu0 0
    %6665 = vmatpush1.bf16.xpose.msra.mxu0 0
    %6666 = vmatprep.subr.bf16.mxu0 0
    %6667 = vmatpush1.bf16.xpose.msra.mxu0 0
    %6668 = vmatprep.subr.bf16.mxu0 0
    %6669 = vmatpush1.bf16.xpose.msra.mxu0 0
    %6670 = vmatprep.subr.bf16.mxu0 0
    %6671 = vmatpush1.bf16.xpose.msra.mxu0 0
    %6672 = vmatprep.subr.bf16.mxu0 0
    %6673 = vmatpush1.bf16.xpose.msra.mxu0 0
    %6674 = vmatprep.subr.bf16.mxu0 0
    %6675 = vmatpush1.bf16.xpose.msra.mxu0 0
    %6676 = vmatprep.subr.bf16.mxu0 0
    %6677 = vmatpush1.bf16.xpose.msra.mxu0 0
    %6678 = vmatprep.subr.bf16.mxu0 0
    %6679 = vmatpush1.bf16.xpose.msra.mxu0 0
    %6680 = vmatprep.subr.bf16.mxu0 0
    %6681 = vmatpush1.bf16.xpose.msra.mxu0 0
    %6682 = vmatprep.mubr.bf16.mxu0 0
    %6683 = vmatmul.mubr.bf16.gmra.mrb[0].mxu0 %v6645
    %v6684 = vpop.f32.mrb[0].mxu0
    %v6685 = vadd.f32 %v47, %v6684
    %v6686 = vpop.f32.mrb[0].mxu0
    %v6687 = vpop.f32.mrb[0].mxu0
    %v6688 = vpop.f32.mrb[0].mxu0
    %6689 = vdwg.mxu0
    %v6690 = vsel %vm390, %v6635, -inf
    %6691 = vmax.xlane.f32.xlu0 %v6690
    %v6692 = vpop.xlane.xlu0 %6691
    %v6693 = vsel %vm390, %v6685, -inf
    %6694 = vmax.xlane.f32.xlu0 %v6693
    %v6695 = vpop.xlane.xlu0 %6694
    %v6696 = vsub.f32 %v6635, %v6692
    %v6697 = vsub.f32 %v6685, %v6695
    %v6698 = vmul.f32 %v6696, 1.442695
    %v6699 = vpow.pop %v6698
    %v6700 = vmul.f32 %v6697, 1.442695
    %v6701 = vpow.pop %v6700
    %v6702 = vsel %vm390, %v6699, 0.0
    %6703 = vadd.xlane.f32.xlu0 %v6702
    %v6704 = vpop.xlane.xlu0 %6703
    %v6705 = vsel %vm390, %v6701, 0.0
    %6706 = vadd.xlane.f32.xlu0 %v6705
    %v6707 = vpop.xlane.xlu0 %6706
    %v6708 = vrcp.pop %v6704
    %v6709 = vrcp.pop %v6707
    %v6710 = vmul.f32 %v6699, %v6708
    %v6711 = vmul.f32 %v6701, %v6709
    %v6712 = vpack.c.bf16 %v6710, %v6710
    %v6713 = vpack.c.bf16 %v6711, %v6711
    %6714 = vrot.lane.b32.xlu0 %v6160, 96
    %v6715 = vpop.permute.xlu0 %6714
    %v6717 = vsel %vm390, %v6712, 0
    %v6720 = vsel %vm418, %v6715, 0
    %6722 = vmatprep.subr.bf16.mxu0 0
    %6723 = vmatpush1.bf16.msra.mxu0 %v6720
    %6724 = vmatprep.subr.bf16.mxu0 0
    %6725 = vmatpush1.bf16.msra.mxu0 0
    %6726 = vmatprep.subr.bf16.mxu0 0
    %6727 = vmatpush1.bf16.msra.mxu0 0
    %6728 = vmatprep.subr.bf16.mxu0 0
    %6729 = vmatpush1.bf16.msra.mxu0 0
    %6730 = vmatprep.subr.bf16.mxu0 0
    %6731 = vmatpush1.bf16.msra.mxu0 0
    %6732 = vmatprep.subr.bf16.mxu0 0
    %6733 = vmatpush1.bf16.msra.mxu0 0
    %6734 = vmatprep.subr.bf16.mxu0 0
    %6735 = vmatpush1.bf16.msra.mxu0 0
    %6736 = vmatprep.subr.bf16.mxu0 0
    %6737 = vmatpush1.bf16.msra.mxu0 0
    %6738 = vmatprep.subr.bf16.mxu0 0
    %6739 = vmatpush1.bf16.msra.mxu0 0
    %6740 = vmatprep.subr.bf16.mxu0 0
    %6741 = vmatpush1.bf16.msra.mxu0 0
    %6742 = vmatprep.subr.bf16.mxu0 0
    %6743 = vmatpush1.bf16.msra.mxu0 0
    %6744 = vmatprep.subr.bf16.mxu0 0
    %6745 = vmatpush1.bf16.msra.mxu0 0
    %6746 = vmatprep.subr.bf16.mxu0 0
    %6747 = vmatpush1.bf16.msra.mxu0 0
    %6748 = vmatprep.subr.bf16.mxu0 0
    %6749 = vmatpush1.bf16.msra.mxu0 0
    %6750 = vmatprep.subr.bf16.mxu0 0
    %6751 = vmatpush1.bf16.msra.mxu0 0
    %6752 = vmatprep.subr.bf16.mxu0 0
    %6753 = vmatpush1.bf16.msra.mxu0 0
    %6754 = vmatprep.mubr.bf16.mxu0 0
    %6755 = vmatmul.mubr.bf16.gmra.mrb[0].mxu0 %v6717
    %v6756 = vpop.f32.mrb[0].mxu0
    %v6757 = vadd.f32 0.0, %v6756
    %v6758 = vpop.f32.mrb[0].mxu0
    %v6759 = vpop.f32.mrb[0].mxu0
    %v6760 = vpop.f32.mrb[0].mxu0
    %6761 = vdwg.mxu0
    %6762 = vrot.lane.b32.xlu0 %v6161, 96
    %v6763 = vpop.permute.xlu0 %6762
    %v6765 = vsel %vm390, %v6713, 0
    %v6768 = vsel %vm418, %v6763, 0
    %6770 = vmatprep.subr.bf16.mxu0 0
    %6771 = vmatpush1.bf16.msra.mxu0 %v6768
    %6772 = vmatprep.subr.bf16.mxu0 0
    %6773 = vmatpush1.bf16.msra.mxu0 0
    %6774 = vmatprep.subr.bf16.mxu0 0
    %6775 = vmatpush1.bf16.msra.mxu0 0
    %6776 = vmatprep.subr.bf16.mxu0 0
    %6777 = vmatpush1.bf16.msra.mxu0 0
    %6778 = vmatprep.subr.bf16.mxu0 0
    %6779 = vmatpush1.bf16.msra.mxu0 0
    %6780 = vmatprep.subr.bf16.mxu0 0
    %6781 = vmatpush1.bf16.msra.mxu0 0
    %6782 = vmatprep.subr.bf16.mxu0 0
    %6783 = vmatpush1.bf16.msra.mxu0 0
    %6784 = vmatprep.subr.bf16.mxu0 0
    %6785 = vmatpush1.bf16.msra.mxu0 0
    %6786 = vmatprep.subr.bf16.mxu0 0
    %6787 = vmatpush1.bf16.msra.mxu0 0
    %6788 = vmatprep.subr.bf16.mxu0 0
    %6789 = vmatpush1.bf16.msra.mxu0 0
    %6790 = vmatprep.subr.bf16.mxu0 0
    %6791 = vmatpush1.bf16.msra.mxu0 0
    %6792 = vmatprep.subr.bf16.mxu0 0
    %6793 = vmatpush1.bf16.msra.mxu0 0
    %6794 = vmatprep.subr.bf16.mxu0 0
    %6795 = vmatpush1.bf16.msra.mxu0 0
    %6796 = vmatprep.subr.bf16.mxu0 0
    %6797 = vmatpush1.bf16.msra.mxu0 0
    %6798 = vmatprep.subr.bf16.mxu0 0
    %6799 = vmatpush1.bf16.msra.mxu0 0
    %6800 = vmatprep.subr.bf16.mxu0 0
    %6801 = vmatpush1.bf16.msra.mxu0 0
    %6802 = vmatprep.mubr.bf16.mxu0 0
    %6803 = vmatmul.mubr.bf16.gmra.mrb[0].mxu0 %v6765
    %v6804 = vpop.f32.mrb[0].mxu0
    %v6805 = vadd.f32 0.0, %v6804
    %v6806 = vpop.f32.mrb[0].mxu0
    %v6807 = vpop.f32.mrb[0].mxu0
    %v6808 = vpop.f32.mrb[0].mxu0
    %6809 = vdwg.mxu0
    %6810 = vrot.lane.b32.xlu0 %v6148, 80
    %v6811 = vpop.permute.xlu0 %6810
    %6812 = vrot.lane.b32.xlu0 %v6154, 80
    %v6813 = vpop.permute.xlu0 %6812
    %v6815 = vsel %vm297, %v6811, 0
    %v6818 = vsel %vm297, %v6813, 0
    %6820 = vmatprep.subr.bf16.mxu0 0
    %6821 = vmatpush1.bf16.xpose.msra.mxu0 %v6818
    %6822 = vmatprep.subr.bf16.mxu0 0
    %6823 = vmatpush1.bf16.xpose.msra.mxu0 0
    %6824 = vmatprep.subr.bf16.mxu0 0
    %6825 = vmatpush1.bf16.xpose.msra.mxu0 0
    %6826 = vmatprep.subr.bf16.mxu0 0
    %6827 = vmatpush1.bf16.xpose.msra.mxu0 0
    %6828 = vmatprep.subr.bf16.mxu0 0
    %6829 = vmatpush1.bf16.xpose.msra.mxu0 0
    %6830 = vmatprep.subr.bf16.mxu0 0
    %6831 = vmatpush1.bf16.xpose.msra.mxu0 0
    %6832 = vmatprep.subr.bf16.mxu0 0
    %6833 = vmatpush1.bf16.xpose.msra.mxu0 0
    %6834 = vmatprep.subr.bf16.mxu0 0
    %6835 = vmatpush1.bf16.xpose.msra.mxu0 0
    %6836 = vmatprep.subr.bf16.mxu0 0
    %6837 = vmatpush1.bf16.xpose.msra.mxu0 0
    %6838 = vmatprep.subr.bf16.mxu0 0
    %6839 = vmatpush1.bf16.xpose.msra.mxu0 0
    %6840 = vmatprep.subr.bf16.mxu0 0
    %6841 = vmatpush1.bf16.xpose.msra.mxu0 0
    %6842 = vmatprep.subr.bf16.mxu0 0
    %6843 = vmatpush1.bf16.xpose.msra.mxu0 0
    %6844 = vmatprep.subr.bf16.mxu0 0
    %6845 = vmatpush1.bf16.xpose.msra.mxu0 0
    %6846 = vmatprep.subr.bf16.mxu0 0
    %6847 = vmatpush1.bf16.xpose.msra.mxu0 0
    %6848 = vmatprep.subr.bf16.mxu0 0
    %6849 = vmatpush1.bf16.xpose.msra.mxu0 0
    %6850 = vmatprep.subr.bf16.mxu0 0
    %6851 = vmatpush1.bf16.xpose.msra.mxu0 0
    %6852 = vmatprep.mubr.bf16.mxu0 0
    %6853 = vmatmul.mubr.bf16.gmra.mrb[0].mxu0 %v6815
    %v6854 = vpop.f32.mrb[0].mxu0
    %v6855 = vadd.f32 %v46, %v6854
    %v6856 = vpop.f32.mrb[0].mxu0
    %v6857 = vpop.f32.mrb[0].mxu0
    %v6858 = vpop.f32.mrb[0].mxu0
    %6859 = vdwg.mxu0
    %6860 = vrot.lane.b32.xlu0 %v6149, 80
    %v6861 = vpop.permute.xlu0 %6860
    %6862 = vrot.lane.b32.xlu0 %v6155, 80
    %v6863 = vpop.permute.xlu0 %6862
    %v6865 = vsel %vm297, %v6861, 0
    %v6868 = vsel %vm297, %v6863, 0
    %6870 = vmatprep.subr.bf16.mxu0 0
    %6871 = vmatpush1.bf16.xpose.msra.mxu0 %v6868
    %6872 = vmatprep.subr.bf16.mxu0 0
    %6873 = vmatpush1.bf16.xpose.msra.mxu0 0
    %6874 = vmatprep.subr.bf16.mxu0 0
    %6875 = vmatpush1.bf16.xpose.msra.mxu0 0
    %6876 = vmatprep.subr.bf16.mxu0 0
    %6877 = vmatpush1.bf16.xpose.msra.mxu0 0
    %6878 = vmatprep.subr.bf16.mxu0 0
    %6879 = vmatpush1.bf16.xpose.msra.mxu0 0
    %6880 = vmatprep.subr.bf16.mxu0 0
    %6881 = vmatpush1.bf16.xpose.msra.mxu0 0
    %6882 = vmatprep.subr.bf16.mxu0 0
    %6883 = vmatpush1.bf16.xpose.msra.mxu0 0
    %6884 = vmatprep.subr.bf16.mxu0 0
    %6885 = vmatpush1.bf16.xpose.msra.mxu0 0
    %6886 = vmatprep.subr.bf16.mxu0 0
    %6887 = vmatpush1.bf16.xpose.msra.mxu0 0
    %6888 = vmatprep.subr.bf16.mxu0 0
    %6889 = vmatpush1.bf16.xpose.msra.mxu0 0
    %6890 = vmatprep.subr.bf16.mxu0 0
    %6891 = vmatpush1.bf16.xpose.msra.mxu0 0
    %6892 = vmatprep.subr.bf16.mxu0 0
    %6893 = vmatpush1.bf16.xpose.msra.mxu0 0
    %6894 = vmatprep.subr.bf16.mxu0 0
    %6895 = vmatpush1.bf16.xpose.msra.mxu0 0
    %6896 = vmatprep.subr.bf16.mxu0 0
    %6897 = vmatpush1.bf16.xpose.msra.mxu0 0
    %6898 = vmatprep.subr.bf16.mxu0 0
    %6899 = vmatpush1.bf16.xpose.msra.mxu0 0
    %6900 = vmatprep.subr.bf16.mxu0 0
    %6901 = vmatpush1.bf16.xpose.msra.mxu0 0
    %6902 = vmatprep.mubr.bf16.mxu0 0
    %6903 = vmatmul.mubr.bf16.gmra.mrb[0].mxu0 %v6865
    %v6904 = vpop.f32.mrb[0].mxu0
    %v6905 = vadd.f32 %v47, %v6904
    %v6906 = vpop.f32.mrb[0].mxu0
    %v6907 = vpop.f32.mrb[0].mxu0
    %v6908 = vpop.f32.mrb[0].mxu0
    %6909 = vdwg.mxu0
    %v6910 = vsel %vm390, %v6855, -inf
    %6911 = vmax.xlane.f32.xlu0 %v6910
    %v6912 = vpop.xlane.xlu0 %6911
    %v6913 = vsel %vm390, %v6905, -inf
    %6914 = vmax.xlane.f32.xlu0 %v6913
    %v6915 = vpop.xlane.xlu0 %6914
    %v6916 = vsub.f32 %v6855, %v6912
    %v6917 = vsub.f32 %v6905, %v6915
    %v6918 = vmul.f32 %v6916, 1.442695
    %v6919 = vpow.pop %v6918
    %v6920 = vmul.f32 %v6917, 1.442695
    %v6921 = vpow.pop %v6920
    %v6922 = vsel %vm390, %v6919, 0.0
    %6923 = vadd.xlane.f32.xlu0 %v6922
    %v6924 = vpop.xlane.xlu0 %6923
    %v6925 = vsel %vm390, %v6921, 0.0
    %6926 = vadd.xlane.f32.xlu0 %v6925
    %v6927 = vpop.xlane.xlu0 %6926
    %v6928 = vrcp.pop %v6924
    %v6929 = vrcp.pop %v6927
    %v6930 = vmul.f32 %v6919, %v6928
    %v6931 = vmul.f32 %v6921, %v6929
    %v6932 = vpack.c.bf16 %v6930, %v6930
    %v6933 = vpack.c.bf16 %v6931, %v6931
    %6934 = vrot.lane.b32.xlu0 %v6160, 80
    %v6935 = vpop.permute.xlu0 %6934
    %v6937 = vsel %vm390, %v6932, 0
    %v6940 = vsel %vm418, %v6935, 0
    %6942 = vmatprep.subr.bf16.mxu0 0
    %6943 = vmatpush1.bf16.msra.mxu0 %v6940
    %6944 = vmatprep.subr.bf16.mxu0 0
    %6945 = vmatpush1.bf16.msra.mxu0 0
    %6946 = vmatprep.subr.bf16.mxu0 0
    %6947 = vmatpush1.bf16.msra.mxu0 0
    %6948 = vmatprep.subr.bf16.mxu0 0
    %6949 = vmatpush1.bf16.msra.mxu0 0
    %6950 = vmatprep.subr.bf16.mxu0 0
    %6951 = vmatpush1.bf16.msra.mxu0 0
    %6952 = vmatprep.subr.bf16.mxu0 0
    %6953 = vmatpush1.bf16.msra.mxu0 0
    %6954 = vmatprep.subr.bf16.mxu0 0
    %6955 = vmatpush1.bf16.msra.mxu0 0
    %6956 = vmatprep.subr.bf16.mxu0 0
    %6957 = vmatpush1.bf16.msra.mxu0 0
    %6958 = vmatprep.subr.bf16.mxu0 0
    %6959 = vmatpush1.bf16.msra.mxu0 0
    %6960 = vmatprep.subr.bf16.mxu0 0
    %6961 = vmatpush1.bf16.msra.mxu0 0
    %6962 = vmatprep.subr.bf16.mxu0 0
    %6963 = vmatpush1.bf16.msra.mxu0 0
    %6964 = vmatprep.subr.bf16.mxu0 0
    %6965 = vmatpush1.bf16.msra.mxu0 0
    %6966 = vmatprep.subr.bf16.mxu0 0
    %6967 = vmatpush1.bf16.msra.mxu0 0
    %6968 = vmatprep.subr.bf16.mxu0 0
    %6969 = vmatpush1.bf16.msra.mxu0 0
    %6970 = vmatprep.subr.bf16.mxu0 0
    %6971 = vmatpush1.bf16.msra.mxu0 0
    %6972 = vmatprep.subr.bf16.mxu0 0
    %6973 = vmatpush1.bf16.msra.mxu0 0
    %6974 = vmatprep.mubr.bf16.mxu0 0
    %6975 = vmatmul.mubr.bf16.gmra.mrb[0].mxu0 %v6937
    %v6976 = vpop.f32.mrb[0].mxu0
    %v6977 = vadd.f32 0.0, %v6976
    %v6978 = vpop.f32.mrb[0].mxu0
    %v6979 = vpop.f32.mrb[0].mxu0
    %v6980 = vpop.f32.mrb[0].mxu0
    %6981 = vdwg.mxu0
    %6982 = vrot.lane.b32.xlu0 %v6161, 80
    %v6983 = vpop.permute.xlu0 %6982
    %v6985 = vsel %vm390, %v6933, 0
    %v6988 = vsel %vm418, %v6983, 0
    %6990 = vmatprep.subr.bf16.mxu0 0
    %6991 = vmatpush1.bf16.msra.mxu0 %v6988
    %6992 = vmatprep.subr.bf16.mxu0 0
    %6993 = vmatpush1.bf16.msra.mxu0 0
    %6994 = vmatprep.subr.bf16.mxu0 0
    %6995 = vmatpush1.bf16.msra.mxu0 0
    %6996 = vmatprep.subr.bf16.mxu0 0
    %6997 = vmatpush1.bf16.msra.mxu0 0
    %6998 = vmatprep.subr.bf16.mxu0 0
    %6999 = vmatpush1.bf16.msra.mxu0 0
    %7000 = vmatprep.subr.bf16.mxu0 0
    %7001 = vmatpush1.bf16.msra.mxu0 0
    %7002 = vmatprep.subr.bf16.mxu0 0
    %7003 = vmatpush1.bf16.msra.mxu0 0
    %7004 = vmatprep.subr.bf16.mxu0 0
    %7005 = vmatpush1.bf16.msra.mxu0 0
    %7006 = vmatprep.subr.bf16.mxu0 0
    %7007 = vmatpush1.bf16.msra.mxu0 0
    %7008 = vmatprep.subr.bf16.mxu0 0
    %7009 = vmatpush1.bf16.msra.mxu0 0
    %7010 = vmatprep.subr.bf16.mxu0 0
    %7011 = vmatpush1.bf16.msra.mxu0 0
    %7012 = vmatprep.subr.bf16.mxu0 0
    %7013 = vmatpush1.bf16.msra.mxu0 0
    %7014 = vmatprep.subr.bf16.mxu0 0
    %7015 = vmatpush1.bf16.msra.mxu0 0
    %7016 = vmatprep.subr.bf16.mxu0 0
    %7017 = vmatpush1.bf16.msra.mxu0 0
    %7018 = vmatprep.subr.bf16.mxu0 0
    %7019 = vmatpush1.bf16.msra.mxu0 0
    %7020 = vmatprep.subr.bf16.mxu0 0
    %7021 = vmatpush1.bf16.msra.mxu0 0
    %7022 = vmatprep.mubr.bf16.mxu0 0
    %7023 = vmatmul.mubr.bf16.gmra.mrb[0].mxu0 %v6985
    %v7024 = vpop.f32.mrb[0].mxu0
    %v7025 = vadd.f32 0.0, %v7024
    %v7026 = vpop.f32.mrb[0].mxu0
    %v7027 = vpop.f32.mrb[0].mxu0
    %v7028 = vpop.f32.mrb[0].mxu0
    %7029 = vdwg.mxu0
    %7032 = vrot.lane.b32.xlu0 %v6537, 16
    %v7033 = vpop.permute.xlu0 %7032
    %7034 = vrot.lane.b32.xlu0 %v6585, 16
    %v7035 = vpop.permute.xlu0 %7034
    %7040 = vrot.lane.b32.xlu0 %v6757, 32
    %v7041 = vpop.permute.xlu0 %7040
    %7042 = vrot.lane.b32.xlu0 %v6805, 32
    %v7043 = vpop.permute.xlu0 %7042
    %7048 = vrot.lane.b32.xlu0 %v6977, 48
    %v7049 = vpop.permute.xlu0 %7048
    %7050 = vrot.lane.b32.xlu0 %v7025, 48
    %v7051 = vpop.permute.xlu0 %7050
    %v7054 = vsel %vm297, %v6319, %v7033
    %v7055 = vsel %vm297, %v6365, %v7035
    %v7056 = vsel %vm1194, %v7054, %v7041
    %v7057 = vsel %vm1194, %v7055, %v7043
    %v7058 = vsel %vm1197, %v7056, %v7049
    %v7059 = vsel %vm1197, %v7057, %v7051
    %v7060 = vpack.c.bf16 %v7059, %v7058
    %s7061 = scalar_lea.vmem %s6, 128
    %v7062 = vld [vmem:[%s7061] sm:$0xf]
    %v7063 = vld [vmem:[%s7061 + $0x4] sm:$0xf]
    %v7064 = vld [vmem:[%s7061 + $0x8] sm:$0xf]
    %v7065 = vld [vmem:[%s7061 + $0xc] sm:$0xf]
    %v7066 = vld [vmem:[%s7061 + $0x10] sm:$0xf]
    %v7067 = vld [vmem:[%s7061 + $0x14] sm:$0xf]
    %v7068 = vld [vmem:[%s7061 + $0x18] sm:$0xf]
    %v7069 = vld [vmem:[%s7061 + $0x1c] sm:$0xf]
    %v7078 = vunpack.c.l.b16 %v7062
    %v7079 = vunpack.c.l.b16 %v7063
    %v7080 = vunpack.c.l.b16 %v7064
    %v7081 = vunpack.c.l.b16 %v7065
    %v7082 = vunpack.c.l.b16 %v7066
    %v7083 = vunpack.c.l.b16 %v7067
    %v7084 = vunpack.c.l.b16 %v7068
    %v7085 = vunpack.c.l.b16 %v7069
    %v7086 = vpack.c.b16 %v7079, %v7078
    %v7087 = vpack.c.b16 %v7081, %v7080
    %v7088 = vpack.c.b16 %v7083, %v7082
    %v7089 = vpack.c.b16 %v7085, %v7084
    %v7095 = vsel %vm51, %v7060, 0
    %7097 = vmatprep.subr.bf16.mxu0 0
    %7098 = vmatpush1.bf16.msra.mxu0 %v7086
    %7099 = vmatprep.subr.bf16.mxu0 0
    %7100 = vmatpush1.bf16.msra.mxu0 %v7087
    %7101 = vmatprep.subr.bf16.mxu0 0
    %7102 = vmatpush1.bf16.msra.mxu0 %v7088
    %7103 = vmatprep.subr.bf16.mxu0 0
    %7104 = vmatpush1.bf16.msra.mxu0 %v7089
    %7105 = vmatprep.subr.bf16.mxu0 0
    %7106 = vmatpush1.bf16.msra.mxu0 0
    %7107 = vmatprep.subr.bf16.mxu0 0
    %7108 = vmatpush1.bf16.msra.mxu0 0
    %7109 = vmatprep.subr.bf16.mxu0 0
    %7110 = vmatpush1.bf16.msra.mxu0 0
    %7111 = vmatprep.subr.bf16.mxu0 0
    %7112 = vmatpush1.bf16.msra.mxu0 0
    %7113 = vmatprep.subr.bf16.mxu0 0
    %7114 = vmatpush1.bf16.msra.mxu0 0
    %7115 = vmatprep.subr.bf16.mxu0 0
    %7116 = vmatpush1.bf16.msra.mxu0 0
    %7117 = vmatprep.subr.bf16.mxu0 0
    %7118 = vmatpush1.bf16.msra.mxu0 0
    %7119 = vmatprep.subr.bf16.mxu0 0
    %7120 = vmatpush1.bf16.msra.mxu0 0
    %7121 = vmatprep.subr.bf16.mxu0 0
    %7122 = vmatpush1.bf16.msra.mxu0 0
    %7123 = vmatprep.subr.bf16.mxu0 0
    %7124 = vmatpush1.bf16.msra.mxu0 0
    %7125 = vmatprep.subr.bf16.mxu0 0
    %7126 = vmatpush1.bf16.msra.mxu0 0
    %7127 = vmatprep.subr.bf16.mxu0 0
    %7128 = vmatpush1.bf16.msra.mxu0 0
    %7129 = vmatprep.mubr.bf16.mxu0 0
    %7130 = vmatmul.mubr.bf16.gmra.mrb[0].mxu0 %v7095
    %v7131 = vpop.f32.mrb[0].mxu0
    %v7132 = vadd.f32 0.0, %v7131
    %v7133 = vpop.f32.mrb[0].mxu0
    %v7134 = vpop.f32.mrb[0].mxu0
    %v7135 = vadd.f32 0.0, %v7134
    %v7136 = vpop.f32.mrb[0].mxu0
    %7137 = vdwg.mxu0
    %v7138 = vadd.f32 %v5919, %v7132
    %v7139 = vadd.f32 %v5920, %v7135
    %s7140 = scalar_lea.vmem %s7, 4
    %v7141 = vld [vmem:[%s7140] sm:$0x1]
    %v7142 = vmul.f32 %v7138, %v7138
    %v7143 = vmul.f32 %v7139, %v7139
    %v7144 = vsel %vm51, %v7142, 0.0
    %7145 = vadd.xlane.f32.xlu0 %v7144
    %v7146 = vpop.xlane.xlu0 %7145
    %v7147 = vsel %vm51, %v7143, 0.0
    %7148 = vadd.xlane.f32.xlu0 %v7147
    %v7149 = vpop.xlane.xlu0 %7148
    %v7150 = vmul.f32 %v7146, %v58
    %v7151 = vmul.f32 %v7149, %v58
    %v7152 = vadd.f32 %v7150, 1e-06
    %v7153 = vadd.f32 %v7151, 1e-06
    %v7154 = vrsqrt.pop %v7152
    %v7155 = vrsqrt.pop %v7153
    %v7156 = vmul.f32 %v7138, %v7154
    %v7157 = vmul.f32 %v7139, %v7155
    %v7159 = vlaneseq
    %v7160 = vshrl.u32 %v7159, 7
    %v7161 = vsub.s32 0, %v7160
    %v7162 = vrot.slane %v7141, %v7161
    %v7164 = vmul.f32 %v7156, %v7162
    %v7165 = vmul.f32 %v7157, %v7162
    %v7166 = vpack.c.bf16 %v7165, %v7164
    %s7167 = scalar_lea.vmem %s8, 256
    %v7168 = vld [vmem:[%s7167] sm:$0xff]
    %v7169 = vld [vmem:[%s7167 + $0x8] sm:$0xff]
    %v7170 = vld [vmem:[%s7167 + $0x10] sm:$0xff]
    %v7171 = vld [vmem:[%s7167 + $0x18] sm:$0xff]
    %v7172 = vld [vmem:[%s7167 + $0x20] sm:$0xff]
    %v7173 = vld [vmem:[%s7167 + $0x28] sm:$0xff]
    %v7174 = vld [vmem:[%s7167 + $0x30] sm:$0xff]
    %v7175 = vld [vmem:[%s7167 + $0x38] sm:$0xff]
    %v7184 = vunpack.c.l.b16 %v7168
    %v7185 = vunpack.c.h.b16 %v7168
    %v7186 = vunpack.c.l.b16 %v7169
    %v7187 = vunpack.c.h.b16 %v7169
    %v7188 = vunpack.c.l.b16 %v7170
    %v7189 = vunpack.c.h.b16 %v7170
    %v7190 = vunpack.c.l.b16 %v7171
    %v7191 = vunpack.c.h.b16 %v7171
    %v7192 = vunpack.c.l.b16 %v7172
    %v7193 = vunpack.c.h.b16 %v7172
    %v7194 = vunpack.c.l.b16 %v7173
    %v7195 = vunpack.c.h.b16 %v7173
    %v7196 = vunpack.c.l.b16 %v7174
    %v7197 = vunpack.c.h.b16 %v7174
    %v7198 = vunpack.c.l.b16 %v7175
    %v7199 = vunpack.c.h.b16 %v7175
    %v7200 = vpack.c.b16 %v7186, %v7184
    %v7201 = vpack.c.b16 %v7187, %v7185
    %v7202 = vpack.c.b16 %v7190, %v7188
    %v7203 = vpack.c.b16 %v7191, %v7189
    %v7204 = vpack.c.b16 %v7194, %v7192
    %v7205 = vpack.c.b16 %v7195, %v7193
    %v7206 = vpack.c.b16 %v7198, %v7196
    %v7207 = vpack.c.b16 %v7199, %v7197
    %v7217 = vsel %vm51, %v7166, 0
    %7219 = vmatprep.subr.bf16.mxu0 %v7201
    %7220 = vmatpush1.bf16.msra.mxu0 %v7200
    %7221 = vmatprep.subr.bf16.mxu0 %v7203
    %7222 = vmatpush1.bf16.msra.mxu0 %v7202
    %7223 = vmatprep.subr.bf16.mxu0 %v7205
    %7224 = vmatpush1.bf16.msra.mxu0 %v7204
    %7225 = vmatprep.subr.bf16.mxu0 %v7207
    %7226 = vmatpush1.bf16.msra.mxu0 %v7206
    %7227 = vmatprep.subr.bf16.mxu0 0
    %7228 = vmatpush1.bf16.msra.mxu0 0
    %7229 = vmatprep.subr.bf16.mxu0 0
    %7230 = vmatpush1.bf16.msra.mxu0 0
    %7231 = vmatprep.subr.bf16.mxu0 0
    %7232 = vmatpush1.bf16.msra.mxu0 0
    %7233 = vmatprep.subr.bf16.mxu0 0
    %7234 = vmatpush1.bf16.msra.mxu0 0
    %7235 = vmatprep.subr.bf16.mxu0 0
    %7236 = vmatpush1.bf16.msra.mxu0 0
    %7237 = vmatprep.subr.bf16.mxu0 0
    %7238 = vmatpush1.bf16.msra.mxu0 0
    %7239 = vmatprep.subr.bf16.mxu0 0
    %7240 = vmatpush1.bf16.msra.mxu0 0
    %7241 = vmatprep.subr.bf16.mxu0 0
    %7242 = vmatpush1.bf16.msra.mxu0 0
    %7243 = vmatprep.subr.bf16.mxu0 0
    %7244 = vmatpush1.bf16.msra.mxu0 0
    %7245 = vmatprep.subr.bf16.mxu0 0
    %7246 = vmatpush1.bf16.msra.mxu0 0
    %7247 = vmatprep.subr.bf16.mxu0 0
    %7248 = vmatpush1.bf16.msra.mxu0 0
    %7249 = vmatprep.subr.bf16.mxu0 0
    %7250 = vmatpush1.bf16.msra.mxu0 0
    %7251 = vmatprep.mubr.bf16.mxu0 0
    %7252 = vmatmul.mubr.bf16.gmra.mrb[0].mxu0 %v7217
    %v7253 = vpop.f32.mrb[0].mxu0
    %v7254 = vadd.f32 0.0, %v7253
    %v7255 = vpop.f32.mrb[0].mxu0
    %v7256 = vadd.f32 0.0, %v7255
    %v7257 = vpop.f32.mrb[0].mxu0
    %v7258 = vadd.f32 0.0, %v7257
    %v7259 = vpop.f32.mrb[0].mxu0
    %v7260 = vadd.f32 0.0, %v7259
    %7261 = vdwg.mxu0
    %v7262 = vxor.u32 %v7254, 2147483648
    %v7263 = vxor.u32 %v7258, 2147483648
    %v7264 = vmul.f32 %v7262, 1.442695
    %v7265 = vpow.pop %v7264
    %v7266 = vmul.f32 %v7263, 1.442695
    %v7267 = vpow.pop %v7266
    %v7268 = vadd.f32 %v7265, 1.0
    %v7269 = vadd.f32 %v7267, 1.0
    %v7270 = vrcp.pop %v7268
    %v7271 = vmul.f32 1.0, %v7270
    %v7272 = vrcp.pop %v7269
    %v7273 = vmul.f32 1.0, %v7272
    %v7274 = vmul.f32 %v7254, %v7271
    %v7275 = vmul.f32 %v7258, %v7273
    %v7276 = vmul.f32 %v7274, %v7256
    %v7277 = vmul.f32 %v7275, %v7260
    %v7278 = vpack.c.bf16 %v7277, %v7276
    %s7279 = scalar_lea.vmem %s9, 256
    %v7280 = vld [vmem:[%s7279] sm:$0xf]
    %v7281 = vld [vmem:[%s7279 + $0x4] sm:$0xf]
    %v7282 = vld [vmem:[%s7279 + $0x8] sm:$0xf]
    %v7283 = vld [vmem:[%s7279 + $0xc] sm:$0xf]
    %v7284 = vld [vmem:[%s7279 + $0x10] sm:$0xf]
    %v7285 = vld [vmem:[%s7279 + $0x14] sm:$0xf]
    %v7286 = vld [vmem:[%s7279 + $0x18] sm:$0xf]
    %v7287 = vld [vmem:[%s7279 + $0x1c] sm:$0xf]
    %v7288 = vld [vmem:[%s7279 + $0x20] sm:$0xf]
    %v7289 = vld [vmem:[%s7279 + $0x24] sm:$0xf]
    %v7290 = vld [vmem:[%s7279 + $0x28] sm:$0xf]
    %v7291 = vld [vmem:[%s7279 + $0x2c] sm:$0xf]
    %v7292 = vld [vmem:[%s7279 + $0x30] sm:$0xf]
    %v7293 = vld [vmem:[%s7279 + $0x34] sm:$0xf]
    %v7294 = vld [vmem:[%s7279 + $0x38] sm:$0xf]
    %v7295 = vld [vmem:[%s7279 + $0x3c] sm:$0xf]
    %v7312 = vunpack.c.l.b16 %v7280
    %v7313 = vunpack.c.l.b16 %v7281
    %v7314 = vunpack.c.l.b16 %v7282
    %v7315 = vunpack.c.l.b16 %v7283
    %v7316 = vunpack.c.l.b16 %v7284
    %v7317 = vunpack.c.l.b16 %v7285
    %v7318 = vunpack.c.l.b16 %v7286
    %v7319 = vunpack.c.l.b16 %v7287
    %v7320 = vunpack.c.l.b16 %v7288
    %v7321 = vunpack.c.l.b16 %v7289
    %v7322 = vunpack.c.l.b16 %v7290
    %v7323 = vunpack.c.l.b16 %v7291
    %v7324 = vunpack.c.l.b16 %v7292
    %v7325 = vunpack.c.l.b16 %v7293
    %v7326 = vunpack.c.l.b16 %v7294
    %v7327 = vunpack.c.l.b16 %v7295
    %v7328 = vpack.c.b16 %v7313, %v7312
    %v7329 = vpack.c.b16 %v7315, %v7314
    %v7330 = vpack.c.b16 %v7317, %v7316
    %v7331 = vpack.c.b16 %v7319, %v7318
    %v7332 = vpack.c.b16 %v7321, %v7320
    %v7333 = vpack.c.b16 %v7323, %v7322
    %v7334 = vpack.c.b16 %v7325, %v7324
    %v7335 = vpack.c.b16 %v7327, %v7326
    %7344 = vmatprep.subr.bf16.mxu0 0
    %7345 = vmatpush1.bf16.msra.mxu0 %v7328
    %7346 = vmatprep.subr.bf16.mxu0 0
    %7347 = vmatpush1.bf16.msra.mxu0 %v7329
    %7348 = vmatprep.subr.bf16.mxu0 0
    %7349 = vmatpush1.bf16.msra.mxu0 %v7330
    %7350 = vmatprep.subr.bf16.mxu0 0
    %7351 = vmatpush1.bf16.msra.mxu0 %v7331
    %7352 = vmatprep.subr.bf16.mxu0 0
    %7353 = vmatpush1.bf16.msra.mxu0 %v7332
    %7354 = vmatprep.subr.bf16.mxu0 0
    %7355 = vmatpush1.bf16.msra.mxu0 %v7333
    %7356 = vmatprep.subr.bf16.mxu0 0
    %7357 = vmatpush1.bf16.msra.mxu0 %v7334
    %7358 = vmatprep.subr.bf16.mxu0 0
    %7359 = vmatpush1.bf16.msra.mxu0 %v7335
    %7360 = vmatprep.subr.bf16.mxu0 0
    %7361 = vmatpush1.bf16.msra.mxu0 0
    %7362 = vmatprep.subr.bf16.mxu0 0
    %7363 = vmatpush1.bf16.msra.mxu0 0
    %7364 = vmatprep.subr.bf16.mxu0 0
    %7365 = vmatpush1.bf16.msra.mxu0 0
    %7366 = vmatprep.subr.bf16.mxu0 0
    %7367 = vmatpush1.bf16.msra.mxu0 0
    %7368 = vmatprep.subr.bf16.mxu0 0
    %7369 = vmatpush1.bf16.msra.mxu0 0
    %7370 = vmatprep.subr.bf16.mxu0 0
    %7371 = vmatpush1.bf16.msra.mxu0 0
    %7372 = vmatprep.subr.bf16.mxu0 0
    %7373 = vmatpush1.bf16.msra.mxu0 0
    %7374 = vmatprep.subr.bf16.mxu0 0
    %7375 = vmatpush1.bf16.msra.mxu0 0
    %7376 = vmatprep.mubr.bf16.mxu0 0
    %7377 = vmatmul.mubr.bf16.gmra.mrb[0].mxu0 %v7278
    %v7378 = vpop.f32.mrb[0].mxu0
    %v7379 = vadd.f32 0.0, %v7378
    %v7380 = vpop.f32.mrb[0].mxu0
    %v7381 = vpop.f32.mrb[0].mxu0
    %v7382 = vadd.f32 0.0, %v7381
    %v7383 = vpop.f32.mrb[0].mxu0
    %7384 = vdwg.mxu0
    %v7385 = vadd.f32 %v7138, %v7379
    %v7386 = vadd.f32 %v7139, %v7382
    %s7387 = scalar_lea.vmem %s4, 5
    %v7388 = vld [vmem:[%s7387] sm:$0x1]
    %v7389 = vmul.f32 %v7385, %v7385
    %v7390 = vmul.f32 %v7386, %v7386
    %v7391 = vsel %vm51, %v7389, 0.0
    %7392 = vadd.xlane.f32.xlu0 %v7391
    %v7393 = vpop.xlane.xlu0 %7392
    %v7394 = vsel %vm51, %v7390, 0.0
    %7395 = vadd.xlane.f32.xlu0 %v7394
    %v7396 = vpop.xlane.xlu0 %7395
    %v7397 = vmul.f32 %v7393, %v58
    %v7398 = vmul.f32 %v7396, %v58
    %v7399 = vadd.f32 %v7397, 1e-06
    %v7400 = vadd.f32 %v7398, 1e-06
    %v7401 = vrsqrt.pop %v7399
    %v7402 = vrsqrt.pop %v7400
    %v7403 = vmul.f32 %v7385, %v7401
    %v7404 = vmul.f32 %v7386, %v7402
    %v7406 = vlaneseq
    %v7407 = vshrl.u32 %v7406, 7
    %v7408 = vsub.s32 0, %v7407
    %v7409 = vrot.slane %v7388, %v7408
    %v7411 = vmul.f32 %v7403, %v7409
    %v7412 = vmul.f32 %v7404, %v7409
    %v7413 = vpack.c.bf16 %v7412, %v7411
    %s7414 = scalar_lea.vmem %s5, 480
    %v7415 = vld [vmem:[%s7414] sm:$0xff]
    %v7416 = vld [vmem:[%s7414 + $0x8] sm:$0xf]
    %v7417 = vld [vmem:[%s7414 + $0xc] sm:$0xff]
    %v7418 = vld [vmem:[%s7414 + $0x14] sm:$0xf]
    %v7419 = vld [vmem:[%s7414 + $0x18] sm:$0xff]
    %v7420 = vld [vmem:[%s7414 + $0x20] sm:$0xf]
    %v7421 = vld [vmem:[%s7414 + $0x24] sm:$0xff]
    %v7422 = vld [vmem:[%s7414 + $0x2c] sm:$0xf]
    %v7423 = vld [vmem:[%s7414 + $0x30] sm:$0xff]
    %v7424 = vld [vmem:[%s7414 + $0x38] sm:$0xf]
    %v7425 = vld [vmem:[%s7414 + $0x3c] sm:$0xff]
    %v7426 = vld [vmem:[%s7414 + $0x44] sm:$0xf]
    %v7427 = vld [vmem:[%s7414 + $0x48] sm:$0xff]
    %v7428 = vld [vmem:[%s7414 + $0x50] sm:$0xf]
    %v7429 = vld [vmem:[%s7414 + $0x54] sm:$0xff]
    %v7430 = vld [vmem:[%s7414 + $0x5c] sm:$0xf]
    %v7447 = vunpack.c.l.b16 %v7415
    %v7448 = vunpack.c.h.b16 %v7415
    %v7449 = vunpack.c.l.b16 %v7416
    %v7450 = vunpack.c.l.b16 %v7417
    %v7451 = vunpack.c.h.b16 %v7417
    %v7452 = vunpack.c.l.b16 %v7418
    %v7453 = vunpack.c.l.b16 %v7419
    %v7454 = vunpack.c.h.b16 %v7419
    %v7455 = vunpack.c.l.b16 %v7420
    %v7456 = vunpack.c.l.b16 %v7421
    %v7457 = vunpack.c.h.b16 %v7421
    %v7458 = vunpack.c.l.b16 %v7422
    %v7459 = vunpack.c.l.b16 %v7423
    %v7460 = vunpack.c.h.b16 %v7423
    %v7461 = vunpack.c.l.b16 %v7424
    %v7462 = vunpack.c.l.b16 %v7425
    %v7463 = vunpack.c.h.b16 %v7425
    %v7464 = vunpack.c.l.b16 %v7426
    %v7465 = vunpack.c.l.b16 %v7427
    %v7466 = vunpack.c.h.b16 %v7427
    %v7467 = vunpack.c.l.b16 %v7428
    %v7468 = vunpack.c.l.b16 %v7429
    %v7469 = vunpack.c.h.b16 %v7429
    %v7470 = vunpack.c.l.b16 %v7430
    %v7471 = vpack.c.b16 %v7450, %v7447
    %v7472 = vpack.c.b16 %v7451, %v7448
    %v7473 = vpack.c.b16 %v7452, %v7449
    %v7474 = vpack.c.b16 %v7456, %v7453
    %v7475 = vpack.c.b16 %v7457, %v7454
    %v7476 = vpack.c.b16 %v7458, %v7455
    %v7477 = vpack.c.b16 %v7462, %v7459
    %v7478 = vpack.c.b16 %v7463, %v7460
    %v7479 = vpack.c.b16 %v7464, %v7461
    %v7480 = vpack.c.b16 %v7468, %v7465
    %v7481 = vpack.c.b16 %v7469, %v7466
    %v7482 = vpack.c.b16 %v7470, %v7467
    %v7496 = vsel %vm51, %v7413, 0
    %7498 = vmatprep.subr.bf16.mxu0 %v7472
    %7499 = vmatpush1.bf16.msra.mxu0 %v7471
    %7500 = vmatprep.subr.bf16.mxu0 %v7475
    %7501 = vmatpush1.bf16.msra.mxu0 %v7474
    %7502 = vmatprep.subr.bf16.mxu0 %v7478
    %7503 = vmatpush1.bf16.msra.mxu0 %v7477
    %7504 = vmatprep.subr.bf16.mxu0 %v7481
    %7505 = vmatpush1.bf16.msra.mxu0 %v7480
    %7506 = vmatprep.subr.bf16.mxu0 0
    %7507 = vmatpush1.bf16.msra.mxu0 0
    %7508 = vmatprep.subr.bf16.mxu0 0
    %7509 = vmatpush1.bf16.msra.mxu0 0
    %7510 = vmatprep.subr.bf16.mxu0 0
    %7511 = vmatpush1.bf16.msra.mxu0 0
    %7512 = vmatprep.subr.bf16.mxu0 0
    %7513 = vmatpush1.bf16.msra.mxu0 0
    %7514 = vmatprep.subr.bf16.mxu0 0
    %7515 = vmatpush1.bf16.msra.mxu0 0
    %7516 = vmatprep.subr.bf16.mxu0 0
    %7517 = vmatpush1.bf16.msra.mxu0 0
    %7518 = vmatprep.subr.bf16.mxu0 0
    %7519 = vmatpush1.bf16.msra.mxu0 0
    %7520 = vmatprep.subr.bf16.mxu0 0
    %7521 = vmatpush1.bf16.msra.mxu0 0
    %7522 = vmatprep.subr.bf16.mxu0 0
    %7523 = vmatpush1.bf16.msra.mxu0 0
    %7524 = vmatprep.subr.bf16.mxu0 0
    %7525 = vmatpush1.bf16.msra.mxu0 0
    %7526 = vmatprep.subr.bf16.mxu0 0
    %7527 = vmatpush1.bf16.msra.mxu0 0
    %7528 = vmatprep.subr.bf16.mxu0 0
    %7529 = vmatpush1.bf16.msra.mxu0 0
    %7530 = vmatprep.mubr.bf16.mxu0 0
    %7531 = vmatmul.mubr.bf16.gmra.mrb[0].mxu0 %v7496
    %v7532 = vpop.f32.mrb[0].mxu0
    %v7533 = vadd.f32 0.0, %v7532
    %v7534 = vpop.f32.mrb[0].mxu0
    %v7535 = vadd.f32 0.0, %v7534
    %v7536 = vpop.f32.mrb[0].mxu0
    %v7537 = vadd.f32 0.0, %v7536
    %v7538 = vpop.f32.mrb[0].mxu0
    %v7539 = vadd.f32 0.0, %v7538
    %7540 = vdwg.mxu0
    %7541 = vmatprep.subr.bf16.mxu0 0
    %7542 = vmatpush1.bf16.msra.mxu0 %v7473
    %7543 = vmatprep.subr.bf16.mxu0 0
    %7544 = vmatpush1.bf16.msra.mxu0 %v7476
    %7545 = vmatprep.subr.bf16.mxu0 0
    %7546 = vmatpush1.bf16.msra.mxu0 %v7479
    %7547 = vmatprep.subr.bf16.mxu0 0
    %7548 = vmatpush1.bf16.msra.mxu0 %v7482
    %7549 = vmatprep.subr.bf16.mxu0 0
    %7550 = vmatpush1.bf16.msra.mxu0 0
    %7551 = vmatprep.subr.bf16.mxu0 0
    %7552 = vmatpush1.bf16.msra.mxu0 0
    %7553 = vmatprep.subr.bf16.mxu0 0
    %7554 = vmatpush1.bf16.msra.mxu0 0
    %7555 = vmatprep.subr.bf16.mxu0 0
    %7556 = vmatpush1.bf16.msra.mxu0 0
    %7557 = vmatprep.subr.bf16.mxu0 0
    %7558 = vmatpush1.bf16.msra.mxu0 0
    %7559 = vmatprep.subr.bf16.mxu0 0
    %7560 = vmatpush1.bf16.msra.mxu0 0
    %7561 = vmatprep.subr.bf16.mxu0 0
    %7562 = vmatpush1.bf16.msra.mxu0 0
    %7563 = vmatprep.subr.bf16.mxu0 0
    %7564 = vmatpush1.bf16.msra.mxu0 0
    %7565 = vmatprep.subr.bf16.mxu0 0
    %7566 = vmatpush1.bf16.msra.mxu0 0
    %7567 = vmatprep.subr.bf16.mxu0 0
    %7568 = vmatpush1.bf16.msra.mxu0 0
    %7569 = vmatprep.subr.bf16.mxu0 0
    %7570 = vmatpush1.bf16.msra.mxu0 0
    %7571 = vmatprep.subr.bf16.mxu0 0
    %7572 = vmatpush1.bf16.msra.mxu0 0
    %7573 = vmatprep.mubr.bf16.mxu0 0
    %7574 = vmatmul.mubr.bf16.gmra.mrb[0].mxu0 %v7496
    %v7575 = vpop.f32.mrb[0].mxu0
    %v7576 = vadd.f32 0.0, %v7575
    %v7577 = vpop.f32.mrb[0].mxu0
    %v7578 = vpop.f32.mrb[0].mxu0
    %v7579 = vadd.f32 0.0, %v7578
    %v7580 = vpop.f32.mrb[0].mxu0
    %7581 = vdwg.mxu0
    %v7582 = vmul.f32 %v7533, %v42
    %v7583 = vmul.f32 %v7537, %v43
    %v7584 = vmul.f32 %v7533, %v248
    %v7585 = vmul.f32 %v7537, %v250
    %7588 = vrot.lane.b32.xlu0 %v7584, 64
    %v7589 = vpop.permute.xlu0 %7588
    %7590 = vrot.lane.b32.xlu0 %v7585, 64
    %v7591 = vpop.permute.xlu0 %7590
    %v7594 = vadd.f32 %v7582, %v7589
    %v7595 = vadd.f32 %v7583, %v7591
    %v7596 = vmul.f32 %v7535, %v42
    %v7597 = vmul.f32 %v7539, %v43
    %v7598 = vmul.f32 %v7535, %v248
    %v7599 = vmul.f32 %v7539, %v250
    %7602 = vrot.lane.b32.xlu0 %v7598, 64
    %v7603 = vpop.permute.xlu0 %7602
    %7604 = vrot.lane.b32.xlu0 %v7599, 64
    %v7605 = vpop.permute.xlu0 %7604
    %v7608 = vadd.f32 %v7596, %v7603
    %v7609 = vadd.f32 %v7597, %v7605
    %v7610 = vpack.c.bf16 %v7595, %v7594
    %v7612 = vunpack.c.l.b16 %v7610
    %v7613 = vunpack.c.h.b16 %v7610
    %v7614 = vpack.c.b16 %v7612, %v7612
    %v7615 = vpack.c.b16 %v7613, %v7613
    %v7616 = vpack.c.bf16 %v7609, %v7608
    %v7618 = vunpack.c.l.b16 %v7616
    %v7619 = vunpack.c.h.b16 %v7616
    %v7620 = vpack.c.b16 %v7618, %v7618
    %v7621 = vpack.c.b16 %v7619, %v7619
    %v7622 = vpack.c.bf16 %v7579, %v7576
    %v7624 = vunpack.c.l.b16 %v7622
    %v7625 = vunpack.c.h.b16 %v7622
    %v7626 = vpack.c.b16 %v7624, %v7624
    %v7627 = vpack.c.b16 %v7625, %v7625
    %v7629 = vsel %vm297, %v7614, 0
    %v7632 = vsel %vm297, %v7620, 0
    %7634 = vmatprep.subr.bf16.mxu0 0
    %7635 = vmatpush1.bf16.xpose.msra.mxu0 %v7632
    %7636 = vmatprep.subr.bf16.mxu0 0
    %7637 = vmatpush1.bf16.xpose.msra.mxu0 0
    %7638 = vmatprep.subr.bf16.mxu0 0
    %7639 = vmatpush1.bf16.xpose.msra.mxu0 0
    %7640 = vmatprep.subr.bf16.mxu0 0
    %7641 = vmatpush1.bf16.xpose.msra.mxu0 0
    %7642 = vmatprep.subr.bf16.mxu0 0
    %7643 = vmatpush1.bf16.xpose.msra.mxu0 0
    %7644 = vmatprep.subr.bf16.mxu0 0
    %7645 = vmatpush1.bf16.xpose.msra.mxu0 0
    %7646 = vmatprep.subr.bf16.mxu0 0
    %7647 = vmatpush1.bf16.xpose.msra.mxu0 0
    %7648 = vmatprep.subr.bf16.mxu0 0
    %7649 = vmatpush1.bf16.xpose.msra.mxu0 0
    %7650 = vmatprep.subr.bf16.mxu0 0
    %7651 = vmatpush1.bf16.xpose.msra.mxu0 0
    %7652 = vmatprep.subr.bf16.mxu0 0
    %7653 = vmatpush1.bf16.xpose.msra.mxu0 0
    %7654 = vmatprep.subr.bf16.mxu0 0
    %7655 = vmatpush1.bf16.xpose.msra.mxu0 0
    %7656 = vmatprep.subr.bf16.mxu0 0
    %7657 = vmatpush1.bf16.xpose.msra.mxu0 0
    %7658 = vmatprep.subr.bf16.mxu0 0
    %7659 = vmatpush1.bf16.xpose.msra.mxu0 0
    %7660 = vmatprep.subr.bf16.mxu0 0
    %7661 = vmatpush1.bf16.xpose.msra.mxu0 0
    %7662 = vmatprep.subr.bf16.mxu0 0
    %7663 = vmatpush1.bf16.xpose.msra.mxu0 0
    %7664 = vmatprep.subr.bf16.mxu0 0
    %7665 = vmatpush1.bf16.xpose.msra.mxu0 0
    %7666 = vmatprep.mubr.bf16.mxu0 0
    %7667 = vmatmul.mubr.bf16.gmra.mrb[0].mxu0 %v7629
    %v7668 = vpop.f32.mrb[0].mxu0
    %v7669 = vadd.f32 %v46, %v7668
    %v7670 = vpop.f32.mrb[0].mxu0
    %v7671 = vpop.f32.mrb[0].mxu0
    %v7672 = vpop.f32.mrb[0].mxu0
    %7673 = vdwg.mxu0
    %v7675 = vsel %vm297, %v7615, 0
    %v7678 = vsel %vm297, %v7621, 0
    %7680 = vmatprep.subr.bf16.mxu0 0
    %7681 = vmatpush1.bf16.xpose.msra.mxu0 %v7678
    %7682 = vmatprep.subr.bf16.mxu0 0
    %7683 = vmatpush1.bf16.xpose.msra.mxu0 0
    %7684 = vmatprep.subr.bf16.mxu0 0
    %7685 = vmatpush1.bf16.xpose.msra.mxu0 0
    %7686 = vmatprep.subr.bf16.mxu0 0
    %7687 = vmatpush1.bf16.xpose.msra.mxu0 0
    %7688 = vmatprep.subr.bf16.mxu0 0
    %7689 = vmatpush1.bf16.xpose.msra.mxu0 0
    %7690 = vmatprep.subr.bf16.mxu0 0
    %7691 = vmatpush1.bf16.xpose.msra.mxu0 0
    %7692 = vmatprep.subr.bf16.mxu0 0
    %7693 = vmatpush1.bf16.xpose.msra.mxu0 0
    %7694 = vmatprep.subr.bf16.mxu0 0
    %7695 = vmatpush1.bf16.xpose.msra.mxu0 0
    %7696 = vmatprep.subr.bf16.mxu0 0
    %7697 = vmatpush1.bf16.xpose.msra.mxu0 0
    %7698 = vmatprep.subr.bf16.mxu0 0
    %7699 = vmatpush1.bf16.xpose.msra.mxu0 0
    %7700 = vmatprep.subr.bf16.mxu0 0
    %7701 = vmatpush1.bf16.xpose.msra.mxu0 0
    %7702 = vmatprep.subr.bf16.mxu0 0
    %7703 = vmatpush1.bf16.xpose.msra.mxu0 0
    %7704 = vmatprep.subr.bf16.mxu0 0
    %7705 = vmatpush1.bf16.xpose.msra.mxu0 0
    %7706 = vmatprep.subr.bf16.mxu0 0
    %7707 = vmatpush1.bf16.xpose.msra.mxu0 0
    %7708 = vmatprep.subr.bf16.mxu0 0
    %7709 = vmatpush1.bf16.xpose.msra.mxu0 0
    %7710 = vmatprep.subr.bf16.mxu0 0
    %7711 = vmatpush1.bf16.xpose.msra.mxu0 0
    %7712 = vmatprep.mubr.bf16.mxu0 0
    %7713 = vmatmul.mubr.bf16.gmra.mrb[0].mxu0 %v7675
    %v7714 = vpop.f32.mrb[0].mxu0
    %v7715 = vadd.f32 %v47, %v7714
    %v7716 = vpop.f32.mrb[0].mxu0
    %v7717 = vpop.f32.mrb[0].mxu0
    %v7718 = vpop.f32.mrb[0].mxu0
    %7719 = vdwg.mxu0
    %v7720 = vsel %vm390, %v7669, -inf
    %7721 = vmax.xlane.f32.xlu0 %v7720
    %v7722 = vpop.xlane.xlu0 %7721
    %v7723 = vsel %vm390, %v7715, -inf
    %7724 = vmax.xlane.f32.xlu0 %v7723
    %v7725 = vpop.xlane.xlu0 %7724
    %v7726 = vsub.f32 %v7669, %v7722
    %v7727 = vsub.f32 %v7715, %v7725
    %v7728 = vmul.f32 %v7726, 1.442695
    %v7729 = vpow.pop %v7728
    %v7730 = vmul.f32 %v7727, 1.442695
    %v7731 = vpow.pop %v7730
    %v7732 = vsel %vm390, %v7729, 0.0
    %7733 = vadd.xlane.f32.xlu0 %v7732
    %v7734 = vpop.xlane.xlu0 %7733
    %v7735 = vsel %vm390, %v7731, 0.0
    %7736 = vadd.xlane.f32.xlu0 %v7735
    %v7737 = vpop.xlane.xlu0 %7736
    %v7738 = vrcp.pop %v7734
    %v7739 = vrcp.pop %v7737
    %v7740 = vmul.f32 %v7729, %v7738
    %v7741 = vmul.f32 %v7731, %v7739
    %v7742 = vpack.c.bf16 %v7740, %v7740
    %v7743 = vpack.c.bf16 %v7741, %v7741
    %v7745 = vsel %vm390, %v7742, 0
    %v7748 = vsel %vm418, %v7626, 0
    %7750 = vmatprep.subr.bf16.mxu0 0
    %7751 = vmatpush1.bf16.msra.mxu0 %v7748
    %7752 = vmatprep.subr.bf16.mxu0 0
    %7753 = vmatpush1.bf16.msra.mxu0 0
    %7754 = vmatprep.subr.bf16.mxu0 0
    %7755 = vmatpush1.bf16.msra.mxu0 0
    %7756 = vmatprep.subr.bf16.mxu0 0
    %7757 = vmatpush1.bf16.msra.mxu0 0
    %7758 = vmatprep.subr.bf16.mxu0 0
    %7759 = vmatpush1.bf16.msra.mxu0 0
    %7760 = vmatprep.subr.bf16.mxu0 0
    %7761 = vmatpush1.bf16.msra.mxu0 0
    %7762 = vmatprep.subr.bf16.mxu0 0
    %7763 = vmatpush1.bf16.msra.mxu0 0
    %7764 = vmatprep.subr.bf16.mxu0 0
    %7765 = vmatpush1.bf16.msra.mxu0 0
    %7766 = vmatprep.subr.bf16.mxu0 0
    %7767 = vmatpush1.bf16.msra.mxu0 0
    %7768 = vmatprep.subr.bf16.mxu0 0
    %7769 = vmatpush1.bf16.msra.mxu0 0
    %7770 = vmatprep.subr.bf16.mxu0 0
    %7771 = vmatpush1.bf16.msra.mxu0 0
    %7772 = vmatprep.subr.bf16.mxu0 0
    %7773 = vmatpush1.bf16.msra.mxu0 0
    %7774 = vmatprep.subr.bf16.mxu0 0
    %7775 = vmatpush1.bf16.msra.mxu0 0
    %7776 = vmatprep.subr.bf16.mxu0 0
    %7777 = vmatpush1.bf16.msra.mxu0 0
    %7778 = vmatprep.subr.bf16.mxu0 0
    %7779 = vmatpush1.bf16.msra.mxu0 0
    %7780 = vmatprep.subr.bf16.mxu0 0
    %7781 = vmatpush1.bf16.msra.mxu0 0
    %7782 = vmatprep.mubr.bf16.mxu0 0
    %7783 = vmatmul.mubr.bf16.gmra.mrb[0].mxu0 %v7745
    %v7784 = vpop.f32.mrb[0].mxu0
    %v7785 = vadd.f32 0.0, %v7784
    %v7786 = vpop.f32.mrb[0].mxu0
    %v7787 = vpop.f32.mrb[0].mxu0
    %v7788 = vpop.f32.mrb[0].mxu0
    %7789 = vdwg.mxu0
    %v7791 = vsel %vm390, %v7743, 0
    %v7794 = vsel %vm418, %v7627, 0
    %7796 = vmatprep.subr.bf16.mxu0 0
    %7797 = vmatpush1.bf16.msra.mxu0 %v7794
    %7798 = vmatprep.subr.bf16.mxu0 0
    %7799 = vmatpush1.bf16.msra.mxu0 0
    %7800 = vmatprep.subr.bf16.mxu0 0
    %7801 = vmatpush1.bf16.msra.mxu0 0
    %7802 = vmatprep.subr.bf16.mxu0 0
    %7803 = vmatpush1.bf16.msra.mxu0 0
    %7804 = vmatprep.subr.bf16.mxu0 0
    %7805 = vmatpush1.bf16.msra.mxu0 0
    %7806 = vmatprep.subr.bf16.mxu0 0
    %7807 = vmatpush1.bf16.msra.mxu0 0
    %7808 = vmatprep.subr.bf16.mxu0 0
    %7809 = vmatpush1.bf16.msra.mxu0 0
    %7810 = vmatprep.subr.bf16.mxu0 0
    %7811 = vmatpush1.bf16.msra.mxu0 0
    %7812 = vmatprep.subr.bf16.mxu0 0
    %7813 = vmatpush1.bf16.msra.mxu0 0
    %7814 = vmatprep.subr.bf16.mxu0 0
    %7815 = vmatpush1.bf16.msra.mxu0 0
    %7816 = vmatprep.subr.bf16.mxu0 0
    %7817 = vmatpush1.bf16.msra.mxu0 0
    %7818 = vmatprep.subr.bf16.mxu0 0
    %7819 = vmatpush1.bf16.msra.mxu0 0
    %7820 = vmatprep.subr.bf16.mxu0 0
    %7821 = vmatpush1.bf16.msra.mxu0 0
    %7822 = vmatprep.subr.bf16.mxu0 0
    %7823 = vmatpush1.bf16.msra.mxu0 0
    %7824 = vmatprep.subr.bf16.mxu0 0
    %7825 = vmatpush1.bf16.msra.mxu0 0
    %7826 = vmatprep.subr.bf16.mxu0 0
    %7827 = vmatpush1.bf16.msra.mxu0 0
    %7828 = vmatprep.mubr.bf16.mxu0 0
    %7829 = vmatmul.mubr.bf16.gmra.mrb[0].mxu0 %v7791
    %v7830 = vpop.f32.mrb[0].mxu0
    %v7831 = vadd.f32 0.0, %v7830
    %v7832 = vpop.f32.mrb[0].mxu0
    %v7833 = vpop.f32.mrb[0].mxu0
    %v7834 = vpop.f32.mrb[0].mxu0
    %7835 = vdwg.mxu0
    %7836 = vrot.lane.b32.xlu0 %v7614, 112
    %v7837 = vpop.permute.xlu0 %7836
    %7838 = vrot.lane.b32.xlu0 %v7620, 112
    %v7839 = vpop.permute.xlu0 %7838
    %v7841 = vsel %vm297, %v7837, 0
    %v7844 = vsel %vm297, %v7839, 0
    %7846 = vmatprep.subr.bf16.mxu0 0
    %7847 = vmatpush1.bf16.xpose.msra.mxu0 %v7844
    %7848 = vmatprep.subr.bf16.mxu0 0
    %7849 = vmatpush1.bf16.xpose.msra.mxu0 0
    %7850 = vmatprep.subr.bf16.mxu0 0
    %7851 = vmatpush1.bf16.xpose.msra.mxu0 0
    %7852 = vmatprep.subr.bf16.mxu0 0
    %7853 = vmatpush1.bf16.xpose.msra.mxu0 0
    %7854 = vmatprep.subr.bf16.mxu0 0
    %7855 = vmatpush1.bf16.xpose.msra.mxu0 0
    %7856 = vmatprep.subr.bf16.mxu0 0
    %7857 = vmatpush1.bf16.xpose.msra.mxu0 0
    %7858 = vmatprep.subr.bf16.mxu0 0
    %7859 = vmatpush1.bf16.xpose.msra.mxu0 0
    %7860 = vmatprep.subr.bf16.mxu0 0
    %7861 = vmatpush1.bf16.xpose.msra.mxu0 0
    %7862 = vmatprep.subr.bf16.mxu0 0
    %7863 = vmatpush1.bf16.xpose.msra.mxu0 0
    %7864 = vmatprep.subr.bf16.mxu0 0
    %7865 = vmatpush1.bf16.xpose.msra.mxu0 0
    %7866 = vmatprep.subr.bf16.mxu0 0
    %7867 = vmatpush1.bf16.xpose.msra.mxu0 0
    %7868 = vmatprep.subr.bf16.mxu0 0
    %7869 = vmatpush1.bf16.xpose.msra.mxu0 0
    %7870 = vmatprep.subr.bf16.mxu0 0
    %7871 = vmatpush1.bf16.xpose.msra.mxu0 0
    %7872 = vmatprep.subr.bf16.mxu0 0
    %7873 = vmatpush1.bf16.xpose.msra.mxu0 0
    %7874 = vmatprep.subr.bf16.mxu0 0
    %7875 = vmatpush1.bf16.xpose.msra.mxu0 0
    %7876 = vmatprep.subr.bf16.mxu0 0
    %7877 = vmatpush1.bf16.xpose.msra.mxu0 0
    %7878 = vmatprep.mubr.bf16.mxu0 0
    %7879 = vmatmul.mubr.bf16.gmra.mrb[0].mxu0 %v7841
    %v7880 = vpop.f32.mrb[0].mxu0
    %v7881 = vadd.f32 %v46, %v7880
    %v7882 = vpop.f32.mrb[0].mxu0
    %v7883 = vpop.f32.mrb[0].mxu0
    %v7884 = vpop.f32.mrb[0].mxu0
    %7885 = vdwg.mxu0
    %7886 = vrot.lane.b32.xlu0 %v7615, 112
    %v7887 = vpop.permute.xlu0 %7886
    %7888 = vrot.lane.b32.xlu0 %v7621, 112
    %v7889 = vpop.permute.xlu0 %7888
    %v7891 = vsel %vm297, %v7887, 0
    %v7894 = vsel %vm297, %v7889, 0
    %7896 = vmatprep.subr.bf16.mxu0 0
    %7897 = vmatpush1.bf16.xpose.msra.mxu0 %v7894
    %7898 = vmatprep.subr.bf16.mxu0 0
    %7899 = vmatpush1.bf16.xpose.msra.mxu0 0
    %7900 = vmatprep.subr.bf16.mxu0 0
    %7901 = vmatpush1.bf16.xpose.msra.mxu0 0
    %7902 = vmatprep.subr.bf16.mxu0 0
    %7903 = vmatpush1.bf16.xpose.msra.mxu0 0
    %7904 = vmatprep.subr.bf16.mxu0 0
    %7905 = vmatpush1.bf16.xpose.msra.mxu0 0
    %7906 = vmatprep.subr.bf16.mxu0 0
    %7907 = vmatpush1.bf16.xpose.msra.mxu0 0
    %7908 = vmatprep.subr.bf16.mxu0 0
    %7909 = vmatpush1.bf16.xpose.msra.mxu0 0
    %7910 = vmatprep.subr.bf16.mxu0 0
    %7911 = vmatpush1.bf16.xpose.msra.mxu0 0
    %7912 = vmatprep.subr.bf16.mxu0 0
    %7913 = vmatpush1.bf16.xpose.msra.mxu0 0
    %7914 = vmatprep.subr.bf16.mxu0 0
    %7915 = vmatpush1.bf16.xpose.msra.mxu0 0
    %7916 = vmatprep.subr.bf16.mxu0 0
    %7917 = vmatpush1.bf16.xpose.msra.mxu0 0
    %7918 = vmatprep.subr.bf16.mxu0 0
    %7919 = vmatpush1.bf16.xpose.msra.mxu0 0
    %7920 = vmatprep.subr.bf16.mxu0 0
    %7921 = vmatpush1.bf16.xpose.msra.mxu0 0
    %7922 = vmatprep.subr.bf16.mxu0 0
    %7923 = vmatpush1.bf16.xpose.msra.mxu0 0
    %7924 = vmatprep.subr.bf16.mxu0 0
    %7925 = vmatpush1.bf16.xpose.msra.mxu0 0
    %7926 = vmatprep.subr.bf16.mxu0 0
    %7927 = vmatpush1.bf16.xpose.msra.mxu0 0
    %7928 = vmatprep.mubr.bf16.mxu0 0
    %7929 = vmatmul.mubr.bf16.gmra.mrb[0].mxu0 %v7891
    %v7930 = vpop.f32.mrb[0].mxu0
    %v7931 = vadd.f32 %v47, %v7930
    %v7932 = vpop.f32.mrb[0].mxu0
    %v7933 = vpop.f32.mrb[0].mxu0
    %v7934 = vpop.f32.mrb[0].mxu0
    %7935 = vdwg.mxu0
    %v7936 = vsel %vm390, %v7881, -inf
    %7937 = vmax.xlane.f32.xlu0 %v7936
    %v7938 = vpop.xlane.xlu0 %7937
    %v7939 = vsel %vm390, %v7931, -inf
    %7940 = vmax.xlane.f32.xlu0 %v7939
    %v7941 = vpop.xlane.xlu0 %7940
    %v7942 = vsub.f32 %v7881, %v7938
    %v7943 = vsub.f32 %v7931, %v7941
    %v7944 = vmul.f32 %v7942, 1.442695
    %v7945 = vpow.pop %v7944
    %v7946 = vmul.f32 %v7943, 1.442695
    %v7947 = vpow.pop %v7946
    %v7948 = vsel %vm390, %v7945, 0.0
    %7949 = vadd.xlane.f32.xlu0 %v7948
    %v7950 = vpop.xlane.xlu0 %7949
    %v7951 = vsel %vm390, %v7947, 0.0
    %7952 = vadd.xlane.f32.xlu0 %v7951
    %v7953 = vpop.xlane.xlu0 %7952
    %v7954 = vrcp.pop %v7950
    %v7955 = vrcp.pop %v7953
    %v7956 = vmul.f32 %v7945, %v7954
    %v7957 = vmul.f32 %v7947, %v7955
    %v7958 = vpack.c.bf16 %v7956, %v7956
    %v7959 = vpack.c.bf16 %v7957, %v7957
    %7960 = vrot.lane.b32.xlu0 %v7626, 112
    %v7961 = vpop.permute.xlu0 %7960
    %v7963 = vsel %vm390, %v7958, 0
    %v7966 = vsel %vm418, %v7961, 0
    %7968 = vmatprep.subr.bf16.mxu0 0
    %7969 = vmatpush1.bf16.msra.mxu0 %v7966
    %7970 = vmatprep.subr.bf16.mxu0 0
    %7971 = vmatpush1.bf16.msra.mxu0 0
    %7972 = vmatprep.subr.bf16.mxu0 0
    %7973 = vmatpush1.bf16.msra.mxu0 0
    %7974 = vmatprep.subr.bf16.mxu0 0
    %7975 = vmatpush1.bf16.msra.mxu0 0
    %7976 = vmatprep.subr.bf16.mxu0 0
    %7977 = vmatpush1.bf16.msra.mxu0 0
    %7978 = vmatprep.subr.bf16.mxu0 0
    %7979 = vmatpush1.bf16.msra.mxu0 0
    %7980 = vmatprep.subr.bf16.mxu0 0
    %7981 = vmatpush1.bf16.msra.mxu0 0
    %7982 = vmatprep.subr.bf16.mxu0 0
    %7983 = vmatpush1.bf16.msra.mxu0 0
    %7984 = vmatprep.subr.bf16.mxu0 0
    %7985 = vmatpush1.bf16.msra.mxu0 0
    %7986 = vmatprep.subr.bf16.mxu0 0
    %7987 = vmatpush1.bf16.msra.mxu0 0
    %7988 = vmatprep.subr.bf16.mxu0 0
    %7989 = vmatpush1.bf16.msra.mxu0 0
    %7990 = vmatprep.subr.bf16.mxu0 0
    %7991 = vmatpush1.bf16.msra.mxu0 0
    %7992 = vmatprep.subr.bf16.mxu0 0
    %7993 = vmatpush1.bf16.msra.mxu0 0
    %7994 = vmatprep.subr.bf16.mxu0 0
    %7995 = vmatpush1.bf16.msra.mxu0 0
    %7996 = vmatprep.subr.bf16.mxu0 0
    %7997 = vmatpush1.bf16.msra.mxu0 0
    %7998 = vmatprep.subr.bf16.mxu0 0
    %7999 = vmatpush1.bf16.msra.mxu0 0
    %8000 = vmatprep.mubr.bf16.mxu0 0
    %8001 = vmatmul.mubr.bf16.gmra.mrb[0].mxu0 %v7963
    %v8002 = vpop.f32.mrb[0].mxu0
    %v8003 = vadd.f32 0.0, %v8002
    %v8004 = vpop.f32.mrb[0].mxu0
    %v8005 = vpop.f32.mrb[0].mxu0
    %v8006 = vpop.f32.mrb[0].mxu0
    %8007 = vdwg.mxu0
    %8008 = vrot.lane.b32.xlu0 %v7627, 112
    %v8009 = vpop.permute.xlu0 %8008
    %v8011 = vsel %vm390, %v7959, 0
    %v8014 = vsel %vm418, %v8009, 0
    %8016 = vmatprep.subr.bf16.mxu0 0
    %8017 = vmatpush1.bf16.msra.mxu0 %v8014
    %8018 = vmatprep.subr.bf16.mxu0 0
    %8019 = vmatpush1.bf16.msra.mxu0 0
    %8020 = vmatprep.subr.bf16.mxu0 0
    %8021 = vmatpush1.bf16.msra.mxu0 0
    %8022 = vmatprep.subr.bf16.mxu0 0
    %8023 = vmatpush1.bf16.msra.mxu0 0
    %8024 = vmatprep.subr.bf16.mxu0 0
    %8025 = vmatpush1.bf16.msra.mxu0 0
    %8026 = vmatprep.subr.bf16.mxu0 0
    %8027 = vmatpush1.bf16.msra.mxu0 0
    %8028 = vmatprep.subr.bf16.mxu0 0
    %8029 = vmatpush1.bf16.msra.mxu0 0
    %8030 = vmatprep.subr.bf16.mxu0 0
    %8031 = vmatpush1.bf16.msra.mxu0 0
    %8032 = vmatprep.subr.bf16.mxu0 0
    %8033 = vmatpush1.bf16.msra.mxu0 0
    %8034 = vmatprep.subr.bf16.mxu0 0
    %8035 = vmatpush1.bf16.msra.mxu0 0
    %8036 = vmatprep.subr.bf16.mxu0 0
    %8037 = vmatpush1.bf16.msra.mxu0 0
    %8038 = vmatprep.subr.bf16.mxu0 0
    %8039 = vmatpush1.bf16.msra.mxu0 0
    %8040 = vmatprep.subr.bf16.mxu0 0
    %8041 = vmatpush1.bf16.msra.mxu0 0
    %8042 = vmatprep.subr.bf16.mxu0 0
    %8043 = vmatpush1.bf16.msra.mxu0 0
    %8044 = vmatprep.subr.bf16.mxu0 0
    %8045 = vmatpush1.bf16.msra.mxu0 0
    %8046 = vmatprep.subr.bf16.mxu0 0
    %8047 = vmatpush1.bf16.msra.mxu0 0
    %8048 = vmatprep.mubr.bf16.mxu0 0
    %8049 = vmatmul.mubr.bf16.gmra.mrb[0].mxu0 %v8011
    %v8050 = vpop.f32.mrb[0].mxu0
    %v8051 = vadd.f32 0.0, %v8050
    %v8052 = vpop.f32.mrb[0].mxu0
    %v8053 = vpop.f32.mrb[0].mxu0
    %v8054 = vpop.f32.mrb[0].mxu0
    %8055 = vdwg.mxu0
    %8056 = vrot.lane.b32.xlu0 %v7614, 96
    %v8057 = vpop.permute.xlu0 %8056
    %8058 = vrot.lane.b32.xlu0 %v7620, 96
    %v8059 = vpop.permute.xlu0 %8058
    %v8061 = vsel %vm297, %v8057, 0
    %v8064 = vsel %vm297, %v8059, 0
    %8066 = vmatprep.subr.bf16.mxu0 0
    %8067 = vmatpush1.bf16.xpose.msra.mxu0 %v8064
    %8068 = vmatprep.subr.bf16.mxu0 0
    %8069 = vmatpush1.bf16.xpose.msra.mxu0 0
    %8070 = vmatprep.subr.bf16.mxu0 0
    %8071 = vmatpush1.bf16.xpose.msra.mxu0 0
    %8072 = vmatprep.subr.bf16.mxu0 0
    %8073 = vmatpush1.bf16.xpose.msra.mxu0 0
    %8074 = vmatprep.subr.bf16.mxu0 0
    %8075 = vmatpush1.bf16.xpose.msra.mxu0 0
    %8076 = vmatprep.subr.bf16.mxu0 0
    %8077 = vmatpush1.bf16.xpose.msra.mxu0 0
    %8078 = vmatprep.subr.bf16.mxu0 0
    %8079 = vmatpush1.bf16.xpose.msra.mxu0 0
    %8080 = vmatprep.subr.bf16.mxu0 0
    %8081 = vmatpush1.bf16.xpose.msra.mxu0 0
    %8082 = vmatprep.subr.bf16.mxu0 0
    %8083 = vmatpush1.bf16.xpose.msra.mxu0 0
    %8084 = vmatprep.subr.bf16.mxu0 0
    %8085 = vmatpush1.bf16.xpose.msra.mxu0 0
    %8086 = vmatprep.subr.bf16.mxu0 0
    %8087 = vmatpush1.bf16.xpose.msra.mxu0 0
    %8088 = vmatprep.subr.bf16.mxu0 0
    %8089 = vmatpush1.bf16.xpose.msra.mxu0 0
    %8090 = vmatprep.subr.bf16.mxu0 0
    %8091 = vmatpush1.bf16.xpose.msra.mxu0 0
    %8092 = vmatprep.subr.bf16.mxu0 0
    %8093 = vmatpush1.bf16.xpose.msra.mxu0 0
    %8094 = vmatprep.subr.bf16.mxu0 0
    %8095 = vmatpush1.bf16.xpose.msra.mxu0 0
    %8096 = vmatprep.subr.bf16.mxu0 0
    %8097 = vmatpush1.bf16.xpose.msra.mxu0 0
    %8098 = vmatprep.mubr.bf16.mxu0 0
    %8099 = vmatmul.mubr.bf16.gmra.mrb[0].mxu0 %v8061
    %v8100 = vpop.f32.mrb[0].mxu0
    %v8101 = vadd.f32 %v46, %v8100
    %v8102 = vpop.f32.mrb[0].mxu0
    %v8103 = vpop.f32.mrb[0].mxu0
    %v8104 = vpop.f32.mrb[0].mxu0
    %8105 = vdwg.mxu0
    %8106 = vrot.lane.b32.xlu0 %v7615, 96
    %v8107 = vpop.permute.xlu0 %8106
    %8108 = vrot.lane.b32.xlu0 %v7621, 96
    %v8109 = vpop.permute.xlu0 %8108
    %v8111 = vsel %vm297, %v8107, 0
    %v8114 = vsel %vm297, %v8109, 0
    %8116 = vmatprep.subr.bf16.mxu0 0
    %8117 = vmatpush1.bf16.xpose.msra.mxu0 %v8114
    %8118 = vmatprep.subr.bf16.mxu0 0
    %8119 = vmatpush1.bf16.xpose.msra.mxu0 0
    %8120 = vmatprep.subr.bf16.mxu0 0
    %8121 = vmatpush1.bf16.xpose.msra.mxu0 0
    %8122 = vmatprep.subr.bf16.mxu0 0
    %8123 = vmatpush1.bf16.xpose.msra.mxu0 0
    %8124 = vmatprep.subr.bf16.mxu0 0
    %8125 = vmatpush1.bf16.xpose.msra.mxu0 0
    %8126 = vmatprep.subr.bf16.mxu0 0
    %8127 = vmatpush1.bf16.xpose.msra.mxu0 0
    %8128 = vmatprep.subr.bf16.mxu0 0
    %8129 = vmatpush1.bf16.xpose.msra.mxu0 0
    %8130 = vmatprep.subr.bf16.mxu0 0
    %8131 = vmatpush1.bf16.xpose.msra.mxu0 0
    %8132 = vmatprep.subr.bf16.mxu0 0
    %8133 = vmatpush1.bf16.xpose.msra.mxu0 0
    %8134 = vmatprep.subr.bf16.mxu0 0
    %8135 = vmatpush1.bf16.xpose.msra.mxu0 0
    %8136 = vmatprep.subr.bf16.mxu0 0
    %8137 = vmatpush1.bf16.xpose.msra.mxu0 0
    %8138 = vmatprep.subr.bf16.mxu0 0
    %8139 = vmatpush1.bf16.xpose.msra.mxu0 0
    %8140 = vmatprep.subr.bf16.mxu0 0
    %8141 = vmatpush1.bf16.xpose.msra.mxu0 0
    %8142 = vmatprep.subr.bf16.mxu0 0
    %8143 = vmatpush1.bf16.xpose.msra.mxu0 0
    %8144 = vmatprep.subr.bf16.mxu0 0
    %8145 = vmatpush1.bf16.xpose.msra.mxu0 0
    %8146 = vmatprep.subr.bf16.mxu0 0
    %8147 = vmatpush1.bf16.xpose.msra.mxu0 0
    %8148 = vmatprep.mubr.bf16.mxu0 0
    %8149 = vmatmul.mubr.bf16.gmra.mrb[0].mxu0 %v8111
    %v8150 = vpop.f32.mrb[0].mxu0
    %v8151 = vadd.f32 %v47, %v8150
    %v8152 = vpop.f32.mrb[0].mxu0
    %v8153 = vpop.f32.mrb[0].mxu0
    %v8154 = vpop.f32.mrb[0].mxu0
    %8155 = vdwg.mxu0
    %v8156 = vsel %vm390, %v8101, -inf
    %8157 = vmax.xlane.f32.xlu0 %v8156
    %v8158 = vpop.xlane.xlu0 %8157
    %v8159 = vsel %vm390, %v8151, -inf
    %8160 = vmax.xlane.f32.xlu0 %v8159
    %v8161 = vpop.xlane.xlu0 %8160
    %v8162 = vsub.f32 %v8101, %v8158
    %v8163 = vsub.f32 %v8151, %v8161
    %v8164 = vmul.f32 %v8162, 1.442695
    %v8165 = vpow.pop %v8164
    %v8166 = vmul.f32 %v8163, 1.442695
    %v8167 = vpow.pop %v8166
    %v8168 = vsel %vm390, %v8165, 0.0
    %8169 = vadd.xlane.f32.xlu0 %v8168
    %v8170 = vpop.xlane.xlu0 %8169
    %v8171 = vsel %vm390, %v8167, 0.0
    %8172 = vadd.xlane.f32.xlu0 %v8171
    %v8173 = vpop.xlane.xlu0 %8172
    %v8174 = vrcp.pop %v8170
    %v8175 = vrcp.pop %v8173
    %v8176 = vmul.f32 %v8165, %v8174
    %v8177 = vmul.f32 %v8167, %v8175
    %v8178 = vpack.c.bf16 %v8176, %v8176
    %v8179 = vpack.c.bf16 %v8177, %v8177
    %8180 = vrot.lane.b32.xlu0 %v7626, 96
    %v8181 = vpop.permute.xlu0 %8180
    %v8183 = vsel %vm390, %v8178, 0
    %v8186 = vsel %vm418, %v8181, 0
    %8188 = vmatprep.subr.bf16.mxu0 0
    %8189 = vmatpush1.bf16.msra.mxu0 %v8186
    %8190 = vmatprep.subr.bf16.mxu0 0
    %8191 = vmatpush1.bf16.msra.mxu0 0
    %8192 = vmatprep.subr.bf16.mxu0 0
    %8193 = vmatpush1.bf16.msra.mxu0 0
    %8194 = vmatprep.subr.bf16.mxu0 0
    %8195 = vmatpush1.bf16.msra.mxu0 0
    %8196 = vmatprep.subr.bf16.mxu0 0
    %8197 = vmatpush1.bf16.msra.mxu0 0
    %8198 = vmatprep.subr.bf16.mxu0 0
    %8199 = vmatpush1.bf16.msra.mxu0 0
    %8200 = vmatprep.subr.bf16.mxu0 0
    %8201 = vmatpush1.bf16.msra.mxu0 0
    %8202 = vmatprep.subr.bf16.mxu0 0
    %8203 = vmatpush1.bf16.msra.mxu0 0
    %8204 = vmatprep.subr.bf16.mxu0 0
    %8205 = vmatpush1.bf16.msra.mxu0 0
    %8206 = vmatprep.subr.bf16.mxu0 0
    %8207 = vmatpush1.bf16.msra.mxu0 0
    %8208 = vmatprep.subr.bf16.mxu0 0
    %8209 = vmatpush1.bf16.msra.mxu0 0
    %8210 = vmatprep.subr.bf16.mxu0 0
    %8211 = vmatpush1.bf16.msra.mxu0 0
    %8212 = vmatprep.subr.bf16.mxu0 0
    %8213 = vmatpush1.bf16.msra.mxu0 0
    %8214 = vmatprep.subr.bf16.mxu0 0
    %8215 = vmatpush1.bf16.msra.mxu0 0
    %8216 = vmatprep.subr.bf16.mxu0 0
    %8217 = vmatpush1.bf16.msra.mxu0 0
    %8218 = vmatprep.subr.bf16.mxu0 0
    %8219 = vmatpush1.bf16.msra.mxu0 0
    %8220 = vmatprep.mubr.bf16.mxu0 0
    %8221 = vmatmul.mubr.bf16.gmra.mrb[0].mxu0 %v8183
    %v8222 = vpop.f32.mrb[0].mxu0
    %v8223 = vadd.f32 0.0, %v8222
    %v8224 = vpop.f32.mrb[0].mxu0
    %v8225 = vpop.f32.mrb[0].mxu0
    %v8226 = vpop.f32.mrb[0].mxu0
    %8227 = vdwg.mxu0
    %8228 = vrot.lane.b32.xlu0 %v7627, 96
    %v8229 = vpop.permute.xlu0 %8228
    %v8231 = vsel %vm390, %v8179, 0
    %v8234 = vsel %vm418, %v8229, 0
    %8236 = vmatprep.subr.bf16.mxu0 0
    %8237 = vmatpush1.bf16.msra.mxu0 %v8234
    %8238 = vmatprep.subr.bf16.mxu0 0
    %8239 = vmatpush1.bf16.msra.mxu0 0
    %8240 = vmatprep.subr.bf16.mxu0 0
    %8241 = vmatpush1.bf16.msra.mxu0 0
    %8242 = vmatprep.subr.bf16.mxu0 0
    %8243 = vmatpush1.bf16.msra.mxu0 0
    %8244 = vmatprep.subr.bf16.mxu0 0
    %8245 = vmatpush1.bf16.msra.mxu0 0
    %8246 = vmatprep.subr.bf16.mxu0 0
    %8247 = vmatpush1.bf16.msra.mxu0 0
    %8248 = vmatprep.subr.bf16.mxu0 0
    %8249 = vmatpush1.bf16.msra.mxu0 0
    %8250 = vmatprep.subr.bf16.mxu0 0
    %8251 = vmatpush1.bf16.msra.mxu0 0
    %8252 = vmatprep.subr.bf16.mxu0 0
    %8253 = vmatpush1.bf16.msra.mxu0 0
    %8254 = vmatprep.subr.bf16.mxu0 0
    %8255 = vmatpush1.bf16.msra.mxu0 0
    %8256 = vmatprep.subr.bf16.mxu0 0
    %8257 = vmatpush1.bf16.msra.mxu0 0
    %8258 = vmatprep.subr.bf16.mxu0 0
    %8259 = vmatpush1.bf16.msra.mxu0 0
    %8260 = vmatprep.subr.bf16.mxu0 0
    %8261 = vmatpush1.bf16.msra.mxu0 0
    %8262 = vmatprep.subr.bf16.mxu0 0
    %8263 = vmatpush1.bf16.msra.mxu0 0
    %8264 = vmatprep.subr.bf16.mxu0 0
    %8265 = vmatpush1.bf16.msra.mxu0 0
    %8266 = vmatprep.subr.bf16.mxu0 0
    %8267 = vmatpush1.bf16.msra.mxu0 0
    %8268 = vmatprep.mubr.bf16.mxu0 0
    %8269 = vmatmul.mubr.bf16.gmra.mrb[0].mxu0 %v8231
    %v8270 = vpop.f32.mrb[0].mxu0
    %v8271 = vadd.f32 0.0, %v8270
    %v8272 = vpop.f32.mrb[0].mxu0
    %v8273 = vpop.f32.mrb[0].mxu0
    %v8274 = vpop.f32.mrb[0].mxu0
    %8275 = vdwg.mxu0
    %8276 = vrot.lane.b32.xlu0 %v7614, 80
    %v8277 = vpop.permute.xlu0 %8276
    %8278 = vrot.lane.b32.xlu0 %v7620, 80
    %v8279 = vpop.permute.xlu0 %8278
    %v8281 = vsel %vm297, %v8277, 0
    %v8284 = vsel %vm297, %v8279, 0
    %8286 = vmatprep.subr.bf16.mxu0 0
    %8287 = vmatpush1.bf16.xpose.msra.mxu0 %v8284
    %8288 = vmatprep.subr.bf16.mxu0 0
    %8289 = vmatpush1.bf16.xpose.msra.mxu0 0
    %8290 = vmatprep.subr.bf16.mxu0 0
    %8291 = vmatpush1.bf16.xpose.msra.mxu0 0
    %8292 = vmatprep.subr.bf16.mxu0 0
    %8293 = vmatpush1.bf16.xpose.msra.mxu0 0
    %8294 = vmatprep.subr.bf16.mxu0 0
    %8295 = vmatpush1.bf16.xpose.msra.mxu0 0
    %8296 = vmatprep.subr.bf16.mxu0 0
    %8297 = vmatpush1.bf16.xpose.msra.mxu0 0
    %8298 = vmatprep.subr.bf16.mxu0 0
    %8299 = vmatpush1.bf16.xpose.msra.mxu0 0
    %8300 = vmatprep.subr.bf16.mxu0 0
    %8301 = vmatpush1.bf16.xpose.msra.mxu0 0
    %8302 = vmatprep.subr.bf16.mxu0 0
    %8303 = vmatpush1.bf16.xpose.msra.mxu0 0
    %8304 = vmatprep.subr.bf16.mxu0 0
    %8305 = vmatpush1.bf16.xpose.msra.mxu0 0
    %8306 = vmatprep.subr.bf16.mxu0 0
    %8307 = vmatpush1.bf16.xpose.msra.mxu0 0
    %8308 = vmatprep.subr.bf16.mxu0 0
    %8309 = vmatpush1.bf16.xpose.msra.mxu0 0
    %8310 = vmatprep.subr.bf16.mxu0 0
    %8311 = vmatpush1.bf16.xpose.msra.mxu0 0
    %8312 = vmatprep.subr.bf16.mxu0 0
    %8313 = vmatpush1.bf16.xpose.msra.mxu0 0
    %8314 = vmatprep.subr.bf16.mxu0 0
    %8315 = vmatpush1.bf16.xpose.msra.mxu0 0
    %8316 = vmatprep.subr.bf16.mxu0 0
    %8317 = vmatpush1.bf16.xpose.msra.mxu0 0
    %8318 = vmatprep.mubr.bf16.mxu0 0
    %8319 = vmatmul.mubr.bf16.gmra.mrb[0].mxu0 %v8281
    %v8320 = vpop.f32.mrb[0].mxu0
    %v8321 = vadd.f32 %v46, %v8320
    %v8322 = vpop.f32.mrb[0].mxu0
    %v8323 = vpop.f32.mrb[0].mxu0
    %v8324 = vpop.f32.mrb[0].mxu0
    %8325 = vdwg.mxu0
    %8326 = vrot.lane.b32.xlu0 %v7615, 80
    %v8327 = vpop.permute.xlu0 %8326
    %8328 = vrot.lane.b32.xlu0 %v7621, 80
    %v8329 = vpop.permute.xlu0 %8328
    %v8331 = vsel %vm297, %v8327, 0
    %v8334 = vsel %vm297, %v8329, 0
    %8336 = vmatprep.subr.bf16.mxu0 0
    %8337 = vmatpush1.bf16.xpose.msra.mxu0 %v8334
    %8338 = vmatprep.subr.bf16.mxu0 0
    %8339 = vmatpush1.bf16.xpose.msra.mxu0 0
    %8340 = vmatprep.subr.bf16.mxu0 0
    %8341 = vmatpush1.bf16.xpose.msra.mxu0 0
    %8342 = vmatprep.subr.bf16.mxu0 0
    %8343 = vmatpush1.bf16.xpose.msra.mxu0 0
    %8344 = vmatprep.subr.bf16.mxu0 0
    %8345 = vmatpush1.bf16.xpose.msra.mxu0 0
    %8346 = vmatprep.subr.bf16.mxu0 0
    %8347 = vmatpush1.bf16.xpose.msra.mxu0 0
    %8348 = vmatprep.subr.bf16.mxu0 0
    %8349 = vmatpush1.bf16.xpose.msra.mxu0 0
    %8350 = vmatprep.subr.bf16.mxu0 0
    %8351 = vmatpush1.bf16.xpose.msra.mxu0 0
    %8352 = vmatprep.subr.bf16.mxu0 0
    %8353 = vmatpush1.bf16.xpose.msra.mxu0 0
    %8354 = vmatprep.subr.bf16.mxu0 0
    %8355 = vmatpush1.bf16.xpose.msra.mxu0 0
    %8356 = vmatprep.subr.bf16.mxu0 0
    %8357 = vmatpush1.bf16.xpose.msra.mxu0 0
    %8358 = vmatprep.subr.bf16.mxu0 0
    %8359 = vmatpush1.bf16.xpose.msra.mxu0 0
    %8360 = vmatprep.subr.bf16.mxu0 0
    %8361 = vmatpush1.bf16.xpose.msra.mxu0 0
    %8362 = vmatprep.subr.bf16.mxu0 0
    %8363 = vmatpush1.bf16.xpose.msra.mxu0 0
    %8364 = vmatprep.subr.bf16.mxu0 0
    %8365 = vmatpush1.bf16.xpose.msra.mxu0 0
    %8366 = vmatprep.subr.bf16.mxu0 0
    %8367 = vmatpush1.bf16.xpose.msra.mxu0 0
    %8368 = vmatprep.mubr.bf16.mxu0 0
    %8369 = vmatmul.mubr.bf16.gmra.mrb[0].mxu0 %v8331
    %v8370 = vpop.f32.mrb[0].mxu0
    %v8371 = vadd.f32 %v47, %v8370
    %v8372 = vpop.f32.mrb[0].mxu0
    %v8373 = vpop.f32.mrb[0].mxu0
    %v8374 = vpop.f32.mrb[0].mxu0
    %8375 = vdwg.mxu0
    %v8376 = vsel %vm390, %v8321, -inf
    %8377 = vmax.xlane.f32.xlu0 %v8376
    %v8378 = vpop.xlane.xlu0 %8377
    %v8379 = vsel %vm390, %v8371, -inf
    %8380 = vmax.xlane.f32.xlu0 %v8379
    %v8381 = vpop.xlane.xlu0 %8380
    %v8382 = vsub.f32 %v8321, %v8378
    %v8383 = vsub.f32 %v8371, %v8381
    %v8384 = vmul.f32 %v8382, 1.442695
    %v8385 = vpow.pop %v8384
    %v8386 = vmul.f32 %v8383, 1.442695
    %v8387 = vpow.pop %v8386
    %v8388 = vsel %vm390, %v8385, 0.0
    %8389 = vadd.xlane.f32.xlu0 %v8388
    %v8390 = vpop.xlane.xlu0 %8389
    %v8391 = vsel %vm390, %v8387, 0.0
    %8392 = vadd.xlane.f32.xlu0 %v8391
    %v8393 = vpop.xlane.xlu0 %8392
    %v8394 = vrcp.pop %v8390
    %v8395 = vrcp.pop %v8393
    %v8396 = vmul.f32 %v8385, %v8394
    %v8397 = vmul.f32 %v8387, %v8395
    %v8398 = vpack.c.bf16 %v8396, %v8396
    %v8399 = vpack.c.bf16 %v8397, %v8397
    %8400 = vrot.lane.b32.xlu0 %v7626, 80
    %v8401 = vpop.permute.xlu0 %8400
    %v8403 = vsel %vm390, %v8398, 0
    %v8406 = vsel %vm418, %v8401, 0
    %8408 = vmatprep.subr.bf16.mxu0 0
    %8409 = vmatpush1.bf16.msra.mxu0 %v8406
    %8410 = vmatprep.subr.bf16.mxu0 0
    %8411 = vmatpush1.bf16.msra.mxu0 0
    %8412 = vmatprep.subr.bf16.mxu0 0
    %8413 = vmatpush1.bf16.msra.mxu0 0
    %8414 = vmatprep.subr.bf16.mxu0 0
    %8415 = vmatpush1.bf16.msra.mxu0 0
    %8416 = vmatprep.subr.bf16.mxu0 0
    %8417 = vmatpush1.bf16.msra.mxu0 0
    %8418 = vmatprep.subr.bf16.mxu0 0
    %8419 = vmatpush1.bf16.msra.mxu0 0
    %8420 = vmatprep.subr.bf16.mxu0 0
    %8421 = vmatpush1.bf16.msra.mxu0 0
    %8422 = vmatprep.subr.bf16.mxu0 0
    %8423 = vmatpush1.bf16.msra.mxu0 0
    %8424 = vmatprep.subr.bf16.mxu0 0
    %8425 = vmatpush1.bf16.msra.mxu0 0
    %8426 = vmatprep.subr.bf16.mxu0 0
    %8427 = vmatpush1.bf16.msra.mxu0 0
    %8428 = vmatprep.subr.bf16.mxu0 0
    %8429 = vmatpush1.bf16.msra.mxu0 0
    %8430 = vmatprep.subr.bf16.mxu0 0
    %8431 = vmatpush1.bf16.msra.mxu0 0
    %8432 = vmatprep.subr.bf16.mxu0 0
    %8433 = vmatpush1.bf16.msra.mxu0 0
    %8434 = vmatprep.subr.bf16.mxu0 0
    %8435 = vmatpush1.bf16.msra.mxu0 0
    %8436 = vmatprep.subr.bf16.mxu0 0
    %8437 = vmatpush1.bf16.msra.mxu0 0
    %8438 = vmatprep.subr.bf16.mxu0 0
    %8439 = vmatpush1.bf16.msra.mxu0 0
    %8440 = vmatprep.mubr.bf16.mxu0 0
    %8441 = vmatmul.mubr.bf16.gmra.mrb[0].mxu0 %v8403
    %v8442 = vpop.f32.mrb[0].mxu0
    %v8443 = vadd.f32 0.0, %v8442
    %v8444 = vpop.f32.mrb[0].mxu0
    %v8445 = vpop.f32.mrb[0].mxu0
    %v8446 = vpop.f32.mrb[0].mxu0
    %8447 = vdwg.mxu0
    %8448 = vrot.lane.b32.xlu0 %v7627, 80
    %v8449 = vpop.permute.xlu0 %8448
    %v8451 = vsel %vm390, %v8399, 0
    %v8454 = vsel %vm418, %v8449, 0
    %8456 = vmatprep.subr.bf16.mxu0 0
    %8457 = vmatpush1.bf16.msra.mxu0 %v8454
    %8458 = vmatprep.subr.bf16.mxu0 0
    %8459 = vmatpush1.bf16.msra.mxu0 0
    %8460 = vmatprep.subr.bf16.mxu0 0
    %8461 = vmatpush1.bf16.msra.mxu0 0
    %8462 = vmatprep.subr.bf16.mxu0 0
    %8463 = vmatpush1.bf16.msra.mxu0 0
    %8464 = vmatprep.subr.bf16.mxu0 0
    %8465 = vmatpush1.bf16.msra.mxu0 0
    %8466 = vmatprep.subr.bf16.mxu0 0
    %8467 = vmatpush1.bf16.msra.mxu0 0
    %8468 = vmatprep.subr.bf16.mxu0 0
    %8469 = vmatpush1.bf16.msra.mxu0 0
    %8470 = vmatprep.subr.bf16.mxu0 0
    %8471 = vmatpush1.bf16.msra.mxu0 0
    %8472 = vmatprep.subr.bf16.mxu0 0
    %8473 = vmatpush1.bf16.msra.mxu0 0
    %8474 = vmatprep.subr.bf16.mxu0 0
    %8475 = vmatpush1.bf16.msra.mxu0 0
    %8476 = vmatprep.subr.bf16.mxu0 0
    %8477 = vmatpush1.bf16.msra.mxu0 0
    %8478 = vmatprep.subr.bf16.mxu0 0
    %8479 = vmatpush1.bf16.msra.mxu0 0
    %8480 = vmatprep.subr.bf16.mxu0 0
    %8481 = vmatpush1.bf16.msra.mxu0 0
    %8482 = vmatprep.subr.bf16.mxu0 0
    %8483 = vmatpush1.bf16.msra.mxu0 0
    %8484 = vmatprep.subr.bf16.mxu0 0
    %8485 = vmatpush1.bf16.msra.mxu0 0
    %8486 = vmatprep.subr.bf16.mxu0 0
    %8487 = vmatpush1.bf16.msra.mxu0 0
    %8488 = vmatprep.mubr.bf16.mxu0 0
    %8489 = vmatmul.mubr.bf16.gmra.mrb[0].mxu0 %v8451
    %v8490 = vpop.f32.mrb[0].mxu0
    %v8491 = vadd.f32 0.0, %v8490
    %v8492 = vpop.f32.mrb[0].mxu0
    %v8493 = vpop.f32.mrb[0].mxu0
    %v8494 = vpop.f32.mrb[0].mxu0
    %8495 = vdwg.mxu0
    %8498 = vrot.lane.b32.xlu0 %v8003, 16
    %v8499 = vpop.permute.xlu0 %8498
    %8500 = vrot.lane.b32.xlu0 %v8051, 16
    %v8501 = vpop.permute.xlu0 %8500
    %8506 = vrot.lane.b32.xlu0 %v8223, 32
    %v8507 = vpop.permute.xlu0 %8506
    %8508 = vrot.lane.b32.xlu0 %v8271, 32
    %v8509 = vpop.permute.xlu0 %8508
    %8514 = vrot.lane.b32.xlu0 %v8443, 48
    %v8515 = vpop.permute.xlu0 %8514
    %8516 = vrot.lane.b32.xlu0 %v8491, 48
    %v8517 = vpop.permute.xlu0 %8516
    %v8520 = vsel %vm297, %v7785, %v8499
    %v8521 = vsel %vm297, %v7831, %v8501
    %v8522 = vsel %vm1194, %v8520, %v8507
    %v8523 = vsel %vm1194, %v8521, %v8509
    %v8524 = vsel %vm1197, %v8522, %v8515
    %v8525 = vsel %vm1197, %v8523, %v8517
    %v8526 = vpack.c.bf16 %v8525, %v8524
    %s8527 = scalar_lea.vmem %s6, 160
    %v8528 = vld [vmem:[%s8527] sm:$0xf]
    %v8529 = vld [vmem:[%s8527 + $0x4] sm:$0xf]
    %v8530 = vld [vmem:[%s8527 + $0x8] sm:$0xf]
    %v8531 = vld [vmem:[%s8527 + $0xc] sm:$0xf]
    %v8532 = vld [vmem:[%s8527 + $0x10] sm:$0xf]
    %v8533 = vld [vmem:[%s8527 + $0x14] sm:$0xf]
    %v8534 = vld [vmem:[%s8527 + $0x18] sm:$0xf]
    %v8535 = vld [vmem:[%s8527 + $0x1c] sm:$0xf]
    %v8544 = vunpack.c.l.b16 %v8528
    %v8545 = vunpack.c.l.b16 %v8529
    %v8546 = vunpack.c.l.b16 %v8530
    %v8547 = vunpack.c.l.b16 %v8531
    %v8548 = vunpack.c.l.b16 %v8532
    %v8549 = vunpack.c.l.b16 %v8533
    %v8550 = vunpack.c.l.b16 %v8534
    %v8551 = vunpack.c.l.b16 %v8535
    %v8552 = vpack.c.b16 %v8545, %v8544
    %v8553 = vpack.c.b16 %v8547, %v8546
    %v8554 = vpack.c.b16 %v8549, %v8548
    %v8555 = vpack.c.b16 %v8551, %v8550
    %v8561 = vsel %vm51, %v8526, 0
    %8563 = vmatprep.subr.bf16.mxu0 0
    %8564 = vmatpush1.bf16.msra.mxu0 %v8552
    %8565 = vmatprep.subr.bf16.mxu0 0
    %8566 = vmatpush1.bf16.msra.mxu0 %v8553
    %8567 = vmatprep.subr.bf16.mxu0 0
    %8568 = vmatpush1.bf16.msra.mxu0 %v8554
    %8569 = vmatprep.subr.bf16.mxu0 0
    %8570 = vmatpush1.bf16.msra.mxu0 %v8555
    %8571 = vmatprep.subr.bf16.mxu0 0
    %8572 = vmatpush1.bf16.msra.mxu0 0
    %8573 = vmatprep.subr.bf16.mxu0 0
    %8574 = vmatpush1.bf16.msra.mxu0 0
    %8575 = vmatprep.subr.bf16.mxu0 0
    %8576 = vmatpush1.bf16.msra.mxu0 0
    %8577 = vmatprep.subr.bf16.mxu0 0
    %8578 = vmatpush1.bf16.msra.mxu0 0
    %8579 = vmatprep.subr.bf16.mxu0 0
    %8580 = vmatpush1.bf16.msra.mxu0 0
    %8581 = vmatprep.subr.bf16.mxu0 0
    %8582 = vmatpush1.bf16.msra.mxu0 0
    %8583 = vmatprep.subr.bf16.mxu0 0
    %8584 = vmatpush1.bf16.msra.mxu0 0
    %8585 = vmatprep.subr.bf16.mxu0 0
    %8586 = vmatpush1.bf16.msra.mxu0 0
    %8587 = vmatprep.subr.bf16.mxu0 0
    %8588 = vmatpush1.bf16.msra.mxu0 0
    %8589 = vmatprep.subr.bf16.mxu0 0
    %8590 = vmatpush1.bf16.msra.mxu0 0
    %8591 = vmatprep.subr.bf16.mxu0 0
    %8592 = vmatpush1.bf16.msra.mxu0 0
    %8593 = vmatprep.subr.bf16.mxu0 0
    %8594 = vmatpush1.bf16.msra.mxu0 0
    %8595 = vmatprep.mubr.bf16.mxu0 0
    %8596 = vmatmul.mubr.bf16.gmra.mrb[0].mxu0 %v8561
    %v8597 = vpop.f32.mrb[0].mxu0
    %v8598 = vadd.f32 0.0, %v8597
    %v8599 = vpop.f32.mrb[0].mxu0
    %v8600 = vpop.f32.mrb[0].mxu0
    %v8601 = vadd.f32 0.0, %v8600
    %v8602 = vpop.f32.mrb[0].mxu0
    %8603 = vdwg.mxu0
    %v8604 = vadd.f32 %v7385, %v8598
    %v8605 = vadd.f32 %v7386, %v8601
    %s8606 = scalar_lea.vmem %s7, 5
    %v8607 = vld [vmem:[%s8606] sm:$0x1]
    %v8608 = vmul.f32 %v8604, %v8604
    %v8609 = vmul.f32 %v8605, %v8605
    %v8610 = vsel %vm51, %v8608, 0.0
    %8611 = vadd.xlane.f32.xlu0 %v8610
    %v8612 = vpop.xlane.xlu0 %8611
    %v8613 = vsel %vm51, %v8609, 0.0
    %8614 = vadd.xlane.f32.xlu0 %v8613
    %v8615 = vpop.xlane.xlu0 %8614
    %v8616 = vmul.f32 %v8612, %v58
    %v8617 = vmul.f32 %v8615, %v58
    %v8618 = vadd.f32 %v8616, 1e-06
    %v8619 = vadd.f32 %v8617, 1e-06
    %v8620 = vrsqrt.pop %v8618
    %v8621 = vrsqrt.pop %v8619
    %v8622 = vmul.f32 %v8604, %v8620
    %v8623 = vmul.f32 %v8605, %v8621
    %v8625 = vlaneseq
    %v8626 = vshrl.u32 %v8625, 7
    %v8627 = vsub.s32 0, %v8626
    %v8628 = vrot.slane %v8607, %v8627
    %v8630 = vmul.f32 %v8622, %v8628
    %v8631 = vmul.f32 %v8623, %v8628
    %v8632 = vpack.c.bf16 %v8631, %v8630
    %s8633 = scalar_lea.vmem %s8, 320
    %v8634 = vld [vmem:[%s8633] sm:$0xff]
    %v8635 = vld [vmem:[%s8633 + $0x8] sm:$0xff]
    %v8636 = vld [vmem:[%s8633 + $0x10] sm:$0xff]
    %v8637 = vld [vmem:[%s8633 + $0x18] sm:$0xff]
    %v8638 = vld [vmem:[%s8633 + $0x20] sm:$0xff]
    %v8639 = vld [vmem:[%s8633 + $0x28] sm:$0xff]
    %v8640 = vld [vmem:[%s8633 + $0x30] sm:$0xff]
    %v8641 = vld [vmem:[%s8633 + $0x38] sm:$0xff]
    %v8650 = vunpack.c.l.b16 %v8634
    %v8651 = vunpack.c.h.b16 %v8634
    %v8652 = vunpack.c.l.b16 %v8635
    %v8653 = vunpack.c.h.b16 %v8635
    %v8654 = vunpack.c.l.b16 %v8636
    %v8655 = vunpack.c.h.b16 %v8636
    %v8656 = vunpack.c.l.b16 %v8637
    %v8657 = vunpack.c.h.b16 %v8637
    %v8658 = vunpack.c.l.b16 %v8638
    %v8659 = vunpack.c.h.b16 %v8638
    %v8660 = vunpack.c.l.b16 %v8639
    %v8661 = vunpack.c.h.b16 %v8639
    %v8662 = vunpack.c.l.b16 %v8640
    %v8663 = vunpack.c.h.b16 %v8640
    %v8664 = vunpack.c.l.b16 %v8641
    %v8665 = vunpack.c.h.b16 %v8641
    %v8666 = vpack.c.b16 %v8652, %v8650
    %v8667 = vpack.c.b16 %v8653, %v8651
    %v8668 = vpack.c.b16 %v8656, %v8654
    %v8669 = vpack.c.b16 %v8657, %v8655
    %v8670 = vpack.c.b16 %v8660, %v8658
    %v8671 = vpack.c.b16 %v8661, %v8659
    %v8672 = vpack.c.b16 %v8664, %v8662
    %v8673 = vpack.c.b16 %v8665, %v8663
    %v8683 = vsel %vm51, %v8632, 0
    %8685 = vmatprep.subr.bf16.mxu0 %v8667
    %8686 = vmatpush1.bf16.msra.mxu0 %v8666
    %8687 = vmatprep.subr.bf16.mxu0 %v8669
    %8688 = vmatpush1.bf16.msra.mxu0 %v8668
    %8689 = vmatprep.subr.bf16.mxu0 %v8671
    %8690 = vmatpush1.bf16.msra.mxu0 %v8670
    %8691 = vmatprep.subr.bf16.mxu0 %v8673
    %8692 = vmatpush1.bf16.msra.mxu0 %v8672
    %8693 = vmatprep.subr.bf16.mxu0 0
    %8694 = vmatpush1.bf16.msra.mxu0 0
    %8695 = vmatprep.subr.bf16.mxu0 0
    %8696 = vmatpush1.bf16.msra.mxu0 0
    %8697 = vmatprep.subr.bf16.mxu0 0
    %8698 = vmatpush1.bf16.msra.mxu0 0
    %8699 = vmatprep.subr.bf16.mxu0 0
    %8700 = vmatpush1.bf16.msra.mxu0 0
    %8701 = vmatprep.subr.bf16.mxu0 0
    %8702 = vmatpush1.bf16.msra.mxu0 0
    %8703 = vmatprep.subr.bf16.mxu0 0
    %8704 = vmatpush1.bf16.msra.mxu0 0
    %8705 = vmatprep.subr.bf16.mxu0 0
    %8706 = vmatpush1.bf16.msra.mxu0 0
    %8707 = vmatprep.subr.bf16.mxu0 0
    %8708 = vmatpush1.bf16.msra.mxu0 0
    %8709 = vmatprep.subr.bf16.mxu0 0
    %8710 = vmatpush1.bf16.msra.mxu0 0
    %8711 = vmatprep.subr.bf16.mxu0 0
    %8712 = vmatpush1.bf16.msra.mxu0 0
    %8713 = vmatprep.subr.bf16.mxu0 0
    %8714 = vmatpush1.bf16.msra.mxu0 0
    %8715 = vmatprep.subr.bf16.mxu0 0
    %8716 = vmatpush1.bf16.msra.mxu0 0
    %8717 = vmatprep.mubr.bf16.mxu0 0
    %8718 = vmatmul.mubr.bf16.gmra.mrb[0].mxu0 %v8683
    %v8719 = vpop.f32.mrb[0].mxu0
    %v8720 = vadd.f32 0.0, %v8719
    %v8721 = vpop.f32.mrb[0].mxu0
    %v8722 = vadd.f32 0.0, %v8721
    %v8723 = vpop.f32.mrb[0].mxu0
    %v8724 = vadd.f32 0.0, %v8723
    %v8725 = vpop.f32.mrb[0].mxu0
    %v8726 = vadd.f32 0.0, %v8725
    %8727 = vdwg.mxu0
    %v8728 = vxor.u32 %v8720, 2147483648
    %v8729 = vxor.u32 %v8724, 2147483648
    %v8730 = vmul.f32 %v8728, 1.442695
    %v8731 = vpow.pop %v8730
    %v8732 = vmul.f32 %v8729, 1.442695
    %v8733 = vpow.pop %v8732
    %v8734 = vadd.f32 %v8731, 1.0
    %v8735 = vadd.f32 %v8733, 1.0
    %v8736 = vrcp.pop %v8734
    %v8737 = vmul.f32 1.0, %v8736
    %v8738 = vrcp.pop %v8735
    %v8739 = vmul.f32 1.0, %v8738
    %v8740 = vmul.f32 %v8720, %v8737
    %v8741 = vmul.f32 %v8724, %v8739
    %v8742 = vmul.f32 %v8740, %v8722
    %v8743 = vmul.f32 %v8741, %v8726
    %v8744 = vpack.c.bf16 %v8743, %v8742
    %s8745 = scalar_lea.vmem %s9, 320
    %v8746 = vld [vmem:[%s8745] sm:$0xf]
    %v8747 = vld [vmem:[%s8745 + $0x4] sm:$0xf]
    %v8748 = vld [vmem:[%s8745 + $0x8] sm:$0xf]
    %v8749 = vld [vmem:[%s8745 + $0xc] sm:$0xf]
    %v8750 = vld [vmem:[%s8745 + $0x10] sm:$0xf]
    %v8751 = vld [vmem:[%s8745 + $0x14] sm:$0xf]
    %v8752 = vld [vmem:[%s8745 + $0x18] sm:$0xf]
    %v8753 = vld [vmem:[%s8745 + $0x1c] sm:$0xf]
    %v8754 = vld [vmem:[%s8745 + $0x20] sm:$0xf]
    %v8755 = vld [vmem:[%s8745 + $0x24] sm:$0xf]
    %v8756 = vld [vmem:[%s8745 + $0x28] sm:$0xf]
    %v8757 = vld [vmem:[%s8745 + $0x2c] sm:$0xf]
    %v8758 = vld [vmem:[%s8745 + $0x30] sm:$0xf]
    %v8759 = vld [vmem:[%s8745 + $0x34] sm:$0xf]
    %v8760 = vld [vmem:[%s8745 + $0x38] sm:$0xf]
    %v8761 = vld [vmem:[%s8745 + $0x3c] sm:$0xf]
    %v8778 = vunpack.c.l.b16 %v8746
    %v8779 = vunpack.c.l.b16 %v8747
    %v8780 = vunpack.c.l.b16 %v8748
    %v8781 = vunpack.c.l.b16 %v8749
    %v8782 = vunpack.c.l.b16 %v8750
    %v8783 = vunpack.c.l.b16 %v8751
    %v8784 = vunpack.c.l.b16 %v8752
    %v8785 = vunpack.c.l.b16 %v8753
    %v8786 = vunpack.c.l.b16 %v8754
    %v8787 = vunpack.c.l.b16 %v8755
    %v8788 = vunpack.c.l.b16 %v8756
    %v8789 = vunpack.c.l.b16 %v8757
    %v8790 = vunpack.c.l.b16 %v8758
    %v8791 = vunpack.c.l.b16 %v8759
    %v8792 = vunpack.c.l.b16 %v8760
    %v8793 = vunpack.c.l.b16 %v8761
    %v8794 = vpack.c.b16 %v8779, %v8778
    %v8795 = vpack.c.b16 %v8781, %v8780
    %v8796 = vpack.c.b16 %v8783, %v8782
    %v8797 = vpack.c.b16 %v8785, %v8784
    %v8798 = vpack.c.b16 %v8787, %v8786
    %v8799 = vpack.c.b16 %v8789, %v8788
    %v8800 = vpack.c.b16 %v8791, %v8790
    %v8801 = vpack.c.b16 %v8793, %v8792
    %8810 = vmatprep.subr.bf16.mxu0 0
    %8811 = vmatpush1.bf16.msra.mxu0 %v8794
    %8812 = vmatprep.subr.bf16.mxu0 0
    %8813 = vmatpush1.bf16.msra.mxu0 %v8795
    %8814 = vmatprep.subr.bf16.mxu0 0
    %8815 = vmatpush1.bf16.msra.mxu0 %v8796
    %8816 = vmatprep.subr.bf16.mxu0 0
    %8817 = vmatpush1.bf16.msra.mxu0 %v8797
    %8818 = vmatprep.subr.bf16.mxu0 0
    %8819 = vmatpush1.bf16.msra.mxu0 %v8798
    %8820 = vmatprep.subr.bf16.mxu0 0
    %8821 = vmatpush1.bf16.msra.mxu0 %v8799
    %8822 = vmatprep.subr.bf16.mxu0 0
    %8823 = vmatpush1.bf16.msra.mxu0 %v8800
    %8824 = vmatprep.subr.bf16.mxu0 0
    %8825 = vmatpush1.bf16.msra.mxu0 %v8801
    %8826 = vmatprep.subr.bf16.mxu0 0
    %8827 = vmatpush1.bf16.msra.mxu0 0
    %8828 = vmatprep.subr.bf16.mxu0 0
    %8829 = vmatpush1.bf16.msra.mxu0 0
    %8830 = vmatprep.subr.bf16.mxu0 0
    %8831 = vmatpush1.bf16.msra.mxu0 0
    %8832 = vmatprep.subr.bf16.mxu0 0
    %8833 = vmatpush1.bf16.msra.mxu0 0
    %8834 = vmatprep.subr.bf16.mxu0 0
    %8835 = vmatpush1.bf16.msra.mxu0 0
    %8836 = vmatprep.subr.bf16.mxu0 0
    %8837 = vmatpush1.bf16.msra.mxu0 0
    %8838 = vmatprep.subr.bf16.mxu0 0
    %8839 = vmatpush1.bf16.msra.mxu0 0
    %8840 = vmatprep.subr.bf16.mxu0 0
    %8841 = vmatpush1.bf16.msra.mxu0 0
    %8842 = vmatprep.mubr.bf16.mxu0 0
    %8843 = vmatmul.mubr.bf16.gmra.mrb[0].mxu0 %v8744
    %v8844 = vpop.f32.mrb[0].mxu0
    %v8845 = vadd.f32 0.0, %v8844
    %v8846 = vpop.f32.mrb[0].mxu0
    %v8847 = vpop.f32.mrb[0].mxu0
    %v8848 = vadd.f32 0.0, %v8847
    %v8849 = vpop.f32.mrb[0].mxu0
    %8850 = vdwg.mxu0
    %v8851 = vadd.f32 %v8604, %v8845
    %v8852 = vadd.f32 %v8605, %v8848
    %v8853 = vld [vmem:[%s10] sm:$0x1]
    %v8854 = vmul.f32 %v8851, %v8851
    %v8855 = vmul.f32 %v8852, %v8852
    %v8856 = vsel %vm51, %v8854, 0.0
    %8857 = vadd.xlane.f32.xlu0 %v8856
    %v8858 = vpop.xlane.xlu0 %8857
    %v8859 = vsel %vm51, %v8855, 0.0
    %8860 = vadd.xlane.f32.xlu0 %v8859
    %v8861 = vpop.xlane.xlu0 %8860
    %v8862 = vmul.f32 %v8858, %v58
    %v8863 = vmul.f32 %v8861, %v58
    %v8864 = vadd.f32 %v8862, 1e-06
    %v8865 = vadd.f32 %v8863, 1e-06
    %v8866 = vrsqrt.pop %v8864
    %v8867 = vrsqrt.pop %v8865
    %v8868 = vmul.f32 %v8851, %v8866
    %v8869 = vmul.f32 %v8852, %v8867
    %v8871 = vlaneseq
    %v8872 = vshrl.u32 %v8871, 7
    %v8873 = vsub.s32 0, %v8872
    %v8874 = vrot.slane %v8853, %v8873
    %v8876 = vmul.f32 %v8868, %v8874
    %v8877 = vmul.f32 %v8869, %v8874
    %8878 = vst.msk [vmem:[#allocation2] sm:$0xff] %vm51, %v8876
    %8879 = vst.msk [vmem:[#allocation2 + $0x8] sm:$0xff] %vm51, %v8877
    // Predicated region
    $region46: #{llama_sub_model_forward.1} parent=1 // pred_check
      _
    $region47: #{llama_sub_model_forward.1} parent=1 // pred_check_branch
      %8881 = sbr.rel (0) target = $region49
    $region48: #{llama_sub_model_forward.1} parent=1 // pred_region
      %s8883 = ssub.s32 256, 256
      %8884 = vsyncadd [#allocation3], %s8883
      %s8885 = sshll.u32 [#allocation2], 4
      %s8886 = int_to_ptr.vmem [resolvable:$true] %s8885
      %8891 = dma.vmem_to_hbm [thread:$0]  %s8886, 256, %s11, [#allocation3], 128, 128, 8
    $region49: #{llama_sub_model_forward.1} parent=1 // pred_fallthru
      _
    // Predicated region
    $region50: #{llama_sub_model_forward.1} parent=1 // pred_check
      _
    $region51: #{llama_sub_model_forward.1} parent=1 // pred_check_branch
      %8893 = sbr.rel (0) target = $region53
    $region52: #{llama_sub_model_forward.1} parent=1 // pred_region
      %8894 = dma.done [#allocation3], 256
    $region53: #{llama_sub_model_forward.1} parent=1 // pred_fallthru
      _
    %8895 = vsyncpa [#allocation3], 1

</llo_original>
